<compile_context>
chip_gen: v7x
topology: tpu7x:2x2x1
jax: 0.10.0
libtpu: 0.0.40
codegen_flags: <defaults>
</compile_context>

<pallas_src>
import jax
import jax.numpy as jnp
from jax.experimental import pallas as pl
from jax.experimental.pallas import tpu as pltpu

INPUT_SIZE = 10
HIDDEN = 128
NUM_LAYERS = 2
TARGET_SIZE = 4  # ['meantemp', 'humidity', 'wind_speed', 'meanpressure']


# ---------------------------------------------------------------------------
# Fused kernel: 2-layer bidirectional LSTM (time-major, batched projections)
# + collapsed MLP head.  Gate order follows PyTorch: i, f, g, o.
# ---------------------------------------------------------------------------
def _fused_lstm_mlp_kernel(
    x_ref,          # (T*Bp, 10)  bf16   time-major, flattened
    wih1_ref,       # (10, 8H)    bf16   [W_ih fwd | W_ih bwd] layer 1
    b1_ref,         # (1, 8H)     f32    [b fwd | b bwd] layer 1
    whh1f_ref,      # (H, 4H)     bf16
    whh1b_ref,      # (H, 4H)     bf16
    wih2_hbm,       # (2H, 8H)    bf16   HBM (overlapped DMA)
    whh2f_hbm,      # (H, 4H)     bf16   HBM (overlapped DMA)
    b2_ref,         # (1, 8H)     f32
    whead_ref,      # (2H, 4)     bf16   collapsed w1@w2@w3
    bhead_ref,      # (1, 4)      f32    folded head bias
    o_ref,          # (Bp, 4)     f32
    g1_scr,         # (T*Bp, 8H)  f32    layer-1 gate pre-activations
    h1_scr,         # (T*Bp, 2H)  f32    layer-1 outputs [fwd | bwd]
    g2_scr,         # (T*Bp, 8H)  f32    layer-2 gate pre-activations
    wih2_vmem,      # (2H, 8H)    bf16   DMA landing buffer
    whh2f_vmem,     # (H, 4H)     bf16   DMA landing buffer
    dma_sem,        # DMA semaphores (2,)
):
    TB = x_ref.shape[0]
    H = whh1f_ref.shape[0]
    Bp = o_ref.shape[0]
    T = TB // Bp
    f32 = jnp.float32
    bf16 = jnp.bfloat16

    def dot(a, b):
        return jnp.dot(a, b, preferred_element_type=f32)

    def cell(gates, c):
        # gates/c are f32; element-wise math stays f32 (v5e-friendly).
        i = jax.nn.sigmoid(gates[:, 0 * H:1 * H])
        f = jax.nn.sigmoid(gates[:, 1 * H:2 * H])
        g = jnp.tanh(gates[:, 2 * H:3 * H])
        o = jax.nn.sigmoid(gates[:, 3 * H:4 * H])
        c_new = f * c + i * g
        return o * jnp.tanh(c_new), c_new

    # ---- Kick off layer-2 weight DMAs; they complete under layer-1 compute.
    cp_wih2 = pltpu.make_async_copy(wih2_hbm, wih2_vmem, dma_sem.at[0])
    cp_whh2 = pltpu.make_async_copy(whh2f_hbm, whh2f_vmem, dma_sem.at[1])
    cp_wih2.start()
    cp_whh2.start()

    # ---- Layer-1 batched input projection (bias folded, broadcast once). ----
    g1_scr[...] = dot(x_ref[...], wih1_ref[...]) + b1_ref[...]

    zeros = jnp.zeros((Bp, H), f32)

    # ---- Layer 1: fwd & bwd recurrences fused in one loop (independent
    # chains; bwd direction handled by reversed indexing, no data reversal).
    h_f, c_f = zeros, zeros
    h_b, c_b = zeros, zeros
    for t in range(T):
        tb = T - 1 - t
        gf = g1_scr[t * Bp:(t + 1) * Bp, 0:4 * H] \
            + dot(h_f.astype(bf16), whh1f_ref[...])
        gb = g1_scr[tb * Bp:(tb + 1) * Bp, 4 * H:8 * H] \
            + dot(h_b.astype(bf16), whh1b_ref[...])
        h_f, c_f = cell(gf, c_f)
        h_b, c_b = cell(gb, c_b)
        h1_scr[t * Bp:(t + 1) * Bp, 0:H] = h_f          # fwd half
        h1_scr[tb * Bp:(tb + 1) * Bp, H:2 * H] = h_b    # bwd half

    # ---- Layer-2 batched input projection (wait for the overlapped DMA). ----
    cp_wih2.wait()
    cp_whh2.wait()
    g2_scr[...] = dot(h1_scr[...].astype(bf16), wih2_vmem[...]) + b2_ref[...]

    # ---- Layer 2, forward recurrence: only the final hidden state matters.
    h2, c2 = zeros, zeros
    for t in range(T):
        g = g2_scr[t * Bp:(t + 1) * Bp, 0:4 * H] \
            + dot(h2.astype(bf16), whh2f_vmem[...])
        h2, c2 = cell(g, c2)

    # ---- Layer 2, backward direction: output at original t=T-1 is the bwd
    # chain's FIRST step (h0=c0=0), so one cell and no W_hh term at all.
    h2b, _ = cell(g2_scr[(T - 1) * Bp:T * Bp, 4 * H:8 * H], zeros)

    # ---- Collapsed head: [h2_fwd || h2_bwd] @ (w1@w2@w3) + folded bias.
    # Concat avoided by splitting the head matrix rows.
    out = (dot(h2.astype(bf16), whead_ref[0:H, :])
           + dot(h2b.astype(bf16), whead_ref[H:2 * H, :])
           + bhead_ref[...])
    o_ref[...] = out.astype(o_ref.dtype)


# ---------------------------------------------------------------------------
# Full forward pass: one pallas_call for the whole network.
# ---------------------------------------------------------------------------
@jax.jit
def lstm_model_forward(x, params):
    # x: (B, T, 10) batch_first, like the PyTorch module.
    B, T, _ = x.shape
    Bp = max(8, ((B + 7) // 8) * 8)          # pad batch to the f32 sublane tile
    if Bp != B:
        x = jnp.pad(x, ((0, Bp - B), (0, 0), (0, 0)))

    bf16 = jnp.bfloat16
    seq = jnp.transpose(x, (1, 0, 2)).astype(bf16)       # (T, Bp, 10) time-major
    x_flat = seq.reshape(T * Bp, INPUT_SIZE)

    p1f = params["lstm"][0]["fwd"]
    p1b = params["lstm"][0]["bwd"]
    p2f = params["lstm"][1]["fwd"]
    p2b = params["lstm"][1]["bwd"]

    # Lane-concatenated (fwd | bwd) weights, bf16 matmul operands, f32 biases.
    wih1 = jnp.concatenate([p1f["wih_t"], p1b["wih_t"]], axis=1).astype(bf16)   # (10, 8H)
    b1 = jnp.concatenate([p1f["b"], p1b["b"]], axis=1)                          # (1, 8H)
    whh1f = p1f["whh_t"].astype(bf16)                                           # (H, 4H)
    whh1b = p1b["whh_t"].astype(bf16)
    wih2 = jnp.concatenate([p2f["wih_t"], p2b["wih_t"]], axis=1).astype(bf16)   # (2H, 8H)
    b2 = jnp.concatenate([p2f["b"], p2b["b"]], axis=1)                          # (1, 8H)
    whh2f = p2f["whh_t"].astype(bf16)                                           # (H, 4H)

    # Collapse the activation-free 3-layer head (Dropout = identity in eval).
    w_head = (params["w1"] @ params["w2"] @ params["w3"]).astype(bf16)          # (2H, 4)
    b_head = (params["b1"] @ params["w2"] + params["b2"]) @ params["w3"] \
        + params["b3"]                                                          # (1, 4)

    H = HIDDEN
    vmem = pl.BlockSpec(memory_space=pltpu.MemorySpace.VMEM)
    hbm = pl.BlockSpec(memory_space=pl.ANY)

    out = pl.pallas_call(
        _fused_lstm_mlp_kernel,
        out_shape=jax.ShapeDtypeStruct((Bp, TARGET_SIZE), jnp.float32),
        in_specs=[
            vmem,   # x_flat
            vmem,   # wih1
            vmem,   # b1
            vmem,   # whh1f
            vmem,   # whh1b
            hbm,    # wih2   (DMA overlapped with layer-1 compute)
            hbm,    # whh2f  (DMA overlapped with layer-1 compute)
            vmem,   # b2
            vmem,   # w_head
            vmem,   # b_head
        ],
        out_specs=pl.BlockSpec(memory_space=pltpu.MemorySpace.VMEM),
        scratch_shapes=[
            pltpu.VMEM((T * Bp, 8 * H), jnp.float32),    # g1 gate pre-activations
            pltpu.VMEM((T * Bp, 2 * H), jnp.float32),    # h1 [fwd | bwd]
            pltpu.VMEM((T * Bp, 8 * H), jnp.float32),    # g2 gate pre-activations
            pltpu.VMEM((2 * H, 8 * H), bf16),            # wih2 landing buffer
            pltpu.VMEM((H, 4 * H), bf16),                # whh2f landing buffer
            pltpu.SemaphoreType.DMA((2,)),
        ],
    )(x_flat, wih1, b1, whh1f, whh1b, wih2, whh2f, b2, w_head, b_head)

    return out[:B]


# ---------------------------------------------------------------------------
# Parameter construction (deterministic; mirrors nn.LSTM / nn.Linear shapes)
# ---------------------------------------------------------------------------
def init_params(key):
    params = {"lstm": []}
    scale = 1.0 / jnp.sqrt(jnp.float32(HIDDEN))

    def rnd(key, shape):
        return jax.random.uniform(key, shape, jnp.float32, -scale, scale)

    keys = iter(jax.random.split(key, 64))
    for layer in range(NUM_LAYERS):
        d_in = INPUT_SIZE if layer == 0 else 2 * HIDDEN
        layer_p = {}
        for direction in ("fwd", "bwd"):
            w_ih = rnd(next(keys), (4 * HIDDEN, d_in))     # PyTorch shape
            w_hh = rnd(next(keys), (4 * HIDDEN, HIDDEN))
            b_ih = rnd(next(keys), (4 * HIDDEN,))
            b_hh = rnd(next(keys), (4 * HIDDEN,))
            layer_p[direction] = {
                "wih_t": w_ih.T,                            # (d_in, 4H)
                "whh_t": w_hh.T,                            # (H, 4H)
                "b": (b_ih + b_hh).reshape(1, 4 * HIDDEN),  # (1, 4H)
            }
        params["lstm"].append(layer_p)

    def linear(key, n_out, n_in):
        k1, k2 = jax.random.split(key)
        s = 1.0 / jnp.sqrt(jnp.float32(n_in))
        w = jax.random.uniform(k1, (n_out, n_in), jnp.float32, -s, s)
        b = jax.random.uniform(k2, (n_out,), jnp.float32, -s, s)
        return w.T, b.reshape(1, n_out)

    params["w1"], params["b1"] = linear(next(keys), 64, 2 * HIDDEN)
    params["w2"], params["b2"] = linear(next(keys), 8, 64)
    params["w3"], params["b3"] = linear(next(keys), TARGET_SIZE, 8)
    return params


# ---------------------------------------------------------------------------
# Pure-JAX reference: full, un-shortcut computation (sequence reversal,
# fwd||bwd concat, 3 separate Linears).  Uses the same bf16-quantized LSTM
# weights / input as the kernel so the check isolates structural correctness.
# ---------------------------------------------------------------------------
def _ref_forward(x, params):
    def q(w):  # mimic the kernel's bf16 weight / input storage
        return w.astype(jnp.bfloat16).astype(jnp.float32)

    def direction(seq, p):
        T, B, _ = seq.shape
        H = HIDDEN
        h = jnp.zeros((B, H), jnp.float32)
        c = jnp.zeros((B, H), jnp.float32)
        outs = []
        for t in range(T):
            g = seq[t] @ q(p["wih_t"]) + h @ q(p["whh_t"]) + p["b"]
            i = jax.nn.sigmoid(g[:, 0 * H:1 * H])
            f = jax.nn.sigmoid(g[:, 1 * H:2 * H])
            gg = jnp.tanh(g[:, 2 * H:3 * H])
            o = jax.nn.sigmoid(g[:, 3 * H:4 * H])
            c = f * c + i * gg
            h = o * jnp.tanh(c)
            outs.append(h)
        return jnp.stack(outs, axis=0)

    seq = jnp.transpose(q(x), (1, 0, 2))
    for layer in range(NUM_LAYERS):
        p = params["lstm"][layer]
        fwd = direction(seq, p["fwd"])
        bwd = direction(seq[::-1], p["bwd"])[::-1]
        seq = jnp.concatenate([fwd, bwd], axis=-1)
    last = seq[-1]                      # Dropout(0.5) is identity in eval mode
    h1 = last @ params["w1"] + params["b1"]
    h2 = h1 @ params["w2"] + params["b2"]
    return h2 @ params["w3"] + params["b3"]


if __name__ == "__main__":
    key = jax.random.PRNGKey(0)
    k_param, k_x = jax.random.split(key)

    batch, seq_len = 2, 8
    x = jax.random.normal(k_x, (batch, seq_len, INPUT_SIZE), jnp.float32)
    params = init_params(k_param)

    out = lstm_model_forward(x, params)
    out = jax.block_until_ready(out)
    assert out.shape == (batch, TARGET_SIZE)

    ref = _ref_forward(x, params)
    # bf16 matmul operands + head folding => loose-but-meaningful tolerance.
    assert jnp.allclose(out, ref, atol=2e-2, rtol=2e-2), (out, ref)

    print("KERNEL_OK")
</pallas_src>

<mosaic_0001>
module attributes {stable_mosaic.version = 11 : i64} {
  func.func @_fused_lstm_mlp_kernel(%arg0: memref<64x10xbf16, #tpu.memory_space<vmem>>, %arg1: memref<10x1024xbf16, #tpu.memory_space<vmem>>, %arg2: memref<1x1024xf32, #tpu.memory_space<vmem>>, %arg3: memref<128x512xbf16, #tpu.memory_space<vmem>>, %arg4: memref<128x512xbf16, #tpu.memory_space<vmem>>, %arg5: memref<256x1024xbf16, #tpu.memory_space<any>>, %arg6: memref<128x512xbf16, #tpu.memory_space<any>>, %arg7: memref<1x1024xf32, #tpu.memory_space<vmem>>, %arg8: memref<256x4xbf16, #tpu.memory_space<vmem>>, %arg9: memref<1x4xf32, #tpu.memory_space<vmem>>, %arg10: memref<8x4xf32, #tpu.memory_space<vmem>>, %arg11: memref<64x1024xf32, #tpu.memory_space<vmem>>, %arg12: memref<64x256xf32, #tpu.memory_space<vmem>>, %arg13: memref<64x1024xf32, #tpu.memory_space<vmem>>, %arg14: memref<256x1024xbf16, #tpu.memory_space<vmem>>, %arg15: memref<128x512xbf16, #tpu.memory_space<vmem>>, %arg16: memref<2x!tpu.dma_semaphore, #tpu.memory_space<semaphore_mem>>) attributes {dimension_semantics = [], scalar_prefetch = 0 : i64, scratch_operands = 6 : i64, tpu.core_type = #tpu.core_type<tc>} {
    %c0_i32 = arith.constant 0 : i32
    %0 = tpu.memref_slice %arg16[%c0_i32] : memref<2x!tpu.dma_semaphore, #tpu.memory_space<semaphore_mem>> -> memref<1x!tpu.dma_semaphore, #tpu.memory_space<semaphore_mem>>
    %1 = tpu.memref_squeeze %0 : memref<1x!tpu.dma_semaphore, #tpu.memory_space<semaphore_mem>> -> memref<!tpu.dma_semaphore, #tpu.memory_space<semaphore_mem>>
    tpu.enqueue_dma source(%arg5 : memref<256x1024xbf16, #tpu.memory_space<any>>) target(%arg14 : memref<256x1024xbf16, #tpu.memory_space<vmem>>) target_semaphore(%1 : memref<!tpu.dma_semaphore, #tpu.memory_space<semaphore_mem>>)
    %c1_i32 = arith.constant 1 : i32
    %2 = tpu.memref_slice %arg16[%c1_i32] : memref<2x!tpu.dma_semaphore, #tpu.memory_space<semaphore_mem>> -> memref<1x!tpu.dma_semaphore, #tpu.memory_space<semaphore_mem>>
    %3 = tpu.memref_squeeze %2 : memref<1x!tpu.dma_semaphore, #tpu.memory_space<semaphore_mem>> -> memref<!tpu.dma_semaphore, #tpu.memory_space<semaphore_mem>>
    tpu.enqueue_dma source(%arg6 : memref<128x512xbf16, #tpu.memory_space<any>>) target(%arg15 : memref<128x512xbf16, #tpu.memory_space<vmem>>) target_semaphore(%3 : memref<!tpu.dma_semaphore, #tpu.memory_space<semaphore_mem>>)
    %c0 = arith.constant 0 : index
    %c0_0 = arith.constant 0 : index
    %4 = vector.load %arg0[%c0, %c0_0] : memref<64x10xbf16, #tpu.memory_space<vmem>>, vector<64x10xbf16>
    %c0_1 = arith.constant 0 : index
    %c0_2 = arith.constant 0 : index
    %5 = vector.load %arg1[%c0_1, %c0_2] : memref<10x1024xbf16, #tpu.memory_space<vmem>>, vector<10x1024xbf16>
    %cst = arith.constant dense<0.000000e+00> : vector<64x1024xf32>
    %6 = tpu.matmul %4, %5, %cst {dimension_numbers = #tpu.dot_dimension_numbers<[1], [0], [0], [1], [0, 0, 1, 1], [], []>} : vector<64x10xbf16>, vector<10x1024xbf16>, vector<64x1024xf32> -> vector<64x1024xf32>
    %c0_3 = arith.constant 0 : index
    %c0_4 = arith.constant 0 : index
    %7 = vector.load %arg2[%c0_3, %c0_4] : memref<1x1024xf32, #tpu.memory_space<vmem>>, vector<1x1024xf32>
    %8 = vector.broadcast %7 : vector<1x1024xf32> to vector<64x1024xf32>
    %9 = arith.addf %6, %8 : vector<64x1024xf32>
    %c0_5 = arith.constant 0 : index
    %c0_6 = arith.constant 0 : index
    %10 = vector.load %arg11[%c0_5, %c0_6] : memref<64x1024xf32, #tpu.memory_space<vmem>>, vector<64x1024xf32>
    tpu.vector_store %arg11[%c0_5, %c0_6], %9 {strides = array<i32>} : memref<64x1024xf32, #tpu.memory_space<vmem>>, vector<64x1024xf32>,
    %cst_7 = arith.constant 0.000000e+00 : f32
    %11 = vector.broadcast %cst_7 : f32 to vector<8x128xf32>
    %c0_8 = arith.constant 0 : index
    %c0_9 = arith.constant 0 : index
    %12 = vector.load %arg11[%c0_8, %c0_9] : memref<64x1024xf32, #tpu.memory_space<vmem>>, vector<8x512xf32>
    %13 = arith.truncf %11 : vector<8x128xf32> to vector<8x128xbf16>
    %c0_10 = arith.constant 0 : index
    %c0_11 = arith.constant 0 : index
    %14 = vector.load %arg3[%c0_10, %c0_11] : memref<128x512xbf16, #tpu.memory_space<vmem>>, vector<128x512xbf16>
    %cst_12 = arith.constant dense<0.000000e+00> : vector<8x512xf32>
    %15 = tpu.matmul %13, %14, %cst_12 {dimension_numbers = #tpu.dot_dimension_numbers<[1], [0], [0], [1], [0, 0, 1, 1], [], []>} : vector<8x128xbf16>, vector<128x512xbf16>, vector<8x512xf32> -> vector<8x512xf32>
    %16 = arith.addf %12, %15 : vector<8x512xf32>
    %c56 = arith.constant 56 : index
    %c512 = arith.constant 512 : index
    %17 = vector.load %arg11[%c56, %c512] : memref<64x1024xf32, #tpu.memory_space<vmem>>, vector<8x512xf32>
    %18 = arith.truncf %11 : vector<8x128xf32> to vector<8x128xbf16>
    %c0_13 = arith.constant 0 : index
    %c0_14 = arith.constant 0 : index
    %19 = vector.load %arg4[%c0_13, %c0_14] : memref<128x512xbf16, #tpu.memory_space<vmem>>, vector<128x512xbf16>
    %cst_15 = arith.constant dense<0.000000e+00> : vector<8x512xf32>
    %20 = tpu.matmul %18, %19, %cst_15 {dimension_numbers = #tpu.dot_dimension_numbers<[1], [0], [0], [1], [0, 0, 1, 1], [], []>} : vector<8x128xbf16>, vector<128x512xbf16>, vector<8x512xf32> -> vector<8x512xf32>
    %21 = arith.addf %17, %20 : vector<8x512xf32>
    %22 = vector.extract_strided_slice %16 {offsets = [0, 0], sizes = [8, 128], strides = [1, 1]} : vector<8x512xf32> to vector<8x128xf32>
    %23 = arith.negf %22 : vector<8x128xf32>
    %24 = math.exp %23 : vector<8x128xf32>
    %cst_16 = arith.constant 1.000000e+00 : f32
    %25 = vector.broadcast %cst_16 : f32 to vector<8x128xf32>
    %26 = arith.addf %25, %24 : vector<8x128xf32>
    %27 = arith.divf %25, %26 : vector<8x128xf32>
    %28 = vector.extract_strided_slice %16 {offsets = [0, 128], sizes = [8, 128], strides = [1, 1]} : vector<8x512xf32> to vector<8x128xf32>
    %29 = arith.negf %28 : vector<8x128xf32>
    %30 = math.exp %29 : vector<8x128xf32>
    %cst_17 = arith.constant 1.000000e+00 : f32
    %31 = vector.broadcast %cst_17 : f32 to vector<8x128xf32>
    %32 = arith.addf %31, %30 : vector<8x128xf32>
    %33 = arith.divf %31, %32 : vector<8x128xf32>
    %34 = vector.extract_strided_slice %16 {offsets = [0, 256], sizes = [8, 128], strides = [1, 1]} : vector<8x512xf32> to vector<8x128xf32>
    %35 = math.tanh %34 : vector<8x128xf32>
    %36 = vector.extract_strided_slice %16 {offsets = [0, 384], sizes = [8, 128], strides = [1, 1]} : vector<8x512xf32> to vector<8x128xf32>
    %37 = arith.negf %36 : vector<8x128xf32>
    %38 = math.exp %37 : vector<8x128xf32>
    %cst_18 = arith.constant 1.000000e+00 : f32
    %39 = vector.broadcast %cst_18 : f32 to vector<8x128xf32>
    %40 = arith.addf %39, %38 : vector<8x128xf32>
    %41 = arith.divf %39, %40 : vector<8x128xf32>
    %42 = arith.mulf %33, %11 : vector<8x128xf32>
    %43 = arith.mulf %27, %35 : vector<8x128xf32>
    %44 = arith.addf %42, %43 : vector<8x128xf32>
    %45 = math.tanh %44 : vector<8x128xf32>
    %46 = arith.mulf %41, %45 : vector<8x128xf32>
    %47 = vector.extract_strided_slice %21 {offsets = [0, 0], sizes = [8, 128], strides = [1, 1]} : vector<8x512xf32> to vector<8x128xf32>
    %48 = arith.negf %47 : vector<8x128xf32>
    %49 = math.exp %48 : vector<8x128xf32>
    %cst_19 = arith.constant 1.000000e+00 : f32
    %50 = vector.broadcast %cst_19 : f32 to vector<8x128xf32>
    %51 = arith.addf %50, %49 : vector<8x128xf32>
    %52 = arith.divf %50, %51 : vector<8x128xf32>
    %53 = vector.extract_strided_slice %21 {offsets = [0, 128], sizes = [8, 128], strides = [1, 1]} : vector<8x512xf32> to vector<8x128xf32>
    %54 = arith.negf %53 : vector<8x128xf32>
    %55 = math.exp %54 : vector<8x128xf32>
    %cst_20 = arith.constant 1.000000e+00 : f32
    %56 = vector.broadcast %cst_20 : f32 to vector<8x128xf32>
    %57 = arith.addf %56, %55 : vector<8x128xf32>
    %58 = arith.divf %56, %57 : vector<8x128xf32>
    %59 = vector.extract_strided_slice %21 {offsets = [0, 256], sizes = [8, 128], strides = [1, 1]} : vector<8x512xf32> to vector<8x128xf32>
    %60 = math.tanh %59 : vector<8x128xf32>
    %61 = vector.extract_strided_slice %21 {offsets = [0, 384], sizes = [8, 128], strides = [1, 1]} : vector<8x512xf32> to vector<8x128xf32>
    %62 = arith.negf %61 : vector<8x128xf32>
    %63 = math.exp %62 : vector<8x128xf32>
    %cst_21 = arith.constant 1.000000e+00 : f32
    %64 = vector.broadcast %cst_21 : f32 to vector<8x128xf32>
    %65 = arith.addf %64, %63 : vector<8x128xf32>
    %66 = arith.divf %64, %65 : vector<8x128xf32>
    %67 = arith.mulf %58, %11 : vector<8x128xf32>
    %68 = arith.mulf %52, %60 : vector<8x128xf32>
    %69 = arith.addf %67, %68 : vector<8x128xf32>
    %70 = math.tanh %69 : vector<8x128xf32>
    %71 = arith.mulf %66, %70 : vector<8x128xf32>
    %c0_22 = arith.constant 0 : index
    %c0_23 = arith.constant 0 : index
    %72 = vector.load %arg12[%c0_22, %c0_23] : memref<64x256xf32, #tpu.memory_space<vmem>>, vector<8x128xf32>
    tpu.vector_store %arg12[%c0_22, %c0_23], %46 {strides = array<i32>} : memref<64x256xf32, #tpu.memory_space<vmem>>, vector<8x128xf32>,
    %c56_24 = arith.constant 56 : index
    %c128 = arith.constant 128 : index
    %73 = vector.load %arg12[%c56_24, %c128] : memref<64x256xf32, #tpu.memory_space<vmem>>, vector<8x128xf32>
    tpu.vector_store %arg12[%c56_24, %c128], %71 {strides = array<i32>} : memref<64x256xf32, #tpu.memory_space<vmem>>, vector<8x128xf32>,
    %c8 = arith.constant 8 : index
    %c0_25 = arith.constant 0 : index
    %74 = vector.load %arg11[%c8, %c0_25] : memref<64x1024xf32, #tpu.memory_space<vmem>>, vector<8x512xf32>
    %75 = arith.truncf %46 : vector<8x128xf32> to vector<8x128xbf16>
    %c0_26 = arith.constant 0 : index
    %c0_27 = arith.constant 0 : index
    %76 = vector.load %arg3[%c0_26, %c0_27] : memref<128x512xbf16, #tpu.memory_space<vmem>>, vector<128x512xbf16>
    %cst_28 = arith.constant dense<0.000000e+00> : vector<8x512xf32>
    %77 = tpu.matmul %75, %76, %cst_28 {dimension_numbers = #tpu.dot_dimension_numbers<[1], [0], [0], [1], [0, 0, 1, 1], [], []>} : vector<8x128xbf16>, vector<128x512xbf16>, vector<8x512xf32> -> vector<8x512xf32>
    %78 = arith.addf %74, %77 : vector<8x512xf32>
    %c48 = arith.constant 48 : index
    %c512_29 = arith.constant 512 : index
    %79 = vector.load %arg11[%c48, %c512_29] : memref<64x1024xf32, #tpu.memory_space<vmem>>, vector<8x512xf32>
    %80 = arith.truncf %71 : vector<8x128xf32> to vector<8x128xbf16>
    %c0_30 = arith.constant 0 : index
    %c0_31 = arith.constant 0 : index
    %81 = vector.load %arg4[%c0_30, %c0_31] : memref<128x512xbf16, #tpu.memory_space<vmem>>, vector<128x512xbf16>
    %cst_32 = arith.constant dense<0.000000e+00> : vector<8x512xf32>
    %82 = tpu.matmul %80, %81, %cst_32 {dimension_numbers = #tpu.dot_dimension_numbers<[1], [0], [0], [1], [0, 0, 1, 1], [], []>} : vector<8x128xbf16>, vector<128x512xbf16>, vector<8x512xf32> -> vector<8x512xf32>
    %83 = arith.addf %79, %82 : vector<8x512xf32>
    %84 = vector.extract_strided_slice %78 {offsets = [0, 0], sizes = [8, 128], strides = [1, 1]} : vector<8x512xf32> to vector<8x128xf32>
    %85 = arith.negf %84 : vector<8x128xf32>
    %86 = math.exp %85 : vector<8x128xf32>
    %cst_33 = arith.constant 1.000000e+00 : f32
    %87 = vector.broadcast %cst_33 : f32 to vector<8x128xf32>
    %88 = arith.addf %87, %86 : vector<8x128xf32>
    %89 = arith.divf %87, %88 : vector<8x128xf32>
    %90 = vector.extract_strided_slice %78 {offsets = [0, 128], sizes = [8, 128], strides = [1, 1]} : vector<8x512xf32> to vector<8x128xf32>
    %91 = arith.negf %90 : vector<8x128xf32>
    %92 = math.exp %91 : vector<8x128xf32>
    %cst_34 = arith.constant 1.000000e+00 : f32
    %93 = vector.broadcast %cst_34 : f32 to vector<8x128xf32>
    %94 = arith.addf %93, %92 : vector<8x128xf32>
    %95 = arith.divf %93, %94 : vector<8x128xf32>
    %96 = vector.extract_strided_slice %78 {offsets = [0, 256], sizes = [8, 128], strides = [1, 1]} : vector<8x512xf32> to vector<8x128xf32>
    %97 = math.tanh %96 : vector<8x128xf32>
    %98 = vector.extract_strided_slice %78 {offsets = [0, 384], sizes = [8, 128], strides = [1, 1]} : vector<8x512xf32> to vector<8x128xf32>
    %99 = arith.negf %98 : vector<8x128xf32>
    %100 = math.exp %99 : vector<8x128xf32>
    %cst_35 = arith.constant 1.000000e+00 : f32
    %101 = vector.broadcast %cst_35 : f32 to vector<8x128xf32>
    %102 = arith.addf %101, %100 : vector<8x128xf32>
    %103 = arith.divf %101, %102 : vector<8x128xf32>
    %104 = arith.mulf %95, %44 : vector<8x128xf32>
    %105 = arith.mulf %89, %97 : vector<8x128xf32>
    %106 = arith.addf %104, %105 : vector<8x128xf32>
    %107 = math.tanh %106 : vector<8x128xf32>
    %108 = arith.mulf %103, %107 : vector<8x128xf32>
    %109 = vector.extract_strided_slice %83 {offsets = [0, 0], sizes = [8, 128], strides = [1, 1]} : vector<8x512xf32> to vector<8x128xf32>
    %110 = arith.negf %109 : vector<8x128xf32>
    %111 = math.exp %110 : vector<8x128xf32>
    %cst_36 = arith.constant 1.000000e+00 : f32
    %112 = vector.broadcast %cst_36 : f32 to vector<8x128xf32>
    %113 = arith.addf %112, %111 : vector<8x128xf32>
    %114 = arith.divf %112, %113 : vector<8x128xf32>
    %115 = vector.extract_strided_slice %83 {offsets = [0, 128], sizes = [8, 128], strides = [1, 1]} : vector<8x512xf32> to vector<8x128xf32>
    %116 = arith.negf %115 : vector<8x128xf32>
    %117 = math.exp %116 : vector<8x128xf32>
    %cst_37 = arith.constant 1.000000e+00 : f32
    %118 = vector.broadcast %cst_37 : f32 to vector<8x128xf32>
    %119 = arith.addf %118, %117 : vector<8x128xf32>
    %120 = arith.divf %118, %119 : vector<8x128xf32>
    %121 = vector.extract_strided_slice %83 {offsets = [0, 256], sizes = [8, 128], strides = [1, 1]} : vector<8x512xf32> to vector<8x128xf32>
    %122 = math.tanh %121 : vector<8x128xf32>
    %123 = vector.extract_strided_slice %83 {offsets = [0, 384], sizes = [8, 128], strides = [1, 1]} : vector<8x512xf32> to vector<8x128xf32>
    %124 = arith.negf %123 : vector<8x128xf32>
    %125 = math.exp %124 : vector<8x128xf32>
    %cst_38 = arith.constant 1.000000e+00 : f32
    %126 = vector.broadcast %cst_38 : f32 to vector<8x128xf32>
    %127 = arith.addf %126, %125 : vector<8x128xf32>
    %128 = arith.divf %126, %127 : vector<8x128xf32>
    %129 = arith.mulf %120, %69 : vector<8x128xf32>
    %130 = arith.mulf %114, %122 : vector<8x128xf32>
    %131 = arith.addf %129, %130 : vector<8x128xf32>
    %132 = math.tanh %131 : vector<8x128xf32>
    %133 = arith.mulf %128, %132 : vector<8x128xf32>
    %c8_39 = arith.constant 8 : index
    %c0_40 = arith.constant 0 : index
    %134 = vector.load %arg12[%c8_39, %c0_40] : memref<64x256xf32, #tpu.memory_space<vmem>>, vector<8x128xf32>
    tpu.vector_store %arg12[%c8_39, %c0_40], %108 {strides = array<i32>} : memref<64x256xf32, #tpu.memory_space<vmem>>, vector<8x128xf32>,
    %c48_41 = arith.constant 48 : index
    %c128_42 = arith.constant 128 : index
    %135 = vector.load %arg12[%c48_41, %c128_42] : memref<64x256xf32, #tpu.memory_space<vmem>>, vector<8x128xf32>
    tpu.vector_store %arg12[%c48_41, %c128_42], %133 {strides = array<i32>} : memref<64x256xf32, #tpu.memory_space<vmem>>, vector<8x128xf32>,
    %c16 = arith.constant 16 : index
    %c0_43 = arith.constant 0 : index
    %136 = vector.load %arg11[%c16, %c0_43] : memref<64x1024xf32, #tpu.memory_space<vmem>>, vector<8x512xf32>
    %137 = arith.truncf %108 : vector<8x128xf32> to vector<8x128xbf16>
    %c0_44 = arith.constant 0 : index
    %c0_45 = arith.constant 0 : index
    %138 = vector.load %arg3[%c0_44, %c0_45] : memref<128x512xbf16, #tpu.memory_space<vmem>>, vector<128x512xbf16>
    %cst_46 = arith.constant dense<0.000000e+00> : vector<8x512xf32>
    %139 = tpu.matmul %137, %138, %cst_46 {dimension_numbers = #tpu.dot_dimension_numbers<[1], [0], [0], [1], [0, 0, 1, 1], [], []>} : vector<8x128xbf16>, vector<128x512xbf16>, vector<8x512xf32> -> vector<8x512xf32>
    %140 = arith.addf %136, %139 : vector<8x512xf32>
    %c40 = arith.constant 40 : index
    %c512_47 = arith.constant 512 : index
    %141 = vector.load %arg11[%c40, %c512_47] : memref<64x1024xf32, #tpu.memory_space<vmem>>, vector<8x512xf32>
    %142 = arith.truncf %133 : vector<8x128xf32> to vector<8x128xbf16>
    %c0_48 = arith.constant 0 : index
    %c0_49 = arith.constant 0 : index
    %143 = vector.load %arg4[%c0_48, %c0_49] : memref<128x512xbf16, #tpu.memory_space<vmem>>, vector<128x512xbf16>
    %cst_50 = arith.constant dense<0.000000e+00> : vector<8x512xf32>
    %144 = tpu.matmul %142, %143, %cst_50 {dimension_numbers = #tpu.dot_dimension_numbers<[1], [0], [0], [1], [0, 0, 1, 1], [], []>} : vector<8x128xbf16>, vector<128x512xbf16>, vector<8x512xf32> -> vector<8x512xf32>
    %145 = arith.addf %141, %144 : vector<8x512xf32>
    %146 = vector.extract_strided_slice %140 {offsets = [0, 0], sizes = [8, 128], strides = [1, 1]} : vector<8x512xf32> to vector<8x128xf32>
    %147 = arith.negf %146 : vector<8x128xf32>
    %148 = math.exp %147 : vector<8x128xf32>
    %cst_51 = arith.constant 1.000000e+00 : f32
    %149 = vector.broadcast %cst_51 : f32 to vector<8x128xf32>
    %150 = arith.addf %149, %148 : vector<8x128xf32>
    %151 = arith.divf %149, %150 : vector<8x128xf32>
    %152 = vector.extract_strided_slice %140 {offsets = [0, 128], sizes = [8, 128], strides = [1, 1]} : vector<8x512xf32> to vector<8x128xf32>
    %153 = arith.negf %152 : vector<8x128xf32>
    %154 = math.exp %153 : vector<8x128xf32>
    %cst_52 = arith.constant 1.000000e+00 : f32
    %155 = vector.broadcast %cst_52 : f32 to vector<8x128xf32>
    %156 = arith.addf %155, %154 : vector<8x128xf32>
    %157 = arith.divf %155, %156 : vector<8x128xf32>
    %158 = vector.extract_strided_slice %140 {offsets = [0, 256], sizes = [8, 128], strides = [1, 1]} : vector<8x512xf32> to vector<8x128xf32>
    %159 = math.tanh %158 : vector<8x128xf32>
    %160 = vector.extract_strided_slice %140 {offsets = [0, 384], sizes = [8, 128], strides = [1, 1]} : vector<8x512xf32> to vector<8x128xf32>
    %161 = arith.negf %160 : vector<8x128xf32>
    %162 = math.exp %161 : vector<8x128xf32>
    %cst_53 = arith.constant 1.000000e+00 : f32
    %163 = vector.broadcast %cst_53 : f32 to vector<8x128xf32>
    %164 = arith.addf %163, %162 : vector<8x128xf32>
    %165 = arith.divf %163, %164 : vector<8x128xf32>
    %166 = arith.mulf %157, %106 : vector<8x128xf32>
    %167 = arith.mulf %151, %159 : vector<8x128xf32>
    %168 = arith.addf %166, %167 : vector<8x128xf32>
    %169 = math.tanh %168 : vector<8x128xf32>
    %170 = arith.mulf %165, %169 : vector<8x128xf32>
    %171 = vector.extract_strided_slice %145 {offsets = [0, 0], sizes = [8, 128], strides = [1, 1]} : vector<8x512xf32> to vector<8x128xf32>
    %172 = arith.negf %171 : vector<8x128xf32>
    %173 = math.exp %172 : vector<8x128xf32>
    %cst_54 = arith.constant 1.000000e+00 : f32
    %174 = vector.broadcast %cst_54 : f32 to vector<8x128xf32>
    %175 = arith.addf %174, %173 : vector<8x128xf32>
    %176 = arith.divf %174, %175 : vector<8x128xf32>
    %177 = vector.extract_strided_slice %145 {offsets = [0, 128], sizes = [8, 128], strides = [1, 1]} : vector<8x512xf32> to vector<8x128xf32>
    %178 = arith.negf %177 : vector<8x128xf32>
    %179 = math.exp %178 : vector<8x128xf32>
    %cst_55 = arith.constant 1.000000e+00 : f32
    %180 = vector.broadcast %cst_55 : f32 to vector<8x128xf32>
    %181 = arith.addf %180, %179 : vector<8x128xf32>
    %182 = arith.divf %180, %181 : vector<8x128xf32>
    %183 = vector.extract_strided_slice %145 {offsets = [0, 256], sizes = [8, 128], strides = [1, 1]} : vector<8x512xf32> to vector<8x128xf32>
    %184 = math.tanh %183 : vector<8x128xf32>
    %185 = vector.extract_strided_slice %145 {offsets = [0, 384], sizes = [8, 128], strides = [1, 1]} : vector<8x512xf32> to vector<8x128xf32>
    %186 = arith.negf %185 : vector<8x128xf32>
    %187 = math.exp %186 : vector<8x128xf32>
    %cst_56 = arith.constant 1.000000e+00 : f32
    %188 = vector.broadcast %cst_56 : f32 to vector<8x128xf32>
    %189 = arith.addf %188, %187 : vector<8x128xf32>
    %190 = arith.divf %188, %189 : vector<8x128xf32>
    %191 = arith.mulf %182, %131 : vector<8x128xf32>
    %192 = arith.mulf %176, %184 : vector<8x128xf32>
    %193 = arith.addf %191, %192 : vector<8x128xf32>
    %194 = math.tanh %193 : vector<8x128xf32>
    %195 = arith.mulf %190, %194 : vector<8x128xf32>
    %c16_57 = arith.constant 16 : index
    %c0_58 = arith.constant 0 : index
    %196 = vector.load %arg12[%c16_57, %c0_58] : memref<64x256xf32, #tpu.memory_space<vmem>>, vector<8x128xf32>
    tpu.vector_store %arg12[%c16_57, %c0_58], %170 {strides = array<i32>} : memref<64x256xf32, #tpu.memory_space<vmem>>, vector<8x128xf32>,
    %c40_59 = arith.constant 40 : index
    %c128_60 = arith.constant 128 : index
    %197 = vector.load %arg12[%c40_59, %c128_60] : memref<64x256xf32, #tpu.memory_space<vmem>>, vector<8x128xf32>
    tpu.vector_store %arg12[%c40_59, %c128_60], %195 {strides = array<i32>} : memref<64x256xf32, #tpu.memory_space<vmem>>, vector<8x128xf32>,
    %c24 = arith.constant 24 : index
    %c0_61 = arith.constant 0 : index
    %198 = vector.load %arg11[%c24, %c0_61] : memref<64x1024xf32, #tpu.memory_space<vmem>>, vector<8x512xf32>
    %199 = arith.truncf %170 : vector<8x128xf32> to vector<8x128xbf16>
    %c0_62 = arith.constant 0 : index
    %c0_63 = arith.constant 0 : index
    %200 = vector.load %arg3[%c0_62, %c0_63] : memref<128x512xbf16, #tpu.memory_space<vmem>>, vector<128x512xbf16>
    %cst_64 = arith.constant dense<0.000000e+00> : vector<8x512xf32>
    %201 = tpu.matmul %199, %200, %cst_64 {dimension_numbers = #tpu.dot_dimension_numbers<[1], [0], [0], [1], [0, 0, 1, 1], [], []>} : vector<8x128xbf16>, vector<128x512xbf16>, vector<8x512xf32> -> vector<8x512xf32>
    %202 = arith.addf %198, %201 : vector<8x512xf32>
    %c32 = arith.constant 32 : index
    %c512_65 = arith.constant 512 : index
    %203 = vector.load %arg11[%c32, %c512_65] : memref<64x1024xf32, #tpu.memory_space<vmem>>, vector<8x512xf32>
    %204 = arith.truncf %195 : vector<8x128xf32> to vector<8x128xbf16>
    %c0_66 = arith.constant 0 : index
    %c0_67 = arith.constant 0 : index
    %205 = vector.load %arg4[%c0_66, %c0_67] : memref<128x512xbf16, #tpu.memory_space<vmem>>, vector<128x512xbf16>
    %cst_68 = arith.constant dense<0.000000e+00> : vector<8x512xf32>
    %206 = tpu.matmul %204, %205, %cst_68 {dimension_numbers = #tpu.dot_dimension_numbers<[1], [0], [0], [1], [0, 0, 1, 1], [], []>} : vector<8x128xbf16>, vector<128x512xbf16>, vector<8x512xf32> -> vector<8x512xf32>
    %207 = arith.addf %203, %206 : vector<8x512xf32>
    %208 = vector.extract_strided_slice %202 {offsets = [0, 0], sizes = [8, 128], strides = [1, 1]} : vector<8x512xf32> to vector<8x128xf32>
    %209 = arith.negf %208 : vector<8x128xf32>
    %210 = math.exp %209 : vector<8x128xf32>
    %cst_69 = arith.constant 1.000000e+00 : f32
    %211 = vector.broadcast %cst_69 : f32 to vector<8x128xf32>
    %212 = arith.addf %211, %210 : vector<8x128xf32>
    %213 = arith.divf %211, %212 : vector<8x128xf32>
    %214 = vector.extract_strided_slice %202 {offsets = [0, 128], sizes = [8, 128], strides = [1, 1]} : vector<8x512xf32> to vector<8x128xf32>
    %215 = arith.negf %214 : vector<8x128xf32>
    %216 = math.exp %215 : vector<8x128xf32>
    %cst_70 = arith.constant 1.000000e+00 : f32
    %217 = vector.broadcast %cst_70 : f32 to vector<8x128xf32>
    %218 = arith.addf %217, %216 : vector<8x128xf32>
    %219 = arith.divf %217, %218 : vector<8x128xf32>
    %220 = vector.extract_strided_slice %202 {offsets = [0, 256], sizes = [8, 128], strides = [1, 1]} : vector<8x512xf32> to vector<8x128xf32>
    %221 = math.tanh %220 : vector<8x128xf32>
    %222 = vector.extract_strided_slice %202 {offsets = [0, 384], sizes = [8, 128], strides = [1, 1]} : vector<8x512xf32> to vector<8x128xf32>
    %223 = arith.negf %222 : vector<8x128xf32>
    %224 = math.exp %223 : vector<8x128xf32>
    %cst_71 = arith.constant 1.000000e+00 : f32
    %225 = vector.broadcast %cst_71 : f32 to vector<8x128xf32>
    %226 = arith.addf %225, %224 : vector<8x128xf32>
    %227 = arith.divf %225, %226 : vector<8x128xf32>
    %228 = arith.mulf %219, %168 : vector<8x128xf32>
    %229 = arith.mulf %213, %221 : vector<8x128xf32>
    %230 = arith.addf %228, %229 : vector<8x128xf32>
    %231 = math.tanh %230 : vector<8x128xf32>
    %232 = arith.mulf %227, %231 : vector<8x128xf32>
    %233 = vector.extract_strided_slice %207 {offsets = [0, 0], sizes = [8, 128], strides = [1, 1]} : vector<8x512xf32> to vector<8x128xf32>
    %234 = arith.negf %233 : vector<8x128xf32>
    %235 = math.exp %234 : vector<8x128xf32>
    %cst_72 = arith.constant 1.000000e+00 : f32
    %236 = vector.broadcast %cst_72 : f32 to vector<8x128xf32>
    %237 = arith.addf %236, %235 : vector<8x128xf32>
    %238 = arith.divf %236, %237 : vector<8x128xf32>
    %239 = vector.extract_strided_slice %207 {offsets = [0, 128], sizes = [8, 128], strides = [1, 1]} : vector<8x512xf32> to vector<8x128xf32>
    %240 = arith.negf %239 : vector<8x128xf32>
    %241 = math.exp %240 : vector<8x128xf32>
    %cst_73 = arith.constant 1.000000e+00 : f32
    %242 = vector.broadcast %cst_73 : f32 to vector<8x128xf32>
    %243 = arith.addf %242, %241 : vector<8x128xf32>
    %244 = arith.divf %242, %243 : vector<8x128xf32>
    %245 = vector.extract_strided_slice %207 {offsets = [0, 256], sizes = [8, 128], strides = [1, 1]} : vector<8x512xf32> to vector<8x128xf32>
    %246 = math.tanh %245 : vector<8x128xf32>
    %247 = vector.extract_strided_slice %207 {offsets = [0, 384], sizes = [8, 128], strides = [1, 1]} : vector<8x512xf32> to vector<8x128xf32>
    %248 = arith.negf %247 : vector<8x128xf32>
    %249 = math.exp %248 : vector<8x128xf32>
    %cst_74 = arith.constant 1.000000e+00 : f32
    %250 = vector.broadcast %cst_74 : f32 to vector<8x128xf32>
    %251 = arith.addf %250, %249 : vector<8x128xf32>
    %252 = arith.divf %250, %251 : vector<8x128xf32>
    %253 = arith.mulf %244, %193 : vector<8x128xf32>
    %254 = arith.mulf %238, %246 : vector<8x128xf32>
    %255 = arith.addf %253, %254 : vector<8x128xf32>
    %256 = math.tanh %255 : vector<8x128xf32>
    %257 = arith.mulf %252, %256 : vector<8x128xf32>
    %c24_75 = arith.constant 24 : index
    %c0_76 = arith.constant 0 : index
    %258 = vector.load %arg12[%c24_75, %c0_76] : memref<64x256xf32, #tpu.memory_space<vmem>>, vector<8x128xf32>
    tpu.vector_store %arg12[%c24_75, %c0_76], %232 {strides = array<i32>} : memref<64x256xf32, #tpu.memory_space<vmem>>, vector<8x128xf32>,
    %c32_77 = arith.constant 32 : index
    %c128_78 = arith.constant 128 : index
    %259 = vector.load %arg12[%c32_77, %c128_78] : memref<64x256xf32, #tpu.memory_space<vmem>>, vector<8x128xf32>
    tpu.vector_store %arg12[%c32_77, %c128_78], %257 {strides = array<i32>} : memref<64x256xf32, #tpu.memory_space<vmem>>, vector<8x128xf32>,
    %c32_79 = arith.constant 32 : index
    %c0_80 = arith.constant 0 : index
    %260 = vector.load %arg11[%c32_79, %c0_80] : memref<64x1024xf32, #tpu.memory_space<vmem>>, vector<8x512xf32>
    %261 = arith.truncf %232 : vector<8x128xf32> to vector<8x128xbf16>
    %c0_81 = arith.constant 0 : index
    %c0_82 = arith.constant 0 : index
    %262 = vector.load %arg3[%c0_81, %c0_82] : memref<128x512xbf16, #tpu.memory_space<vmem>>, vector<128x512xbf16>
    %cst_83 = arith.constant dense<0.000000e+00> : vector<8x512xf32>
    %263 = tpu.matmul %261, %262, %cst_83 {dimension_numbers = #tpu.dot_dimension_numbers<[1], [0], [0], [1], [0, 0, 1, 1], [], []>} : vector<8x128xbf16>, vector<128x512xbf16>, vector<8x512xf32> -> vector<8x512xf32>
    %264 = arith.addf %260, %263 : vector<8x512xf32>
    %c24_84 = arith.constant 24 : index
    %c512_85 = arith.constant 512 : index
    %265 = vector.load %arg11[%c24_84, %c512_85] : memref<64x1024xf32, #tpu.memory_space<vmem>>, vector<8x512xf32>
    %266 = arith.truncf %257 : vector<8x128xf32> to vector<8x128xbf16>
    %c0_86 = arith.constant 0 : index
    %c0_87 = arith.constant 0 : index
    %267 = vector.load %arg4[%c0_86, %c0_87] : memref<128x512xbf16, #tpu.memory_space<vmem>>, vector<128x512xbf16>
    %cst_88 = arith.constant dense<0.000000e+00> : vector<8x512xf32>
    %268 = tpu.matmul %266, %267, %cst_88 {dimension_numbers = #tpu.dot_dimension_numbers<[1], [0], [0], [1], [0, 0, 1, 1], [], []>} : vector<8x128xbf16>, vector<128x512xbf16>, vector<8x512xf32> -> vector<8x512xf32>
    %269 = arith.addf %265, %268 : vector<8x512xf32>
    %270 = vector.extract_strided_slice %264 {offsets = [0, 0], sizes = [8, 128], strides = [1, 1]} : vector<8x512xf32> to vector<8x128xf32>
    %271 = arith.negf %270 : vector<8x128xf32>
    %272 = math.exp %271 : vector<8x128xf32>
    %cst_89 = arith.constant 1.000000e+00 : f32
    %273 = vector.broadcast %cst_89 : f32 to vector<8x128xf32>
    %274 = arith.addf %273, %272 : vector<8x128xf32>
    %275 = arith.divf %273, %274 : vector<8x128xf32>
    %276 = vector.extract_strided_slice %264 {offsets = [0, 128], sizes = [8, 128], strides = [1, 1]} : vector<8x512xf32> to vector<8x128xf32>
    %277 = arith.negf %276 : vector<8x128xf32>
    %278 = math.exp %277 : vector<8x128xf32>
    %cst_90 = arith.constant 1.000000e+00 : f32
    %279 = vector.broadcast %cst_90 : f32 to vector<8x128xf32>
    %280 = arith.addf %279, %278 : vector<8x128xf32>
    %281 = arith.divf %279, %280 : vector<8x128xf32>
    %282 = vector.extract_strided_slice %264 {offsets = [0, 256], sizes = [8, 128], strides = [1, 1]} : vector<8x512xf32> to vector<8x128xf32>
    %283 = math.tanh %282 : vector<8x128xf32>
    %284 = vector.extract_strided_slice %264 {offsets = [0, 384], sizes = [8, 128], strides = [1, 1]} : vector<8x512xf32> to vector<8x128xf32>
    %285 = arith.negf %284 : vector<8x128xf32>
    %286 = math.exp %285 : vector<8x128xf32>
    %cst_91 = arith.constant 1.000000e+00 : f32
    %287 = vector.broadcast %cst_91 : f32 to vector<8x128xf32>
    %288 = arith.addf %287, %286 : vector<8x128xf32>
    %289 = arith.divf %287, %288 : vector<8x128xf32>
    %290 = arith.mulf %281, %230 : vector<8x128xf32>
    %291 = arith.mulf %275, %283 : vector<8x128xf32>
    %292 = arith.addf %290, %291 : vector<8x128xf32>
    %293 = math.tanh %292 : vector<8x128xf32>
    %294 = arith.mulf %289, %293 : vector<8x128xf32>
    %295 = vector.extract_strided_slice %269 {offsets = [0, 0], sizes = [8, 128], strides = [1, 1]} : vector<8x512xf32> to vector<8x128xf32>
    %296 = arith.negf %295 : vector<8x128xf32>
    %297 = math.exp %296 : vector<8x128xf32>
    %cst_92 = arith.constant 1.000000e+00 : f32
    %298 = vector.broadcast %cst_92 : f32 to vector<8x128xf32>
    %299 = arith.addf %298, %297 : vector<8x128xf32>
    %300 = arith.divf %298, %299 : vector<8x128xf32>
    %301 = vector.extract_strided_slice %269 {offsets = [0, 128], sizes = [8, 128], strides = [1, 1]} : vector<8x512xf32> to vector<8x128xf32>
    %302 = arith.negf %301 : vector<8x128xf32>
    %303 = math.exp %302 : vector<8x128xf32>
    %cst_93 = arith.constant 1.000000e+00 : f32
    %304 = vector.broadcast %cst_93 : f32 to vector<8x128xf32>
    %305 = arith.addf %304, %303 : vector<8x128xf32>
    %306 = arith.divf %304, %305 : vector<8x128xf32>
    %307 = vector.extract_strided_slice %269 {offsets = [0, 256], sizes = [8, 128], strides = [1, 1]} : vector<8x512xf32> to vector<8x128xf32>
    %308 = math.tanh %307 : vector<8x128xf32>
    %309 = vector.extract_strided_slice %269 {offsets = [0, 384], sizes = [8, 128], strides = [1, 1]} : vector<8x512xf32> to vector<8x128xf32>
    %310 = arith.negf %309 : vector<8x128xf32>
    %311 = math.exp %310 : vector<8x128xf32>
    %cst_94 = arith.constant 1.000000e+00 : f32
    %312 = vector.broadcast %cst_94 : f32 to vector<8x128xf32>
    %313 = arith.addf %312, %311 : vector<8x128xf32>
    %314 = arith.divf %312, %313 : vector<8x128xf32>
    %315 = arith.mulf %306, %255 : vector<8x128xf32>
    %316 = arith.mulf %300, %308 : vector<8x128xf32>
    %317 = arith.addf %315, %316 : vector<8x128xf32>
    %318 = math.tanh %317 : vector<8x128xf32>
    %319 = arith.mulf %314, %318 : vector<8x128xf32>
    %c32_95 = arith.constant 32 : index
    %c0_96 = arith.constant 0 : index
    %320 = vector.load %arg12[%c32_95, %c0_96] : memref<64x256xf32, #tpu.memory_space<vmem>>, vector<8x128xf32>
    tpu.vector_store %arg12[%c32_95, %c0_96], %294 {strides = array<i32>} : memref<64x256xf32, #tpu.memory_space<vmem>>, vector<8x128xf32>,
    %c24_97 = arith.constant 24 : index
    %c128_98 = arith.constant 128 : index
    %321 = vector.load %arg12[%c24_97, %c128_98] : memref<64x256xf32, #tpu.memory_space<vmem>>, vector<8x128xf32>
    tpu.vector_store %arg12[%c24_97, %c128_98], %319 {strides = array<i32>} : memref<64x256xf32, #tpu.memory_space<vmem>>, vector<8x128xf32>,
    %c40_99 = arith.constant 40 : index
    %c0_100 = arith.constant 0 : index
    %322 = vector.load %arg11[%c40_99, %c0_100] : memref<64x1024xf32, #tpu.memory_space<vmem>>, vector<8x512xf32>
    %323 = arith.truncf %294 : vector<8x128xf32> to vector<8x128xbf16>
    %c0_101 = arith.constant 0 : index
    %c0_102 = arith.constant 0 : index
    %324 = vector.load %arg3[%c0_101, %c0_102] : memref<128x512xbf16, #tpu.memory_space<vmem>>, vector<128x512xbf16>
    %cst_103 = arith.constant dense<0.000000e+00> : vector<8x512xf32>
    %325 = tpu.matmul %323, %324, %cst_103 {dimension_numbers = #tpu.dot_dimension_numbers<[1], [0], [0], [1], [0, 0, 1, 1], [], []>} : vector<8x128xbf16>, vector<128x512xbf16>, vector<8x512xf32> -> vector<8x512xf32>
    %326 = arith.addf %322, %325 : vector<8x512xf32>
    %c16_104 = arith.constant 16 : index
    %c512_105 = arith.constant 512 : index
    %327 = vector.load %arg11[%c16_104, %c512_105] : memref<64x1024xf32, #tpu.memory_space<vmem>>, vector<8x512xf32>
    %328 = arith.truncf %319 : vector<8x128xf32> to vector<8x128xbf16>
    %c0_106 = arith.constant 0 : index
    %c0_107 = arith.constant 0 : index
    %329 = vector.load %arg4[%c0_106, %c0_107] : memref<128x512xbf16, #tpu.memory_space<vmem>>, vector<128x512xbf16>
    %cst_108 = arith.constant dense<0.000000e+00> : vector<8x512xf32>
    %330 = tpu.matmul %328, %329, %cst_108 {dimension_numbers = #tpu.dot_dimension_numbers<[1], [0], [0], [1], [0, 0, 1, 1], [], []>} : vector<8x128xbf16>, vector<128x512xbf16>, vector<8x512xf32> -> vector<8x512xf32>
    %331 = arith.addf %327, %330 : vector<8x512xf32>
    %332 = vector.extract_strided_slice %326 {offsets = [0, 0], sizes = [8, 128], strides = [1, 1]} : vector<8x512xf32> to vector<8x128xf32>
    %333 = arith.negf %332 : vector<8x128xf32>
    %334 = math.exp %333 : vector<8x128xf32>
    %cst_109 = arith.constant 1.000000e+00 : f32
    %335 = vector.broadcast %cst_109 : f32 to vector<8x128xf32>
    %336 = arith.addf %335, %334 : vector<8x128xf32>
    %337 = arith.divf %335, %336 : vector<8x128xf32>
    %338 = vector.extract_strided_slice %326 {offsets = [0, 128], sizes = [8, 128], strides = [1, 1]} : vector<8x512xf32> to vector<8x128xf32>
    %339 = arith.negf %338 : vector<8x128xf32>
    %340 = math.exp %339 : vector<8x128xf32>
    %cst_110 = arith.constant 1.000000e+00 : f32
    %341 = vector.broadcast %cst_110 : f32 to vector<8x128xf32>
    %342 = arith.addf %341, %340 : vector<8x128xf32>
    %343 = arith.divf %341, %342 : vector<8x128xf32>
    %344 = vector.extract_strided_slice %326 {offsets = [0, 256], sizes = [8, 128], strides = [1, 1]} : vector<8x512xf32> to vector<8x128xf32>
    %345 = math.tanh %344 : vector<8x128xf32>
    %346 = vector.extract_strided_slice %326 {offsets = [0, 384], sizes = [8, 128], strides = [1, 1]} : vector<8x512xf32> to vector<8x128xf32>
    %347 = arith.negf %346 : vector<8x128xf32>
    %348 = math.exp %347 : vector<8x128xf32>
    %cst_111 = arith.constant 1.000000e+00 : f32
    %349 = vector.broadcast %cst_111 : f32 to vector<8x128xf32>
    %350 = arith.addf %349, %348 : vector<8x128xf32>
    %351 = arith.divf %349, %350 : vector<8x128xf32>
    %352 = arith.mulf %343, %292 : vector<8x128xf32>
    %353 = arith.mulf %337, %345 : vector<8x128xf32>
    %354 = arith.addf %352, %353 : vector<8x128xf32>
    %355 = math.tanh %354 : vector<8x128xf32>
    %356 = arith.mulf %351, %355 : vector<8x128xf32>
    %357 = vector.extract_strided_slice %331 {offsets = [0, 0], sizes = [8, 128], strides = [1, 1]} : vector<8x512xf32> to vector<8x128xf32>
    %358 = arith.negf %357 : vector<8x128xf32>
    %359 = math.exp %358 : vector<8x128xf32>
    %cst_112 = arith.constant 1.000000e+00 : f32
    %360 = vector.broadcast %cst_112 : f32 to vector<8x128xf32>
    %361 = arith.addf %360, %359 : vector<8x128xf32>
    %362 = arith.divf %360, %361 : vector<8x128xf32>
    %363 = vector.extract_strided_slice %331 {offsets = [0, 128], sizes = [8, 128], strides = [1, 1]} : vector<8x512xf32> to vector<8x128xf32>
    %364 = arith.negf %363 : vector<8x128xf32>
    %365 = math.exp %364 : vector<8x128xf32>
    %cst_113 = arith.constant 1.000000e+00 : f32
    %366 = vector.broadcast %cst_113 : f32 to vector<8x128xf32>
    %367 = arith.addf %366, %365 : vector<8x128xf32>
    %368 = arith.divf %366, %367 : vector<8x128xf32>
    %369 = vector.extract_strided_slice %331 {offsets = [0, 256], sizes = [8, 128], strides = [1, 1]} : vector<8x512xf32> to vector<8x128xf32>
    %370 = math.tanh %369 : vector<8x128xf32>
    %371 = vector.extract_strided_slice %331 {offsets = [0, 384], sizes = [8, 128], strides = [1, 1]} : vector<8x512xf32> to vector<8x128xf32>
    %372 = arith.negf %371 : vector<8x128xf32>
    %373 = math.exp %372 : vector<8x128xf32>
    %cst_114 = arith.constant 1.000000e+00 : f32
    %374 = vector.broadcast %cst_114 : f32 to vector<8x128xf32>
    %375 = arith.addf %374, %373 : vector<8x128xf32>
    %376 = arith.divf %374, %375 : vector<8x128xf32>
    %377 = arith.mulf %368, %317 : vector<8x128xf32>
    %378 = arith.mulf %362, %370 : vector<8x128xf32>
    %379 = arith.addf %377, %378 : vector<8x128xf32>
    %380 = math.tanh %379 : vector<8x128xf32>
    %381 = arith.mulf %376, %380 : vector<8x128xf32>
    %c40_115 = arith.constant 40 : index
    %c0_116 = arith.constant 0 : index
    %382 = vector.load %arg12[%c40_115, %c0_116] : memref<64x256xf32, #tpu.memory_space<vmem>>, vector<8x128xf32>
    tpu.vector_store %arg12[%c40_115, %c0_116], %356 {strides = array<i32>} : memref<64x256xf32, #tpu.memory_space<vmem>>, vector<8x128xf32>,
    %c16_117 = arith.constant 16 : index
    %c128_118 = arith.constant 128 : index
    %383 = vector.load %arg12[%c16_117, %c128_118] : memref<64x256xf32, #tpu.memory_space<vmem>>, vector<8x128xf32>
    tpu.vector_store %arg12[%c16_117, %c128_118], %381 {strides = array<i32>} : memref<64x256xf32, #tpu.memory_space<vmem>>, vector<8x128xf32>,
    %c48_119 = arith.constant 48 : index
    %c0_120 = arith.constant 0 : index
    %384 = vector.load %arg11[%c48_119, %c0_120] : memref<64x1024xf32, #tpu.memory_space<vmem>>, vector<8x512xf32>
    %385 = arith.truncf %356 : vector<8x128xf32> to vector<8x128xbf16>
    %c0_121 = arith.constant 0 : index
    %c0_122 = arith.constant 0 : index
    %386 = vector.load %arg3[%c0_121, %c0_122] : memref<128x512xbf16, #tpu.memory_space<vmem>>, vector<128x512xbf16>
    %cst_123 = arith.constant dense<0.000000e+00> : vector<8x512xf32>
    %387 = tpu.matmul %385, %386, %cst_123 {dimension_numbers = #tpu.dot_dimension_numbers<[1], [0], [0], [1], [0, 0, 1, 1], [], []>} : vector<8x128xbf16>, vector<128x512xbf16>, vector<8x512xf32> -> vector<8x512xf32>
    %388 = arith.addf %384, %387 : vector<8x512xf32>
    %c8_124 = arith.constant 8 : index
    %c512_125 = arith.constant 512 : index
    %389 = vector.load %arg11[%c8_124, %c512_125] : memref<64x1024xf32, #tpu.memory_space<vmem>>, vector<8x512xf32>
    %390 = arith.truncf %381 : vector<8x128xf32> to vector<8x128xbf16>
    %c0_126 = arith.constant 0 : index
    %c0_127 = arith.constant 0 : index
    %391 = vector.load %arg4[%c0_126, %c0_127] : memref<128x512xbf16, #tpu.memory_space<vmem>>, vector<128x512xbf16>
    %cst_128 = arith.constant dense<0.000000e+00> : vector<8x512xf32>
    %392 = tpu.matmul %390, %391, %cst_128 {dimension_numbers = #tpu.dot_dimension_numbers<[1], [0], [0], [1], [0, 0, 1, 1], [], []>} : vector<8x128xbf16>, vector<128x512xbf16>, vector<8x512xf32> -> vector<8x512xf32>
    %393 = arith.addf %389, %392 : vector<8x512xf32>
    %394 = vector.extract_strided_slice %388 {offsets = [0, 0], sizes = [8, 128], strides = [1, 1]} : vector<8x512xf32> to vector<8x128xf32>
    %395 = arith.negf %394 : vector<8x128xf32>
    %396 = math.exp %395 : vector<8x128xf32>
    %cst_129 = arith.constant 1.000000e+00 : f32
    %397 = vector.broadcast %cst_129 : f32 to vector<8x128xf32>
    %398 = arith.addf %397, %396 : vector<8x128xf32>
    %399 = arith.divf %397, %398 : vector<8x128xf32>
    %400 = vector.extract_strided_slice %388 {offsets = [0, 128], sizes = [8, 128], strides = [1, 1]} : vector<8x512xf32> to vector<8x128xf32>
    %401 = arith.negf %400 : vector<8x128xf32>
    %402 = math.exp %401 : vector<8x128xf32>
    %cst_130 = arith.constant 1.000000e+00 : f32
    %403 = vector.broadcast %cst_130 : f32 to vector<8x128xf32>
    %404 = arith.addf %403, %402 : vector<8x128xf32>
    %405 = arith.divf %403, %404 : vector<8x128xf32>
    %406 = vector.extract_strided_slice %388 {offsets = [0, 256], sizes = [8, 128], strides = [1, 1]} : vector<8x512xf32> to vector<8x128xf32>
    %407 = math.tanh %406 : vector<8x128xf32>
    %408 = vector.extract_strided_slice %388 {offsets = [0, 384], sizes = [8, 128], strides = [1, 1]} : vector<8x512xf32> to vector<8x128xf32>
    %409 = arith.negf %408 : vector<8x128xf32>
    %410 = math.exp %409 : vector<8x128xf32>
    %cst_131 = arith.constant 1.000000e+00 : f32
    %411 = vector.broadcast %cst_131 : f32 to vector<8x128xf32>
    %412 = arith.addf %411, %410 : vector<8x128xf32>
    %413 = arith.divf %411, %412 : vector<8x128xf32>
    %414 = arith.mulf %405, %354 : vector<8x128xf32>
    %415 = arith.mulf %399, %407 : vector<8x128xf32>
    %416 = arith.addf %414, %415 : vector<8x128xf32>
    %417 = math.tanh %416 : vector<8x128xf32>
    %418 = arith.mulf %413, %417 : vector<8x128xf32>
    %419 = vector.extract_strided_slice %393 {offsets = [0, 0], sizes = [8, 128], strides = [1, 1]} : vector<8x512xf32> to vector<8x128xf32>
    %420 = arith.negf %419 : vector<8x128xf32>
    %421 = math.exp %420 : vector<8x128xf32>
    %cst_132 = arith.constant 1.000000e+00 : f32
    %422 = vector.broadcast %cst_132 : f32 to vector<8x128xf32>
    %423 = arith.addf %422, %421 : vector<8x128xf32>
    %424 = arith.divf %422, %423 : vector<8x128xf32>
    %425 = vector.extract_strided_slice %393 {offsets = [0, 128], sizes = [8, 128], strides = [1, 1]} : vector<8x512xf32> to vector<8x128xf32>
    %426 = arith.negf %425 : vector<8x128xf32>
    %427 = math.exp %426 : vector<8x128xf32>
    %cst_133 = arith.constant 1.000000e+00 : f32
    %428 = vector.broadcast %cst_133 : f32 to vector<8x128xf32>
    %429 = arith.addf %428, %427 : vector<8x128xf32>
    %430 = arith.divf %428, %429 : vector<8x128xf32>
    %431 = vector.extract_strided_slice %393 {offsets = [0, 256], sizes = [8, 128], strides = [1, 1]} : vector<8x512xf32> to vector<8x128xf32>
    %432 = math.tanh %431 : vector<8x128xf32>
    %433 = vector.extract_strided_slice %393 {offsets = [0, 384], sizes = [8, 128], strides = [1, 1]} : vector<8x512xf32> to vector<8x128xf32>
    %434 = arith.negf %433 : vector<8x128xf32>
    %435 = math.exp %434 : vector<8x128xf32>
    %cst_134 = arith.constant 1.000000e+00 : f32
    %436 = vector.broadcast %cst_134 : f32 to vector<8x128xf32>
    %437 = arith.addf %436, %435 : vector<8x128xf32>
    %438 = arith.divf %436, %437 : vector<8x128xf32>
    %439 = arith.mulf %430, %379 : vector<8x128xf32>
    %440 = arith.mulf %424, %432 : vector<8x128xf32>
    %441 = arith.addf %439, %440 : vector<8x128xf32>
    %442 = math.tanh %441 : vector<8x128xf32>
    %443 = arith.mulf %438, %442 : vector<8x128xf32>
    %c48_135 = arith.constant 48 : index
    %c0_136 = arith.constant 0 : index
    %444 = vector.load %arg12[%c48_135, %c0_136] : memref<64x256xf32, #tpu.memory_space<vmem>>, vector<8x128xf32>
    tpu.vector_store %arg12[%c48_135, %c0_136], %418 {strides = array<i32>} : memref<64x256xf32, #tpu.memory_space<vmem>>, vector<8x128xf32>,
    %c8_137 = arith.constant 8 : index
    %c128_138 = arith.constant 128 : index
    %445 = vector.load %arg12[%c8_137, %c128_138] : memref<64x256xf32, #tpu.memory_space<vmem>>, vector<8x128xf32>
    tpu.vector_store %arg12[%c8_137, %c128_138], %443 {strides = array<i32>} : memref<64x256xf32, #tpu.memory_space<vmem>>, vector<8x128xf32>,
    %c56_139 = arith.constant 56 : index
    %c0_140 = arith.constant 0 : index
    %446 = vector.load %arg11[%c56_139, %c0_140] : memref<64x1024xf32, #tpu.memory_space<vmem>>, vector<8x512xf32>
    %447 = arith.truncf %418 : vector<8x128xf32> to vector<8x128xbf16>
    %c0_141 = arith.constant 0 : index
    %c0_142 = arith.constant 0 : index
    %448 = vector.load %arg3[%c0_141, %c0_142] : memref<128x512xbf16, #tpu.memory_space<vmem>>, vector<128x512xbf16>
    %cst_143 = arith.constant dense<0.000000e+00> : vector<8x512xf32>
    %449 = tpu.matmul %447, %448, %cst_143 {dimension_numbers = #tpu.dot_dimension_numbers<[1], [0], [0], [1], [0, 0, 1, 1], [], []>} : vector<8x128xbf16>, vector<128x512xbf16>, vector<8x512xf32> -> vector<8x512xf32>
    %450 = arith.addf %446, %449 : vector<8x512xf32>
    %c0_144 = arith.constant 0 : index
    %c512_145 = arith.constant 512 : index
    %451 = vector.load %arg11[%c0_144, %c512_145] : memref<64x1024xf32, #tpu.memory_space<vmem>>, vector<8x512xf32>
    %452 = arith.truncf %443 : vector<8x128xf32> to vector<8x128xbf16>
    %c0_146 = arith.constant 0 : index
    %c0_147 = arith.constant 0 : index
    %453 = vector.load %arg4[%c0_146, %c0_147] : memref<128x512xbf16, #tpu.memory_space<vmem>>, vector<128x512xbf16>
    %cst_148 = arith.constant dense<0.000000e+00> : vector<8x512xf32>
    %454 = tpu.matmul %452, %453, %cst_148 {dimension_numbers = #tpu.dot_dimension_numbers<[1], [0], [0], [1], [0, 0, 1, 1], [], []>} : vector<8x128xbf16>, vector<128x512xbf16>, vector<8x512xf32> -> vector<8x512xf32>
    %455 = arith.addf %451, %454 : vector<8x512xf32>
    %456 = vector.extract_strided_slice %450 {offsets = [0, 0], sizes = [8, 128], strides = [1, 1]} : vector<8x512xf32> to vector<8x128xf32>
    %457 = arith.negf %456 : vector<8x128xf32>
    %458 = math.exp %457 : vector<8x128xf32>
    %cst_149 = arith.constant 1.000000e+00 : f32
    %459 = vector.broadcast %cst_149 : f32 to vector<8x128xf32>
    %460 = arith.addf %459, %458 : vector<8x128xf32>
    %461 = arith.divf %459, %460 : vector<8x128xf32>
    %462 = vector.extract_strided_slice %450 {offsets = [0, 128], sizes = [8, 128], strides = [1, 1]} : vector<8x512xf32> to vector<8x128xf32>
    %463 = arith.negf %462 : vector<8x128xf32>
    %464 = math.exp %463 : vector<8x128xf32>
    %cst_150 = arith.constant 1.000000e+00 : f32
    %465 = vector.broadcast %cst_150 : f32 to vector<8x128xf32>
    %466 = arith.addf %465, %464 : vector<8x128xf32>
    %467 = arith.divf %465, %466 : vector<8x128xf32>
    %468 = vector.extract_strided_slice %450 {offsets = [0, 256], sizes = [8, 128], strides = [1, 1]} : vector<8x512xf32> to vector<8x128xf32>
    %469 = math.tanh %468 : vector<8x128xf32>
    %470 = vector.extract_strided_slice %450 {offsets = [0, 384], sizes = [8, 128], strides = [1, 1]} : vector<8x512xf32> to vector<8x128xf32>
    %471 = arith.negf %470 : vector<8x128xf32>
    %472 = math.exp %471 : vector<8x128xf32>
    %cst_151 = arith.constant 1.000000e+00 : f32
    %473 = vector.broadcast %cst_151 : f32 to vector<8x128xf32>
    %474 = arith.addf %473, %472 : vector<8x128xf32>
    %475 = arith.divf %473, %474 : vector<8x128xf32>
    %476 = arith.mulf %467, %416 : vector<8x128xf32>
    %477 = arith.mulf %461, %469 : vector<8x128xf32>
    %478 = arith.addf %476, %477 : vector<8x128xf32>
    %479 = math.tanh %478 : vector<8x128xf32>
    %480 = arith.mulf %475, %479 : vector<8x128xf32>
    %481 = vector.extract_strided_slice %455 {offsets = [0, 0], sizes = [8, 128], strides = [1, 1]} : vector<8x512xf32> to vector<8x128xf32>
    %482 = arith.negf %481 : vector<8x128xf32>
    %483 = math.exp %482 : vector<8x128xf32>
    %cst_152 = arith.constant 1.000000e+00 : f32
    %484 = vector.broadcast %cst_152 : f32 to vector<8x128xf32>
    %485 = arith.addf %484, %483 : vector<8x128xf32>
    %486 = arith.divf %484, %485 : vector<8x128xf32>
    %487 = vector.extract_strided_slice %455 {offsets = [0, 128], sizes = [8, 128], strides = [1, 1]} : vector<8x512xf32> to vector<8x128xf32>
    %488 = arith.negf %487 : vector<8x128xf32>
    %489 = math.exp %488 : vector<8x128xf32>
    %cst_153 = arith.constant 1.000000e+00 : f32
    %490 = vector.broadcast %cst_153 : f32 to vector<8x128xf32>
    %491 = arith.addf %490, %489 : vector<8x128xf32>
    %492 = arith.divf %490, %491 : vector<8x128xf32>
    %493 = vector.extract_strided_slice %455 {offsets = [0, 256], sizes = [8, 128], strides = [1, 1]} : vector<8x512xf32> to vector<8x128xf32>
    %494 = math.tanh %493 : vector<8x128xf32>
    %495 = vector.extract_strided_slice %455 {offsets = [0, 384], sizes = [8, 128], strides = [1, 1]} : vector<8x512xf32> to vector<8x128xf32>
    %496 = arith.negf %495 : vector<8x128xf32>
    %497 = math.exp %496 : vector<8x128xf32>
    %cst_154 = arith.constant 1.000000e+00 : f32
    %498 = vector.broadcast %cst_154 : f32 to vector<8x128xf32>
    %499 = arith.addf %498, %497 : vector<8x128xf32>
    %500 = arith.divf %498, %499 : vector<8x128xf32>
    %501 = arith.mulf %492, %441 : vector<8x128xf32>
    %502 = arith.mulf %486, %494 : vector<8x128xf32>
    %503 = arith.addf %501, %502 : vector<8x128xf32>
    %504 = math.tanh %503 : vector<8x128xf32>
    %505 = arith.mulf %500, %504 : vector<8x128xf32>
    %c56_155 = arith.constant 56 : index
    %c0_156 = arith.constant 0 : index
    %506 = vector.load %arg12[%c56_155, %c0_156] : memref<64x256xf32, #tpu.memory_space<vmem>>, vector<8x128xf32>
    tpu.vector_store %arg12[%c56_155, %c0_156], %480 {strides = array<i32>} : memref<64x256xf32, #tpu.memory_space<vmem>>, vector<8x128xf32>,
    %c0_157 = arith.constant 0 : index
    %c128_158 = arith.constant 128 : index
    %507 = vector.load %arg12[%c0_157, %c128_158] : memref<64x256xf32, #tpu.memory_space<vmem>>, vector<8x128xf32>
    tpu.vector_store %arg12[%c0_157, %c128_158], %505 {strides = array<i32>} : memref<64x256xf32, #tpu.memory_space<vmem>>, vector<8x128xf32>,
    %c0_i32_159 = arith.constant 0 : i32
    %508 = tpu.memref_slice %arg16[%c0_i32_159] : memref<2x!tpu.dma_semaphore, #tpu.memory_space<semaphore_mem>> -> memref<1x!tpu.dma_semaphore, #tpu.memory_space<semaphore_mem>>
    %509 = tpu.memref_squeeze %508 : memref<1x!tpu.dma_semaphore, #tpu.memory_space<semaphore_mem>> -> memref<!tpu.dma_semaphore, #tpu.memory_space<semaphore_mem>>
    tpu.wait_dma2 semaphore(%509 : memref<!tpu.dma_semaphore, #tpu.memory_space<semaphore_mem>>) src(%arg5 : memref<256x1024xbf16, #tpu.memory_space<any>>) dst(%arg14 : memref<256x1024xbf16, #tpu.memory_space<vmem>>)
    %c1_i32_160 = arith.constant 1 : i32
    %510 = tpu.memref_slice %arg16[%c1_i32_160] : memref<2x!tpu.dma_semaphore, #tpu.memory_space<semaphore_mem>> -> memref<1x!tpu.dma_semaphore, #tpu.memory_space<semaphore_mem>>
    %511 = tpu.memref_squeeze %510 : memref<1x!tpu.dma_semaphore, #tpu.memory_space<semaphore_mem>> -> memref<!tpu.dma_semaphore, #tpu.memory_space<semaphore_mem>>
    tpu.wait_dma2 semaphore(%511 : memref<!tpu.dma_semaphore, #tpu.memory_space<semaphore_mem>>) src(%arg6 : memref<128x512xbf16, #tpu.memory_space<any>>) dst(%arg15 : memref<128x512xbf16, #tpu.memory_space<vmem>>)
    %c0_161 = arith.constant 0 : index
    %c0_162 = arith.constant 0 : index
    %512 = vector.load %arg12[%c0_161, %c0_162] : memref<64x256xf32, #tpu.memory_space<vmem>>, vector<64x256xf32>
    %513 = arith.truncf %512 : vector<64x256xf32> to vector<64x256xbf16>
    %c0_163 = arith.constant 0 : index
    %c0_164 = arith.constant 0 : index
    %514 = vector.load %arg14[%c0_163, %c0_164] : memref<256x1024xbf16, #tpu.memory_space<vmem>>, vector<256x1024xbf16>
    %cst_165 = arith.constant dense<0.000000e+00> : vector<64x1024xf32>
    %515 = tpu.matmul %513, %514, %cst_165 {dimension_numbers = #tpu.dot_dimension_numbers<[1], [0], [0], [1], [0, 0, 1, 1], [], []>} : vector<64x256xbf16>, vector<256x1024xbf16>, vector<64x1024xf32> -> vector<64x1024xf32>
    %c0_166 = arith.constant 0 : index
    %c0_167 = arith.constant 0 : index
    %516 = vector.load %arg7[%c0_166, %c0_167] : memref<1x1024xf32, #tpu.memory_space<vmem>>, vector<1x1024xf32>
    %517 = vector.broadcast %516 : vector<1x1024xf32> to vector<64x1024xf32>
    %518 = arith.addf %515, %517 : vector<64x1024xf32>
    %c0_168 = arith.constant 0 : index
    %c0_169 = arith.constant 0 : index
    %519 = vector.load %arg13[%c0_168, %c0_169] : memref<64x1024xf32, #tpu.memory_space<vmem>>, vector<64x1024xf32>
    tpu.vector_store %arg13[%c0_168, %c0_169], %518 {strides = array<i32>} : memref<64x1024xf32, #tpu.memory_space<vmem>>, vector<64x1024xf32>,
    %c0_170 = arith.constant 0 : index
    %c0_171 = arith.constant 0 : index
    %520 = vector.load %arg13[%c0_170, %c0_171] : memref<64x1024xf32, #tpu.memory_space<vmem>>, vector<8x512xf32>
    %521 = arith.truncf %11 : vector<8x128xf32> to vector<8x128xbf16>
    %c0_172 = arith.constant 0 : index
    %c0_173 = arith.constant 0 : index
    %522 = vector.load %arg15[%c0_172, %c0_173] : memref<128x512xbf16, #tpu.memory_space<vmem>>, vector<128x512xbf16>
    %cst_174 = arith.constant dense<0.000000e+00> : vector<8x512xf32>
    %523 = tpu.matmul %521, %522, %cst_174 {dimension_numbers = #tpu.dot_dimension_numbers<[1], [0], [0], [1], [0, 0, 1, 1], [], []>} : vector<8x128xbf16>, vector<128x512xbf16>, vector<8x512xf32> -> vector<8x512xf32>
    %524 = arith.addf %520, %523 : vector<8x512xf32>
    %525 = vector.extract_strided_slice %524 {offsets = [0, 0], sizes = [8, 128], strides = [1, 1]} : vector<8x512xf32> to vector<8x128xf32>
    %526 = arith.negf %525 : vector<8x128xf32>
    %527 = math.exp %526 : vector<8x128xf32>
    %cst_175 = arith.constant 1.000000e+00 : f32
    %528 = vector.broadcast %cst_175 : f32 to vector<8x128xf32>
    %529 = arith.addf %528, %527 : vector<8x128xf32>
    %530 = arith.divf %528, %529 : vector<8x128xf32>
    %531 = vector.extract_strided_slice %524 {offsets = [0, 128], sizes = [8, 128], strides = [1, 1]} : vector<8x512xf32> to vector<8x128xf32>
    %532 = arith.negf %531 : vector<8x128xf32>
    %533 = math.exp %532 : vector<8x128xf32>
    %cst_176 = arith.constant 1.000000e+00 : f32
    %534 = vector.broadcast %cst_176 : f32 to vector<8x128xf32>
    %535 = arith.addf %534, %533 : vector<8x128xf32>
    %536 = arith.divf %534, %535 : vector<8x128xf32>
    %537 = vector.extract_strided_slice %524 {offsets = [0, 256], sizes = [8, 128], strides = [1, 1]} : vector<8x512xf32> to vector<8x128xf32>
    %538 = math.tanh %537 : vector<8x128xf32>
    %539 = vector.extract_strided_slice %524 {offsets = [0, 384], sizes = [8, 128], strides = [1, 1]} : vector<8x512xf32> to vector<8x128xf32>
    %540 = arith.negf %539 : vector<8x128xf32>
    %541 = math.exp %540 : vector<8x128xf32>
    %cst_177 = arith.constant 1.000000e+00 : f32
    %542 = vector.broadcast %cst_177 : f32 to vector<8x128xf32>
    %543 = arith.addf %542, %541 : vector<8x128xf32>
    %544 = arith.divf %542, %543 : vector<8x128xf32>
    %545 = arith.mulf %536, %11 : vector<8x128xf32>
    %546 = arith.mulf %530, %538 : vector<8x128xf32>
    %547 = arith.addf %545, %546 : vector<8x128xf32>
    %548 = math.tanh %547 : vector<8x128xf32>
    %549 = arith.mulf %544, %548 : vector<8x128xf32>
    %c8_178 = arith.constant 8 : index
    %c0_179 = arith.constant 0 : index
    %550 = vector.load %arg13[%c8_178, %c0_179] : memref<64x1024xf32, #tpu.memory_space<vmem>>, vector<8x512xf32>
    %551 = arith.truncf %549 : vector<8x128xf32> to vector<8x128xbf16>
    %c0_180 = arith.constant 0 : index
    %c0_181 = arith.constant 0 : index
    %552 = vector.load %arg15[%c0_180, %c0_181] : memref<128x512xbf16, #tpu.memory_space<vmem>>, vector<128x512xbf16>
    %cst_182 = arith.constant dense<0.000000e+00> : vector<8x512xf32>
    %553 = tpu.matmul %551, %552, %cst_182 {dimension_numbers = #tpu.dot_dimension_numbers<[1], [0], [0], [1], [0, 0, 1, 1], [], []>} : vector<8x128xbf16>, vector<128x512xbf16>, vector<8x512xf32> -> vector<8x512xf32>
    %554 = arith.addf %550, %553 : vector<8x512xf32>
    %555 = vector.extract_strided_slice %554 {offsets = [0, 0], sizes = [8, 128], strides = [1, 1]} : vector<8x512xf32> to vector<8x128xf32>
    %556 = arith.negf %555 : vector<8x128xf32>
    %557 = math.exp %556 : vector<8x128xf32>
    %cst_183 = arith.constant 1.000000e+00 : f32
    %558 = vector.broadcast %cst_183 : f32 to vector<8x128xf32>
    %559 = arith.addf %558, %557 : vector<8x128xf32>
    %560 = arith.divf %558, %559 : vector<8x128xf32>
    %561 = vector.extract_strided_slice %554 {offsets = [0, 128], sizes = [8, 128], strides = [1, 1]} : vector<8x512xf32> to vector<8x128xf32>
    %562 = arith.negf %561 : vector<8x128xf32>
    %563 = math.exp %562 : vector<8x128xf32>
    %cst_184 = arith.constant 1.000000e+00 : f32
    %564 = vector.broadcast %cst_184 : f32 to vector<8x128xf32>
    %565 = arith.addf %564, %563 : vector<8x128xf32>
    %566 = arith.divf %564, %565 : vector<8x128xf32>
    %567 = vector.extract_strided_slice %554 {offsets = [0, 256], sizes = [8, 128], strides = [1, 1]} : vector<8x512xf32> to vector<8x128xf32>
    %568 = math.tanh %567 : vector<8x128xf32>
    %569 = vector.extract_strided_slice %554 {offsets = [0, 384], sizes = [8, 128], strides = [1, 1]} : vector<8x512xf32> to vector<8x128xf32>
    %570 = arith.negf %569 : vector<8x128xf32>
    %571 = math.exp %570 : vector<8x128xf32>
    %cst_185 = arith.constant 1.000000e+00 : f32
    %572 = vector.broadcast %cst_185 : f32 to vector<8x128xf32>
    %573 = arith.addf %572, %571 : vector<8x128xf32>
    %574 = arith.divf %572, %573 : vector<8x128xf32>
    %575 = arith.mulf %566, %547 : vector<8x128xf32>
    %576 = arith.mulf %560, %568 : vector<8x128xf32>
    %577 = arith.addf %575, %576 : vector<8x128xf32>
    %578 = math.tanh %577 : vector<8x128xf32>
    %579 = arith.mulf %574, %578 : vector<8x128xf32>
    %c16_186 = arith.constant 16 : index
    %c0_187 = arith.constant 0 : index
    %580 = vector.load %arg13[%c16_186, %c0_187] : memref<64x1024xf32, #tpu.memory_space<vmem>>, vector<8x512xf32>
    %581 = arith.truncf %579 : vector<8x128xf32> to vector<8x128xbf16>
    %c0_188 = arith.constant 0 : index
    %c0_189 = arith.constant 0 : index
    %582 = vector.load %arg15[%c0_188, %c0_189] : memref<128x512xbf16, #tpu.memory_space<vmem>>, vector<128x512xbf16>
    %cst_190 = arith.constant dense<0.000000e+00> : vector<8x512xf32>
    %583 = tpu.matmul %581, %582, %cst_190 {dimension_numbers = #tpu.dot_dimension_numbers<[1], [0], [0], [1], [0, 0, 1, 1], [], []>} : vector<8x128xbf16>, vector<128x512xbf16>, vector<8x512xf32> -> vector<8x512xf32>
    %584 = arith.addf %580, %583 : vector<8x512xf32>
    %585 = vector.extract_strided_slice %584 {offsets = [0, 0], sizes = [8, 128], strides = [1, 1]} : vector<8x512xf32> to vector<8x128xf32>
    %586 = arith.negf %585 : vector<8x128xf32>
    %587 = math.exp %586 : vector<8x128xf32>
    %cst_191 = arith.constant 1.000000e+00 : f32
    %588 = vector.broadcast %cst_191 : f32 to vector<8x128xf32>
    %589 = arith.addf %588, %587 : vector<8x128xf32>
    %590 = arith.divf %588, %589 : vector<8x128xf32>
    %591 = vector.extract_strided_slice %584 {offsets = [0, 128], sizes = [8, 128], strides = [1, 1]} : vector<8x512xf32> to vector<8x128xf32>
    %592 = arith.negf %591 : vector<8x128xf32>
    %593 = math.exp %592 : vector<8x128xf32>
    %cst_192 = arith.constant 1.000000e+00 : f32
    %594 = vector.broadcast %cst_192 : f32 to vector<8x128xf32>
    %595 = arith.addf %594, %593 : vector<8x128xf32>
    %596 = arith.divf %594, %595 : vector<8x128xf32>
    %597 = vector.extract_strided_slice %584 {offsets = [0, 256], sizes = [8, 128], strides = [1, 1]} : vector<8x512xf32> to vector<8x128xf32>
    %598 = math.tanh %597 : vector<8x128xf32>
    %599 = vector.extract_strided_slice %584 {offsets = [0, 384], sizes = [8, 128], strides = [1, 1]} : vector<8x512xf32> to vector<8x128xf32>
    %600 = arith.negf %599 : vector<8x128xf32>
    %601 = math.exp %600 : vector<8x128xf32>
    %cst_193 = arith.constant 1.000000e+00 : f32
    %602 = vector.broadcast %cst_193 : f32 to vector<8x128xf32>
    %603 = arith.addf %602, %601 : vector<8x128xf32>
    %604 = arith.divf %602, %603 : vector<8x128xf32>
    %605 = arith.mulf %596, %577 : vector<8x128xf32>
    %606 = arith.mulf %590, %598 : vector<8x128xf32>
    %607 = arith.addf %605, %606 : vector<8x128xf32>
    %608 = math.tanh %607 : vector<8x128xf32>
    %609 = arith.mulf %604, %608 : vector<8x128xf32>
    %c24_194 = arith.constant 24 : index
    %c0_195 = arith.constant 0 : index
    %610 = vector.load %arg13[%c24_194, %c0_195] : memref<64x1024xf32, #tpu.memory_space<vmem>>, vector<8x512xf32>
    %611 = arith.truncf %609 : vector<8x128xf32> to vector<8x128xbf16>
    %c0_196 = arith.constant 0 : index
    %c0_197 = arith.constant 0 : index
    %612 = vector.load %arg15[%c0_196, %c0_197] : memref<128x512xbf16, #tpu.memory_space<vmem>>, vector<128x512xbf16>
    %cst_198 = arith.constant dense<0.000000e+00> : vector<8x512xf32>
    %613 = tpu.matmul %611, %612, %cst_198 {dimension_numbers = #tpu.dot_dimension_numbers<[1], [0], [0], [1], [0, 0, 1, 1], [], []>} : vector<8x128xbf16>, vector<128x512xbf16>, vector<8x512xf32> -> vector<8x512xf32>
    %614 = arith.addf %610, %613 : vector<8x512xf32>
    %615 = vector.extract_strided_slice %614 {offsets = [0, 0], sizes = [8, 128], strides = [1, 1]} : vector<8x512xf32> to vector<8x128xf32>
    %616 = arith.negf %615 : vector<8x128xf32>
    %617 = math.exp %616 : vector<8x128xf32>
    %cst_199 = arith.constant 1.000000e+00 : f32
    %618 = vector.broadcast %cst_199 : f32 to vector<8x128xf32>
    %619 = arith.addf %618, %617 : vector<8x128xf32>
    %620 = arith.divf %618, %619 : vector<8x128xf32>
    %621 = vector.extract_strided_slice %614 {offsets = [0, 128], sizes = [8, 128], strides = [1, 1]} : vector<8x512xf32> to vector<8x128xf32>
    %622 = arith.negf %621 : vector<8x128xf32>
    %623 = math.exp %622 : vector<8x128xf32>
    %cst_200 = arith.constant 1.000000e+00 : f32
    %624 = vector.broadcast %cst_200 : f32 to vector<8x128xf32>
    %625 = arith.addf %624, %623 : vector<8x128xf32>
    %626 = arith.divf %624, %625 : vector<8x128xf32>
    %627 = vector.extract_strided_slice %614 {offsets = [0, 256], sizes = [8, 128], strides = [1, 1]} : vector<8x512xf32> to vector<8x128xf32>
    %628 = math.tanh %627 : vector<8x128xf32>
    %629 = vector.extract_strided_slice %614 {offsets = [0, 384], sizes = [8, 128], strides = [1, 1]} : vector<8x512xf32> to vector<8x128xf32>
    %630 = arith.negf %629 : vector<8x128xf32>
    %631 = math.exp %630 : vector<8x128xf32>
    %cst_201 = arith.constant 1.000000e+00 : f32
    %632 = vector.broadcast %cst_201 : f32 to vector<8x128xf32>
    %633 = arith.addf %632, %631 : vector<8x128xf32>
    %634 = arith.divf %632, %633 : vector<8x128xf32>
    %635 = arith.mulf %626, %607 : vector<8x128xf32>
    %636 = arith.mulf %620, %628 : vector<8x128xf32>
    %637 = arith.addf %635, %636 : vector<8x128xf32>
    %638 = math.tanh %637 : vector<8x128xf32>
    %639 = arith.mulf %634, %638 : vector<8x128xf32>
    %c32_202 = arith.constant 32 : index
    %c0_203 = arith.constant 0 : index
    %640 = vector.load %arg13[%c32_202, %c0_203] : memref<64x1024xf32, #tpu.memory_space<vmem>>, vector<8x512xf32>
    %641 = arith.truncf %639 : vector<8x128xf32> to vector<8x128xbf16>
    %c0_204 = arith.constant 0 : index
    %c0_205 = arith.constant 0 : index
    %642 = vector.load %arg15[%c0_204, %c0_205] : memref<128x512xbf16, #tpu.memory_space<vmem>>, vector<128x512xbf16>
    %cst_206 = arith.constant dense<0.000000e+00> : vector<8x512xf32>
    %643 = tpu.matmul %641, %642, %cst_206 {dimension_numbers = #tpu.dot_dimension_numbers<[1], [0], [0], [1], [0, 0, 1, 1], [], []>} : vector<8x128xbf16>, vector<128x512xbf16>, vector<8x512xf32> -> vector<8x512xf32>
    %644 = arith.addf %640, %643 : vector<8x512xf32>
    %645 = vector.extract_strided_slice %644 {offsets = [0, 0], sizes = [8, 128], strides = [1, 1]} : vector<8x512xf32> to vector<8x128xf32>
    %646 = arith.negf %645 : vector<8x128xf32>
    %647 = math.exp %646 : vector<8x128xf32>
    %cst_207 = arith.constant 1.000000e+00 : f32
    %648 = vector.broadcast %cst_207 : f32 to vector<8x128xf32>
    %649 = arith.addf %648, %647 : vector<8x128xf32>
    %650 = arith.divf %648, %649 : vector<8x128xf32>
    %651 = vector.extract_strided_slice %644 {offsets = [0, 128], sizes = [8, 128], strides = [1, 1]} : vector<8x512xf32> to vector<8x128xf32>
    %652 = arith.negf %651 : vector<8x128xf32>
    %653 = math.exp %652 : vector<8x128xf32>
    %cst_208 = arith.constant 1.000000e+00 : f32
    %654 = vector.broadcast %cst_208 : f32 to vector<8x128xf32>
    %655 = arith.addf %654, %653 : vector<8x128xf32>
    %656 = arith.divf %654, %655 : vector<8x128xf32>
    %657 = vector.extract_strided_slice %644 {offsets = [0, 256], sizes = [8, 128], strides = [1, 1]} : vector<8x512xf32> to vector<8x128xf32>
    %658 = math.tanh %657 : vector<8x128xf32>
    %659 = vector.extract_strided_slice %644 {offsets = [0, 384], sizes = [8, 128], strides = [1, 1]} : vector<8x512xf32> to vector<8x128xf32>
    %660 = arith.negf %659 : vector<8x128xf32>
    %661 = math.exp %660 : vector<8x128xf32>
    %cst_209 = arith.constant 1.000000e+00 : f32
    %662 = vector.broadcast %cst_209 : f32 to vector<8x128xf32>
    %663 = arith.addf %662, %661 : vector<8x128xf32>
    %664 = arith.divf %662, %663 : vector<8x128xf32>
    %665 = arith.mulf %656, %637 : vector<8x128xf32>
    %666 = arith.mulf %650, %658 : vector<8x128xf32>
    %667 = arith.addf %665, %666 : vector<8x128xf32>
    %668 = math.tanh %667 : vector<8x128xf32>
    %669 = arith.mulf %664, %668 : vector<8x128xf32>
    %c40_210 = arith.constant 40 : index
    %c0_211 = arith.constant 0 : index
    %670 = vector.load %arg13[%c40_210, %c0_211] : memref<64x1024xf32, #tpu.memory_space<vmem>>, vector<8x512xf32>
    %671 = arith.truncf %669 : vector<8x128xf32> to vector<8x128xbf16>
    %c0_212 = arith.constant 0 : index
    %c0_213 = arith.constant 0 : index
    %672 = vector.load %arg15[%c0_212, %c0_213] : memref<128x512xbf16, #tpu.memory_space<vmem>>, vector<128x512xbf16>
    %cst_214 = arith.constant dense<0.000000e+00> : vector<8x512xf32>
    %673 = tpu.matmul %671, %672, %cst_214 {dimension_numbers = #tpu.dot_dimension_numbers<[1], [0], [0], [1], [0, 0, 1, 1], [], []>} : vector<8x128xbf16>, vector<128x512xbf16>, vector<8x512xf32> -> vector<8x512xf32>
    %674 = arith.addf %670, %673 : vector<8x512xf32>
    %675 = vector.extract_strided_slice %674 {offsets = [0, 0], sizes = [8, 128], strides = [1, 1]} : vector<8x512xf32> to vector<8x128xf32>
    %676 = arith.negf %675 : vector<8x128xf32>
    %677 = math.exp %676 : vector<8x128xf32>
    %cst_215 = arith.constant 1.000000e+00 : f32
    %678 = vector.broadcast %cst_215 : f32 to vector<8x128xf32>
    %679 = arith.addf %678, %677 : vector<8x128xf32>
    %680 = arith.divf %678, %679 : vector<8x128xf32>
    %681 = vector.extract_strided_slice %674 {offsets = [0, 128], sizes = [8, 128], strides = [1, 1]} : vector<8x512xf32> to vector<8x128xf32>
    %682 = arith.negf %681 : vector<8x128xf32>
    %683 = math.exp %682 : vector<8x128xf32>
    %cst_216 = arith.constant 1.000000e+00 : f32
    %684 = vector.broadcast %cst_216 : f32 to vector<8x128xf32>
    %685 = arith.addf %684, %683 : vector<8x128xf32>
    %686 = arith.divf %684, %685 : vector<8x128xf32>
    %687 = vector.extract_strided_slice %674 {offsets = [0, 256], sizes = [8, 128], strides = [1, 1]} : vector<8x512xf32> to vector<8x128xf32>
    %688 = math.tanh %687 : vector<8x128xf32>
    %689 = vector.extract_strided_slice %674 {offsets = [0, 384], sizes = [8, 128], strides = [1, 1]} : vector<8x512xf32> to vector<8x128xf32>
    %690 = arith.negf %689 : vector<8x128xf32>
    %691 = math.exp %690 : vector<8x128xf32>
    %cst_217 = arith.constant 1.000000e+00 : f32
    %692 = vector.broadcast %cst_217 : f32 to vector<8x128xf32>
    %693 = arith.addf %692, %691 : vector<8x128xf32>
    %694 = arith.divf %692, %693 : vector<8x128xf32>
    %695 = arith.mulf %686, %667 : vector<8x128xf32>
    %696 = arith.mulf %680, %688 : vector<8x128xf32>
    %697 = arith.addf %695, %696 : vector<8x128xf32>
    %698 = math.tanh %697 : vector<8x128xf32>
    %699 = arith.mulf %694, %698 : vector<8x128xf32>
    %c48_218 = arith.constant 48 : index
    %c0_219 = arith.constant 0 : index
    %700 = vector.load %arg13[%c48_218, %c0_219] : memref<64x1024xf32, #tpu.memory_space<vmem>>, vector<8x512xf32>
    %701 = arith.truncf %699 : vector<8x128xf32> to vector<8x128xbf16>
    %c0_220 = arith.constant 0 : index
    %c0_221 = arith.constant 0 : index
    %702 = vector.load %arg15[%c0_220, %c0_221] : memref<128x512xbf16, #tpu.memory_space<vmem>>, vector<128x512xbf16>
    %cst_222 = arith.constant dense<0.000000e+00> : vector<8x512xf32>
    %703 = tpu.matmul %701, %702, %cst_222 {dimension_numbers = #tpu.dot_dimension_numbers<[1], [0], [0], [1], [0, 0, 1, 1], [], []>} : vector<8x128xbf16>, vector<128x512xbf16>, vector<8x512xf32> -> vector<8x512xf32>
    %704 = arith.addf %700, %703 : vector<8x512xf32>
    %705 = vector.extract_strided_slice %704 {offsets = [0, 0], sizes = [8, 128], strides = [1, 1]} : vector<8x512xf32> to vector<8x128xf32>
    %706 = arith.negf %705 : vector<8x128xf32>
    %707 = math.exp %706 : vector<8x128xf32>
    %cst_223 = arith.constant 1.000000e+00 : f32
    %708 = vector.broadcast %cst_223 : f32 to vector<8x128xf32>
    %709 = arith.addf %708, %707 : vector<8x128xf32>
    %710 = arith.divf %708, %709 : vector<8x128xf32>
    %711 = vector.extract_strided_slice %704 {offsets = [0, 128], sizes = [8, 128], strides = [1, 1]} : vector<8x512xf32> to vector<8x128xf32>
    %712 = arith.negf %711 : vector<8x128xf32>
    %713 = math.exp %712 : vector<8x128xf32>
    %cst_224 = arith.constant 1.000000e+00 : f32
    %714 = vector.broadcast %cst_224 : f32 to vector<8x128xf32>
    %715 = arith.addf %714, %713 : vector<8x128xf32>
    %716 = arith.divf %714, %715 : vector<8x128xf32>
    %717 = vector.extract_strided_slice %704 {offsets = [0, 256], sizes = [8, 128], strides = [1, 1]} : vector<8x512xf32> to vector<8x128xf32>
    %718 = math.tanh %717 : vector<8x128xf32>
    %719 = vector.extract_strided_slice %704 {offsets = [0, 384], sizes = [8, 128], strides = [1, 1]} : vector<8x512xf32> to vector<8x128xf32>
    %720 = arith.negf %719 : vector<8x128xf32>
    %721 = math.exp %720 : vector<8x128xf32>
    %cst_225 = arith.constant 1.000000e+00 : f32
    %722 = vector.broadcast %cst_225 : f32 to vector<8x128xf32>
    %723 = arith.addf %722, %721 : vector<8x128xf32>
    %724 = arith.divf %722, %723 : vector<8x128xf32>
    %725 = arith.mulf %716, %697 : vector<8x128xf32>
    %726 = arith.mulf %710, %718 : vector<8x128xf32>
    %727 = arith.addf %725, %726 : vector<8x128xf32>
    %728 = math.tanh %727 : vector<8x128xf32>
    %729 = arith.mulf %724, %728 : vector<8x128xf32>
    %c56_226 = arith.constant 56 : index
    %c0_227 = arith.constant 0 : index
    %730 = vector.load %arg13[%c56_226, %c0_227] : memref<64x1024xf32, #tpu.memory_space<vmem>>, vector<8x512xf32>
    %731 = arith.truncf %729 : vector<8x128xf32> to vector<8x128xbf16>
    %c0_228 = arith.constant 0 : index
    %c0_229 = arith.constant 0 : index
    %732 = vector.load %arg15[%c0_228, %c0_229] : memref<128x512xbf16, #tpu.memory_space<vmem>>, vector<128x512xbf16>
    %cst_230 = arith.constant dense<0.000000e+00> : vector<8x512xf32>
    %733 = tpu.matmul %731, %732, %cst_230 {dimension_numbers = #tpu.dot_dimension_numbers<[1], [0], [0], [1], [0, 0, 1, 1], [], []>} : vector<8x128xbf16>, vector<128x512xbf16>, vector<8x512xf32> -> vector<8x512xf32>
    %734 = arith.addf %730, %733 : vector<8x512xf32>
    %735 = vector.extract_strided_slice %734 {offsets = [0, 0], sizes = [8, 128], strides = [1, 1]} : vector<8x512xf32> to vector<8x128xf32>
    %736 = arith.negf %735 : vector<8x128xf32>
    %737 = math.exp %736 : vector<8x128xf32>
    %cst_231 = arith.constant 1.000000e+00 : f32
    %738 = vector.broadcast %cst_231 : f32 to vector<8x128xf32>
    %739 = arith.addf %738, %737 : vector<8x128xf32>
    %740 = arith.divf %738, %739 : vector<8x128xf32>
    %741 = vector.extract_strided_slice %734 {offsets = [0, 128], sizes = [8, 128], strides = [1, 1]} : vector<8x512xf32> to vector<8x128xf32>
    %742 = arith.negf %741 : vector<8x128xf32>
    %743 = math.exp %742 : vector<8x128xf32>
    %cst_232 = arith.constant 1.000000e+00 : f32
    %744 = vector.broadcast %cst_232 : f32 to vector<8x128xf32>
    %745 = arith.addf %744, %743 : vector<8x128xf32>
    %746 = arith.divf %744, %745 : vector<8x128xf32>
    %747 = vector.extract_strided_slice %734 {offsets = [0, 256], sizes = [8, 128], strides = [1, 1]} : vector<8x512xf32> to vector<8x128xf32>
    %748 = math.tanh %747 : vector<8x128xf32>
    %749 = vector.extract_strided_slice %734 {offsets = [0, 384], sizes = [8, 128], strides = [1, 1]} : vector<8x512xf32> to vector<8x128xf32>
    %750 = arith.negf %749 : vector<8x128xf32>
    %751 = math.exp %750 : vector<8x128xf32>
    %cst_233 = arith.constant 1.000000e+00 : f32
    %752 = vector.broadcast %cst_233 : f32 to vector<8x128xf32>
    %753 = arith.addf %752, %751 : vector<8x128xf32>
    %754 = arith.divf %752, %753 : vector<8x128xf32>
    %755 = arith.mulf %746, %727 : vector<8x128xf32>
    %756 = arith.mulf %740, %748 : vector<8x128xf32>
    %757 = arith.addf %755, %756 : vector<8x128xf32>
    %758 = math.tanh %757 : vector<8x128xf32>
    %759 = arith.mulf %754, %758 : vector<8x128xf32>
    %c56_234 = arith.constant 56 : index
    %c512_235 = arith.constant 512 : index
    %760 = vector.load %arg13[%c56_234, %c512_235] : memref<64x1024xf32, #tpu.memory_space<vmem>>, vector<8x512xf32>
    %761 = vector.extract_strided_slice %760 {offsets = [0, 0], sizes = [8, 128], strides = [1, 1]} : vector<8x512xf32> to vector<8x128xf32>
    %762 = arith.negf %761 : vector<8x128xf32>
    %763 = math.exp %762 : vector<8x128xf32>
    %cst_236 = arith.constant 1.000000e+00 : f32
    %764 = vector.broadcast %cst_236 : f32 to vector<8x128xf32>
    %765 = arith.addf %764, %763 : vector<8x128xf32>
    %766 = arith.divf %764, %765 : vector<8x128xf32>
    %767 = vector.extract_strided_slice %760 {offsets = [0, 128], sizes = [8, 128], strides = [1, 1]} : vector<8x512xf32> to vector<8x128xf32>
    %768 = arith.negf %767 : vector<8x128xf32>
    %769 = math.exp %768 : vector<8x128xf32>
    %cst_237 = arith.constant 1.000000e+00 : f32
    %770 = vector.broadcast %cst_237 : f32 to vector<8x128xf32>
    %771 = arith.addf %770, %769 : vector<8x128xf32>
    %772 = arith.divf %770, %771 : vector<8x128xf32>
    %773 = vector.extract_strided_slice %760 {offsets = [0, 256], sizes = [8, 128], strides = [1, 1]} : vector<8x512xf32> to vector<8x128xf32>
    %774 = math.tanh %773 : vector<8x128xf32>
    %775 = vector.extract_strided_slice %760 {offsets = [0, 384], sizes = [8, 128], strides = [1, 1]} : vector<8x512xf32> to vector<8x128xf32>
    %776 = arith.negf %775 : vector<8x128xf32>
    %777 = math.exp %776 : vector<8x128xf32>
    %cst_238 = arith.constant 1.000000e+00 : f32
    %778 = vector.broadcast %cst_238 : f32 to vector<8x128xf32>
    %779 = arith.addf %778, %777 : vector<8x128xf32>
    %780 = arith.divf %778, %779 : vector<8x128xf32>
    %781 = arith.mulf %772, %11 : vector<8x128xf32>
    %782 = arith.mulf %766, %774 : vector<8x128xf32>
    %783 = arith.addf %781, %782 : vector<8x128xf32>
    %784 = math.tanh %783 : vector<8x128xf32>
    %785 = arith.mulf %780, %784 : vector<8x128xf32>
    %786 = arith.truncf %759 : vector<8x128xf32> to vector<8x128xbf16>
    %c0_239 = arith.constant 0 : index
    %c0_240 = arith.constant 0 : index
    %787 = vector.load %arg8[%c0_239, %c0_240] : memref<256x4xbf16, #tpu.memory_space<vmem>>, vector<128x4xbf16>
    %cst_241 = arith.constant dense<0.000000e+00> : vector<8x4xf32>
    %788 = tpu.matmul %786, %787, %cst_241 {dimension_numbers = #tpu.dot_dimension_numbers<[1], [0], [0], [1], [0, 0, 1, 1], [], []>} : vector<8x128xbf16>, vector<128x4xbf16>, vector<8x4xf32> -> vector<8x4xf32>
    %789 = arith.truncf %785 : vector<8x128xf32> to vector<8x128xbf16>
    %c128_242 = arith.constant 128 : index
    %c0_243 = arith.constant 0 : index
    %790 = vector.load %arg8[%c128_242, %c0_243] : memref<256x4xbf16, #tpu.memory_space<vmem>>, vector<128x4xbf16>
    %cst_244 = arith.constant dense<0.000000e+00> : vector<8x4xf32>
    %791 = tpu.matmul %789, %790, %cst_244 {dimension_numbers = #tpu.dot_dimension_numbers<[1], [0], [0], [1], [0, 0, 1, 1], [], []>} : vector<8x128xbf16>, vector<128x4xbf16>, vector<8x4xf32> -> vector<8x4xf32>
    %792 = arith.addf %788, %791 : vector<8x4xf32>
    %c0_245 = arith.constant 0 : index
    %c0_246 = arith.constant 0 : index
    %793 = vector.load %arg9[%c0_245, %c0_246] : memref<1x4xf32, #tpu.memory_space<vmem>>, vector<1x4xf32>
    %794 = vector.broadcast %793 : vector<1x4xf32> to vector<8x4xf32>
    %795 = arith.addf %792, %794 : vector<8x4xf32>
    %c0_247 = arith.constant 0 : index
    %c0_248 = arith.constant 0 : index
    %796 = vector.load %arg10[%c0_247, %c0_248] : memref<8x4xf32, #tpu.memory_space<vmem>>, vector<8x4xf32>
    tpu.vector_store %arg10[%c0_247, %c0_248], %795 {strides = array<i32>} : memref<8x4xf32, #tpu.memory_space<vmem>>, vector<8x4xf32>,
    return
  }
}

</mosaic_0001>

<llo_original>
// kernel: lstm_model_forward.1
$region0: #{lstm_model_forward.1}
  #allocation0 [shape = 'u32[]', space=smem, size = 0x4, offset = 0x4, fixed_abs, tag = 'smem constant byte address 0x4 - core index']
  #allocation1 [shape = 'u32[144,128]{1,0:T(1,128)}', space=vmem, size = 0x12000, scoped, tag = 'internal scratch']
  #allocation2 [shape = 'f32[64,1024]{1,0:T(8,128)}', space=vmem, size = 0x40000, scoped, tag = 'scratch operand']
  #allocation3 [shape = 'f32[64,256]{1,0:T(8,128)}', space=vmem, size = 0x10000, scoped, tag = 'scratch operand']
  #allocation4 [shape = 'f32[64,1024]{1,0:T(8,128)}', space=vmem, size = 0x40000, scoped, tag = 'scratch operand']
  #allocation5 [shape = 'bf16[256,1024]{1,0:T(16,128)(2,1)}', space=vmem, size = 0x80000, scoped, tag = 'scratch operand']
  #allocation6 [shape = 'bf16[128,512]{1,0:T(16,128)(2,1)}', space=vmem, size = 0x20000, scoped, tag = 'scratch operand']
  #allocation7 [shape = 's32[2]{0}', space=sflag, size = 0x8, scoped, tag = 'scratch operand']
  #allocation8 [shape = 's32[]', space=sflag, size = 0x4, offset = 0, fixed_abs, tag = 'sflag constant byte address 0x0 - dummy sync flag']
  #allocation9 [shape = 's32[]', space=sflag, size = 0x4, offset = 0, fixed_abs, tag = 'sflag constant byte address 0x0 - dummy sync flag']
  %s0 = inlined_call_operand.vmem [shape: bf16[64,10], index: 0, kind: input, shape index: {}]
  %s1 = inlined_call_operand.vmem [shape: bf16[10,1024], index: 1, kind: input, shape index: {}]
  %s2 = inlined_call_operand.vmem [shape: f32[1,1024], index: 2, kind: input, shape index: {}]
  %s3 = inlined_call_operand.vmem [shape: bf16[128,512], index: 3, kind: input, shape index: {}]
  %s4 = inlined_call_operand.vmem [shape: bf16[128,512], index: 4, kind: input, shape index: {}]
  %s5 = inlined_call_operand.vmem [shape: bf16[256,1024], index: 5, kind: input, shape index: {}]
  %s6 = inlined_call_operand.vmem [shape: bf16[128,512], index: 6, kind: input, shape index: {}]
  %s7 = inlined_call_operand.vmem [shape: f32[1,1024], index: 7, kind: input, shape index: {}]
  %s8 = inlined_call_operand.vmem [shape: bf16[256,4], index: 8, kind: input, shape index: {}]
  %s9 = inlined_call_operand.vmem [shape: f32[1,4], index: 9, kind: input, shape index: {}]
  %s10 = inlined_call_operand.vmem [shape: f32[8,4], index: 10, kind: output, shape index: {}]
  %s11 = sld [smem:[#allocation0]]
  $region116: #{lstm_model_forward.1} parent=0
    _
  %s13 = ssub.s32 1, %s11
  %s14 = scalar_select 0, %s13, %s11
  // Predicated region
  $region2: #{lstm_model_forward.1} parent=0 // pred_check
    _
  $region3: #{lstm_model_forward.1} parent=0 // pred_check_branch
    %16 = sbr.rel (0) target = $region5
  $region4: #{lstm_model_forward.1} parent=0 // pred_region
    _
  $region5: #{lstm_model_forward.1} parent=0 // pred_fallthru
    _
  // Predicated region
  $region6: #{lstm_model_forward.1} parent=0 // pred_check
    _
  $region7: #{lstm_model_forward.1} parent=0 // pred_check_branch
    %18 = sbr.rel (0) target = $region9
  $region8: #{lstm_model_forward.1} parent=0 // pred_region
    _
  $region9: #{lstm_model_forward.1} parent=0 // pred_fallthru
    _
  // Predicated region
  $region10: #{lstm_model_forward.1} parent=0 // pred_check
    _
  $region11: #{lstm_model_forward.1} parent=0 // pred_check_branch
    %20 = sbr.rel (0) target = $region13
  $region12: #{lstm_model_forward.1} parent=0 // pred_region
    _
  $region13: #{lstm_model_forward.1} parent=0 // pred_fallthru
    _
  // Predicated region
  $region14: #{lstm_model_forward.1} parent=0 // pred_check
    _
  $region15: #{lstm_model_forward.1} parent=0 // pred_check_branch
    %22 = sbr.rel (0) target = $region17
  $region16: #{lstm_model_forward.1} parent=0 // pred_region
    _
  $region17: #{lstm_model_forward.1} parent=0 // pred_fallthru
    _
  // Predicated region
  $region18: #{lstm_model_forward.1} parent=0 // pred_check
    _
  $region19: #{lstm_model_forward.1} parent=0 // pred_check_branch
    %24 = sbr.rel (0) target = $region21
  $region20: #{lstm_model_forward.1} parent=0 // pred_region
    _
  $region21: #{lstm_model_forward.1} parent=0 // pred_fallthru
    _
  // Predicated region
  $region22: #{lstm_model_forward.1} parent=0 // pred_check
    _
  $region23: #{lstm_model_forward.1} parent=0 // pred_check_branch
    %26 = sbr.rel (0) target = $region25
  $region24: #{lstm_model_forward.1} parent=0 // pred_region
    _
  $region25: #{lstm_model_forward.1} parent=0 // pred_fallthru
    _
  // Predicated region
  $region26: #{lstm_model_forward.1} parent=0 // pred_check
    _
  $region27: #{lstm_model_forward.1} parent=0 // pred_check_branch
    %28 = sbr.rel (0) target = $region29
  $region28: #{lstm_model_forward.1} parent=0 // pred_region
    _
  $region29: #{lstm_model_forward.1} parent=0 // pred_fallthru
    _
  // Predicated region
  $region30: #{lstm_model_forward.1} parent=0 // pred_check
    _
  $region31: #{lstm_model_forward.1} parent=0 // pred_check_branch
    %30 = sbr.rel (0) target = $region33
  $region32: #{lstm_model_forward.1} parent=0 // pred_region
    _
  $region33: #{lstm_model_forward.1} parent=0 // pred_fallthru
    _
  %p33 = scmp.lt.u32.totalorder 4, 8
  %p34 = pneg %p33
  // Predicated region
  $region34: #{lstm_model_forward.1} parent=0 // pred_check
    _
  $region35: #{lstm_model_forward.1} parent=0 // pred_check_branch
    %36 = sbr.rel (%p33) target = $region37
  $region36: #{lstm_model_forward.1} parent=0 // pred_region
    %s561 = sand.u32 4, 7
    %p562 = scmp.eq.s32.totalorder %s561, 0
    %p563 = pneg %p562
    // Predicated region
    $region49: #{lstm_model_forward.1} parent=36 // pred_check
      _
    $region50: #{lstm_model_forward.1} parent=36 // pred_check_branch
      %565 = sbr.rel (%p562) target = $region52
    $region51: #{lstm_model_forward.1} parent=36 // pred_region
      %s566 = sand.u32 4, 7
      %s567 = ssub.s32 4, %s566
      %s568 = scalar_lea.vmem %s5, %s567
      %s569 = ssub.s32 4, %s566
      %s570 = scalar_lea.vmem [#allocation5], %s569
      loop: start=0, step=1, limit=1
      $region53: #{lstm_model_forward.1} parent=51 // loop_pre_header
        _
      $region54: #{lstm_model_forward.1} parent=51 // loop_header
        %s572 = sphi 0, %s576
        %p573 = scmp.ge.s32.totalorder %s572, 1
        %s577 = sphi %s5, %s5
        %s578 = sphi [#allocation5], [#allocation5]
      $region55: #{lstm_model_forward.1} parent=51 // loop_header_branch
        %575 = sbr.rel (%p573) target = $region59
      $region56: #{lstm_model_forward.1} parent=51 // loop_body
        _
      $region57: #{lstm_model_forward.1} parent=51 // loop_footer
        %s576 = sadd.s32 1, %s572
      $region58: #{lstm_model_forward.1} parent=51 // loop_footer_branch
        %571 = sbr.rel target = $region54
      $region59: #{lstm_model_forward.1} parent=51 // loop_exit
        _
      %s579 = sshllo.u32 0, %s566
      loop: start=0, step=1, limit=1
      $region60: #{lstm_model_forward.1} parent=51 // loop_pre_header
        _
      $region61: #{lstm_model_forward.1} parent=51 // loop_header
        %s581 = sphi 0, %s585
        %p582 = scmp.ge.s32.totalorder %s581, 1
        %s586 = sphi %s568, %s568
        %s587 = sphi %s570, %s570
      $region62: #{lstm_model_forward.1} parent=51 // loop_header_branch
        %584 = sbr.rel (%p582) target = $region66
      $region63: #{lstm_model_forward.1} parent=51 // loop_body
        %v588 = vld [vmem:[%s586] sm:%s579]
        %589 = vst [vmem:[%s587] sm:%s579] %v588
        %v590 = vld [vmem:[%s586 + $0x20] sm:%s579]
        %591 = vst [vmem:[%s587 + $0x4] sm:%s579] %v590
        %v592 = vld [vmem:[%s586 + $0x4] sm:%s579]
        %593 = vst [vmem:[%s587 + $0x8] sm:%s579] %v592
        %v594 = vld [vmem:[%s586 + $0x24] sm:%s579]
        %595 = vst [vmem:[%s587 + $0xc] sm:%s579] %v594
        %v596 = vld [vmem:[%s586 + $0x8] sm:%s579]
        %597 = vst [vmem:[%s587 + $0x10] sm:%s579] %v596
        %v598 = vld [vmem:[%s586 + $0x28] sm:%s579]
        %599 = vst [vmem:[%s587 + $0x14] sm:%s579] %v598
        %v600 = vld [vmem:[%s586 + $0xc] sm:%s579]
        %601 = vst [vmem:[%s587 + $0x18] sm:%s579] %v600
        %v602 = vld [vmem:[%s586 + $0x2c] sm:%s579]
        %603 = vst [vmem:[%s587 + $0x1c] sm:%s579] %v602
        %v604 = vld [vmem:[%s586 + $0x10] sm:%s579]
        %605 = vst [vmem:[%s587 + $0x20] sm:%s579] %v604
        %v606 = vld [vmem:[%s586 + $0x30] sm:%s579]
        %607 = vst [vmem:[%s587 + $0x24] sm:%s579] %v606
        %v608 = vld [vmem:[%s586 + $0x14] sm:%s579]
        %609 = vst [vmem:[%s587 + $0x28] sm:%s579] %v608
        %v610 = vld [vmem:[%s586 + $0x34] sm:%s579]
        %611 = vst [vmem:[%s587 + $0x2c] sm:%s579] %v610
        %v612 = vld [vmem:[%s586 + $0x18] sm:%s579]
        %613 = vst [vmem:[%s587 + $0x30] sm:%s579] %v612
        %v614 = vld [vmem:[%s586 + $0x38] sm:%s579]
        %615 = vst [vmem:[%s587 + $0x34] sm:%s579] %v614
        %v616 = vld [vmem:[%s586 + $0x1c] sm:%s579]
        %617 = vst [vmem:[%s587 + $0x38] sm:%s579] %v616
        %v618 = vld [vmem:[%s586 + $0x3c] sm:%s579]
        %619 = vst [vmem:[%s587 + $0x3c] sm:%s579] %v618
        %v620 = vld [vmem:[%s586 + $0x40] sm:%s579]
        %621 = vst [vmem:[%s587 + $0x40] sm:%s579] %v620
        %v622 = vld [vmem:[%s586 + $0x60] sm:%s579]
        %623 = vst [vmem:[%s587 + $0x44] sm:%s579] %v622
        %v624 = vld [vmem:[%s586 + $0x44] sm:%s579]
        %625 = vst [vmem:[%s587 + $0x48] sm:%s579] %v624
        %v626 = vld [vmem:[%s586 + $0x64] sm:%s579]
        %627 = vst [vmem:[%s587 + $0x4c] sm:%s579] %v626
        %v628 = vld [vmem:[%s586 + $0x48] sm:%s579]
        %629 = vst [vmem:[%s587 + $0x50] sm:%s579] %v628
        %v630 = vld [vmem:[%s586 + $0x68] sm:%s579]
        %631 = vst [vmem:[%s587 + $0x54] sm:%s579] %v630
        %v632 = vld [vmem:[%s586 + $0x4c] sm:%s579]
        %633 = vst [vmem:[%s587 + $0x58] sm:%s579] %v632
        %v634 = vld [vmem:[%s586 + $0x6c] sm:%s579]
        %635 = vst [vmem:[%s587 + $0x5c] sm:%s579] %v634
        %v636 = vld [vmem:[%s586 + $0x50] sm:%s579]
        %637 = vst [vmem:[%s587 + $0x60] sm:%s579] %v636
        %v638 = vld [vmem:[%s586 + $0x70] sm:%s579]
        %639 = vst [vmem:[%s587 + $0x64] sm:%s579] %v638
        %v640 = vld [vmem:[%s586 + $0x54] sm:%s579]
        %641 = vst [vmem:[%s587 + $0x68] sm:%s579] %v640
        %v642 = vld [vmem:[%s586 + $0x74] sm:%s579]
        %643 = vst [vmem:[%s587 + $0x6c] sm:%s579] %v642
        %v644 = vld [vmem:[%s586 + $0x58] sm:%s579]
        %645 = vst [vmem:[%s587 + $0x70] sm:%s579] %v644
        %v646 = vld [vmem:[%s586 + $0x78] sm:%s579]
        %647 = vst [vmem:[%s587 + $0x74] sm:%s579] %v646
        %v648 = vld [vmem:[%s586 + $0x5c] sm:%s579]
        %649 = vst [vmem:[%s587 + $0x78] sm:%s579] %v648
        %v650 = vld [vmem:[%s586 + $0x7c] sm:%s579]
        %651 = vst [vmem:[%s587 + $0x7c] sm:%s579] %v650
        %v652 = vld [vmem:[%s586 + $0x80] sm:%s579]
        %653 = vst [vmem:[%s587 + $0x80] sm:%s579] %v652
        %v654 = vld [vmem:[%s586 + $0xa0] sm:%s579]
        %655 = vst [vmem:[%s587 + $0x84] sm:%s579] %v654
        %v656 = vld [vmem:[%s586 + $0x84] sm:%s579]
        %657 = vst [vmem:[%s587 + $0x88] sm:%s579] %v656
        %v658 = vld [vmem:[%s586 + $0xa4] sm:%s579]
        %659 = vst [vmem:[%s587 + $0x8c] sm:%s579] %v658
        %v660 = vld [vmem:[%s586 + $0x88] sm:%s579]
        %661 = vst [vmem:[%s587 + $0x90] sm:%s579] %v660
        %v662 = vld [vmem:[%s586 + $0xa8] sm:%s579]
        %663 = vst [vmem:[%s587 + $0x94] sm:%s579] %v662
        %v664 = vld [vmem:[%s586 + $0x8c] sm:%s579]
        %665 = vst [vmem:[%s587 + $0x98] sm:%s579] %v664
        %v666 = vld [vmem:[%s586 + $0xac] sm:%s579]
        %667 = vst [vmem:[%s587 + $0x9c] sm:%s579] %v666
        %v668 = vld [vmem:[%s586 + $0x90] sm:%s579]
        %669 = vst [vmem:[%s587 + $0xa0] sm:%s579] %v668
        %v670 = vld [vmem:[%s586 + $0xb0] sm:%s579]
        %671 = vst [vmem:[%s587 + $0xa4] sm:%s579] %v670
        %v672 = vld [vmem:[%s586 + $0x94] sm:%s579]
        %673 = vst [vmem:[%s587 + $0xa8] sm:%s579] %v672
        %v674 = vld [vmem:[%s586 + $0xb4] sm:%s579]
        %675 = vst [vmem:[%s587 + $0xac] sm:%s579] %v674
        %v676 = vld [vmem:[%s586 + $0x98] sm:%s579]
        %677 = vst [vmem:[%s587 + $0xb0] sm:%s579] %v676
        %v678 = vld [vmem:[%s586 + $0xb8] sm:%s579]
        %679 = vst [vmem:[%s587 + $0xb4] sm:%s579] %v678
        %v680 = vld [vmem:[%s586 + $0x9c] sm:%s579]
        %681 = vst [vmem:[%s587 + $0xb8] sm:%s579] %v680
        %v682 = vld [vmem:[%s586 + $0xbc] sm:%s579]
        %683 = vst [vmem:[%s587 + $0xbc] sm:%s579] %v682
        %v684 = vld [vmem:[%s586 + $0xc0] sm:%s579]
        %685 = vst [vmem:[%s587 + $0xc0] sm:%s579] %v684
        %v686 = vld [vmem:[%s586 + $0xe0] sm:%s579]
        %687 = vst [vmem:[%s587 + $0xc4] sm:%s579] %v686
        %v688 = vld [vmem:[%s586 + $0xc4] sm:%s579]
        %689 = vst [vmem:[%s587 + $0xc8] sm:%s579] %v688
        %v690 = vld [vmem:[%s586 + $0xe4] sm:%s579]
        %691 = vst [vmem:[%s587 + $0xcc] sm:%s579] %v690
        %v692 = vld [vmem:[%s586 + $0xc8] sm:%s579]
        %693 = vst [vmem:[%s587 + $0xd0] sm:%s579] %v692
        %v694 = vld [vmem:[%s586 + $0xe8] sm:%s579]
        %695 = vst [vmem:[%s587 + $0xd4] sm:%s579] %v694
        %v696 = vld [vmem:[%s586 + $0xcc] sm:%s579]
        %697 = vst [vmem:[%s587 + $0xd8] sm:%s579] %v696
        %v698 = vld [vmem:[%s586 + $0xec] sm:%s579]
        %699 = vst [vmem:[%s587 + $0xdc] sm:%s579] %v698
        %v700 = vld [vmem:[%s586 + $0xd0] sm:%s579]
        %701 = vst [vmem:[%s587 + $0xe0] sm:%s579] %v700
        %v702 = vld [vmem:[%s586 + $0xf0] sm:%s579]
        %703 = vst [vmem:[%s587 + $0xe4] sm:%s579] %v702
        %v704 = vld [vmem:[%s586 + $0xd4] sm:%s579]
        %705 = vst [vmem:[%s587 + $0xe8] sm:%s579] %v704
        %v706 = vld [vmem:[%s586 + $0xf4] sm:%s579]
        %707 = vst [vmem:[%s587 + $0xec] sm:%s579] %v706
        %v708 = vld [vmem:[%s586 + $0xd8] sm:%s579]
        %709 = vst [vmem:[%s587 + $0xf0] sm:%s579] %v708
        %v710 = vld [vmem:[%s586 + $0xf8] sm:%s579]
        %711 = vst [vmem:[%s587 + $0xf4] sm:%s579] %v710
        %v712 = vld [vmem:[%s586 + $0xdc] sm:%s579]
        %713 = vst [vmem:[%s587 + $0xf8] sm:%s579] %v712
        %v714 = vld [vmem:[%s586 + $0xfc] sm:%s579]
        %715 = vst [vmem:[%s587 + $0xfc] sm:%s579] %v714
        %v716 = vld [vmem:[%s586 + $0x100] sm:%s579]
        %717 = vst [vmem:[%s587 + $0x100] sm:%s579] %v716
        %v718 = vld [vmem:[%s586 + $0x120] sm:%s579]
        %719 = vst [vmem:[%s587 + $0x104] sm:%s579] %v718
        %v720 = vld [vmem:[%s586 + $0x104] sm:%s579]
        %721 = vst [vmem:[%s587 + $0x108] sm:%s579] %v720
        %v722 = vld [vmem:[%s586 + $0x124] sm:%s579]
        %723 = vst [vmem:[%s587 + $0x10c] sm:%s579] %v722
        %v724 = vld [vmem:[%s586 + $0x108] sm:%s579]
        %725 = vst [vmem:[%s587 + $0x110] sm:%s579] %v724
        %v726 = vld [vmem:[%s586 + $0x128] sm:%s579]
        %727 = vst [vmem:[%s587 + $0x114] sm:%s579] %v726
        %v728 = vld [vmem:[%s586 + $0x10c] sm:%s579]
        %729 = vst [vmem:[%s587 + $0x118] sm:%s579] %v728
        %v730 = vld [vmem:[%s586 + $0x12c] sm:%s579]
        %731 = vst [vmem:[%s587 + $0x11c] sm:%s579] %v730
        %v732 = vld [vmem:[%s586 + $0x110] sm:%s579]
        %733 = vst [vmem:[%s587 + $0x120] sm:%s579] %v732
        %v734 = vld [vmem:[%s586 + $0x130] sm:%s579]
        %735 = vst [vmem:[%s587 + $0x124] sm:%s579] %v734
        %v736 = vld [vmem:[%s586 + $0x114] sm:%s579]
        %737 = vst [vmem:[%s587 + $0x128] sm:%s579] %v736
        %v738 = vld [vmem:[%s586 + $0x134] sm:%s579]
        %739 = vst [vmem:[%s587 + $0x12c] sm:%s579] %v738
        %v740 = vld [vmem:[%s586 + $0x118] sm:%s579]
        %741 = vst [vmem:[%s587 + $0x130] sm:%s579] %v740
        %v742 = vld [vmem:[%s586 + $0x138] sm:%s579]
        %743 = vst [vmem:[%s587 + $0x134] sm:%s579] %v742
        %v744 = vld [vmem:[%s586 + $0x11c] sm:%s579]
        %745 = vst [vmem:[%s587 + $0x138] sm:%s579] %v744
        %v746 = vld [vmem:[%s586 + $0x13c] sm:%s579]
        %747 = vst [vmem:[%s587 + $0x13c] sm:%s579] %v746
        %v748 = vld [vmem:[%s586 + $0x140] sm:%s579]
        %749 = vst [vmem:[%s587 + $0x140] sm:%s579] %v748
        %v750 = vld [vmem:[%s586 + $0x160] sm:%s579]
        %751 = vst [vmem:[%s587 + $0x144] sm:%s579] %v750
        %v752 = vld [vmem:[%s586 + $0x144] sm:%s579]
        %753 = vst [vmem:[%s587 + $0x148] sm:%s579] %v752
        %v754 = vld [vmem:[%s586 + $0x164] sm:%s579]
        %755 = vst [vmem:[%s587 + $0x14c] sm:%s579] %v754
        %v756 = vld [vmem:[%s586 + $0x148] sm:%s579]
        %757 = vst [vmem:[%s587 + $0x150] sm:%s579] %v756
        %v758 = vld [vmem:[%s586 + $0x168] sm:%s579]
        %759 = vst [vmem:[%s587 + $0x154] sm:%s579] %v758
        %v760 = vld [vmem:[%s586 + $0x14c] sm:%s579]
        %761 = vst [vmem:[%s587 + $0x158] sm:%s579] %v760
        %v762 = vld [vmem:[%s586 + $0x16c] sm:%s579]
        %763 = vst [vmem:[%s587 + $0x15c] sm:%s579] %v762
        %v764 = vld [vmem:[%s586 + $0x150] sm:%s579]
        %765 = vst [vmem:[%s587 + $0x160] sm:%s579] %v764
        %v766 = vld [vmem:[%s586 + $0x170] sm:%s579]
        %767 = vst [vmem:[%s587 + $0x164] sm:%s579] %v766
        %v768 = vld [vmem:[%s586 + $0x154] sm:%s579]
        %769 = vst [vmem:[%s587 + $0x168] sm:%s579] %v768
        %v770 = vld [vmem:[%s586 + $0x174] sm:%s579]
        %771 = vst [vmem:[%s587 + $0x16c] sm:%s579] %v770
        %v772 = vld [vmem:[%s586 + $0x158] sm:%s579]
        %773 = vst [vmem:[%s587 + $0x170] sm:%s579] %v772
        %v774 = vld [vmem:[%s586 + $0x178] sm:%s579]
        %775 = vst [vmem:[%s587 + $0x174] sm:%s579] %v774
        %v776 = vld [vmem:[%s586 + $0x15c] sm:%s579]
        %777 = vst [vmem:[%s587 + $0x178] sm:%s579] %v776
        %v778 = vld [vmem:[%s586 + $0x17c] sm:%s579]
        %779 = vst [vmem:[%s587 + $0x17c] sm:%s579] %v778
        %v780 = vld [vmem:[%s586 + $0x180] sm:%s579]
        %781 = vst [vmem:[%s587 + $0x180] sm:%s579] %v780
        %v782 = vld [vmem:[%s586 + $0x1a0] sm:%s579]
        %783 = vst [vmem:[%s587 + $0x184] sm:%s579] %v782
        %v784 = vld [vmem:[%s586 + $0x184] sm:%s579]
        %785 = vst [vmem:[%s587 + $0x188] sm:%s579] %v784
        %v786 = vld [vmem:[%s586 + $0x1a4] sm:%s579]
        %787 = vst [vmem:[%s587 + $0x18c] sm:%s579] %v786
        %v788 = vld [vmem:[%s586 + $0x188] sm:%s579]
        %789 = vst [vmem:[%s587 + $0x190] sm:%s579] %v788
        %v790 = vld [vmem:[%s586 + $0x1a8] sm:%s579]
        %791 = vst [vmem:[%s587 + $0x194] sm:%s579] %v790
        %v792 = vld [vmem:[%s586 + $0x18c] sm:%s579]
        %793 = vst [vmem:[%s587 + $0x198] sm:%s579] %v792
        %v794 = vld [vmem:[%s586 + $0x1ac] sm:%s579]
        %795 = vst [vmem:[%s587 + $0x19c] sm:%s579] %v794
        %v796 = vld [vmem:[%s586 + $0x190] sm:%s579]
        %797 = vst [vmem:[%s587 + $0x1a0] sm:%s579] %v796
        %v798 = vld [vmem:[%s586 + $0x1b0] sm:%s579]
        %799 = vst [vmem:[%s587 + $0x1a4] sm:%s579] %v798
        %v800 = vld [vmem:[%s586 + $0x194] sm:%s579]
        %801 = vst [vmem:[%s587 + $0x1a8] sm:%s579] %v800
        %v802 = vld [vmem:[%s586 + $0x1b4] sm:%s579]
        %803 = vst [vmem:[%s587 + $0x1ac] sm:%s579] %v802
        %v804 = vld [vmem:[%s586 + $0x198] sm:%s579]
        %805 = vst [vmem:[%s587 + $0x1b0] sm:%s579] %v804
        %v806 = vld [vmem:[%s586 + $0x1b8] sm:%s579]
        %807 = vst [vmem:[%s587 + $0x1b4] sm:%s579] %v806
        %v808 = vld [vmem:[%s586 + $0x19c] sm:%s579]
        %809 = vst [vmem:[%s587 + $0x1b8] sm:%s579] %v808
        %v810 = vld [vmem:[%s586 + $0x1bc] sm:%s579]
        %811 = vst [vmem:[%s587 + $0x1bc] sm:%s579] %v810
        %v812 = vld [vmem:[%s586 + $0x1c0] sm:%s579]
        %813 = vst [vmem:[%s587 + $0x1c0] sm:%s579] %v812
        %v814 = vld [vmem:[%s586 + $0x1e0] sm:%s579]
        %815 = vst [vmem:[%s587 + $0x1c4] sm:%s579] %v814
        %v816 = vld [vmem:[%s586 + $0x1c4] sm:%s579]
        %817 = vst [vmem:[%s587 + $0x1c8] sm:%s579] %v816
        %v818 = vld [vmem:[%s586 + $0x1e4] sm:%s579]
        %819 = vst [vmem:[%s587 + $0x1cc] sm:%s579] %v818
        %v820 = vld [vmem:[%s586 + $0x1c8] sm:%s579]
        %821 = vst [vmem:[%s587 + $0x1d0] sm:%s579] %v820
        %v822 = vld [vmem:[%s586 + $0x1e8] sm:%s579]
        %823 = vst [vmem:[%s587 + $0x1d4] sm:%s579] %v822
        %v824 = vld [vmem:[%s586 + $0x1cc] sm:%s579]
        %825 = vst [vmem:[%s587 + $0x1d8] sm:%s579] %v824
        %v826 = vld [vmem:[%s586 + $0x1ec] sm:%s579]
        %827 = vst [vmem:[%s587 + $0x1dc] sm:%s579] %v826
        %v828 = vld [vmem:[%s586 + $0x1d0] sm:%s579]
        %829 = vst [vmem:[%s587 + $0x1e0] sm:%s579] %v828
        %v830 = vld [vmem:[%s586 + $0x1f0] sm:%s579]
        %831 = vst [vmem:[%s587 + $0x1e4] sm:%s579] %v830
        %v832 = vld [vmem:[%s586 + $0x1d4] sm:%s579]
        %833 = vst [vmem:[%s587 + $0x1e8] sm:%s579] %v832
        %v834 = vld [vmem:[%s586 + $0x1f4] sm:%s579]
        %835 = vst [vmem:[%s587 + $0x1ec] sm:%s579] %v834
        %v836 = vld [vmem:[%s586 + $0x1d8] sm:%s579]
        %837 = vst [vmem:[%s587 + $0x1f0] sm:%s579] %v836
        %v838 = vld [vmem:[%s586 + $0x1f8] sm:%s579]
        %839 = vst [vmem:[%s587 + $0x1f4] sm:%s579] %v838
        %v840 = vld [vmem:[%s586 + $0x1dc] sm:%s579]
        %841 = vst [vmem:[%s587 + $0x1f8] sm:%s579] %v840
        %v842 = vld [vmem:[%s586 + $0x1fc] sm:%s579]
        %843 = vst [vmem:[%s587 + $0x1fc] sm:%s579] %v842
        %v844 = vld [vmem:[%s586 + $0x200] sm:%s579]
        %845 = vst [vmem:[%s587 + $0x200] sm:%s579] %v844
        %v846 = vld [vmem:[%s586 + $0x220] sm:%s579]
        %847 = vst [vmem:[%s587 + $0x204] sm:%s579] %v846
        %v848 = vld [vmem:[%s586 + $0x204] sm:%s579]
        %849 = vst [vmem:[%s587 + $0x208] sm:%s579] %v848
        %v850 = vld [vmem:[%s586 + $0x224] sm:%s579]
        %851 = vst [vmem:[%s587 + $0x20c] sm:%s579] %v850
        %v852 = vld [vmem:[%s586 + $0x208] sm:%s579]
        %853 = vst [vmem:[%s587 + $0x210] sm:%s579] %v852
        %v854 = vld [vmem:[%s586 + $0x228] sm:%s579]
        %855 = vst [vmem:[%s587 + $0x214] sm:%s579] %v854
        %v856 = vld [vmem:[%s586 + $0x20c] sm:%s579]
        %857 = vst [vmem:[%s587 + $0x218] sm:%s579] %v856
        %v858 = vld [vmem:[%s586 + $0x22c] sm:%s579]
        %859 = vst [vmem:[%s587 + $0x21c] sm:%s579] %v858
        %v860 = vld [vmem:[%s586 + $0x210] sm:%s579]
        %861 = vst [vmem:[%s587 + $0x220] sm:%s579] %v860
        %v862 = vld [vmem:[%s586 + $0x230] sm:%s579]
        %863 = vst [vmem:[%s587 + $0x224] sm:%s579] %v862
        %v864 = vld [vmem:[%s586 + $0x214] sm:%s579]
        %865 = vst [vmem:[%s587 + $0x228] sm:%s579] %v864
        %v866 = vld [vmem:[%s586 + $0x234] sm:%s579]
        %867 = vst [vmem:[%s587 + $0x22c] sm:%s579] %v866
        %v868 = vld [vmem:[%s586 + $0x218] sm:%s579]
        %869 = vst [vmem:[%s587 + $0x230] sm:%s579] %v868
        %v870 = vld [vmem:[%s586 + $0x238] sm:%s579]
        %871 = vst [vmem:[%s587 + $0x234] sm:%s579] %v870
        %v872 = vld [vmem:[%s586 + $0x21c] sm:%s579]
        %873 = vst [vmem:[%s587 + $0x238] sm:%s579] %v872
        %v874 = vld [vmem:[%s586 + $0x23c] sm:%s579]
        %875 = vst [vmem:[%s587 + $0x23c] sm:%s579] %v874
        %v876 = vld [vmem:[%s586 + $0x240] sm:%s579]
        %877 = vst [vmem:[%s587 + $0x240] sm:%s579] %v876
        %v878 = vld [vmem:[%s586 + $0x260] sm:%s579]
        %879 = vst [vmem:[%s587 + $0x244] sm:%s579] %v878
        %v880 = vld [vmem:[%s586 + $0x244] sm:%s579]
        %881 = vst [vmem:[%s587 + $0x248] sm:%s579] %v880
        %v882 = vld [vmem:[%s586 + $0x264] sm:%s579]
        %883 = vst [vmem:[%s587 + $0x24c] sm:%s579] %v882
        %v884 = vld [vmem:[%s586 + $0x248] sm:%s579]
        %885 = vst [vmem:[%s587 + $0x250] sm:%s579] %v884
        %v886 = vld [vmem:[%s586 + $0x268] sm:%s579]
        %887 = vst [vmem:[%s587 + $0x254] sm:%s579] %v886
        %v888 = vld [vmem:[%s586 + $0x24c] sm:%s579]
        %889 = vst [vmem:[%s587 + $0x258] sm:%s579] %v888
        %v890 = vld [vmem:[%s586 + $0x26c] sm:%s579]
        %891 = vst [vmem:[%s587 + $0x25c] sm:%s579] %v890
        %v892 = vld [vmem:[%s586 + $0x250] sm:%s579]
        %893 = vst [vmem:[%s587 + $0x260] sm:%s579] %v892
        %v894 = vld [vmem:[%s586 + $0x270] sm:%s579]
        %895 = vst [vmem:[%s587 + $0x264] sm:%s579] %v894
        %v896 = vld [vmem:[%s586 + $0x254] sm:%s579]
        %897 = vst [vmem:[%s587 + $0x268] sm:%s579] %v896
        %v898 = vld [vmem:[%s586 + $0x274] sm:%s579]
        %899 = vst [vmem:[%s587 + $0x26c] sm:%s579] %v898
        %v900 = vld [vmem:[%s586 + $0x258] sm:%s579]
        %901 = vst [vmem:[%s587 + $0x270] sm:%s579] %v900
        %v902 = vld [vmem:[%s586 + $0x278] sm:%s579]
        %903 = vst [vmem:[%s587 + $0x274] sm:%s579] %v902
        %v904 = vld [vmem:[%s586 + $0x25c] sm:%s579]
        %905 = vst [vmem:[%s587 + $0x278] sm:%s579] %v904
        %v906 = vld [vmem:[%s586 + $0x27c] sm:%s579]
        %907 = vst [vmem:[%s587 + $0x27c] sm:%s579] %v906
        %v908 = vld [vmem:[%s586 + $0x280] sm:%s579]
        %909 = vst [vmem:[%s587 + $0x280] sm:%s579] %v908
        %v910 = vld [vmem:[%s586 + $0x2a0] sm:%s579]
        %911 = vst [vmem:[%s587 + $0x284] sm:%s579] %v910
        %v912 = vld [vmem:[%s586 + $0x284] sm:%s579]
        %913 = vst [vmem:[%s587 + $0x288] sm:%s579] %v912
        %v914 = vld [vmem:[%s586 + $0x2a4] sm:%s579]
        %915 = vst [vmem:[%s587 + $0x28c] sm:%s579] %v914
        %v916 = vld [vmem:[%s586 + $0x288] sm:%s579]
        %917 = vst [vmem:[%s587 + $0x290] sm:%s579] %v916
        %v918 = vld [vmem:[%s586 + $0x2a8] sm:%s579]
        %919 = vst [vmem:[%s587 + $0x294] sm:%s579] %v918
        %v920 = vld [vmem:[%s586 + $0x28c] sm:%s579]
        %921 = vst [vmem:[%s587 + $0x298] sm:%s579] %v920
        %v922 = vld [vmem:[%s586 + $0x2ac] sm:%s579]
        %923 = vst [vmem:[%s587 + $0x29c] sm:%s579] %v922
        %v924 = vld [vmem:[%s586 + $0x290] sm:%s579]
        %925 = vst [vmem:[%s587 + $0x2a0] sm:%s579] %v924
        %v926 = vld [vmem:[%s586 + $0x2b0] sm:%s579]
        %927 = vst [vmem:[%s587 + $0x2a4] sm:%s579] %v926
        %v928 = vld [vmem:[%s586 + $0x294] sm:%s579]
        %929 = vst [vmem:[%s587 + $0x2a8] sm:%s579] %v928
        %v930 = vld [vmem:[%s586 + $0x2b4] sm:%s579]
        %931 = vst [vmem:[%s587 + $0x2ac] sm:%s579] %v930
        %v932 = vld [vmem:[%s586 + $0x298] sm:%s579]
        %933 = vst [vmem:[%s587 + $0x2b0] sm:%s579] %v932
        %v934 = vld [vmem:[%s586 + $0x2b8] sm:%s579]
        %935 = vst [vmem:[%s587 + $0x2b4] sm:%s579] %v934
        %v936 = vld [vmem:[%s586 + $0x29c] sm:%s579]
        %937 = vst [vmem:[%s587 + $0x2b8] sm:%s579] %v936
        %v938 = vld [vmem:[%s586 + $0x2bc] sm:%s579]
        %939 = vst [vmem:[%s587 + $0x2bc] sm:%s579] %v938
        %v940 = vld [vmem:[%s586 + $0x2c0] sm:%s579]
        %941 = vst [vmem:[%s587 + $0x2c0] sm:%s579] %v940
        %v942 = vld [vmem:[%s586 + $0x2e0] sm:%s579]
        %943 = vst [vmem:[%s587 + $0x2c4] sm:%s579] %v942
        %v944 = vld [vmem:[%s586 + $0x2c4] sm:%s579]
        %945 = vst [vmem:[%s587 + $0x2c8] sm:%s579] %v944
        %v946 = vld [vmem:[%s586 + $0x2e4] sm:%s579]
        %947 = vst [vmem:[%s587 + $0x2cc] sm:%s579] %v946
        %v948 = vld [vmem:[%s586 + $0x2c8] sm:%s579]
        %949 = vst [vmem:[%s587 + $0x2d0] sm:%s579] %v948
        %v950 = vld [vmem:[%s586 + $0x2e8] sm:%s579]
        %951 = vst [vmem:[%s587 + $0x2d4] sm:%s579] %v950
        %v952 = vld [vmem:[%s586 + $0x2cc] sm:%s579]
        %953 = vst [vmem:[%s587 + $0x2d8] sm:%s579] %v952
        %v954 = vld [vmem:[%s586 + $0x2ec] sm:%s579]
        %955 = vst [vmem:[%s587 + $0x2dc] sm:%s579] %v954
        %v956 = vld [vmem:[%s586 + $0x2d0] sm:%s579]
        %957 = vst [vmem:[%s587 + $0x2e0] sm:%s579] %v956
        %v958 = vld [vmem:[%s586 + $0x2f0] sm:%s579]
        %959 = vst [vmem:[%s587 + $0x2e4] sm:%s579] %v958
        %v960 = vld [vmem:[%s586 + $0x2d4] sm:%s579]
        %961 = vst [vmem:[%s587 + $0x2e8] sm:%s579] %v960
        %v962 = vld [vmem:[%s586 + $0x2f4] sm:%s579]
        %963 = vst [vmem:[%s587 + $0x2ec] sm:%s579] %v962
        %v964 = vld [vmem:[%s586 + $0x2d8] sm:%s579]
        %965 = vst [vmem:[%s587 + $0x2f0] sm:%s579] %v964
        %v966 = vld [vmem:[%s586 + $0x2f8] sm:%s579]
        %967 = vst [vmem:[%s587 + $0x2f4] sm:%s579] %v966
        %v968 = vld [vmem:[%s586 + $0x2dc] sm:%s579]
        %969 = vst [vmem:[%s587 + $0x2f8] sm:%s579] %v968
        %v970 = vld [vmem:[%s586 + $0x2fc] sm:%s579]
        %971 = vst [vmem:[%s587 + $0x2fc] sm:%s579] %v970
        %v972 = vld [vmem:[%s586 + $0x300] sm:%s579]
        %973 = vst [vmem:[%s587 + $0x300] sm:%s579] %v972
        %v974 = vld [vmem:[%s586 + $0x320] sm:%s579]
        %975 = vst [vmem:[%s587 + $0x304] sm:%s579] %v974
        %v976 = vld [vmem:[%s586 + $0x304] sm:%s579]
        %977 = vst [vmem:[%s587 + $0x308] sm:%s579] %v976
        %v978 = vld [vmem:[%s586 + $0x324] sm:%s579]
        %979 = vst [vmem:[%s587 + $0x30c] sm:%s579] %v978
        %v980 = vld [vmem:[%s586 + $0x308] sm:%s579]
        %981 = vst [vmem:[%s587 + $0x310] sm:%s579] %v980
        %v982 = vld [vmem:[%s586 + $0x328] sm:%s579]
        %983 = vst [vmem:[%s587 + $0x314] sm:%s579] %v982
        %v984 = vld [vmem:[%s586 + $0x30c] sm:%s579]
        %985 = vst [vmem:[%s587 + $0x318] sm:%s579] %v984
        %v986 = vld [vmem:[%s586 + $0x32c] sm:%s579]
        %987 = vst [vmem:[%s587 + $0x31c] sm:%s579] %v986
        %v988 = vld [vmem:[%s586 + $0x310] sm:%s579]
        %989 = vst [vmem:[%s587 + $0x320] sm:%s579] %v988
        %v990 = vld [vmem:[%s586 + $0x330] sm:%s579]
        %991 = vst [vmem:[%s587 + $0x324] sm:%s579] %v990
        %v992 = vld [vmem:[%s586 + $0x314] sm:%s579]
        %993 = vst [vmem:[%s587 + $0x328] sm:%s579] %v992
        %v994 = vld [vmem:[%s586 + $0x334] sm:%s579]
        %995 = vst [vmem:[%s587 + $0x32c] sm:%s579] %v994
        %v996 = vld [vmem:[%s586 + $0x318] sm:%s579]
        %997 = vst [vmem:[%s587 + $0x330] sm:%s579] %v996
        %v998 = vld [vmem:[%s586 + $0x338] sm:%s579]
        %999 = vst [vmem:[%s587 + $0x334] sm:%s579] %v998
        %v1000 = vld [vmem:[%s586 + $0x31c] sm:%s579]
        %1001 = vst [vmem:[%s587 + $0x338] sm:%s579] %v1000
        %v1002 = vld [vmem:[%s586 + $0x33c] sm:%s579]
        %1003 = vst [vmem:[%s587 + $0x33c] sm:%s579] %v1002
        %v1004 = vld [vmem:[%s586 + $0x340] sm:%s579]
        %1005 = vst [vmem:[%s587 + $0x340] sm:%s579] %v1004
        %v1006 = vld [vmem:[%s586 + $0x360] sm:%s579]
        %1007 = vst [vmem:[%s587 + $0x344] sm:%s579] %v1006
        %v1008 = vld [vmem:[%s586 + $0x344] sm:%s579]
        %1009 = vst [vmem:[%s587 + $0x348] sm:%s579] %v1008
        %v1010 = vld [vmem:[%s586 + $0x364] sm:%s579]
        %1011 = vst [vmem:[%s587 + $0x34c] sm:%s579] %v1010
        %v1012 = vld [vmem:[%s586 + $0x348] sm:%s579]
        %1013 = vst [vmem:[%s587 + $0x350] sm:%s579] %v1012
        %v1014 = vld [vmem:[%s586 + $0x368] sm:%s579]
        %1015 = vst [vmem:[%s587 + $0x354] sm:%s579] %v1014
        %v1016 = vld [vmem:[%s586 + $0x34c] sm:%s579]
        %1017 = vst [vmem:[%s587 + $0x358] sm:%s579] %v1016
        %v1018 = vld [vmem:[%s586 + $0x36c] sm:%s579]
        %1019 = vst [vmem:[%s587 + $0x35c] sm:%s579] %v1018
        %v1020 = vld [vmem:[%s586 + $0x350] sm:%s579]
        %1021 = vst [vmem:[%s587 + $0x360] sm:%s579] %v1020
        %v1022 = vld [vmem:[%s586 + $0x370] sm:%s579]
        %1023 = vst [vmem:[%s587 + $0x364] sm:%s579] %v1022
        %v1024 = vld [vmem:[%s586 + $0x354] sm:%s579]
        %1025 = vst [vmem:[%s587 + $0x368] sm:%s579] %v1024
        %v1026 = vld [vmem:[%s586 + $0x374] sm:%s579]
        %1027 = vst [vmem:[%s587 + $0x36c] sm:%s579] %v1026
        %v1028 = vld [vmem:[%s586 + $0x358] sm:%s579]
        %1029 = vst [vmem:[%s587 + $0x370] sm:%s579] %v1028
        %v1030 = vld [vmem:[%s586 + $0x378] sm:%s579]
        %1031 = vst [vmem:[%s587 + $0x374] sm:%s579] %v1030
        %v1032 = vld [vmem:[%s586 + $0x35c] sm:%s579]
        %1033 = vst [vmem:[%s587 + $0x378] sm:%s579] %v1032
        %v1034 = vld [vmem:[%s586 + $0x37c] sm:%s579]
        %1035 = vst [vmem:[%s587 + $0x37c] sm:%s579] %v1034
        %v1036 = vld [vmem:[%s586 + $0x380] sm:%s579]
        %1037 = vst [vmem:[%s587 + $0x380] sm:%s579] %v1036
        %v1038 = vld [vmem:[%s586 + $0x3a0] sm:%s579]
        %1039 = vst [vmem:[%s587 + $0x384] sm:%s579] %v1038
        %v1040 = vld [vmem:[%s586 + $0x384] sm:%s579]
        %1041 = vst [vmem:[%s587 + $0x388] sm:%s579] %v1040
        %v1042 = vld [vmem:[%s586 + $0x3a4] sm:%s579]
        %1043 = vst [vmem:[%s587 + $0x38c] sm:%s579] %v1042
        %v1044 = vld [vmem:[%s586 + $0x388] sm:%s579]
        %1045 = vst [vmem:[%s587 + $0x390] sm:%s579] %v1044
        %v1046 = vld [vmem:[%s586 + $0x3a8] sm:%s579]
        %1047 = vst [vmem:[%s587 + $0x394] sm:%s579] %v1046
        %v1048 = vld [vmem:[%s586 + $0x38c] sm:%s579]
        %1049 = vst [vmem:[%s587 + $0x398] sm:%s579] %v1048
        %v1050 = vld [vmem:[%s586 + $0x3ac] sm:%s579]
        %1051 = vst [vmem:[%s587 + $0x39c] sm:%s579] %v1050
        %v1052 = vld [vmem:[%s586 + $0x390] sm:%s579]
        %1053 = vst [vmem:[%s587 + $0x3a0] sm:%s579] %v1052
        %v1054 = vld [vmem:[%s586 + $0x3b0] sm:%s579]
        %1055 = vst [vmem:[%s587 + $0x3a4] sm:%s579] %v1054
        %v1056 = vld [vmem:[%s586 + $0x394] sm:%s579]
        %1057 = vst [vmem:[%s587 + $0x3a8] sm:%s579] %v1056
        %v1058 = vld [vmem:[%s586 + $0x3b4] sm:%s579]
        %1059 = vst [vmem:[%s587 + $0x3ac] sm:%s579] %v1058
        %v1060 = vld [vmem:[%s586 + $0x398] sm:%s579]
        %1061 = vst [vmem:[%s587 + $0x3b0] sm:%s579] %v1060
        %v1062 = vld [vmem:[%s586 + $0x3b8] sm:%s579]
        %1063 = vst [vmem:[%s587 + $0x3b4] sm:%s579] %v1062
        %v1064 = vld [vmem:[%s586 + $0x39c] sm:%s579]
        %1065 = vst [vmem:[%s587 + $0x3b8] sm:%s579] %v1064
        %v1066 = vld [vmem:[%s586 + $0x3bc] sm:%s579]
        %1067 = vst [vmem:[%s587 + $0x3bc] sm:%s579] %v1066
        %v1068 = vld [vmem:[%s586 + $0x3c0] sm:%s579]
        %1069 = vst [vmem:[%s587 + $0x3c0] sm:%s579] %v1068
        %v1070 = vld [vmem:[%s586 + $0x3e0] sm:%s579]
        %1071 = vst [vmem:[%s587 + $0x3c4] sm:%s579] %v1070
        %v1072 = vld [vmem:[%s586 + $0x3c4] sm:%s579]
        %1073 = vst [vmem:[%s587 + $0x3c8] sm:%s579] %v1072
        %v1074 = vld [vmem:[%s586 + $0x3e4] sm:%s579]
        %1075 = vst [vmem:[%s587 + $0x3cc] sm:%s579] %v1074
        %v1076 = vld [vmem:[%s586 + $0x3c8] sm:%s579]
        %1077 = vst [vmem:[%s587 + $0x3d0] sm:%s579] %v1076
        %v1078 = vld [vmem:[%s586 + $0x3e8] sm:%s579]
        %1079 = vst [vmem:[%s587 + $0x3d4] sm:%s579] %v1078
        %v1080 = vld [vmem:[%s586 + $0x3cc] sm:%s579]
        %1081 = vst [vmem:[%s587 + $0x3d8] sm:%s579] %v1080
        %v1082 = vld [vmem:[%s586 + $0x3ec] sm:%s579]
        %1083 = vst [vmem:[%s587 + $0x3dc] sm:%s579] %v1082
        %v1084 = vld [vmem:[%s586 + $0x3d0] sm:%s579]
        %1085 = vst [vmem:[%s587 + $0x3e0] sm:%s579] %v1084
        %v1086 = vld [vmem:[%s586 + $0x3f0] sm:%s579]
        %1087 = vst [vmem:[%s587 + $0x3e4] sm:%s579] %v1086
        %v1088 = vld [vmem:[%s586 + $0x3d4] sm:%s579]
        %1089 = vst [vmem:[%s587 + $0x3e8] sm:%s579] %v1088
        %v1090 = vld [vmem:[%s586 + $0x3f4] sm:%s579]
        %1091 = vst [vmem:[%s587 + $0x3ec] sm:%s579] %v1090
        %v1092 = vld [vmem:[%s586 + $0x3d8] sm:%s579]
        %1093 = vst [vmem:[%s587 + $0x3f0] sm:%s579] %v1092
        %v1094 = vld [vmem:[%s586 + $0x3f8] sm:%s579]
        %1095 = vst [vmem:[%s587 + $0x3f4] sm:%s579] %v1094
        %v1096 = vld [vmem:[%s586 + $0x3dc] sm:%s579]
        %1097 = vst [vmem:[%s587 + $0x3f8] sm:%s579] %v1096
        %v1098 = vld [vmem:[%s586 + $0x3fc] sm:%s579]
        %1099 = vst [vmem:[%s587 + $0x3fc] sm:%s579] %v1098
      $region64: #{lstm_model_forward.1} parent=51 // loop_footer
        %s585 = sadd.s32 1, %s581
      $region65: #{lstm_model_forward.1} parent=51 // loop_footer_branch
        %580 = sbr.rel target = $region61
      $region66: #{lstm_model_forward.1} parent=51 // loop_exit
        _
    $region52: #{lstm_model_forward.1} parent=36 // pred_fallthru
      _
  $region37: #{lstm_model_forward.1} parent=0 // pred_fallthru
    _
  // Predicated region
  $region38: #{lstm_model_forward.1} parent=0 // pred_check
    %p37 = pneg %p33
  $region39: #{lstm_model_forward.1} parent=0 // pred_check_branch
    %39 = sbr.rel (%p37) target = $region41
  $region40: #{lstm_model_forward.1} parent=0 // pred_region
    %s40 = sshllo.u32 0, 4
    loop: start=0, step=1, limit=1
    $region42: #{lstm_model_forward.1} parent=40 // loop_pre_header
      _
    $region43: #{lstm_model_forward.1} parent=40 // loop_header
      %s42 = sphi 0, %s46
      %p43 = scmp.ge.s32.totalorder %s42, 1
      %s47 = sphi %s5, %s5
      %s48 = sphi [#allocation5], [#allocation5]
    $region44: #{lstm_model_forward.1} parent=40 // loop_header_branch
      %45 = sbr.rel (%p43) target = $region48
    $region45: #{lstm_model_forward.1} parent=40 // loop_body
      %v49 = vld [vmem:[%s47] sm:%s40]
      %50 = vst [vmem:[%s48] sm:%s40] %v49
      %v51 = vld [vmem:[%s47 + $0x20] sm:%s40]
      %52 = vst [vmem:[%s48 + $0x4] sm:%s40] %v51
      %v53 = vld [vmem:[%s47 + $0x4] sm:%s40]
      %54 = vst [vmem:[%s48 + $0x8] sm:%s40] %v53
      %v55 = vld [vmem:[%s47 + $0x24] sm:%s40]
      %56 = vst [vmem:[%s48 + $0xc] sm:%s40] %v55
      %v57 = vld [vmem:[%s47 + $0x8] sm:%s40]
      %58 = vst [vmem:[%s48 + $0x10] sm:%s40] %v57
      %v59 = vld [vmem:[%s47 + $0x28] sm:%s40]
      %60 = vst [vmem:[%s48 + $0x14] sm:%s40] %v59
      %v61 = vld [vmem:[%s47 + $0xc] sm:%s40]
      %62 = vst [vmem:[%s48 + $0x18] sm:%s40] %v61
      %v63 = vld [vmem:[%s47 + $0x2c] sm:%s40]
      %64 = vst [vmem:[%s48 + $0x1c] sm:%s40] %v63
      %v65 = vld [vmem:[%s47 + $0x10] sm:%s40]
      %66 = vst [vmem:[%s48 + $0x20] sm:%s40] %v65
      %v67 = vld [vmem:[%s47 + $0x30] sm:%s40]
      %68 = vst [vmem:[%s48 + $0x24] sm:%s40] %v67
      %v69 = vld [vmem:[%s47 + $0x14] sm:%s40]
      %70 = vst [vmem:[%s48 + $0x28] sm:%s40] %v69
      %v71 = vld [vmem:[%s47 + $0x34] sm:%s40]
      %72 = vst [vmem:[%s48 + $0x2c] sm:%s40] %v71
      %v73 = vld [vmem:[%s47 + $0x18] sm:%s40]
      %74 = vst [vmem:[%s48 + $0x30] sm:%s40] %v73
      %v75 = vld [vmem:[%s47 + $0x38] sm:%s40]
      %76 = vst [vmem:[%s48 + $0x34] sm:%s40] %v75
      %v77 = vld [vmem:[%s47 + $0x1c] sm:%s40]
      %78 = vst [vmem:[%s48 + $0x38] sm:%s40] %v77
      %v79 = vld [vmem:[%s47 + $0x3c] sm:%s40]
      %80 = vst [vmem:[%s48 + $0x3c] sm:%s40] %v79
      %v81 = vld [vmem:[%s47 + $0x40] sm:%s40]
      %82 = vst [vmem:[%s48 + $0x40] sm:%s40] %v81
      %v83 = vld [vmem:[%s47 + $0x60] sm:%s40]
      %84 = vst [vmem:[%s48 + $0x44] sm:%s40] %v83
      %v85 = vld [vmem:[%s47 + $0x44] sm:%s40]
      %86 = vst [vmem:[%s48 + $0x48] sm:%s40] %v85
      %v87 = vld [vmem:[%s47 + $0x64] sm:%s40]
      %88 = vst [vmem:[%s48 + $0x4c] sm:%s40] %v87
      %v89 = vld [vmem:[%s47 + $0x48] sm:%s40]
      %90 = vst [vmem:[%s48 + $0x50] sm:%s40] %v89
      %v91 = vld [vmem:[%s47 + $0x68] sm:%s40]
      %92 = vst [vmem:[%s48 + $0x54] sm:%s40] %v91
      %v93 = vld [vmem:[%s47 + $0x4c] sm:%s40]
      %94 = vst [vmem:[%s48 + $0x58] sm:%s40] %v93
      %v95 = vld [vmem:[%s47 + $0x6c] sm:%s40]
      %96 = vst [vmem:[%s48 + $0x5c] sm:%s40] %v95
      %v97 = vld [vmem:[%s47 + $0x50] sm:%s40]
      %98 = vst [vmem:[%s48 + $0x60] sm:%s40] %v97
      %v99 = vld [vmem:[%s47 + $0x70] sm:%s40]
      %100 = vst [vmem:[%s48 + $0x64] sm:%s40] %v99
      %v101 = vld [vmem:[%s47 + $0x54] sm:%s40]
      %102 = vst [vmem:[%s48 + $0x68] sm:%s40] %v101
      %v103 = vld [vmem:[%s47 + $0x74] sm:%s40]
      %104 = vst [vmem:[%s48 + $0x6c] sm:%s40] %v103
      %v105 = vld [vmem:[%s47 + $0x58] sm:%s40]
      %106 = vst [vmem:[%s48 + $0x70] sm:%s40] %v105
      %v107 = vld [vmem:[%s47 + $0x78] sm:%s40]
      %108 = vst [vmem:[%s48 + $0x74] sm:%s40] %v107
      %v109 = vld [vmem:[%s47 + $0x5c] sm:%s40]
      %110 = vst [vmem:[%s48 + $0x78] sm:%s40] %v109
      %v111 = vld [vmem:[%s47 + $0x7c] sm:%s40]
      %112 = vst [vmem:[%s48 + $0x7c] sm:%s40] %v111
      %v113 = vld [vmem:[%s47 + $0x80] sm:%s40]
      %114 = vst [vmem:[%s48 + $0x80] sm:%s40] %v113
      %v115 = vld [vmem:[%s47 + $0xa0] sm:%s40]
      %116 = vst [vmem:[%s48 + $0x84] sm:%s40] %v115
      %v117 = vld [vmem:[%s47 + $0x84] sm:%s40]
      %118 = vst [vmem:[%s48 + $0x88] sm:%s40] %v117
      %v119 = vld [vmem:[%s47 + $0xa4] sm:%s40]
      %120 = vst [vmem:[%s48 + $0x8c] sm:%s40] %v119
      %v121 = vld [vmem:[%s47 + $0x88] sm:%s40]
      %122 = vst [vmem:[%s48 + $0x90] sm:%s40] %v121
      %v123 = vld [vmem:[%s47 + $0xa8] sm:%s40]
      %124 = vst [vmem:[%s48 + $0x94] sm:%s40] %v123
      %v125 = vld [vmem:[%s47 + $0x8c] sm:%s40]
      %126 = vst [vmem:[%s48 + $0x98] sm:%s40] %v125
      %v127 = vld [vmem:[%s47 + $0xac] sm:%s40]
      %128 = vst [vmem:[%s48 + $0x9c] sm:%s40] %v127
      %v129 = vld [vmem:[%s47 + $0x90] sm:%s40]
      %130 = vst [vmem:[%s48 + $0xa0] sm:%s40] %v129
      %v131 = vld [vmem:[%s47 + $0xb0] sm:%s40]
      %132 = vst [vmem:[%s48 + $0xa4] sm:%s40] %v131
      %v133 = vld [vmem:[%s47 + $0x94] sm:%s40]
      %134 = vst [vmem:[%s48 + $0xa8] sm:%s40] %v133
      %v135 = vld [vmem:[%s47 + $0xb4] sm:%s40]
      %136 = vst [vmem:[%s48 + $0xac] sm:%s40] %v135
      %v137 = vld [vmem:[%s47 + $0x98] sm:%s40]
      %138 = vst [vmem:[%s48 + $0xb0] sm:%s40] %v137
      %v139 = vld [vmem:[%s47 + $0xb8] sm:%s40]
      %140 = vst [vmem:[%s48 + $0xb4] sm:%s40] %v139
      %v141 = vld [vmem:[%s47 + $0x9c] sm:%s40]
      %142 = vst [vmem:[%s48 + $0xb8] sm:%s40] %v141
      %v143 = vld [vmem:[%s47 + $0xbc] sm:%s40]
      %144 = vst [vmem:[%s48 + $0xbc] sm:%s40] %v143
      %v145 = vld [vmem:[%s47 + $0xc0] sm:%s40]
      %146 = vst [vmem:[%s48 + $0xc0] sm:%s40] %v145
      %v147 = vld [vmem:[%s47 + $0xe0] sm:%s40]
      %148 = vst [vmem:[%s48 + $0xc4] sm:%s40] %v147
      %v149 = vld [vmem:[%s47 + $0xc4] sm:%s40]
      %150 = vst [vmem:[%s48 + $0xc8] sm:%s40] %v149
      %v151 = vld [vmem:[%s47 + $0xe4] sm:%s40]
      %152 = vst [vmem:[%s48 + $0xcc] sm:%s40] %v151
      %v153 = vld [vmem:[%s47 + $0xc8] sm:%s40]
      %154 = vst [vmem:[%s48 + $0xd0] sm:%s40] %v153
      %v155 = vld [vmem:[%s47 + $0xe8] sm:%s40]
      %156 = vst [vmem:[%s48 + $0xd4] sm:%s40] %v155
      %v157 = vld [vmem:[%s47 + $0xcc] sm:%s40]
      %158 = vst [vmem:[%s48 + $0xd8] sm:%s40] %v157
      %v159 = vld [vmem:[%s47 + $0xec] sm:%s40]
      %160 = vst [vmem:[%s48 + $0xdc] sm:%s40] %v159
      %v161 = vld [vmem:[%s47 + $0xd0] sm:%s40]
      %162 = vst [vmem:[%s48 + $0xe0] sm:%s40] %v161
      %v163 = vld [vmem:[%s47 + $0xf0] sm:%s40]
      %164 = vst [vmem:[%s48 + $0xe4] sm:%s40] %v163
      %v165 = vld [vmem:[%s47 + $0xd4] sm:%s40]
      %166 = vst [vmem:[%s48 + $0xe8] sm:%s40] %v165
      %v167 = vld [vmem:[%s47 + $0xf4] sm:%s40]
      %168 = vst [vmem:[%s48 + $0xec] sm:%s40] %v167
      %v169 = vld [vmem:[%s47 + $0xd8] sm:%s40]
      %170 = vst [vmem:[%s48 + $0xf0] sm:%s40] %v169
      %v171 = vld [vmem:[%s47 + $0xf8] sm:%s40]
      %172 = vst [vmem:[%s48 + $0xf4] sm:%s40] %v171
      %v173 = vld [vmem:[%s47 + $0xdc] sm:%s40]
      %174 = vst [vmem:[%s48 + $0xf8] sm:%s40] %v173
      %v175 = vld [vmem:[%s47 + $0xfc] sm:%s40]
      %176 = vst [vmem:[%s48 + $0xfc] sm:%s40] %v175
      %v177 = vld [vmem:[%s47 + $0x100] sm:%s40]
      %178 = vst [vmem:[%s48 + $0x100] sm:%s40] %v177
      %v179 = vld [vmem:[%s47 + $0x120] sm:%s40]
      %180 = vst [vmem:[%s48 + $0x104] sm:%s40] %v179
      %v181 = vld [vmem:[%s47 + $0x104] sm:%s40]
      %182 = vst [vmem:[%s48 + $0x108] sm:%s40] %v181
      %v183 = vld [vmem:[%s47 + $0x124] sm:%s40]
      %184 = vst [vmem:[%s48 + $0x10c] sm:%s40] %v183
      %v185 = vld [vmem:[%s47 + $0x108] sm:%s40]
      %186 = vst [vmem:[%s48 + $0x110] sm:%s40] %v185
      %v187 = vld [vmem:[%s47 + $0x128] sm:%s40]
      %188 = vst [vmem:[%s48 + $0x114] sm:%s40] %v187
      %v189 = vld [vmem:[%s47 + $0x10c] sm:%s40]
      %190 = vst [vmem:[%s48 + $0x118] sm:%s40] %v189
      %v191 = vld [vmem:[%s47 + $0x12c] sm:%s40]
      %192 = vst [vmem:[%s48 + $0x11c] sm:%s40] %v191
      %v193 = vld [vmem:[%s47 + $0x110] sm:%s40]
      %194 = vst [vmem:[%s48 + $0x120] sm:%s40] %v193
      %v195 = vld [vmem:[%s47 + $0x130] sm:%s40]
      %196 = vst [vmem:[%s48 + $0x124] sm:%s40] %v195
      %v197 = vld [vmem:[%s47 + $0x114] sm:%s40]
      %198 = vst [vmem:[%s48 + $0x128] sm:%s40] %v197
      %v199 = vld [vmem:[%s47 + $0x134] sm:%s40]
      %200 = vst [vmem:[%s48 + $0x12c] sm:%s40] %v199
      %v201 = vld [vmem:[%s47 + $0x118] sm:%s40]
      %202 = vst [vmem:[%s48 + $0x130] sm:%s40] %v201
      %v203 = vld [vmem:[%s47 + $0x138] sm:%s40]
      %204 = vst [vmem:[%s48 + $0x134] sm:%s40] %v203
      %v205 = vld [vmem:[%s47 + $0x11c] sm:%s40]
      %206 = vst [vmem:[%s48 + $0x138] sm:%s40] %v205
      %v207 = vld [vmem:[%s47 + $0x13c] sm:%s40]
      %208 = vst [vmem:[%s48 + $0x13c] sm:%s40] %v207
      %v209 = vld [vmem:[%s47 + $0x140] sm:%s40]
      %210 = vst [vmem:[%s48 + $0x140] sm:%s40] %v209
      %v211 = vld [vmem:[%s47 + $0x160] sm:%s40]
      %212 = vst [vmem:[%s48 + $0x144] sm:%s40] %v211
      %v213 = vld [vmem:[%s47 + $0x144] sm:%s40]
      %214 = vst [vmem:[%s48 + $0x148] sm:%s40] %v213
      %v215 = vld [vmem:[%s47 + $0x164] sm:%s40]
      %216 = vst [vmem:[%s48 + $0x14c] sm:%s40] %v215
      %v217 = vld [vmem:[%s47 + $0x148] sm:%s40]
      %218 = vst [vmem:[%s48 + $0x150] sm:%s40] %v217
      %v219 = vld [vmem:[%s47 + $0x168] sm:%s40]
      %220 = vst [vmem:[%s48 + $0x154] sm:%s40] %v219
      %v221 = vld [vmem:[%s47 + $0x14c] sm:%s40]
      %222 = vst [vmem:[%s48 + $0x158] sm:%s40] %v221
      %v223 = vld [vmem:[%s47 + $0x16c] sm:%s40]
      %224 = vst [vmem:[%s48 + $0x15c] sm:%s40] %v223
      %v225 = vld [vmem:[%s47 + $0x150] sm:%s40]
      %226 = vst [vmem:[%s48 + $0x160] sm:%s40] %v225
      %v227 = vld [vmem:[%s47 + $0x170] sm:%s40]
      %228 = vst [vmem:[%s48 + $0x164] sm:%s40] %v227
      %v229 = vld [vmem:[%s47 + $0x154] sm:%s40]
      %230 = vst [vmem:[%s48 + $0x168] sm:%s40] %v229
      %v231 = vld [vmem:[%s47 + $0x174] sm:%s40]
      %232 = vst [vmem:[%s48 + $0x16c] sm:%s40] %v231
      %v233 = vld [vmem:[%s47 + $0x158] sm:%s40]
      %234 = vst [vmem:[%s48 + $0x170] sm:%s40] %v233
      %v235 = vld [vmem:[%s47 + $0x178] sm:%s40]
      %236 = vst [vmem:[%s48 + $0x174] sm:%s40] %v235
      %v237 = vld [vmem:[%s47 + $0x15c] sm:%s40]
      %238 = vst [vmem:[%s48 + $0x178] sm:%s40] %v237
      %v239 = vld [vmem:[%s47 + $0x17c] sm:%s40]
      %240 = vst [vmem:[%s48 + $0x17c] sm:%s40] %v239
      %v241 = vld [vmem:[%s47 + $0x180] sm:%s40]
      %242 = vst [vmem:[%s48 + $0x180] sm:%s40] %v241
      %v243 = vld [vmem:[%s47 + $0x1a0] sm:%s40]
      %244 = vst [vmem:[%s48 + $0x184] sm:%s40] %v243
      %v245 = vld [vmem:[%s47 + $0x184] sm:%s40]
      %246 = vst [vmem:[%s48 + $0x188] sm:%s40] %v245
      %v247 = vld [vmem:[%s47 + $0x1a4] sm:%s40]
      %248 = vst [vmem:[%s48 + $0x18c] sm:%s40] %v247
      %v249 = vld [vmem:[%s47 + $0x188] sm:%s40]
      %250 = vst [vmem:[%s48 + $0x190] sm:%s40] %v249
      %v251 = vld [vmem:[%s47 + $0x1a8] sm:%s40]
      %252 = vst [vmem:[%s48 + $0x194] sm:%s40] %v251
      %v253 = vld [vmem:[%s47 + $0x18c] sm:%s40]
      %254 = vst [vmem:[%s48 + $0x198] sm:%s40] %v253
      %v255 = vld [vmem:[%s47 + $0x1ac] sm:%s40]
      %256 = vst [vmem:[%s48 + $0x19c] sm:%s40] %v255
      %v257 = vld [vmem:[%s47 + $0x190] sm:%s40]
      %258 = vst [vmem:[%s48 + $0x1a0] sm:%s40] %v257
      %v259 = vld [vmem:[%s47 + $0x1b0] sm:%s40]
      %260 = vst [vmem:[%s48 + $0x1a4] sm:%s40] %v259
      %v261 = vld [vmem:[%s47 + $0x194] sm:%s40]
      %262 = vst [vmem:[%s48 + $0x1a8] sm:%s40] %v261
      %v263 = vld [vmem:[%s47 + $0x1b4] sm:%s40]
      %264 = vst [vmem:[%s48 + $0x1ac] sm:%s40] %v263
      %v265 = vld [vmem:[%s47 + $0x198] sm:%s40]
      %266 = vst [vmem:[%s48 + $0x1b0] sm:%s40] %v265
      %v267 = vld [vmem:[%s47 + $0x1b8] sm:%s40]
      %268 = vst [vmem:[%s48 + $0x1b4] sm:%s40] %v267
      %v269 = vld [vmem:[%s47 + $0x19c] sm:%s40]
      %270 = vst [vmem:[%s48 + $0x1b8] sm:%s40] %v269
      %v271 = vld [vmem:[%s47 + $0x1bc] sm:%s40]
      %272 = vst [vmem:[%s48 + $0x1bc] sm:%s40] %v271
      %v273 = vld [vmem:[%s47 + $0x1c0] sm:%s40]
      %274 = vst [vmem:[%s48 + $0x1c0] sm:%s40] %v273
      %v275 = vld [vmem:[%s47 + $0x1e0] sm:%s40]
      %276 = vst [vmem:[%s48 + $0x1c4] sm:%s40] %v275
      %v277 = vld [vmem:[%s47 + $0x1c4] sm:%s40]
      %278 = vst [vmem:[%s48 + $0x1c8] sm:%s40] %v277
      %v279 = vld [vmem:[%s47 + $0x1e4] sm:%s40]
      %280 = vst [vmem:[%s48 + $0x1cc] sm:%s40] %v279
      %v281 = vld [vmem:[%s47 + $0x1c8] sm:%s40]
      %282 = vst [vmem:[%s48 + $0x1d0] sm:%s40] %v281
      %v283 = vld [vmem:[%s47 + $0x1e8] sm:%s40]
      %284 = vst [vmem:[%s48 + $0x1d4] sm:%s40] %v283
      %v285 = vld [vmem:[%s47 + $0x1cc] sm:%s40]
      %286 = vst [vmem:[%s48 + $0x1d8] sm:%s40] %v285
      %v287 = vld [vmem:[%s47 + $0x1ec] sm:%s40]
      %288 = vst [vmem:[%s48 + $0x1dc] sm:%s40] %v287
      %v289 = vld [vmem:[%s47 + $0x1d0] sm:%s40]
      %290 = vst [vmem:[%s48 + $0x1e0] sm:%s40] %v289
      %v291 = vld [vmem:[%s47 + $0x1f0] sm:%s40]
      %292 = vst [vmem:[%s48 + $0x1e4] sm:%s40] %v291
      %v293 = vld [vmem:[%s47 + $0x1d4] sm:%s40]
      %294 = vst [vmem:[%s48 + $0x1e8] sm:%s40] %v293
      %v295 = vld [vmem:[%s47 + $0x1f4] sm:%s40]
      %296 = vst [vmem:[%s48 + $0x1ec] sm:%s40] %v295
      %v297 = vld [vmem:[%s47 + $0x1d8] sm:%s40]
      %298 = vst [vmem:[%s48 + $0x1f0] sm:%s40] %v297
      %v299 = vld [vmem:[%s47 + $0x1f8] sm:%s40]
      %300 = vst [vmem:[%s48 + $0x1f4] sm:%s40] %v299
      %v301 = vld [vmem:[%s47 + $0x1dc] sm:%s40]
      %302 = vst [vmem:[%s48 + $0x1f8] sm:%s40] %v301
      %v303 = vld [vmem:[%s47 + $0x1fc] sm:%s40]
      %304 = vst [vmem:[%s48 + $0x1fc] sm:%s40] %v303
      %v305 = vld [vmem:[%s47 + $0x200] sm:%s40]
      %306 = vst [vmem:[%s48 + $0x200] sm:%s40] %v305
      %v307 = vld [vmem:[%s47 + $0x220] sm:%s40]
      %308 = vst [vmem:[%s48 + $0x204] sm:%s40] %v307
      %v309 = vld [vmem:[%s47 + $0x204] sm:%s40]
      %310 = vst [vmem:[%s48 + $0x208] sm:%s40] %v309
      %v311 = vld [vmem:[%s47 + $0x224] sm:%s40]
      %312 = vst [vmem:[%s48 + $0x20c] sm:%s40] %v311
      %v313 = vld [vmem:[%s47 + $0x208] sm:%s40]
      %314 = vst [vmem:[%s48 + $0x210] sm:%s40] %v313
      %v315 = vld [vmem:[%s47 + $0x228] sm:%s40]
      %316 = vst [vmem:[%s48 + $0x214] sm:%s40] %v315
      %v317 = vld [vmem:[%s47 + $0x20c] sm:%s40]
      %318 = vst [vmem:[%s48 + $0x218] sm:%s40] %v317
      %v319 = vld [vmem:[%s47 + $0x22c] sm:%s40]
      %320 = vst [vmem:[%s48 + $0x21c] sm:%s40] %v319
      %v321 = vld [vmem:[%s47 + $0x210] sm:%s40]
      %322 = vst [vmem:[%s48 + $0x220] sm:%s40] %v321
      %v323 = vld [vmem:[%s47 + $0x230] sm:%s40]
      %324 = vst [vmem:[%s48 + $0x224] sm:%s40] %v323
      %v325 = vld [vmem:[%s47 + $0x214] sm:%s40]
      %326 = vst [vmem:[%s48 + $0x228] sm:%s40] %v325
      %v327 = vld [vmem:[%s47 + $0x234] sm:%s40]
      %328 = vst [vmem:[%s48 + $0x22c] sm:%s40] %v327
      %v329 = vld [vmem:[%s47 + $0x218] sm:%s40]
      %330 = vst [vmem:[%s48 + $0x230] sm:%s40] %v329
      %v331 = vld [vmem:[%s47 + $0x238] sm:%s40]
      %332 = vst [vmem:[%s48 + $0x234] sm:%s40] %v331
      %v333 = vld [vmem:[%s47 + $0x21c] sm:%s40]
      %334 = vst [vmem:[%s48 + $0x238] sm:%s40] %v333
      %v335 = vld [vmem:[%s47 + $0x23c] sm:%s40]
      %336 = vst [vmem:[%s48 + $0x23c] sm:%s40] %v335
      %v337 = vld [vmem:[%s47 + $0x240] sm:%s40]
      %338 = vst [vmem:[%s48 + $0x240] sm:%s40] %v337
      %v339 = vld [vmem:[%s47 + $0x260] sm:%s40]
      %340 = vst [vmem:[%s48 + $0x244] sm:%s40] %v339
      %v341 = vld [vmem:[%s47 + $0x244] sm:%s40]
      %342 = vst [vmem:[%s48 + $0x248] sm:%s40] %v341
      %v343 = vld [vmem:[%s47 + $0x264] sm:%s40]
      %344 = vst [vmem:[%s48 + $0x24c] sm:%s40] %v343
      %v345 = vld [vmem:[%s47 + $0x248] sm:%s40]
      %346 = vst [vmem:[%s48 + $0x250] sm:%s40] %v345
      %v347 = vld [vmem:[%s47 + $0x268] sm:%s40]
      %348 = vst [vmem:[%s48 + $0x254] sm:%s40] %v347
      %v349 = vld [vmem:[%s47 + $0x24c] sm:%s40]
      %350 = vst [vmem:[%s48 + $0x258] sm:%s40] %v349
      %v351 = vld [vmem:[%s47 + $0x26c] sm:%s40]
      %352 = vst [vmem:[%s48 + $0x25c] sm:%s40] %v351
      %v353 = vld [vmem:[%s47 + $0x250] sm:%s40]
      %354 = vst [vmem:[%s48 + $0x260] sm:%s40] %v353
      %v355 = vld [vmem:[%s47 + $0x270] sm:%s40]
      %356 = vst [vmem:[%s48 + $0x264] sm:%s40] %v355
      %v357 = vld [vmem:[%s47 + $0x254] sm:%s40]
      %358 = vst [vmem:[%s48 + $0x268] sm:%s40] %v357
      %v359 = vld [vmem:[%s47 + $0x274] sm:%s40]
      %360 = vst [vmem:[%s48 + $0x26c] sm:%s40] %v359
      %v361 = vld [vmem:[%s47 + $0x258] sm:%s40]
      %362 = vst [vmem:[%s48 + $0x270] sm:%s40] %v361
      %v363 = vld [vmem:[%s47 + $0x278] sm:%s40]
      %364 = vst [vmem:[%s48 + $0x274] sm:%s40] %v363
      %v365 = vld [vmem:[%s47 + $0x25c] sm:%s40]
      %366 = vst [vmem:[%s48 + $0x278] sm:%s40] %v365
      %v367 = vld [vmem:[%s47 + $0x27c] sm:%s40]
      %368 = vst [vmem:[%s48 + $0x27c] sm:%s40] %v367
      %v369 = vld [vmem:[%s47 + $0x280] sm:%s40]
      %370 = vst [vmem:[%s48 + $0x280] sm:%s40] %v369
      %v371 = vld [vmem:[%s47 + $0x2a0] sm:%s40]
      %372 = vst [vmem:[%s48 + $0x284] sm:%s40] %v371
      %v373 = vld [vmem:[%s47 + $0x284] sm:%s40]
      %374 = vst [vmem:[%s48 + $0x288] sm:%s40] %v373
      %v375 = vld [vmem:[%s47 + $0x2a4] sm:%s40]
      %376 = vst [vmem:[%s48 + $0x28c] sm:%s40] %v375
      %v377 = vld [vmem:[%s47 + $0x288] sm:%s40]
      %378 = vst [vmem:[%s48 + $0x290] sm:%s40] %v377
      %v379 = vld [vmem:[%s47 + $0x2a8] sm:%s40]
      %380 = vst [vmem:[%s48 + $0x294] sm:%s40] %v379
      %v381 = vld [vmem:[%s47 + $0x28c] sm:%s40]
      %382 = vst [vmem:[%s48 + $0x298] sm:%s40] %v381
      %v383 = vld [vmem:[%s47 + $0x2ac] sm:%s40]
      %384 = vst [vmem:[%s48 + $0x29c] sm:%s40] %v383
      %v385 = vld [vmem:[%s47 + $0x290] sm:%s40]
      %386 = vst [vmem:[%s48 + $0x2a0] sm:%s40] %v385
      %v387 = vld [vmem:[%s47 + $0x2b0] sm:%s40]
      %388 = vst [vmem:[%s48 + $0x2a4] sm:%s40] %v387
      %v389 = vld [vmem:[%s47 + $0x294] sm:%s40]
      %390 = vst [vmem:[%s48 + $0x2a8] sm:%s40] %v389
      %v391 = vld [vmem:[%s47 + $0x2b4] sm:%s40]
      %392 = vst [vmem:[%s48 + $0x2ac] sm:%s40] %v391
      %v393 = vld [vmem:[%s47 + $0x298] sm:%s40]
      %394 = vst [vmem:[%s48 + $0x2b0] sm:%s40] %v393
      %v395 = vld [vmem:[%s47 + $0x2b8] sm:%s40]
      %396 = vst [vmem:[%s48 + $0x2b4] sm:%s40] %v395
      %v397 = vld [vmem:[%s47 + $0x29c] sm:%s40]
      %398 = vst [vmem:[%s48 + $0x2b8] sm:%s40] %v397
      %v399 = vld [vmem:[%s47 + $0x2bc] sm:%s40]
      %400 = vst [vmem:[%s48 + $0x2bc] sm:%s40] %v399
      %v401 = vld [vmem:[%s47 + $0x2c0] sm:%s40]
      %402 = vst [vmem:[%s48 + $0x2c0] sm:%s40] %v401
      %v403 = vld [vmem:[%s47 + $0x2e0] sm:%s40]
      %404 = vst [vmem:[%s48 + $0x2c4] sm:%s40] %v403
      %v405 = vld [vmem:[%s47 + $0x2c4] sm:%s40]
      %406 = vst [vmem:[%s48 + $0x2c8] sm:%s40] %v405
      %v407 = vld [vmem:[%s47 + $0x2e4] sm:%s40]
      %408 = vst [vmem:[%s48 + $0x2cc] sm:%s40] %v407
      %v409 = vld [vmem:[%s47 + $0x2c8] sm:%s40]
      %410 = vst [vmem:[%s48 + $0x2d0] sm:%s40] %v409
      %v411 = vld [vmem:[%s47 + $0x2e8] sm:%s40]
      %412 = vst [vmem:[%s48 + $0x2d4] sm:%s40] %v411
      %v413 = vld [vmem:[%s47 + $0x2cc] sm:%s40]
      %414 = vst [vmem:[%s48 + $0x2d8] sm:%s40] %v413
      %v415 = vld [vmem:[%s47 + $0x2ec] sm:%s40]
      %416 = vst [vmem:[%s48 + $0x2dc] sm:%s40] %v415
      %v417 = vld [vmem:[%s47 + $0x2d0] sm:%s40]
      %418 = vst [vmem:[%s48 + $0x2e0] sm:%s40] %v417
      %v419 = vld [vmem:[%s47 + $0x2f0] sm:%s40]
      %420 = vst [vmem:[%s48 + $0x2e4] sm:%s40] %v419
      %v421 = vld [vmem:[%s47 + $0x2d4] sm:%s40]
      %422 = vst [vmem:[%s48 + $0x2e8] sm:%s40] %v421
      %v423 = vld [vmem:[%s47 + $0x2f4] sm:%s40]
      %424 = vst [vmem:[%s48 + $0x2ec] sm:%s40] %v423
      %v425 = vld [vmem:[%s47 + $0x2d8] sm:%s40]
      %426 = vst [vmem:[%s48 + $0x2f0] sm:%s40] %v425
      %v427 = vld [vmem:[%s47 + $0x2f8] sm:%s40]
      %428 = vst [vmem:[%s48 + $0x2f4] sm:%s40] %v427
      %v429 = vld [vmem:[%s47 + $0x2dc] sm:%s40]
      %430 = vst [vmem:[%s48 + $0x2f8] sm:%s40] %v429
      %v431 = vld [vmem:[%s47 + $0x2fc] sm:%s40]
      %432 = vst [vmem:[%s48 + $0x2fc] sm:%s40] %v431
      %v433 = vld [vmem:[%s47 + $0x300] sm:%s40]
      %434 = vst [vmem:[%s48 + $0x300] sm:%s40] %v433
      %v435 = vld [vmem:[%s47 + $0x320] sm:%s40]
      %436 = vst [vmem:[%s48 + $0x304] sm:%s40] %v435
      %v437 = vld [vmem:[%s47 + $0x304] sm:%s40]
      %438 = vst [vmem:[%s48 + $0x308] sm:%s40] %v437
      %v439 = vld [vmem:[%s47 + $0x324] sm:%s40]
      %440 = vst [vmem:[%s48 + $0x30c] sm:%s40] %v439
      %v441 = vld [vmem:[%s47 + $0x308] sm:%s40]
      %442 = vst [vmem:[%s48 + $0x310] sm:%s40] %v441
      %v443 = vld [vmem:[%s47 + $0x328] sm:%s40]
      %444 = vst [vmem:[%s48 + $0x314] sm:%s40] %v443
      %v445 = vld [vmem:[%s47 + $0x30c] sm:%s40]
      %446 = vst [vmem:[%s48 + $0x318] sm:%s40] %v445
      %v447 = vld [vmem:[%s47 + $0x32c] sm:%s40]
      %448 = vst [vmem:[%s48 + $0x31c] sm:%s40] %v447
      %v449 = vld [vmem:[%s47 + $0x310] sm:%s40]
      %450 = vst [vmem:[%s48 + $0x320] sm:%s40] %v449
      %v451 = vld [vmem:[%s47 + $0x330] sm:%s40]
      %452 = vst [vmem:[%s48 + $0x324] sm:%s40] %v451
      %v453 = vld [vmem:[%s47 + $0x314] sm:%s40]
      %454 = vst [vmem:[%s48 + $0x328] sm:%s40] %v453
      %v455 = vld [vmem:[%s47 + $0x334] sm:%s40]
      %456 = vst [vmem:[%s48 + $0x32c] sm:%s40] %v455
      %v457 = vld [vmem:[%s47 + $0x318] sm:%s40]
      %458 = vst [vmem:[%s48 + $0x330] sm:%s40] %v457
      %v459 = vld [vmem:[%s47 + $0x338] sm:%s40]
      %460 = vst [vmem:[%s48 + $0x334] sm:%s40] %v459
      %v461 = vld [vmem:[%s47 + $0x31c] sm:%s40]
      %462 = vst [vmem:[%s48 + $0x338] sm:%s40] %v461
      %v463 = vld [vmem:[%s47 + $0x33c] sm:%s40]
      %464 = vst [vmem:[%s48 + $0x33c] sm:%s40] %v463
      %v465 = vld [vmem:[%s47 + $0x340] sm:%s40]
      %466 = vst [vmem:[%s48 + $0x340] sm:%s40] %v465
      %v467 = vld [vmem:[%s47 + $0x360] sm:%s40]
      %468 = vst [vmem:[%s48 + $0x344] sm:%s40] %v467
      %v469 = vld [vmem:[%s47 + $0x344] sm:%s40]
      %470 = vst [vmem:[%s48 + $0x348] sm:%s40] %v469
      %v471 = vld [vmem:[%s47 + $0x364] sm:%s40]
      %472 = vst [vmem:[%s48 + $0x34c] sm:%s40] %v471
      %v473 = vld [vmem:[%s47 + $0x348] sm:%s40]
      %474 = vst [vmem:[%s48 + $0x350] sm:%s40] %v473
      %v475 = vld [vmem:[%s47 + $0x368] sm:%s40]
      %476 = vst [vmem:[%s48 + $0x354] sm:%s40] %v475
      %v477 = vld [vmem:[%s47 + $0x34c] sm:%s40]
      %478 = vst [vmem:[%s48 + $0x358] sm:%s40] %v477
      %v479 = vld [vmem:[%s47 + $0x36c] sm:%s40]
      %480 = vst [vmem:[%s48 + $0x35c] sm:%s40] %v479
      %v481 = vld [vmem:[%s47 + $0x350] sm:%s40]
      %482 = vst [vmem:[%s48 + $0x360] sm:%s40] %v481
      %v483 = vld [vmem:[%s47 + $0x370] sm:%s40]
      %484 = vst [vmem:[%s48 + $0x364] sm:%s40] %v483
      %v485 = vld [vmem:[%s47 + $0x354] sm:%s40]
      %486 = vst [vmem:[%s48 + $0x368] sm:%s40] %v485
      %v487 = vld [vmem:[%s47 + $0x374] sm:%s40]
      %488 = vst [vmem:[%s48 + $0x36c] sm:%s40] %v487
      %v489 = vld [vmem:[%s47 + $0x358] sm:%s40]
      %490 = vst [vmem:[%s48 + $0x370] sm:%s40] %v489
      %v491 = vld [vmem:[%s47 + $0x378] sm:%s40]
      %492 = vst [vmem:[%s48 + $0x374] sm:%s40] %v491
      %v493 = vld [vmem:[%s47 + $0x35c] sm:%s40]
      %494 = vst [vmem:[%s48 + $0x378] sm:%s40] %v493
      %v495 = vld [vmem:[%s47 + $0x37c] sm:%s40]
      %496 = vst [vmem:[%s48 + $0x37c] sm:%s40] %v495
      %v497 = vld [vmem:[%s47 + $0x380] sm:%s40]
      %498 = vst [vmem:[%s48 + $0x380] sm:%s40] %v497
      %v499 = vld [vmem:[%s47 + $0x3a0] sm:%s40]
      %500 = vst [vmem:[%s48 + $0x384] sm:%s40] %v499
      %v501 = vld [vmem:[%s47 + $0x384] sm:%s40]
      %502 = vst [vmem:[%s48 + $0x388] sm:%s40] %v501
      %v503 = vld [vmem:[%s47 + $0x3a4] sm:%s40]
      %504 = vst [vmem:[%s48 + $0x38c] sm:%s40] %v503
      %v505 = vld [vmem:[%s47 + $0x388] sm:%s40]
      %506 = vst [vmem:[%s48 + $0x390] sm:%s40] %v505
      %v507 = vld [vmem:[%s47 + $0x3a8] sm:%s40]
      %508 = vst [vmem:[%s48 + $0x394] sm:%s40] %v507
      %v509 = vld [vmem:[%s47 + $0x38c] sm:%s40]
      %510 = vst [vmem:[%s48 + $0x398] sm:%s40] %v509
      %v511 = vld [vmem:[%s47 + $0x3ac] sm:%s40]
      %512 = vst [vmem:[%s48 + $0x39c] sm:%s40] %v511
      %v513 = vld [vmem:[%s47 + $0x390] sm:%s40]
      %514 = vst [vmem:[%s48 + $0x3a0] sm:%s40] %v513
      %v515 = vld [vmem:[%s47 + $0x3b0] sm:%s40]
      %516 = vst [vmem:[%s48 + $0x3a4] sm:%s40] %v515
      %v517 = vld [vmem:[%s47 + $0x394] sm:%s40]
      %518 = vst [vmem:[%s48 + $0x3a8] sm:%s40] %v517
      %v519 = vld [vmem:[%s47 + $0x3b4] sm:%s40]
      %520 = vst [vmem:[%s48 + $0x3ac] sm:%s40] %v519
      %v521 = vld [vmem:[%s47 + $0x398] sm:%s40]
      %522 = vst [vmem:[%s48 + $0x3b0] sm:%s40] %v521
      %v523 = vld [vmem:[%s47 + $0x3b8] sm:%s40]
      %524 = vst [vmem:[%s48 + $0x3b4] sm:%s40] %v523
      %v525 = vld [vmem:[%s47 + $0x39c] sm:%s40]
      %526 = vst [vmem:[%s48 + $0x3b8] sm:%s40] %v525
      %v527 = vld [vmem:[%s47 + $0x3bc] sm:%s40]
      %528 = vst [vmem:[%s48 + $0x3bc] sm:%s40] %v527
      %v529 = vld [vmem:[%s47 + $0x3c0] sm:%s40]
      %530 = vst [vmem:[%s48 + $0x3c0] sm:%s40] %v529
      %v531 = vld [vmem:[%s47 + $0x3e0] sm:%s40]
      %532 = vst [vmem:[%s48 + $0x3c4] sm:%s40] %v531
      %v533 = vld [vmem:[%s47 + $0x3c4] sm:%s40]
      %534 = vst [vmem:[%s48 + $0x3c8] sm:%s40] %v533
      %v535 = vld [vmem:[%s47 + $0x3e4] sm:%s40]
      %536 = vst [vmem:[%s48 + $0x3cc] sm:%s40] %v535
      %v537 = vld [vmem:[%s47 + $0x3c8] sm:%s40]
      %538 = vst [vmem:[%s48 + $0x3d0] sm:%s40] %v537
      %v539 = vld [vmem:[%s47 + $0x3e8] sm:%s40]
      %540 = vst [vmem:[%s48 + $0x3d4] sm:%s40] %v539
      %v541 = vld [vmem:[%s47 + $0x3cc] sm:%s40]
      %542 = vst [vmem:[%s48 + $0x3d8] sm:%s40] %v541
      %v543 = vld [vmem:[%s47 + $0x3ec] sm:%s40]
      %544 = vst [vmem:[%s48 + $0x3dc] sm:%s40] %v543
      %v545 = vld [vmem:[%s47 + $0x3d0] sm:%s40]
      %546 = vst [vmem:[%s48 + $0x3e0] sm:%s40] %v545
      %v547 = vld [vmem:[%s47 + $0x3f0] sm:%s40]
      %548 = vst [vmem:[%s48 + $0x3e4] sm:%s40] %v547
      %v549 = vld [vmem:[%s47 + $0x3d4] sm:%s40]
      %550 = vst [vmem:[%s48 + $0x3e8] sm:%s40] %v549
      %v551 = vld [vmem:[%s47 + $0x3f4] sm:%s40]
      %552 = vst [vmem:[%s48 + $0x3ec] sm:%s40] %v551
      %v553 = vld [vmem:[%s47 + $0x3d8] sm:%s40]
      %554 = vst [vmem:[%s48 + $0x3f0] sm:%s40] %v553
      %v555 = vld [vmem:[%s47 + $0x3f8] sm:%s40]
      %556 = vst [vmem:[%s48 + $0x3f4] sm:%s40] %v555
      %v557 = vld [vmem:[%s47 + $0x3dc] sm:%s40]
      %558 = vst [vmem:[%s48 + $0x3f8] sm:%s40] %v557
      %v559 = vld [vmem:[%s47 + $0x3fc] sm:%s40]
      %560 = vst [vmem:[%s48 + $0x3fc] sm:%s40] %v559
    $region46: #{lstm_model_forward.1} parent=40 // loop_footer
      %s46 = sadd.s32 1, %s42
    $region47: #{lstm_model_forward.1} parent=40 // loop_footer_branch
      %41 = sbr.rel target = $region43
    $region48: #{lstm_model_forward.1} parent=40 // loop_exit
      _
  $region41: #{lstm_model_forward.1} parent=0 // pred_fallthru
    _
  // Predicated region
  $region67: #{lstm_model_forward.1} parent=0 // pred_check
    _
  $region68: #{lstm_model_forward.1} parent=0 // pred_check_branch
    %1102 = sbr.rel (0) target = $region70
  $region69: #{lstm_model_forward.1} parent=0 // pred_region
    %1103 = vsyncadd [#allocation7], 16384
  $region70: #{lstm_model_forward.1} parent=0 // pred_fallthru
    _
  %s1104 = scalar_lea.sflag [#allocation7], 1
  %p1106 = scmp.lt.u32.totalorder 4, 8
  %p1107 = pneg %p1106
  // Predicated region
  $region71: #{lstm_model_forward.1} parent=0 // pred_check
    _
  $region72: #{lstm_model_forward.1} parent=0 // pred_check_branch
    %1109 = sbr.rel (%p1106) target = $region74
  $region73: #{lstm_model_forward.1} parent=0 // pred_region
    %s1250 = sand.u32 4, 7
    %p1251 = scmp.eq.s32.totalorder %s1250, 0
    %p1252 = pneg %p1251
    // Predicated region
    $region86: #{lstm_model_forward.1} parent=73 // pred_check
      _
    $region87: #{lstm_model_forward.1} parent=73 // pred_check_branch
      %1254 = sbr.rel (%p1251) target = $region89
    $region88: #{lstm_model_forward.1} parent=73 // pred_region
      %s1255 = sand.u32 4, 7
      %s1256 = ssub.s32 4, %s1255
      %s1257 = scalar_lea.vmem %s6, %s1256
      %s1258 = ssub.s32 4, %s1255
      %s1259 = scalar_lea.vmem [#allocation6], %s1258
      loop: start=0, step=1, limit=1
      $region90: #{lstm_model_forward.1} parent=88 // loop_pre_header
        _
      $region91: #{lstm_model_forward.1} parent=88 // loop_header
        %s1261 = sphi 0, %s1265
        %p1262 = scmp.ge.s32.totalorder %s1261, 1
        %s1266 = sphi %s6, %s6
        %s1267 = sphi [#allocation6], [#allocation6]
      $region92: #{lstm_model_forward.1} parent=88 // loop_header_branch
        %1264 = sbr.rel (%p1262) target = $region96
      $region93: #{lstm_model_forward.1} parent=88 // loop_body
        _
      $region94: #{lstm_model_forward.1} parent=88 // loop_footer
        %s1265 = sadd.s32 1, %s1261
      $region95: #{lstm_model_forward.1} parent=88 // loop_footer_branch
        %1260 = sbr.rel target = $region91
      $region96: #{lstm_model_forward.1} parent=88 // loop_exit
        _
      %s1268 = sshllo.u32 0, %s1255
      loop: start=0, step=1, limit=1
      $region97: #{lstm_model_forward.1} parent=88 // loop_pre_header
        _
      $region98: #{lstm_model_forward.1} parent=88 // loop_header
        %s1270 = sphi 0, %s1274
        %p1271 = scmp.ge.s32.totalorder %s1270, 1
        %s1275 = sphi %s1257, %s1257
        %s1276 = sphi %s1259, %s1259
      $region99: #{lstm_model_forward.1} parent=88 // loop_header_branch
        %1273 = sbr.rel (%p1271) target = $region103
      $region100: #{lstm_model_forward.1} parent=88 // loop_body
        %v1277 = vld [vmem:[%s1275] sm:%s1268]
        %1278 = vst [vmem:[%s1276] sm:%s1268] %v1277
        %v1279 = vld [vmem:[%s1275 + $0x10] sm:%s1268]
        %1280 = vst [vmem:[%s1276 + $0x4] sm:%s1268] %v1279
        %v1281 = vld [vmem:[%s1275 + $0x4] sm:%s1268]
        %1282 = vst [vmem:[%s1276 + $0x8] sm:%s1268] %v1281
        %v1283 = vld [vmem:[%s1275 + $0x14] sm:%s1268]
        %1284 = vst [vmem:[%s1276 + $0xc] sm:%s1268] %v1283
        %v1285 = vld [vmem:[%s1275 + $0x8] sm:%s1268]
        %1286 = vst [vmem:[%s1276 + $0x10] sm:%s1268] %v1285
        %v1287 = vld [vmem:[%s1275 + $0x18] sm:%s1268]
        %1288 = vst [vmem:[%s1276 + $0x14] sm:%s1268] %v1287
        %v1289 = vld [vmem:[%s1275 + $0xc] sm:%s1268]
        %1290 = vst [vmem:[%s1276 + $0x18] sm:%s1268] %v1289
        %v1291 = vld [vmem:[%s1275 + $0x1c] sm:%s1268]
        %1292 = vst [vmem:[%s1276 + $0x1c] sm:%s1268] %v1291
        %v1293 = vld [vmem:[%s1275 + $0x20] sm:%s1268]
        %1294 = vst [vmem:[%s1276 + $0x20] sm:%s1268] %v1293
        %v1295 = vld [vmem:[%s1275 + $0x30] sm:%s1268]
        %1296 = vst [vmem:[%s1276 + $0x24] sm:%s1268] %v1295
        %v1297 = vld [vmem:[%s1275 + $0x24] sm:%s1268]
        %1298 = vst [vmem:[%s1276 + $0x28] sm:%s1268] %v1297
        %v1299 = vld [vmem:[%s1275 + $0x34] sm:%s1268]
        %1300 = vst [vmem:[%s1276 + $0x2c] sm:%s1268] %v1299
        %v1301 = vld [vmem:[%s1275 + $0x28] sm:%s1268]
        %1302 = vst [vmem:[%s1276 + $0x30] sm:%s1268] %v1301
        %v1303 = vld [vmem:[%s1275 + $0x38] sm:%s1268]
        %1304 = vst [vmem:[%s1276 + $0x34] sm:%s1268] %v1303
        %v1305 = vld [vmem:[%s1275 + $0x2c] sm:%s1268]
        %1306 = vst [vmem:[%s1276 + $0x38] sm:%s1268] %v1305
        %v1307 = vld [vmem:[%s1275 + $0x3c] sm:%s1268]
        %1308 = vst [vmem:[%s1276 + $0x3c] sm:%s1268] %v1307
        %v1309 = vld [vmem:[%s1275 + $0x40] sm:%s1268]
        %1310 = vst [vmem:[%s1276 + $0x40] sm:%s1268] %v1309
        %v1311 = vld [vmem:[%s1275 + $0x50] sm:%s1268]
        %1312 = vst [vmem:[%s1276 + $0x44] sm:%s1268] %v1311
        %v1313 = vld [vmem:[%s1275 + $0x44] sm:%s1268]
        %1314 = vst [vmem:[%s1276 + $0x48] sm:%s1268] %v1313
        %v1315 = vld [vmem:[%s1275 + $0x54] sm:%s1268]
        %1316 = vst [vmem:[%s1276 + $0x4c] sm:%s1268] %v1315
        %v1317 = vld [vmem:[%s1275 + $0x48] sm:%s1268]
        %1318 = vst [vmem:[%s1276 + $0x50] sm:%s1268] %v1317
        %v1319 = vld [vmem:[%s1275 + $0x58] sm:%s1268]
        %1320 = vst [vmem:[%s1276 + $0x54] sm:%s1268] %v1319
        %v1321 = vld [vmem:[%s1275 + $0x4c] sm:%s1268]
        %1322 = vst [vmem:[%s1276 + $0x58] sm:%s1268] %v1321
        %v1323 = vld [vmem:[%s1275 + $0x5c] sm:%s1268]
        %1324 = vst [vmem:[%s1276 + $0x5c] sm:%s1268] %v1323
        %v1325 = vld [vmem:[%s1275 + $0x60] sm:%s1268]
        %1326 = vst [vmem:[%s1276 + $0x60] sm:%s1268] %v1325
        %v1327 = vld [vmem:[%s1275 + $0x70] sm:%s1268]
        %1328 = vst [vmem:[%s1276 + $0x64] sm:%s1268] %v1327
        %v1329 = vld [vmem:[%s1275 + $0x64] sm:%s1268]
        %1330 = vst [vmem:[%s1276 + $0x68] sm:%s1268] %v1329
        %v1331 = vld [vmem:[%s1275 + $0x74] sm:%s1268]
        %1332 = vst [vmem:[%s1276 + $0x6c] sm:%s1268] %v1331
        %v1333 = vld [vmem:[%s1275 + $0x68] sm:%s1268]
        %1334 = vst [vmem:[%s1276 + $0x70] sm:%s1268] %v1333
        %v1335 = vld [vmem:[%s1275 + $0x78] sm:%s1268]
        %1336 = vst [vmem:[%s1276 + $0x74] sm:%s1268] %v1335
        %v1337 = vld [vmem:[%s1275 + $0x6c] sm:%s1268]
        %1338 = vst [vmem:[%s1276 + $0x78] sm:%s1268] %v1337
        %v1339 = vld [vmem:[%s1275 + $0x7c] sm:%s1268]
        %1340 = vst [vmem:[%s1276 + $0x7c] sm:%s1268] %v1339
        %v1341 = vld [vmem:[%s1275 + $0x80] sm:%s1268]
        %1342 = vst [vmem:[%s1276 + $0x80] sm:%s1268] %v1341
        %v1343 = vld [vmem:[%s1275 + $0x90] sm:%s1268]
        %1344 = vst [vmem:[%s1276 + $0x84] sm:%s1268] %v1343
        %v1345 = vld [vmem:[%s1275 + $0x84] sm:%s1268]
        %1346 = vst [vmem:[%s1276 + $0x88] sm:%s1268] %v1345
        %v1347 = vld [vmem:[%s1275 + $0x94] sm:%s1268]
        %1348 = vst [vmem:[%s1276 + $0x8c] sm:%s1268] %v1347
        %v1349 = vld [vmem:[%s1275 + $0x88] sm:%s1268]
        %1350 = vst [vmem:[%s1276 + $0x90] sm:%s1268] %v1349
        %v1351 = vld [vmem:[%s1275 + $0x98] sm:%s1268]
        %1352 = vst [vmem:[%s1276 + $0x94] sm:%s1268] %v1351
        %v1353 = vld [vmem:[%s1275 + $0x8c] sm:%s1268]
        %1354 = vst [vmem:[%s1276 + $0x98] sm:%s1268] %v1353
        %v1355 = vld [vmem:[%s1275 + $0x9c] sm:%s1268]
        %1356 = vst [vmem:[%s1276 + $0x9c] sm:%s1268] %v1355
        %v1357 = vld [vmem:[%s1275 + $0xa0] sm:%s1268]
        %1358 = vst [vmem:[%s1276 + $0xa0] sm:%s1268] %v1357
        %v1359 = vld [vmem:[%s1275 + $0xb0] sm:%s1268]
        %1360 = vst [vmem:[%s1276 + $0xa4] sm:%s1268] %v1359
        %v1361 = vld [vmem:[%s1275 + $0xa4] sm:%s1268]
        %1362 = vst [vmem:[%s1276 + $0xa8] sm:%s1268] %v1361
        %v1363 = vld [vmem:[%s1275 + $0xb4] sm:%s1268]
        %1364 = vst [vmem:[%s1276 + $0xac] sm:%s1268] %v1363
        %v1365 = vld [vmem:[%s1275 + $0xa8] sm:%s1268]
        %1366 = vst [vmem:[%s1276 + $0xb0] sm:%s1268] %v1365
        %v1367 = vld [vmem:[%s1275 + $0xb8] sm:%s1268]
        %1368 = vst [vmem:[%s1276 + $0xb4] sm:%s1268] %v1367
        %v1369 = vld [vmem:[%s1275 + $0xac] sm:%s1268]
        %1370 = vst [vmem:[%s1276 + $0xb8] sm:%s1268] %v1369
        %v1371 = vld [vmem:[%s1275 + $0xbc] sm:%s1268]
        %1372 = vst [vmem:[%s1276 + $0xbc] sm:%s1268] %v1371
        %v1373 = vld [vmem:[%s1275 + $0xc0] sm:%s1268]
        %1374 = vst [vmem:[%s1276 + $0xc0] sm:%s1268] %v1373
        %v1375 = vld [vmem:[%s1275 + $0xd0] sm:%s1268]
        %1376 = vst [vmem:[%s1276 + $0xc4] sm:%s1268] %v1375
        %v1377 = vld [vmem:[%s1275 + $0xc4] sm:%s1268]
        %1378 = vst [vmem:[%s1276 + $0xc8] sm:%s1268] %v1377
        %v1379 = vld [vmem:[%s1275 + $0xd4] sm:%s1268]
        %1380 = vst [vmem:[%s1276 + $0xcc] sm:%s1268] %v1379
        %v1381 = vld [vmem:[%s1275 + $0xc8] sm:%s1268]
        %1382 = vst [vmem:[%s1276 + $0xd0] sm:%s1268] %v1381
        %v1383 = vld [vmem:[%s1275 + $0xd8] sm:%s1268]
        %1384 = vst [vmem:[%s1276 + $0xd4] sm:%s1268] %v1383
        %v1385 = vld [vmem:[%s1275 + $0xcc] sm:%s1268]
        %1386 = vst [vmem:[%s1276 + $0xd8] sm:%s1268] %v1385
        %v1387 = vld [vmem:[%s1275 + $0xdc] sm:%s1268]
        %1388 = vst [vmem:[%s1276 + $0xdc] sm:%s1268] %v1387
        %v1389 = vld [vmem:[%s1275 + $0xe0] sm:%s1268]
        %1390 = vst [vmem:[%s1276 + $0xe0] sm:%s1268] %v1389
        %v1391 = vld [vmem:[%s1275 + $0xf0] sm:%s1268]
        %1392 = vst [vmem:[%s1276 + $0xe4] sm:%s1268] %v1391
        %v1393 = vld [vmem:[%s1275 + $0xe4] sm:%s1268]
        %1394 = vst [vmem:[%s1276 + $0xe8] sm:%s1268] %v1393
        %v1395 = vld [vmem:[%s1275 + $0xf4] sm:%s1268]
        %1396 = vst [vmem:[%s1276 + $0xec] sm:%s1268] %v1395
        %v1397 = vld [vmem:[%s1275 + $0xe8] sm:%s1268]
        %1398 = vst [vmem:[%s1276 + $0xf0] sm:%s1268] %v1397
        %v1399 = vld [vmem:[%s1275 + $0xf8] sm:%s1268]
        %1400 = vst [vmem:[%s1276 + $0xf4] sm:%s1268] %v1399
        %v1401 = vld [vmem:[%s1275 + $0xec] sm:%s1268]
        %1402 = vst [vmem:[%s1276 + $0xf8] sm:%s1268] %v1401
        %v1403 = vld [vmem:[%s1275 + $0xfc] sm:%s1268]
        %1404 = vst [vmem:[%s1276 + $0xfc] sm:%s1268] %v1403
      $region101: #{lstm_model_forward.1} parent=88 // loop_footer
        %s1274 = sadd.s32 1, %s1270
      $region102: #{lstm_model_forward.1} parent=88 // loop_footer_branch
        %1269 = sbr.rel target = $region98
      $region103: #{lstm_model_forward.1} parent=88 // loop_exit
        _
    $region89: #{lstm_model_forward.1} parent=73 // pred_fallthru
      _
  $region74: #{lstm_model_forward.1} parent=0 // pred_fallthru
    _
  // Predicated region
  $region75: #{lstm_model_forward.1} parent=0 // pred_check
    %p1110 = pneg %p1106
  $region76: #{lstm_model_forward.1} parent=0 // pred_check_branch
    %1112 = sbr.rel (%p1110) target = $region78
  $region77: #{lstm_model_forward.1} parent=0 // pred_region
    %s1113 = sshllo.u32 0, 4
    loop: start=0, step=1, limit=1
    $region79: #{lstm_model_forward.1} parent=77 // loop_pre_header
      _
    $region80: #{lstm_model_forward.1} parent=77 // loop_header
      %s1115 = sphi 0, %s1119
      %p1116 = scmp.ge.s32.totalorder %s1115, 1
      %s1120 = sphi %s6, %s6
      %s1121 = sphi [#allocation6], [#allocation6]
    $region81: #{lstm_model_forward.1} parent=77 // loop_header_branch
      %1118 = sbr.rel (%p1116) target = $region85
    $region82: #{lstm_model_forward.1} parent=77 // loop_body
      %v1122 = vld [vmem:[%s1120] sm:%s1113]
      %1123 = vst [vmem:[%s1121] sm:%s1113] %v1122
      %v1124 = vld [vmem:[%s1120 + $0x10] sm:%s1113]
      %1125 = vst [vmem:[%s1121 + $0x4] sm:%s1113] %v1124
      %v1126 = vld [vmem:[%s1120 + $0x4] sm:%s1113]
      %1127 = vst [vmem:[%s1121 + $0x8] sm:%s1113] %v1126
      %v1128 = vld [vmem:[%s1120 + $0x14] sm:%s1113]
      %1129 = vst [vmem:[%s1121 + $0xc] sm:%s1113] %v1128
      %v1130 = vld [vmem:[%s1120 + $0x8] sm:%s1113]
      %1131 = vst [vmem:[%s1121 + $0x10] sm:%s1113] %v1130
      %v1132 = vld [vmem:[%s1120 + $0x18] sm:%s1113]
      %1133 = vst [vmem:[%s1121 + $0x14] sm:%s1113] %v1132
      %v1134 = vld [vmem:[%s1120 + $0xc] sm:%s1113]
      %1135 = vst [vmem:[%s1121 + $0x18] sm:%s1113] %v1134
      %v1136 = vld [vmem:[%s1120 + $0x1c] sm:%s1113]
      %1137 = vst [vmem:[%s1121 + $0x1c] sm:%s1113] %v1136
      %v1138 = vld [vmem:[%s1120 + $0x20] sm:%s1113]
      %1139 = vst [vmem:[%s1121 + $0x20] sm:%s1113] %v1138
      %v1140 = vld [vmem:[%s1120 + $0x30] sm:%s1113]
      %1141 = vst [vmem:[%s1121 + $0x24] sm:%s1113] %v1140
      %v1142 = vld [vmem:[%s1120 + $0x24] sm:%s1113]
      %1143 = vst [vmem:[%s1121 + $0x28] sm:%s1113] %v1142
      %v1144 = vld [vmem:[%s1120 + $0x34] sm:%s1113]
      %1145 = vst [vmem:[%s1121 + $0x2c] sm:%s1113] %v1144
      %v1146 = vld [vmem:[%s1120 + $0x28] sm:%s1113]
      %1147 = vst [vmem:[%s1121 + $0x30] sm:%s1113] %v1146
      %v1148 = vld [vmem:[%s1120 + $0x38] sm:%s1113]
      %1149 = vst [vmem:[%s1121 + $0x34] sm:%s1113] %v1148
      %v1150 = vld [vmem:[%s1120 + $0x2c] sm:%s1113]
      %1151 = vst [vmem:[%s1121 + $0x38] sm:%s1113] %v1150
      %v1152 = vld [vmem:[%s1120 + $0x3c] sm:%s1113]
      %1153 = vst [vmem:[%s1121 + $0x3c] sm:%s1113] %v1152
      %v1154 = vld [vmem:[%s1120 + $0x40] sm:%s1113]
      %1155 = vst [vmem:[%s1121 + $0x40] sm:%s1113] %v1154
      %v1156 = vld [vmem:[%s1120 + $0x50] sm:%s1113]
      %1157 = vst [vmem:[%s1121 + $0x44] sm:%s1113] %v1156
      %v1158 = vld [vmem:[%s1120 + $0x44] sm:%s1113]
      %1159 = vst [vmem:[%s1121 + $0x48] sm:%s1113] %v1158
      %v1160 = vld [vmem:[%s1120 + $0x54] sm:%s1113]
      %1161 = vst [vmem:[%s1121 + $0x4c] sm:%s1113] %v1160
      %v1162 = vld [vmem:[%s1120 + $0x48] sm:%s1113]
      %1163 = vst [vmem:[%s1121 + $0x50] sm:%s1113] %v1162
      %v1164 = vld [vmem:[%s1120 + $0x58] sm:%s1113]
      %1165 = vst [vmem:[%s1121 + $0x54] sm:%s1113] %v1164
      %v1166 = vld [vmem:[%s1120 + $0x4c] sm:%s1113]
      %1167 = vst [vmem:[%s1121 + $0x58] sm:%s1113] %v1166
      %v1168 = vld [vmem:[%s1120 + $0x5c] sm:%s1113]
      %1169 = vst [vmem:[%s1121 + $0x5c] sm:%s1113] %v1168
      %v1170 = vld [vmem:[%s1120 + $0x60] sm:%s1113]
      %1171 = vst [vmem:[%s1121 + $0x60] sm:%s1113] %v1170
      %v1172 = vld [vmem:[%s1120 + $0x70] sm:%s1113]
      %1173 = vst [vmem:[%s1121 + $0x64] sm:%s1113] %v1172
      %v1174 = vld [vmem:[%s1120 + $0x64] sm:%s1113]
      %1175 = vst [vmem:[%s1121 + $0x68] sm:%s1113] %v1174
      %v1176 = vld [vmem:[%s1120 + $0x74] sm:%s1113]
      %1177 = vst [vmem:[%s1121 + $0x6c] sm:%s1113] %v1176
      %v1178 = vld [vmem:[%s1120 + $0x68] sm:%s1113]
      %1179 = vst [vmem:[%s1121 + $0x70] sm:%s1113] %v1178
      %v1180 = vld [vmem:[%s1120 + $0x78] sm:%s1113]
      %1181 = vst [vmem:[%s1121 + $0x74] sm:%s1113] %v1180
      %v1182 = vld [vmem:[%s1120 + $0x6c] sm:%s1113]
      %1183 = vst [vmem:[%s1121 + $0x78] sm:%s1113] %v1182
      %v1184 = vld [vmem:[%s1120 + $0x7c] sm:%s1113]
      %1185 = vst [vmem:[%s1121 + $0x7c] sm:%s1113] %v1184
      %v1186 = vld [vmem:[%s1120 + $0x80] sm:%s1113]
      %1187 = vst [vmem:[%s1121 + $0x80] sm:%s1113] %v1186
      %v1188 = vld [vmem:[%s1120 + $0x90] sm:%s1113]
      %1189 = vst [vmem:[%s1121 + $0x84] sm:%s1113] %v1188
      %v1190 = vld [vmem:[%s1120 + $0x84] sm:%s1113]
      %1191 = vst [vmem:[%s1121 + $0x88] sm:%s1113] %v1190
      %v1192 = vld [vmem:[%s1120 + $0x94] sm:%s1113]
      %1193 = vst [vmem:[%s1121 + $0x8c] sm:%s1113] %v1192
      %v1194 = vld [vmem:[%s1120 + $0x88] sm:%s1113]
      %1195 = vst [vmem:[%s1121 + $0x90] sm:%s1113] %v1194
      %v1196 = vld [vmem:[%s1120 + $0x98] sm:%s1113]
      %1197 = vst [vmem:[%s1121 + $0x94] sm:%s1113] %v1196
      %v1198 = vld [vmem:[%s1120 + $0x8c] sm:%s1113]
      %1199 = vst [vmem:[%s1121 + $0x98] sm:%s1113] %v1198
      %v1200 = vld [vmem:[%s1120 + $0x9c] sm:%s1113]
      %1201 = vst [vmem:[%s1121 + $0x9c] sm:%s1113] %v1200
      %v1202 = vld [vmem:[%s1120 + $0xa0] sm:%s1113]
      %1203 = vst [vmem:[%s1121 + $0xa0] sm:%s1113] %v1202
      %v1204 = vld [vmem:[%s1120 + $0xb0] sm:%s1113]
      %1205 = vst [vmem:[%s1121 + $0xa4] sm:%s1113] %v1204
      %v1206 = vld [vmem:[%s1120 + $0xa4] sm:%s1113]
      %1207 = vst [vmem:[%s1121 + $0xa8] sm:%s1113] %v1206
      %v1208 = vld [vmem:[%s1120 + $0xb4] sm:%s1113]
      %1209 = vst [vmem:[%s1121 + $0xac] sm:%s1113] %v1208
      %v1210 = vld [vmem:[%s1120 + $0xa8] sm:%s1113]
      %1211 = vst [vmem:[%s1121 + $0xb0] sm:%s1113] %v1210
      %v1212 = vld [vmem:[%s1120 + $0xb8] sm:%s1113]
      %1213 = vst [vmem:[%s1121 + $0xb4] sm:%s1113] %v1212
      %v1214 = vld [vmem:[%s1120 + $0xac] sm:%s1113]
      %1215 = vst [vmem:[%s1121 + $0xb8] sm:%s1113] %v1214
      %v1216 = vld [vmem:[%s1120 + $0xbc] sm:%s1113]
      %1217 = vst [vmem:[%s1121 + $0xbc] sm:%s1113] %v1216
      %v1218 = vld [vmem:[%s1120 + $0xc0] sm:%s1113]
      %1219 = vst [vmem:[%s1121 + $0xc0] sm:%s1113] %v1218
      %v1220 = vld [vmem:[%s1120 + $0xd0] sm:%s1113]
      %1221 = vst [vmem:[%s1121 + $0xc4] sm:%s1113] %v1220
      %v1222 = vld [vmem:[%s1120 + $0xc4] sm:%s1113]
      %1223 = vst [vmem:[%s1121 + $0xc8] sm:%s1113] %v1222
      %v1224 = vld [vmem:[%s1120 + $0xd4] sm:%s1113]
      %1225 = vst [vmem:[%s1121 + $0xcc] sm:%s1113] %v1224
      %v1226 = vld [vmem:[%s1120 + $0xc8] sm:%s1113]
      %1227 = vst [vmem:[%s1121 + $0xd0] sm:%s1113] %v1226
      %v1228 = vld [vmem:[%s1120 + $0xd8] sm:%s1113]
      %1229 = vst [vmem:[%s1121 + $0xd4] sm:%s1113] %v1228
      %v1230 = vld [vmem:[%s1120 + $0xcc] sm:%s1113]
      %1231 = vst [vmem:[%s1121 + $0xd8] sm:%s1113] %v1230
      %v1232 = vld [vmem:[%s1120 + $0xdc] sm:%s1113]
      %1233 = vst [vmem:[%s1121 + $0xdc] sm:%s1113] %v1232
      %v1234 = vld [vmem:[%s1120 + $0xe0] sm:%s1113]
      %1235 = vst [vmem:[%s1121 + $0xe0] sm:%s1113] %v1234
      %v1236 = vld [vmem:[%s1120 + $0xf0] sm:%s1113]
      %1237 = vst [vmem:[%s1121 + $0xe4] sm:%s1113] %v1236
      %v1238 = vld [vmem:[%s1120 + $0xe4] sm:%s1113]
      %1239 = vst [vmem:[%s1121 + $0xe8] sm:%s1113] %v1238
      %v1240 = vld [vmem:[%s1120 + $0xf4] sm:%s1113]
      %1241 = vst [vmem:[%s1121 + $0xec] sm:%s1113] %v1240
      %v1242 = vld [vmem:[%s1120 + $0xe8] sm:%s1113]
      %1243 = vst [vmem:[%s1121 + $0xf0] sm:%s1113] %v1242
      %v1244 = vld [vmem:[%s1120 + $0xf8] sm:%s1113]
      %1245 = vst [vmem:[%s1121 + $0xf4] sm:%s1113] %v1244
      %v1246 = vld [vmem:[%s1120 + $0xec] sm:%s1113]
      %1247 = vst [vmem:[%s1121 + $0xf8] sm:%s1113] %v1246
      %v1248 = vld [vmem:[%s1120 + $0xfc] sm:%s1113]
      %1249 = vst [vmem:[%s1121 + $0xfc] sm:%s1113] %v1248
    $region83: #{lstm_model_forward.1} parent=77 // loop_footer
      %s1119 = sadd.s32 1, %s1115
    $region84: #{lstm_model_forward.1} parent=77 // loop_footer_branch
      %1114 = sbr.rel target = $region80
    $region85: #{lstm_model_forward.1} parent=77 // loop_exit
      _
  $region78: #{lstm_model_forward.1} parent=0 // pred_fallthru
    _
  // Predicated region
  $region104: #{lstm_model_forward.1} parent=0 // pred_check
    _
  $region105: #{lstm_model_forward.1} parent=0 // pred_check_branch
    %1407 = sbr.rel (0) target = $region107
  $region106: #{lstm_model_forward.1} parent=0 // pred_region
    %1408 = vsyncadd %s1104, 4096
  $region107: #{lstm_model_forward.1} parent=0 // pred_fallthru
    _
  %v1409 = vld [vmem:[%s0] sm:$0xf]
  %v1410 = vld [vmem:[%s0 + $0x4] sm:$0xf]
  %v1411 = vld [vmem:[%s0 + $0x8] sm:$0xf]
  %v1412 = vld [vmem:[%s0 + $0xc] sm:$0xf]
  %v1413 = vld [vmem:[%s0 + $0x10] sm:$0xf]
  %v1414 = vld [vmem:[%s0 + $0x14] sm:$0xf]
  %v1415 = vld [vmem:[%s0 + $0x18] sm:$0xf]
  %v1416 = vld [vmem:[%s0 + $0x1c] sm:$0xf]
  %v1417 = vld [vmem:[%s1] sm:$0xff]
  %v1418 = vld [vmem:[%s1 + $0x8] sm:$0xff]
  %v1419 = vld [vmem:[%s1 + $0x10] sm:$0xff]
  %v1420 = vld [vmem:[%s1 + $0x18] sm:$0xff]
  %v1421 = vld [vmem:[%s1 + $0x20] sm:$0x11]
  %v1422 = vld [vmem:[%s1 + $0x28] sm:$0x11]
  %v1423 = vld [vmem:[%s1 + $0x30] sm:$0x11]
  %v1424 = vld [vmem:[%s1 + $0x38] sm:$0x11]
  %v1425 = vld [vmem:[%s2] sm:$0xff]
  %v1427 = vlaneseq
  %v1428 = vshrl.u32 %v1427, 7
  %v1429 = vsub.s32 0, %v1428
  %v1430 = vrot.slane %v1425, %v1429
  %v1431 = vlaneseq
  %v1432 = vshrl.u32 %v1431, 7
  %v1433 = vsub.s32 1, %v1432
  %v1434 = vrot.slane %v1425, %v1433
  %v1435 = vlaneseq
  %v1436 = vshrl.u32 %v1435, 7
  %v1437 = vsub.s32 2, %v1436
  %v1438 = vrot.slane %v1425, %v1437
  %v1439 = vlaneseq
  %v1440 = vshrl.u32 %v1439, 7
  %v1441 = vsub.s32 3, %v1440
  %v1442 = vrot.slane %v1425, %v1441
  %v1443 = vlaneseq
  %v1444 = vshrl.u32 %v1443, 7
  %v1445 = vsub.s32 4, %v1444
  %v1446 = vrot.slane %v1425, %v1445
  %v1447 = vlaneseq
  %v1448 = vshrl.u32 %v1447, 7
  %v1449 = vsub.s32 5, %v1448
  %v1450 = vrot.slane %v1425, %v1449
  %v1451 = vlaneseq
  %v1452 = vshrl.u32 %v1451, 7
  %v1453 = vsub.s32 6, %v1452
  %v1454 = vrot.slane %v1425, %v1453
  %v1455 = vlaneseq
  %v1456 = vshrl.u32 %v1455, 7
  %v1457 = vsub.s32 7, %v1456
  %v1458 = vrot.slane %v1425, %v1457
  %v1475 = vunpack.c.l.b16 %v1409
  %v1476 = vunpack.c.l.b16 %v1410
  %v1477 = vunpack.c.l.b16 %v1411
  %v1478 = vunpack.c.l.b16 %v1412
  %v1479 = vunpack.c.l.b16 %v1413
  %v1480 = vunpack.c.l.b16 %v1414
  %v1481 = vunpack.c.l.b16 %v1415
  %v1482 = vunpack.c.l.b16 %v1416
  %v1483 = vpack.c.b16 %v1476, %v1475
  %v1484 = vpack.c.b16 %v1478, %v1477
  %v1485 = vpack.c.b16 %v1480, %v1479
  %v1486 = vpack.c.b16 %v1482, %v1481
  %v1495 = vunpack.c.l.b16 %v1417
  %v1496 = vunpack.c.h.b16 %v1417
  %v1497 = vunpack.c.l.b16 %v1418
  %v1498 = vunpack.c.h.b16 %v1418
  %v1499 = vunpack.c.l.b16 %v1419
  %v1500 = vunpack.c.h.b16 %v1419
  %v1501 = vunpack.c.l.b16 %v1420
  %v1502 = vunpack.c.h.b16 %v1420
  %v1503 = vunpack.c.l.b16 %v1421
  %v1504 = vunpack.c.h.b16 %v1421
  %v1505 = vunpack.c.l.b16 %v1422
  %v1506 = vunpack.c.h.b16 %v1422
  %v1507 = vunpack.c.l.b16 %v1423
  %v1508 = vunpack.c.h.b16 %v1423
  %v1509 = vunpack.c.l.b16 %v1424
  %v1510 = vunpack.c.h.b16 %v1424
  %v1511 = vpack.c.b16 %v1503, %v1495
  %v1512 = vpack.c.b16 %v1504, %v1496
  %v1513 = vpack.c.b16 %v1505, %v1497
  %v1514 = vpack.c.b16 %v1506, %v1498
  %v1515 = vpack.c.b16 %v1507, %v1499
  %v1516 = vpack.c.b16 %v1508, %v1500
  %v1517 = vpack.c.b16 %v1509, %v1501
  %v1518 = vpack.c.b16 %v1510, %v1502
  %vm1519 = vcmask 80896
  %v1521 = vsel %vm1519, %v1483, 0
  %v1524 = vsel %vm1519, %v1484, 0
  %v1527 = vsel %vm1519, %v1485, 0
  %v1530 = vsel %vm1519, %v1486, 0
  %vm1532 = vcmask 1044480
  %v1534 = vsel %vm1532, %v1511, 0
  %v1537 = vsel %vm1532, %v1512, 0
  %v1540 = vsel %vm1532, %v1513, 0
  %v1543 = vsel %vm1532, %v1514, 0
  %v1546 = vsel %vm1532, %v1515, 0
  %v1549 = vsel %vm1532, %v1516, 0
  %v1552 = vsel %vm1532, %v1517, 0
  %v1555 = vsel %vm1532, %v1518, 0
  %1557 = vmatprep.subr.bf16.mxu0 %v1537
  %1558 = vmatpush1.bf16.msra.mxu0 %v1534
  %1559 = vmatprep.subr.bf16.mxu0 0
  %1560 = vmatpush1.bf16.msra.mxu0 0
  %1561 = vmatprep.subr.bf16.mxu0 0
  %1562 = vmatpush1.bf16.msra.mxu0 0
  %1563 = vmatprep.subr.bf16.mxu0 0
  %1564 = vmatpush1.bf16.msra.mxu0 0
  %1565 = vmatprep.subr.bf16.mxu0 0
  %1566 = vmatpush1.bf16.msra.mxu0 0
  %1567 = vmatprep.subr.bf16.mxu0 0
  %1568 = vmatpush1.bf16.msra.mxu0 0
  %1569 = vmatprep.subr.bf16.mxu0 0
  %1570 = vmatpush1.bf16.msra.mxu0 0
  %1571 = vmatprep.subr.bf16.mxu0 0
  %1572 = vmatpush1.bf16.msra.mxu0 0
  %1573 = vmatprep.subr.bf16.mxu0 0
  %1574 = vmatpush1.bf16.msra.mxu0 0
  %1575 = vmatprep.subr.bf16.mxu0 0
  %1576 = vmatpush1.bf16.msra.mxu0 0
  %1577 = vmatprep.subr.bf16.mxu0 0
  %1578 = vmatpush1.bf16.msra.mxu0 0
  %1579 = vmatprep.subr.bf16.mxu0 0
  %1580 = vmatpush1.bf16.msra.mxu0 0
  %1581 = vmatprep.subr.bf16.mxu0 0
  %1582 = vmatpush1.bf16.msra.mxu0 0
  %1583 = vmatprep.subr.bf16.mxu0 0
  %1584 = vmatpush1.bf16.msra.mxu0 0
  %1585 = vmatprep.subr.bf16.mxu0 0
  %1586 = vmatpush1.bf16.msra.mxu0 0
  %1587 = vmatprep.subr.bf16.mxu0 0
  %1588 = vmatpush1.bf16.msra.mxu0 0
  %1589 = vmatprep.mubr.bf16.mxu0 0
  %1590 = vmatmul.mubr.bf16.gmra.mrb[0].mxu0 %v1521
  %v1591 = vpop.f32.mrb[0].mxu0
  %v1592 = vadd.f32 %v1430, %v1591
  %v1593 = vpop.f32.mrb[0].mxu0
  %v1594 = vadd.f32 %v1434, %v1593
  %v1595 = vpop.f32.mrb[0].mxu0
  %v1596 = vadd.f32 %v1430, %v1595
  %v1597 = vpop.f32.mrb[0].mxu0
  %v1598 = vadd.f32 %v1434, %v1597
  %1599 = vmatprep.mubr.bf16.mxu0 0
  %1600 = vmatmul.mubr.bf16.gmra.mrb[0].mxu0 %v1524
  %v1601 = vpop.f32.mrb[0].mxu0
  %v1602 = vadd.f32 %v1430, %v1601
  %v1603 = vpop.f32.mrb[0].mxu0
  %v1604 = vadd.f32 %v1434, %v1603
  %v1605 = vpop.f32.mrb[0].mxu0
  %v1606 = vadd.f32 %v1430, %v1605
  %v1607 = vpop.f32.mrb[0].mxu0
  %v1608 = vadd.f32 %v1434, %v1607
  %1609 = vmatprep.mubr.bf16.mxu0 0
  %1610 = vmatmul.mubr.bf16.gmra.mrb[0].mxu0 %v1527
  %v1611 = vpop.f32.mrb[0].mxu0
  %v1612 = vadd.f32 %v1430, %v1611
  %v1613 = vpop.f32.mrb[0].mxu0
  %v1614 = vadd.f32 %v1434, %v1613
  %v1615 = vpop.f32.mrb[0].mxu0
  %v1616 = vadd.f32 %v1430, %v1615
  %v1617 = vpop.f32.mrb[0].mxu0
  %v1618 = vadd.f32 %v1434, %v1617
  %1619 = vmatprep.mubr.bf16.mxu0 0
  %1620 = vmatmul.mubr.bf16.gmra.mrb[0].mxu0 %v1530
  %v1621 = vpop.f32.mrb[0].mxu0
  %v1622 = vadd.f32 %v1430, %v1621
  %v1623 = vpop.f32.mrb[0].mxu0
  %v1624 = vadd.f32 %v1434, %v1623
  %v1625 = vpop.f32.mrb[0].mxu0
  %v1626 = vadd.f32 %v1430, %v1625
  %v1627 = vpop.f32.mrb[0].mxu0
  %v1628 = vadd.f32 %v1434, %v1627
  %1629 = vdwg.mxu0
  %1630 = vmatprep.subr.bf16.mxu0 %v1543
  %1631 = vmatpush1.bf16.msra.mxu0 %v1540
  %1632 = vmatprep.subr.bf16.mxu0 0
  %1633 = vmatpush1.bf16.msra.mxu0 0
  %1634 = vmatprep.subr.bf16.mxu0 0
  %1635 = vmatpush1.bf16.msra.mxu0 0
  %1636 = vmatprep.subr.bf16.mxu0 0
  %1637 = vmatpush1.bf16.msra.mxu0 0
  %1638 = vmatprep.subr.bf16.mxu0 0
  %1639 = vmatpush1.bf16.msra.mxu0 0
  %1640 = vmatprep.subr.bf16.mxu0 0
  %1641 = vmatpush1.bf16.msra.mxu0 0
  %1642 = vmatprep.subr.bf16.mxu0 0
  %1643 = vmatpush1.bf16.msra.mxu0 0
  %1644 = vmatprep.subr.bf16.mxu0 0
  %1645 = vmatpush1.bf16.msra.mxu0 0
  %1646 = vmatprep.subr.bf16.mxu0 0
  %1647 = vmatpush1.bf16.msra.mxu0 0
  %1648 = vmatprep.subr.bf16.mxu0 0
  %1649 = vmatpush1.bf16.msra.mxu0 0
  %1650 = vmatprep.subr.bf16.mxu0 0
  %1651 = vmatpush1.bf16.msra.mxu0 0
  %1652 = vmatprep.subr.bf16.mxu0 0
  %1653 = vmatpush1.bf16.msra.mxu0 0
  %1654 = vmatprep.subr.bf16.mxu0 0
  %1655 = vmatpush1.bf16.msra.mxu0 0
  %1656 = vmatprep.subr.bf16.mxu0 0
  %1657 = vmatpush1.bf16.msra.mxu0 0
  %1658 = vmatprep.subr.bf16.mxu0 0
  %1659 = vmatpush1.bf16.msra.mxu0 0
  %1660 = vmatprep.subr.bf16.mxu0 0
  %1661 = vmatpush1.bf16.msra.mxu0 0
  %1662 = vmatprep.mubr.bf16.mxu0 0
  %1663 = vmatmul.mubr.bf16.gmra.mrb[0].mxu0 %v1521
  %v1664 = vpop.f32.mrb[0].mxu0
  %v1665 = vadd.f32 %v1438, %v1664
  %v1666 = vpop.f32.mrb[0].mxu0
  %v1667 = vadd.f32 %v1442, %v1666
  %v1668 = vpop.f32.mrb[0].mxu0
  %v1669 = vadd.f32 %v1438, %v1668
  %v1670 = vpop.f32.mrb[0].mxu0
  %v1671 = vadd.f32 %v1442, %v1670
  %1672 = vmatprep.mubr.bf16.mxu0 0
  %1673 = vmatmul.mubr.bf16.gmra.mrb[0].mxu0 %v1524
  %v1674 = vpop.f32.mrb[0].mxu0
  %v1675 = vadd.f32 %v1438, %v1674
  %v1676 = vpop.f32.mrb[0].mxu0
  %v1677 = vadd.f32 %v1442, %v1676
  %v1678 = vpop.f32.mrb[0].mxu0
  %v1679 = vadd.f32 %v1438, %v1678
  %v1680 = vpop.f32.mrb[0].mxu0
  %v1681 = vadd.f32 %v1442, %v1680
  %1682 = vmatprep.mubr.bf16.mxu0 0
  %1683 = vmatmul.mubr.bf16.gmra.mrb[0].mxu0 %v1527
  %v1684 = vpop.f32.mrb[0].mxu0
  %v1685 = vadd.f32 %v1438, %v1684
  %v1686 = vpop.f32.mrb[0].mxu0
  %v1687 = vadd.f32 %v1442, %v1686
  %v1688 = vpop.f32.mrb[0].mxu0
  %v1689 = vadd.f32 %v1438, %v1688
  %v1690 = vpop.f32.mrb[0].mxu0
  %v1691 = vadd.f32 %v1442, %v1690
  %1692 = vmatprep.mubr.bf16.mxu0 0
  %1693 = vmatmul.mubr.bf16.gmra.mrb[0].mxu0 %v1530
  %v1694 = vpop.f32.mrb[0].mxu0
  %v1695 = vadd.f32 %v1438, %v1694
  %v1696 = vpop.f32.mrb[0].mxu0
  %v1697 = vadd.f32 %v1442, %v1696
  %v1698 = vpop.f32.mrb[0].mxu0
  %v1699 = vadd.f32 %v1438, %v1698
  %v1700 = vpop.f32.mrb[0].mxu0
  %v1701 = vadd.f32 %v1442, %v1700
  %1702 = vdwg.mxu0
  %1703 = vmatprep.subr.bf16.mxu0 %v1549
  %1704 = vmatpush1.bf16.msra.mxu0 %v1546
  %1705 = vmatprep.subr.bf16.mxu0 0
  %1706 = vmatpush1.bf16.msra.mxu0 0
  %1707 = vmatprep.subr.bf16.mxu0 0
  %1708 = vmatpush1.bf16.msra.mxu0 0
  %1709 = vmatprep.subr.bf16.mxu0 0
  %1710 = vmatpush1.bf16.msra.mxu0 0
  %1711 = vmatprep.subr.bf16.mxu0 0
  %1712 = vmatpush1.bf16.msra.mxu0 0
  %1713 = vmatprep.subr.bf16.mxu0 0
  %1714 = vmatpush1.bf16.msra.mxu0 0
  %1715 = vmatprep.subr.bf16.mxu0 0
  %1716 = vmatpush1.bf16.msra.mxu0 0
  %1717 = vmatprep.subr.bf16.mxu0 0
  %1718 = vmatpush1.bf16.msra.mxu0 0
  %1719 = vmatprep.subr.bf16.mxu0 0
  %1720 = vmatpush1.bf16.msra.mxu0 0
  %1721 = vmatprep.subr.bf16.mxu0 0
  %1722 = vmatpush1.bf16.msra.mxu0 0
  %1723 = vmatprep.subr.bf16.mxu0 0
  %1724 = vmatpush1.bf16.msra.mxu0 0
  %1725 = vmatprep.subr.bf16.mxu0 0
  %1726 = vmatpush1.bf16.msra.mxu0 0
  %1727 = vmatprep.subr.bf16.mxu0 0
  %1728 = vmatpush1.bf16.msra.mxu0 0
  %1729 = vmatprep.subr.bf16.mxu0 0
  %1730 = vmatpush1.bf16.msra.mxu0 0
  %1731 = vmatprep.subr.bf16.mxu0 0
  %1732 = vmatpush1.bf16.msra.mxu0 0
  %1733 = vmatprep.subr.bf16.mxu0 0
  %1734 = vmatpush1.bf16.msra.mxu0 0
  %1735 = vmatprep.mubr.bf16.mxu0 0
  %1736 = vmatmul.mubr.bf16.gmra.mrb[0].mxu0 %v1521
  %v1737 = vpop.f32.mrb[0].mxu0
  %v1738 = vadd.f32 %v1446, %v1737
  %v1739 = vpop.f32.mrb[0].mxu0
  %v1740 = vadd.f32 %v1450, %v1739
  %v1741 = vpop.f32.mrb[0].mxu0
  %v1742 = vadd.f32 %v1446, %v1741
  %v1743 = vpop.f32.mrb[0].mxu0
  %v1744 = vadd.f32 %v1450, %v1743
  %1745 = vmatprep.mubr.bf16.mxu0 0
  %1746 = vmatmul.mubr.bf16.gmra.mrb[0].mxu0 %v1524
  %v1747 = vpop.f32.mrb[0].mxu0
  %v1748 = vadd.f32 %v1446, %v1747
  %v1749 = vpop.f32.mrb[0].mxu0
  %v1750 = vadd.f32 %v1450, %v1749
  %v1751 = vpop.f32.mrb[0].mxu0
  %v1752 = vadd.f32 %v1446, %v1751
  %v1753 = vpop.f32.mrb[0].mxu0
  %v1754 = vadd.f32 %v1450, %v1753
  %1755 = vmatprep.mubr.bf16.mxu0 0
  %1756 = vmatmul.mubr.bf16.gmra.mrb[0].mxu0 %v1527
  %v1757 = vpop.f32.mrb[0].mxu0
  %v1758 = vadd.f32 %v1446, %v1757
  %v1759 = vpop.f32.mrb[0].mxu0
  %v1760 = vadd.f32 %v1450, %v1759
  %v1761 = vpop.f32.mrb[0].mxu0
  %v1762 = vadd.f32 %v1446, %v1761
  %v1763 = vpop.f32.mrb[0].mxu0
  %v1764 = vadd.f32 %v1450, %v1763
  %1765 = vmatprep.mubr.bf16.mxu0 0
  %1766 = vmatmul.mubr.bf16.gmra.mrb[0].mxu0 %v1530
  %v1767 = vpop.f32.mrb[0].mxu0
  %v1768 = vadd.f32 %v1446, %v1767
  %v1769 = vpop.f32.mrb[0].mxu0
  %v1770 = vadd.f32 %v1450, %v1769
  %v1771 = vpop.f32.mrb[0].mxu0
  %v1772 = vadd.f32 %v1446, %v1771
  %v1773 = vpop.f32.mrb[0].mxu0
  %v1774 = vadd.f32 %v1450, %v1773
  %1775 = vdwg.mxu0
  %1776 = vmatprep.subr.bf16.mxu0 %v1555
  %1777 = vmatpush1.bf16.msra.mxu0 %v1552
  %1778 = vmatprep.subr.bf16.mxu0 0
  %1779 = vmatpush1.bf16.msra.mxu0 0
  %1780 = vmatprep.subr.bf16.mxu0 0
  %1781 = vmatpush1.bf16.msra.mxu0 0
  %1782 = vmatprep.subr.bf16.mxu0 0
  %1783 = vmatpush1.bf16.msra.mxu0 0
  %1784 = vmatprep.subr.bf16.mxu0 0
  %1785 = vmatpush1.bf16.msra.mxu0 0
  %1786 = vmatprep.subr.bf16.mxu0 0
  %1787 = vmatpush1.bf16.msra.mxu0 0
  %1788 = vmatprep.subr.bf16.mxu0 0
  %1789 = vmatpush1.bf16.msra.mxu0 0
  %1790 = vmatprep.subr.bf16.mxu0 0
  %1791 = vmatpush1.bf16.msra.mxu0 0
  %1792 = vmatprep.subr.bf16.mxu0 0
  %1793 = vmatpush1.bf16.msra.mxu0 0
  %1794 = vmatprep.subr.bf16.mxu0 0
  %1795 = vmatpush1.bf16.msra.mxu0 0
  %1796 = vmatprep.subr.bf16.mxu0 0
  %1797 = vmatpush1.bf16.msra.mxu0 0
  %1798 = vmatprep.subr.bf16.mxu0 0
  %1799 = vmatpush1.bf16.msra.mxu0 0
  %1800 = vmatprep.subr.bf16.mxu0 0
  %1801 = vmatpush1.bf16.msra.mxu0 0
  %1802 = vmatprep.subr.bf16.mxu0 0
  %1803 = vmatpush1.bf16.msra.mxu0 0
  %1804 = vmatprep.subr.bf16.mxu0 0
  %1805 = vmatpush1.bf16.msra.mxu0 0
  %1806 = vmatprep.subr.bf16.mxu0 0
  %1807 = vmatpush1.bf16.msra.mxu0 0
  %1808 = vmatprep.mubr.bf16.mxu0 0
  %1809 = vmatmul.mubr.bf16.gmra.mrb[0].mxu0 %v1521
  %v1810 = vpop.f32.mrb[0].mxu0
  %v1811 = vadd.f32 %v1454, %v1810
  %v1812 = vpop.f32.mrb[0].mxu0
  %v1813 = vadd.f32 %v1458, %v1812
  %v1814 = vpop.f32.mrb[0].mxu0
  %v1815 = vadd.f32 %v1454, %v1814
  %v1816 = vpop.f32.mrb[0].mxu0
  %v1817 = vadd.f32 %v1458, %v1816
  %1818 = vmatprep.mubr.bf16.mxu0 0
  %1819 = vmatmul.mubr.bf16.gmra.mrb[0].mxu0 %v1524
  %v1820 = vpop.f32.mrb[0].mxu0
  %v1821 = vadd.f32 %v1454, %v1820
  %v1822 = vpop.f32.mrb[0].mxu0
  %v1823 = vadd.f32 %v1458, %v1822
  %v1824 = vpop.f32.mrb[0].mxu0
  %v1825 = vadd.f32 %v1454, %v1824
  %v1826 = vpop.f32.mrb[0].mxu0
  %v1827 = vadd.f32 %v1458, %v1826
  %1828 = vmatprep.mubr.bf16.mxu0 0
  %1829 = vmatmul.mubr.bf16.gmra.mrb[0].mxu0 %v1527
  %v1830 = vpop.f32.mrb[0].mxu0
  %v1831 = vadd.f32 %v1454, %v1830
  %v1832 = vpop.f32.mrb[0].mxu0
  %v1833 = vadd.f32 %v1458, %v1832
  %v1834 = vpop.f32.mrb[0].mxu0
  %v1835 = vadd.f32 %v1454, %v1834
  %v1836 = vpop.f32.mrb[0].mxu0
  %v1837 = vadd.f32 %v1458, %v1836
  %1838 = vmatprep.mubr.bf16.mxu0 0
  %1839 = vmatmul.mubr.bf16.gmra.mrb[0].mxu0 %v1530
  %v1840 = vpop.f32.mrb[0].mxu0
  %v1841 = vadd.f32 %v1454, %v1840
  %v1842 = vpop.f32.mrb[0].mxu0
  %v1843 = vadd.f32 %v1458, %v1842
  %v1844 = vpop.f32.mrb[0].mxu0
  %v1845 = vadd.f32 %v1454, %v1844
  %v1846 = vpop.f32.mrb[0].mxu0
  %v1847 = vadd.f32 %v1458, %v1846
  %1848 = vdwg.mxu0
  %1849 = vst [vmem:[#allocation2] sm:$0xff] %v1592
  %1850 = vst [vmem:[#allocation2 + $0x8] sm:$0xff] %v1594
  %1851 = vst [vmem:[#allocation2 + $0x10] sm:$0xff] %v1665
  %1852 = vst [vmem:[#allocation2 + $0x18] sm:$0xff] %v1667
  %1853 = vst [vmem:[#allocation2 + $0x20] sm:$0xff] %v1738
  %1854 = vst [vmem:[#allocation2 + $0x28] sm:$0xff] %v1740
  %1855 = vst [vmem:[#allocation2 + $0x30] sm:$0xff] %v1811
  %1856 = vst [vmem:[#allocation2 + $0x38] sm:$0xff] %v1813
  %1857 = vst [vmem:[#allocation2 + $0x40] sm:$0xff] %v1596
  %1858 = vst [vmem:[#allocation2 + $0x48] sm:$0xff] %v1598
  %1859 = vst [vmem:[#allocation2 + $0x50] sm:$0xff] %v1669
  %1860 = vst [vmem:[#allocation2 + $0x58] sm:$0xff] %v1671
  %1861 = vst [vmem:[#allocation2 + $0x60] sm:$0xff] %v1742
  %1862 = vst [vmem:[#allocation2 + $0x68] sm:$0xff] %v1744
  %1863 = vst [vmem:[#allocation2 + $0x70] sm:$0xff] %v1815
  %1864 = vst [vmem:[#allocation2 + $0x78] sm:$0xff] %v1817
  %1865 = vst [vmem:[#allocation2 + $0x80] sm:$0xff] %v1602
  %1866 = vst [vmem:[#allocation2 + $0x88] sm:$0xff] %v1604
  %1867 = vst [vmem:[#allocation2 + $0x90] sm:$0xff] %v1675
  %1868 = vst [vmem:[#allocation2 + $0x98] sm:$0xff] %v1677
  %1869 = vst [vmem:[#allocation2 + $0xa0] sm:$0xff] %v1748
  %1870 = vst [vmem:[#allocation2 + $0xa8] sm:$0xff] %v1750
  %1871 = vst [vmem:[#allocation2 + $0xb0] sm:$0xff] %v1821
  %1872 = vst [vmem:[#allocation2 + $0xb8] sm:$0xff] %v1823
  %1873 = vst [vmem:[#allocation2 + $0xc0] sm:$0xff] %v1606
  %1874 = vst [vmem:[#allocation2 + $0xc8] sm:$0xff] %v1608
  %1875 = vst [vmem:[#allocation2 + $0xd0] sm:$0xff] %v1679
  %1876 = vst [vmem:[#allocation2 + $0xd8] sm:$0xff] %v1681
  %1877 = vst [vmem:[#allocation2 + $0xe0] sm:$0xff] %v1752
  %1878 = vst [vmem:[#allocation2 + $0xe8] sm:$0xff] %v1754
  %1879 = vst [vmem:[#allocation2 + $0xf0] sm:$0xff] %v1825
  %1880 = vst [vmem:[#allocation2 + $0xf8] sm:$0xff] %v1827
  %1881 = vst [vmem:[#allocation2 + $0x100] sm:$0xff] %v1612
  %1882 = vst [vmem:[#allocation2 + $0x108] sm:$0xff] %v1614
  %1883 = vst [vmem:[#allocation2 + $0x110] sm:$0xff] %v1685
  %1884 = vst [vmem:[#allocation2 + $0x118] sm:$0xff] %v1687
  %1885 = vst [vmem:[#allocation2 + $0x120] sm:$0xff] %v1758
  %1886 = vst [vmem:[#allocation2 + $0x128] sm:$0xff] %v1760
  %1887 = vst [vmem:[#allocation2 + $0x130] sm:$0xff] %v1831
  %1888 = vst [vmem:[#allocation2 + $0x138] sm:$0xff] %v1833
  %1889 = vst [vmem:[#allocation2 + $0x140] sm:$0xff] %v1616
  %1890 = vst [vmem:[#allocation2 + $0x148] sm:$0xff] %v1618
  %1891 = vst [vmem:[#allocation2 + $0x150] sm:$0xff] %v1689
  %1892 = vst [vmem:[#allocation2 + $0x158] sm:$0xff] %v1691
  %1893 = vst [vmem:[#allocation2 + $0x160] sm:$0xff] %v1762
  %1894 = vst [vmem:[#allocation2 + $0x168] sm:$0xff] %v1764
  %1895 = vst [vmem:[#allocation2 + $0x170] sm:$0xff] %v1835
  %1896 = vst [vmem:[#allocation2 + $0x178] sm:$0xff] %v1837
  %1897 = vst [vmem:[#allocation2 + $0x180] sm:$0xff] %v1622
  %1898 = vst [vmem:[#allocation2 + $0x188] sm:$0xff] %v1624
  %1899 = vst [vmem:[#allocation2 + $0x190] sm:$0xff] %v1695
  %1900 = vst [vmem:[#allocation2 + $0x198] sm:$0xff] %v1697
  %1901 = vst [vmem:[#allocation2 + $0x1a0] sm:$0xff] %v1768
  %1902 = vst [vmem:[#allocation2 + $0x1a8] sm:$0xff] %v1770
  %1903 = vst [vmem:[#allocation2 + $0x1b0] sm:$0xff] %v1841
  %1904 = vst [vmem:[#allocation2 + $0x1b8] sm:$0xff] %v1843
  %1905 = vst [vmem:[#allocation2 + $0x1c0] sm:$0xff] %v1626
  %1906 = vst [vmem:[#allocation2 + $0x1c8] sm:$0xff] %v1628
  %1907 = vst [vmem:[#allocation2 + $0x1d0] sm:$0xff] %v1699
  %1908 = vst [vmem:[#allocation2 + $0x1d8] sm:$0xff] %v1701
  %1909 = vst [vmem:[#allocation2 + $0x1e0] sm:$0xff] %v1772
  %1910 = vst [vmem:[#allocation2 + $0x1e8] sm:$0xff] %v1774
  %1911 = vst [vmem:[#allocation2 + $0x1f0] sm:$0xff] %v1845
  %1912 = vst [vmem:[#allocation2 + $0x1f8] sm:$0xff] %v1847
  %v1913 = vld [vmem:[#allocation2] sm:$0xff]
  %v1914 = vld [vmem:[#allocation2 + $0x8] sm:$0xff]
  %v1915 = vld [vmem:[#allocation2 + $0x10] sm:$0xff]
  %v1916 = vld [vmem:[#allocation2 + $0x18] sm:$0xff]
  %v1917 = vld [vmem:[%s3] sm:$0xff]
  %v1918 = vld [vmem:[%s3 + $0x8] sm:$0xff]
  %v1919 = vld [vmem:[%s3 + $0x10] sm:$0xff]
  %v1920 = vld [vmem:[%s3 + $0x18] sm:$0xff]
  %v1921 = vld [vmem:[%s3 + $0x20] sm:$0xff]
  %v1922 = vld [vmem:[%s3 + $0x28] sm:$0xff]
  %v1923 = vld [vmem:[%s3 + $0x30] sm:$0xff]
  %v1924 = vld [vmem:[%s3 + $0x38] sm:$0xff]
  %v1925 = vld [vmem:[%s3 + $0x40] sm:$0xff]
  %v1926 = vld [vmem:[%s3 + $0x48] sm:$0xff]
  %v1927 = vld [vmem:[%s3 + $0x50] sm:$0xff]
  %v1928 = vld [vmem:[%s3 + $0x58] sm:$0xff]
  %v1929 = vld [vmem:[%s3 + $0x60] sm:$0xff]
  %v1930 = vld [vmem:[%s3 + $0x68] sm:$0xff]
  %v1931 = vld [vmem:[%s3 + $0x70] sm:$0xff]
  %v1932 = vld [vmem:[%s3 + $0x78] sm:$0xff]
  %v1933 = vld [vmem:[%s3 + $0x80] sm:$0xff]
  %v1934 = vld [vmem:[%s3 + $0x88] sm:$0xff]
  %v1935 = vld [vmem:[%s3 + $0x90] sm:$0xff]
  %v1936 = vld [vmem:[%s3 + $0x98] sm:$0xff]
  %v1937 = vld [vmem:[%s3 + $0xa0] sm:$0xff]
  %v1938 = vld [vmem:[%s3 + $0xa8] sm:$0xff]
  %v1939 = vld [vmem:[%s3 + $0xb0] sm:$0xff]
  %v1940 = vld [vmem:[%s3 + $0xb8] sm:$0xff]
  %v1941 = vld [vmem:[%s3 + $0xc0] sm:$0xff]
  %v1942 = vld [vmem:[%s3 + $0xc8] sm:$0xff]
  %v1943 = vld [vmem:[%s3 + $0xd0] sm:$0xff]
  %v1944 = vld [vmem:[%s3 + $0xd8] sm:$0xff]
  %v1945 = vld [vmem:[%s3 + $0xe0] sm:$0xff]
  %v1946 = vld [vmem:[%s3 + $0xe8] sm:$0xff]
  %v1947 = vld [vmem:[%s3 + $0xf0] sm:$0xff]
  %v1948 = vld [vmem:[%s3 + $0xf8] sm:$0xff]
  %v1981 = vunpack.c.l.b16 %v1917
  %v1982 = vunpack.c.h.b16 %v1917
  %v1983 = vunpack.c.l.b16 %v1918
  %v1984 = vunpack.c.h.b16 %v1918
  %v1985 = vunpack.c.l.b16 %v1919
  %v1986 = vunpack.c.h.b16 %v1919
  %v1987 = vunpack.c.l.b16 %v1920
  %v1988 = vunpack.c.h.b16 %v1920
  %v1989 = vunpack.c.l.b16 %v1921
  %v1990 = vunpack.c.h.b16 %v1921
  %v1991 = vunpack.c.l.b16 %v1922
  %v1992 = vunpack.c.h.b16 %v1922
  %v1993 = vunpack.c.l.b16 %v1923
  %v1994 = vunpack.c.h.b16 %v1923
  %v1995 = vunpack.c.l.b16 %v1924
  %v1996 = vunpack.c.h.b16 %v1924
  %v1997 = vunpack.c.l.b16 %v1925
  %v1998 = vunpack.c.h.b16 %v1925
  %v1999 = vunpack.c.l.b16 %v1926
  %v2000 = vunpack.c.h.b16 %v1926
  %v2001 = vunpack.c.l.b16 %v1927
  %v2002 = vunpack.c.h.b16 %v1927
  %v2003 = vunpack.c.l.b16 %v1928
  %v2004 = vunpack.c.h.b16 %v1928
  %v2005 = vunpack.c.l.b16 %v1929
  %v2006 = vunpack.c.h.b16 %v1929
  %v2007 = vunpack.c.l.b16 %v1930
  %v2008 = vunpack.c.h.b16 %v1930
  %v2009 = vunpack.c.l.b16 %v1931
  %v2010 = vunpack.c.h.b16 %v1931
  %v2011 = vunpack.c.l.b16 %v1932
  %v2012 = vunpack.c.h.b16 %v1932
  %v2013 = vunpack.c.l.b16 %v1933
  %v2014 = vunpack.c.h.b16 %v1933
  %v2015 = vunpack.c.l.b16 %v1934
  %v2016 = vunpack.c.h.b16 %v1934
  %v2017 = vunpack.c.l.b16 %v1935
  %v2018 = vunpack.c.h.b16 %v1935
  %v2019 = vunpack.c.l.b16 %v1936
  %v2020 = vunpack.c.h.b16 %v1936
  %v2021 = vunpack.c.l.b16 %v1937
  %v2022 = vunpack.c.h.b16 %v1937
  %v2023 = vunpack.c.l.b16 %v1938
  %v2024 = vunpack.c.h.b16 %v1938
  %v2025 = vunpack.c.l.b16 %v1939
  %v2026 = vunpack.c.h.b16 %v1939
  %v2027 = vunpack.c.l.b16 %v1940
  %v2028 = vunpack.c.h.b16 %v1940
  %v2029 = vunpack.c.l.b16 %v1941
  %v2030 = vunpack.c.h.b16 %v1941
  %v2031 = vunpack.c.l.b16 %v1942
  %v2032 = vunpack.c.h.b16 %v1942
  %v2033 = vunpack.c.l.b16 %v1943
  %v2034 = vunpack.c.h.b16 %v1943
  %v2035 = vunpack.c.l.b16 %v1944
  %v2036 = vunpack.c.h.b16 %v1944
  %v2037 = vunpack.c.l.b16 %v1945
  %v2038 = vunpack.c.h.b16 %v1945
  %v2039 = vunpack.c.l.b16 %v1946
  %v2040 = vunpack.c.h.b16 %v1946
  %v2041 = vunpack.c.l.b16 %v1947
  %v2042 = vunpack.c.h.b16 %v1947
  %v2043 = vunpack.c.l.b16 %v1948
  %v2044 = vunpack.c.h.b16 %v1948
  %v2045 = vpack.c.b16 %v1985, %v1981
  %v2046 = vpack.c.b16 %v1986, %v1982
  %v2047 = vpack.c.b16 %v1987, %v1983
  %v2048 = vpack.c.b16 %v1988, %v1984
  %v2049 = vpack.c.b16 %v1993, %v1989
  %v2050 = vpack.c.b16 %v1994, %v1990
  %v2051 = vpack.c.b16 %v1995, %v1991
  %v2052 = vpack.c.b16 %v1996, %v1992
  %v2053 = vpack.c.b16 %v2001, %v1997
  %v2054 = vpack.c.b16 %v2002, %v1998
  %v2055 = vpack.c.b16 %v2003, %v1999
  %v2056 = vpack.c.b16 %v2004, %v2000
  %v2057 = vpack.c.b16 %v2009, %v2005
  %v2058 = vpack.c.b16 %v2010, %v2006
  %v2059 = vpack.c.b16 %v2011, %v2007
  %v2060 = vpack.c.b16 %v2012, %v2008
  %v2061 = vpack.c.b16 %v2017, %v2013
  %v2062 = vpack.c.b16 %v2018, %v2014
  %v2063 = vpack.c.b16 %v2019, %v2015
  %v2064 = vpack.c.b16 %v2020, %v2016
  %v2065 = vpack.c.b16 %v2025, %v2021
  %v2066 = vpack.c.b16 %v2026, %v2022
  %v2067 = vpack.c.b16 %v2027, %v2023
  %v2068 = vpack.c.b16 %v2028, %v2024
  %v2069 = vpack.c.b16 %v2033, %v2029
  %v2070 = vpack.c.b16 %v2034, %v2030
  %v2071 = vpack.c.b16 %v2035, %v2031
  %v2072 = vpack.c.b16 %v2036, %v2032
  %v2073 = vpack.c.b16 %v2041, %v2037
  %v2074 = vpack.c.b16 %v2042, %v2038
  %v2075 = vpack.c.b16 %v2043, %v2039
  %v2076 = vpack.c.b16 %v2044, %v2040
  %2109 = vmatprep.subr.bf16.mxu0 %v2046
  %2110 = vmatpush1.bf16.msra.mxu0 %v2045
  %2111 = vmatprep.subr.bf16.mxu0 %v2050
  %2112 = vmatpush1.bf16.msra.mxu0 %v2049
  %2113 = vmatprep.subr.bf16.mxu0 %v2054
  %2114 = vmatpush1.bf16.msra.mxu0 %v2053
  %2115 = vmatprep.subr.bf16.mxu0 %v2058
  %2116 = vmatpush1.bf16.msra.mxu0 %v2057
  %2117 = vmatprep.subr.bf16.mxu0 %v2062
  %2118 = vmatpush1.bf16.msra.mxu0 %v2061
  %2119 = vmatprep.subr.bf16.mxu0 %v2066
  %2120 = vmatpush1.bf16.msra.mxu0 %v2065
  %2121 = vmatprep.subr.bf16.mxu0 %v2070
  %2122 = vmatpush1.bf16.msra.mxu0 %v2069
  %2123 = vmatprep.subr.bf16.mxu0 %v2074
  %2124 = vmatpush1.bf16.msra.mxu0 %v2073
  %2125 = vmatprep.subr.bf16.mxu0 0
  %2126 = vmatpush1.bf16.msra.mxu0 0
  %2127 = vmatprep.subr.bf16.mxu0 0
  %2128 = vmatpush1.bf16.msra.mxu0 0
  %2129 = vmatprep.subr.bf16.mxu0 0
  %2130 = vmatpush1.bf16.msra.mxu0 0
  %2131 = vmatprep.subr.bf16.mxu0 0
  %2132 = vmatpush1.bf16.msra.mxu0 0
  %2133 = vmatprep.subr.bf16.mxu0 0
  %2134 = vmatpush1.bf16.msra.mxu0 0
  %2135 = vmatprep.subr.bf16.mxu0 0
  %2136 = vmatpush1.bf16.msra.mxu0 0
  %2137 = vmatprep.subr.bf16.mxu0 0
  %2138 = vmatpush1.bf16.msra.mxu0 0
  %2139 = vmatprep.subr.bf16.mxu0 0
  %2140 = vmatpush1.bf16.msra.mxu0 0
  %2141 = vmatprep.mubr.bf16.mxu0 0
  %2142 = vmatmul.mubr.bf16.gmra.mrb[0].mxu0 0
  %v2143 = vpop.f32.mrb[0].mxu0
  %v2144 = vadd.f32 0.0, %v2143
  %v2145 = vpop.f32.mrb[0].mxu0
  %v2146 = vadd.f32 0.0, %v2145
  %v2147 = vpop.f32.mrb[0].mxu0
  %v2148 = vpop.f32.mrb[0].mxu0
  %2149 = vdwg.mxu0
  %2150 = vmatprep.subr.bf16.mxu0 %v2048
  %2151 = vmatpush1.bf16.msra.mxu0 %v2047
  %2152 = vmatprep.subr.bf16.mxu0 %v2052
  %2153 = vmatpush1.bf16.msra.mxu0 %v2051
  %2154 = vmatprep.subr.bf16.mxu0 %v2056
  %2155 = vmatpush1.bf16.msra.mxu0 %v2055
  %2156 = vmatprep.subr.bf16.mxu0 %v2060
  %2157 = vmatpush1.bf16.msra.mxu0 %v2059
  %2158 = vmatprep.subr.bf16.mxu0 %v2064
  %2159 = vmatpush1.bf16.msra.mxu0 %v2063
  %2160 = vmatprep.subr.bf16.mxu0 %v2068
  %2161 = vmatpush1.bf16.msra.mxu0 %v2067
  %2162 = vmatprep.subr.bf16.mxu0 %v2072
  %2163 = vmatpush1.bf16.msra.mxu0 %v2071
  %2164 = vmatprep.subr.bf16.mxu0 %v2076
  %2165 = vmatpush1.bf16.msra.mxu0 %v2075
  %2166 = vmatprep.subr.bf16.mxu0 0
  %2167 = vmatpush1.bf16.msra.mxu0 0
  %2168 = vmatprep.subr.bf16.mxu0 0
  %2169 = vmatpush1.bf16.msra.mxu0 0
  %2170 = vmatprep.subr.bf16.mxu0 0
  %2171 = vmatpush1.bf16.msra.mxu0 0
  %2172 = vmatprep.subr.bf16.mxu0 0
  %2173 = vmatpush1.bf16.msra.mxu0 0
  %2174 = vmatprep.subr.bf16.mxu0 0
  %2175 = vmatpush1.bf16.msra.mxu0 0
  %2176 = vmatprep.subr.bf16.mxu0 0
  %2177 = vmatpush1.bf16.msra.mxu0 0
  %2178 = vmatprep.subr.bf16.mxu0 0
  %2179 = vmatpush1.bf16.msra.mxu0 0
  %2180 = vmatprep.subr.bf16.mxu0 0
  %2181 = vmatpush1.bf16.msra.mxu0 0
  %2182 = vmatprep.mubr.bf16.mxu0 0
  %2183 = vmatmul.mubr.bf16.gmra.mrb[0].mxu0 0
  %v2184 = vpop.f32.mrb[0].mxu0
  %v2185 = vadd.f32 0.0, %v2184
  %v2186 = vpop.f32.mrb[0].mxu0
  %v2187 = vadd.f32 0.0, %v2186
  %v2188 = vpop.f32.mrb[0].mxu0
  %v2189 = vpop.f32.mrb[0].mxu0
  %2190 = vdwg.mxu0
  %v2191 = vadd.f32 %v1913, %v2144
  %v2192 = vadd.f32 %v1914, %v2146
  %v2193 = vadd.f32 %v1915, %v2185
  %v2194 = vadd.f32 %v1916, %v2187
  %v2195 = vld [vmem:[#allocation2 + $0x1e0] sm:$0xff]
  %v2196 = vld [vmem:[#allocation2 + $0x1e8] sm:$0xff]
  %v2197 = vld [vmem:[#allocation2 + $0x1f0] sm:$0xff]
  %v2198 = vld [vmem:[#allocation2 + $0x1f8] sm:$0xff]
  %v2199 = vld [vmem:[%s4] sm:$0xff]
  %v2200 = vld [vmem:[%s4 + $0x8] sm:$0xff]
  %v2201 = vld [vmem:[%s4 + $0x10] sm:$0xff]
  %v2202 = vld [vmem:[%s4 + $0x18] sm:$0xff]
  %v2203 = vld [vmem:[%s4 + $0x20] sm:$0xff]
  %v2204 = vld [vmem:[%s4 + $0x28] sm:$0xff]
  %v2205 = vld [vmem:[%s4 + $0x30] sm:$0xff]
  %v2206 = vld [vmem:[%s4 + $0x38] sm:$0xff]
  %v2207 = vld [vmem:[%s4 + $0x40] sm:$0xff]
  %v2208 = vld [vmem:[%s4 + $0x48] sm:$0xff]
  %v2209 = vld [vmem:[%s4 + $0x50] sm:$0xff]
  %v2210 = vld [vmem:[%s4 + $0x58] sm:$0xff]
  %v2211 = vld [vmem:[%s4 + $0x60] sm:$0xff]
  %v2212 = vld [vmem:[%s4 + $0x68] sm:$0xff]
  %v2213 = vld [vmem:[%s4 + $0x70] sm:$0xff]
  %v2214 = vld [vmem:[%s4 + $0x78] sm:$0xff]
  %v2215 = vld [vmem:[%s4 + $0x80] sm:$0xff]
  %v2216 = vld [vmem:[%s4 + $0x88] sm:$0xff]
  %v2217 = vld [vmem:[%s4 + $0x90] sm:$0xff]
  %v2218 = vld [vmem:[%s4 + $0x98] sm:$0xff]
  %v2219 = vld [vmem:[%s4 + $0xa0] sm:$0xff]
  %v2220 = vld [vmem:[%s4 + $0xa8] sm:$0xff]
  %v2221 = vld [vmem:[%s4 + $0xb0] sm:$0xff]
  %v2222 = vld [vmem:[%s4 + $0xb8] sm:$0xff]
  %v2223 = vld [vmem:[%s4 + $0xc0] sm:$0xff]
  %v2224 = vld [vmem:[%s4 + $0xc8] sm:$0xff]
  %v2225 = vld [vmem:[%s4 + $0xd0] sm:$0xff]
  %v2226 = vld [vmem:[%s4 + $0xd8] sm:$0xff]
  %v2227 = vld [vmem:[%s4 + $0xe0] sm:$0xff]
  %v2228 = vld [vmem:[%s4 + $0xe8] sm:$0xff]
  %v2229 = vld [vmem:[%s4 + $0xf0] sm:$0xff]
  %v2230 = vld [vmem:[%s4 + $0xf8] sm:$0xff]
  %v2263 = vunpack.c.l.b16 %v2199
  %v2264 = vunpack.c.h.b16 %v2199
  %v2265 = vunpack.c.l.b16 %v2200
  %v2266 = vunpack.c.h.b16 %v2200
  %v2267 = vunpack.c.l.b16 %v2201
  %v2268 = vunpack.c.h.b16 %v2201
  %v2269 = vunpack.c.l.b16 %v2202
  %v2270 = vunpack.c.h.b16 %v2202
  %v2271 = vunpack.c.l.b16 %v2203
  %v2272 = vunpack.c.h.b16 %v2203
  %v2273 = vunpack.c.l.b16 %v2204
  %v2274 = vunpack.c.h.b16 %v2204
  %v2275 = vunpack.c.l.b16 %v2205
  %v2276 = vunpack.c.h.b16 %v2205
  %v2277 = vunpack.c.l.b16 %v2206
  %v2278 = vunpack.c.h.b16 %v2206
  %v2279 = vunpack.c.l.b16 %v2207
  %v2280 = vunpack.c.h.b16 %v2207
  %v2281 = vunpack.c.l.b16 %v2208
  %v2282 = vunpack.c.h.b16 %v2208
  %v2283 = vunpack.c.l.b16 %v2209
  %v2284 = vunpack.c.h.b16 %v2209
  %v2285 = vunpack.c.l.b16 %v2210
  %v2286 = vunpack.c.h.b16 %v2210
  %v2287 = vunpack.c.l.b16 %v2211
  %v2288 = vunpack.c.h.b16 %v2211
  %v2289 = vunpack.c.l.b16 %v2212
  %v2290 = vunpack.c.h.b16 %v2212
  %v2291 = vunpack.c.l.b16 %v2213
  %v2292 = vunpack.c.h.b16 %v2213
  %v2293 = vunpack.c.l.b16 %v2214
  %v2294 = vunpack.c.h.b16 %v2214
  %v2295 = vunpack.c.l.b16 %v2215
  %v2296 = vunpack.c.h.b16 %v2215
  %v2297 = vunpack.c.l.b16 %v2216
  %v2298 = vunpack.c.h.b16 %v2216
  %v2299 = vunpack.c.l.b16 %v2217
  %v2300 = vunpack.c.h.b16 %v2217
  %v2301 = vunpack.c.l.b16 %v2218
  %v2302 = vunpack.c.h.b16 %v2218
  %v2303 = vunpack.c.l.b16 %v2219
  %v2304 = vunpack.c.h.b16 %v2219
  %v2305 = vunpack.c.l.b16 %v2220
  %v2306 = vunpack.c.h.b16 %v2220
  %v2307 = vunpack.c.l.b16 %v2221
  %v2308 = vunpack.c.h.b16 %v2221
  %v2309 = vunpack.c.l.b16 %v2222
  %v2310 = vunpack.c.h.b16 %v2222
  %v2311 = vunpack.c.l.b16 %v2223
  %v2312 = vunpack.c.h.b16 %v2223
  %v2313 = vunpack.c.l.b16 %v2224
  %v2314 = vunpack.c.h.b16 %v2224
  %v2315 = vunpack.c.l.b16 %v2225
  %v2316 = vunpack.c.h.b16 %v2225
  %v2317 = vunpack.c.l.b16 %v2226
  %v2318 = vunpack.c.h.b16 %v2226
  %v2319 = vunpack.c.l.b16 %v2227
  %v2320 = vunpack.c.h.b16 %v2227
  %v2321 = vunpack.c.l.b16 %v2228
  %v2322 = vunpack.c.h.b16 %v2228
  %v2323 = vunpack.c.l.b16 %v2229
  %v2324 = vunpack.c.h.b16 %v2229
  %v2325 = vunpack.c.l.b16 %v2230
  %v2326 = vunpack.c.h.b16 %v2230
  %v2327 = vpack.c.b16 %v2267, %v2263
  %v2328 = vpack.c.b16 %v2268, %v2264
  %v2329 = vpack.c.b16 %v2269, %v2265
  %v2330 = vpack.c.b16 %v2270, %v2266
  %v2331 = vpack.c.b16 %v2275, %v2271
  %v2332 = vpack.c.b16 %v2276, %v2272
  %v2333 = vpack.c.b16 %v2277, %v2273
  %v2334 = vpack.c.b16 %v2278, %v2274
  %v2335 = vpack.c.b16 %v2283, %v2279
  %v2336 = vpack.c.b16 %v2284, %v2280
  %v2337 = vpack.c.b16 %v2285, %v2281
  %v2338 = vpack.c.b16 %v2286, %v2282
  %v2339 = vpack.c.b16 %v2291, %v2287
  %v2340 = vpack.c.b16 %v2292, %v2288
  %v2341 = vpack.c.b16 %v2293, %v2289
  %v2342 = vpack.c.b16 %v2294, %v2290
  %v2343 = vpack.c.b16 %v2299, %v2295
  %v2344 = vpack.c.b16 %v2300, %v2296
  %v2345 = vpack.c.b16 %v2301, %v2297
  %v2346 = vpack.c.b16 %v2302, %v2298
  %v2347 = vpack.c.b16 %v2307, %v2303
  %v2348 = vpack.c.b16 %v2308, %v2304
  %v2349 = vpack.c.b16 %v2309, %v2305
  %v2350 = vpack.c.b16 %v2310, %v2306
  %v2351 = vpack.c.b16 %v2315, %v2311
  %v2352 = vpack.c.b16 %v2316, %v2312
  %v2353 = vpack.c.b16 %v2317, %v2313
  %v2354 = vpack.c.b16 %v2318, %v2314
  %v2355 = vpack.c.b16 %v2323, %v2319
  %v2356 = vpack.c.b16 %v2324, %v2320
  %v2357 = vpack.c.b16 %v2325, %v2321
  %v2358 = vpack.c.b16 %v2326, %v2322
  %2391 = vmatprep.subr.bf16.mxu0 %v2328
  %2392 = vmatpush1.bf16.msra.mxu0 %v2327
  %2393 = vmatprep.subr.bf16.mxu0 %v2332
  %2394 = vmatpush1.bf16.msra.mxu0 %v2331
  %2395 = vmatprep.subr.bf16.mxu0 %v2336
  %2396 = vmatpush1.bf16.msra.mxu0 %v2335
  %2397 = vmatprep.subr.bf16.mxu0 %v2340
  %2398 = vmatpush1.bf16.msra.mxu0 %v2339
  %2399 = vmatprep.subr.bf16.mxu0 %v2344
  %2400 = vmatpush1.bf16.msra.mxu0 %v2343
  %2401 = vmatprep.subr.bf16.mxu0 %v2348
  %2402 = vmatpush1.bf16.msra.mxu0 %v2347
  %2403 = vmatprep.subr.bf16.mxu0 %v2352
  %2404 = vmatpush1.bf16.msra.mxu0 %v2351
  %2405 = vmatprep.subr.bf16.mxu0 %v2356
  %2406 = vmatpush1.bf16.msra.mxu0 %v2355
  %2407 = vmatprep.subr.bf16.mxu0 0
  %2408 = vmatpush1.bf16.msra.mxu0 0
  %2409 = vmatprep.subr.bf16.mxu0 0
  %2410 = vmatpush1.bf16.msra.mxu0 0
  %2411 = vmatprep.subr.bf16.mxu0 0
  %2412 = vmatpush1.bf16.msra.mxu0 0
  %2413 = vmatprep.subr.bf16.mxu0 0
  %2414 = vmatpush1.bf16.msra.mxu0 0
  %2415 = vmatprep.subr.bf16.mxu0 0
  %2416 = vmatpush1.bf16.msra.mxu0 0
  %2417 = vmatprep.subr.bf16.mxu0 0
  %2418 = vmatpush1.bf16.msra.mxu0 0
  %2419 = vmatprep.subr.bf16.mxu0 0
  %2420 = vmatpush1.bf16.msra.mxu0 0
  %2421 = vmatprep.subr.bf16.mxu0 0
  %2422 = vmatpush1.bf16.msra.mxu0 0
  %2423 = vmatprep.mubr.bf16.mxu0 0
  %2424 = vmatmul.mubr.bf16.gmra.mrb[0].mxu0 0
  %v2425 = vpop.f32.mrb[0].mxu0
  %v2426 = vadd.f32 0.0, %v2425
  %v2427 = vpop.f32.mrb[0].mxu0
  %v2428 = vadd.f32 0.0, %v2427
  %v2429 = vpop.f32.mrb[0].mxu0
  %v2430 = vpop.f32.mrb[0].mxu0
  %2431 = vdwg.mxu0
  %2432 = vmatprep.subr.bf16.mxu0 %v2330
  %2433 = vmatpush1.bf16.msra.mxu0 %v2329
  %2434 = vmatprep.subr.bf16.mxu0 %v2334
  %2435 = vmatpush1.bf16.msra.mxu0 %v2333
  %2436 = vmatprep.subr.bf16.mxu0 %v2338
  %2437 = vmatpush1.bf16.msra.mxu0 %v2337
  %2438 = vmatprep.subr.bf16.mxu0 %v2342
  %2439 = vmatpush1.bf16.msra.mxu0 %v2341
  %2440 = vmatprep.subr.bf16.mxu0 %v2346
  %2441 = vmatpush1.bf16.msra.mxu0 %v2345
  %2442 = vmatprep.subr.bf16.mxu0 %v2350
  %2443 = vmatpush1.bf16.msra.mxu0 %v2349
  %2444 = vmatprep.subr.bf16.mxu0 %v2354
  %2445 = vmatpush1.bf16.msra.mxu0 %v2353
  %2446 = vmatprep.subr.bf16.mxu0 %v2358
  %2447 = vmatpush1.bf16.msra.mxu0 %v2357
  %2448 = vmatprep.subr.bf16.mxu0 0
  %2449 = vmatpush1.bf16.msra.mxu0 0
  %2450 = vmatprep.subr.bf16.mxu0 0
  %2451 = vmatpush1.bf16.msra.mxu0 0
  %2452 = vmatprep.subr.bf16.mxu0 0
  %2453 = vmatpush1.bf16.msra.mxu0 0
  %2454 = vmatprep.subr.bf16.mxu0 0
  %2455 = vmatpush1.bf16.msra.mxu0 0
  %2456 = vmatprep.subr.bf16.mxu0 0
  %2457 = vmatpush1.bf16.msra.mxu0 0
  %2458 = vmatprep.subr.bf16.mxu0 0
  %2459 = vmatpush1.bf16.msra.mxu0 0
  %2460 = vmatprep.subr.bf16.mxu0 0
  %2461 = vmatpush1.bf16.msra.mxu0 0
  %2462 = vmatprep.subr.bf16.mxu0 0
  %2463 = vmatpush1.bf16.msra.mxu0 0
  %2464 = vmatprep.mubr.bf16.mxu0 0
  %2465 = vmatmul.mubr.bf16.gmra.mrb[0].mxu0 0
  %v2466 = vpop.f32.mrb[0].mxu0
  %v2467 = vadd.f32 0.0, %v2466
  %v2468 = vpop.f32.mrb[0].mxu0
  %v2469 = vadd.f32 0.0, %v2468
  %v2470 = vpop.f32.mrb[0].mxu0
  %v2471 = vpop.f32.mrb[0].mxu0
  %2472 = vdwg.mxu0
  %v2473 = vadd.f32 %v2195, %v2426
  %v2474 = vadd.f32 %v2196, %v2428
  %v2475 = vadd.f32 %v2197, %v2467
  %v2476 = vadd.f32 %v2198, %v2469
  %v2477 = vxor.u32 %v2191, 2147483648
  %v2478 = vmul.f32 %v2477, 1.442695
  %v2479 = vpow.pop %v2478
  %v2480 = vadd.f32 %v2479, 1.0
  %v2481 = vrcp.pop %v2480
  %v2482 = vmul.f32 1.0, %v2481
  %v2483 = vxor.u32 %v2192, 2147483648
  %v2484 = vmul.f32 %v2483, 1.442695
  %v2485 = vpow.pop %v2484
  %v2486 = vadd.f32 %v2485, 1.0
  %v2487 = vrcp.pop %v2486
  %v2488 = vmul.f32 1.0, %v2487
  %v2489 = vtanh.pop %v2193
  %v2490 = vxor.u32 %v2194, 2147483648
  %v2491 = vmul.f32 %v2490, 1.442695
  %v2492 = vpow.pop %v2491
  %v2493 = vadd.f32 %v2492, 1.0
  %v2494 = vrcp.pop %v2493
  %v2495 = vmul.f32 1.0, %v2494
  %v2496 = vmul.f32 %v2488, 0.0
  %v2497 = vmul.f32 %v2482, %v2489
  %v2498 = vadd.f32 %v2496, %v2497
  %v2499 = vtanh.pop %v2498
  %v2500 = vmul.f32 %v2495, %v2499
  %v2501 = vxor.u32 %v2473, 2147483648
  %v2502 = vmul.f32 %v2501, 1.442695
  %v2503 = vpow.pop %v2502
  %v2504 = vadd.f32 %v2503, 1.0
  %v2505 = vrcp.pop %v2504
  %v2506 = vmul.f32 1.0, %v2505
  %v2507 = vxor.u32 %v2474, 2147483648
  %v2508 = vmul.f32 %v2507, 1.442695
  %v2509 = vpow.pop %v2508
  %v2510 = vadd.f32 %v2509, 1.0
  %v2511 = vrcp.pop %v2510
  %v2512 = vmul.f32 1.0, %v2511
  %v2513 = vtanh.pop %v2475
  %v2514 = vxor.u32 %v2476, 2147483648
  %v2515 = vmul.f32 %v2514, 1.442695
  %v2516 = vpow.pop %v2515
  %v2517 = vadd.f32 %v2516, 1.0
  %v2518 = vrcp.pop %v2517
  %v2519 = vmul.f32 1.0, %v2518
  %v2520 = vmul.f32 %v2512, 0.0
  %v2521 = vmul.f32 %v2506, %v2513
  %v2522 = vadd.f32 %v2520, %v2521
  %v2523 = vtanh.pop %v2522
  %v2524 = vmul.f32 %v2519, %v2523
  %2525 = vst [vmem:[#allocation3] sm:$0xff] %v2500
  %2526 = vst [vmem:[#allocation3 + $0x78] sm:$0xff] %v2524
  %v2527 = vld [vmem:[#allocation2 + $0x40] sm:$0xff]
  %v2528 = vld [vmem:[#allocation2 + $0x48] sm:$0xff]
  %v2529 = vld [vmem:[#allocation2 + $0x50] sm:$0xff]
  %v2530 = vld [vmem:[#allocation2 + $0x58] sm:$0xff]
  %v2531 = vpack.c.bf16 %v2500, %v2500
  %v2532 = vld [vmem:[%s3] sm:$0xff]
  %v2533 = vld [vmem:[%s3 + $0x8] sm:$0xff]
  %v2534 = vld [vmem:[%s3 + $0x10] sm:$0xff]
  %v2535 = vld [vmem:[%s3 + $0x18] sm:$0xff]
  %v2536 = vld [vmem:[%s3 + $0x20] sm:$0xff]
  %v2537 = vld [vmem:[%s3 + $0x28] sm:$0xff]
  %v2538 = vld [vmem:[%s3 + $0x30] sm:$0xff]
  %v2539 = vld [vmem:[%s3 + $0x38] sm:$0xff]
  %v2540 = vld [vmem:[%s3 + $0x40] sm:$0xff]
  %v2541 = vld [vmem:[%s3 + $0x48] sm:$0xff]
  %v2542 = vld [vmem:[%s3 + $0x50] sm:$0xff]
  %v2543 = vld [vmem:[%s3 + $0x58] sm:$0xff]
  %v2544 = vld [vmem:[%s3 + $0x60] sm:$0xff]
  %v2545 = vld [vmem:[%s3 + $0x68] sm:$0xff]
  %v2546 = vld [vmem:[%s3 + $0x70] sm:$0xff]
  %v2547 = vld [vmem:[%s3 + $0x78] sm:$0xff]
  %v2548 = vld [vmem:[%s3 + $0x80] sm:$0xff]
  %v2549 = vld [vmem:[%s3 + $0x88] sm:$0xff]
  %v2550 = vld [vmem:[%s3 + $0x90] sm:$0xff]
  %v2551 = vld [vmem:[%s3 + $0x98] sm:$0xff]
  %v2552 = vld [vmem:[%s3 + $0xa0] sm:$0xff]
  %v2553 = vld [vmem:[%s3 + $0xa8] sm:$0xff]
  %v2554 = vld [vmem:[%s3 + $0xb0] sm:$0xff]
  %v2555 = vld [vmem:[%s3 + $0xb8] sm:$0xff]
  %v2556 = vld [vmem:[%s3 + $0xc0] sm:$0xff]
  %v2557 = vld [vmem:[%s3 + $0xc8] sm:$0xff]
  %v2558 = vld [vmem:[%s3 + $0xd0] sm:$0xff]
  %v2559 = vld [vmem:[%s3 + $0xd8] sm:$0xff]
  %v2560 = vld [vmem:[%s3 + $0xe0] sm:$0xff]
  %v2561 = vld [vmem:[%s3 + $0xe8] sm:$0xff]
  %v2562 = vld [vmem:[%s3 + $0xf0] sm:$0xff]
  %v2563 = vld [vmem:[%s3 + $0xf8] sm:$0xff]
  %v2596 = vunpack.c.l.b16 %v2532
  %v2597 = vunpack.c.h.b16 %v2532
  %v2598 = vunpack.c.l.b16 %v2533
  %v2599 = vunpack.c.h.b16 %v2533
  %v2600 = vunpack.c.l.b16 %v2534
  %v2601 = vunpack.c.h.b16 %v2534
  %v2602 = vunpack.c.l.b16 %v2535
  %v2603 = vunpack.c.h.b16 %v2535
  %v2604 = vunpack.c.l.b16 %v2536
  %v2605 = vunpack.c.h.b16 %v2536
  %v2606 = vunpack.c.l.b16 %v2537
  %v2607 = vunpack.c.h.b16 %v2537
  %v2608 = vunpack.c.l.b16 %v2538
  %v2609 = vunpack.c.h.b16 %v2538
  %v2610 = vunpack.c.l.b16 %v2539
  %v2611 = vunpack.c.h.b16 %v2539
  %v2612 = vunpack.c.l.b16 %v2540
  %v2613 = vunpack.c.h.b16 %v2540
  %v2614 = vunpack.c.l.b16 %v2541
  %v2615 = vunpack.c.h.b16 %v2541
  %v2616 = vunpack.c.l.b16 %v2542
  %v2617 = vunpack.c.h.b16 %v2542
  %v2618 = vunpack.c.l.b16 %v2543
  %v2619 = vunpack.c.h.b16 %v2543
  %v2620 = vunpack.c.l.b16 %v2544
  %v2621 = vunpack.c.h.b16 %v2544
  %v2622 = vunpack.c.l.b16 %v2545
  %v2623 = vunpack.c.h.b16 %v2545
  %v2624 = vunpack.c.l.b16 %v2546
  %v2625 = vunpack.c.h.b16 %v2546
  %v2626 = vunpack.c.l.b16 %v2547
  %v2627 = vunpack.c.h.b16 %v2547
  %v2628 = vunpack.c.l.b16 %v2548
  %v2629 = vunpack.c.h.b16 %v2548
  %v2630 = vunpack.c.l.b16 %v2549
  %v2631 = vunpack.c.h.b16 %v2549
  %v2632 = vunpack.c.l.b16 %v2550
  %v2633 = vunpack.c.h.b16 %v2550
  %v2634 = vunpack.c.l.b16 %v2551
  %v2635 = vunpack.c.h.b16 %v2551
  %v2636 = vunpack.c.l.b16 %v2552
  %v2637 = vunpack.c.h.b16 %v2552
  %v2638 = vunpack.c.l.b16 %v2553
  %v2639 = vunpack.c.h.b16 %v2553
  %v2640 = vunpack.c.l.b16 %v2554
  %v2641 = vunpack.c.h.b16 %v2554
  %v2642 = vunpack.c.l.b16 %v2555
  %v2643 = vunpack.c.h.b16 %v2555
  %v2644 = vunpack.c.l.b16 %v2556
  %v2645 = vunpack.c.h.b16 %v2556
  %v2646 = vunpack.c.l.b16 %v2557
  %v2647 = vunpack.c.h.b16 %v2557
  %v2648 = vunpack.c.l.b16 %v2558
  %v2649 = vunpack.c.h.b16 %v2558
  %v2650 = vunpack.c.l.b16 %v2559
  %v2651 = vunpack.c.h.b16 %v2559
  %v2652 = vunpack.c.l.b16 %v2560
  %v2653 = vunpack.c.h.b16 %v2560
  %v2654 = vunpack.c.l.b16 %v2561
  %v2655 = vunpack.c.h.b16 %v2561
  %v2656 = vunpack.c.l.b16 %v2562
  %v2657 = vunpack.c.h.b16 %v2562
  %v2658 = vunpack.c.l.b16 %v2563
  %v2659 = vunpack.c.h.b16 %v2563
  %v2660 = vpack.c.b16 %v2600, %v2596
  %v2661 = vpack.c.b16 %v2601, %v2597
  %v2662 = vpack.c.b16 %v2602, %v2598
  %v2663 = vpack.c.b16 %v2603, %v2599
  %v2664 = vpack.c.b16 %v2608, %v2604
  %v2665 = vpack.c.b16 %v2609, %v2605
  %v2666 = vpack.c.b16 %v2610, %v2606
  %v2667 = vpack.c.b16 %v2611, %v2607
  %v2668 = vpack.c.b16 %v2616, %v2612
  %v2669 = vpack.c.b16 %v2617, %v2613
  %v2670 = vpack.c.b16 %v2618, %v2614
  %v2671 = vpack.c.b16 %v2619, %v2615
  %v2672 = vpack.c.b16 %v2624, %v2620
  %v2673 = vpack.c.b16 %v2625, %v2621
  %v2674 = vpack.c.b16 %v2626, %v2622
  %v2675 = vpack.c.b16 %v2627, %v2623
  %v2676 = vpack.c.b16 %v2632, %v2628
  %v2677 = vpack.c.b16 %v2633, %v2629
  %v2678 = vpack.c.b16 %v2634, %v2630
  %v2679 = vpack.c.b16 %v2635, %v2631
  %v2680 = vpack.c.b16 %v2640, %v2636
  %v2681 = vpack.c.b16 %v2641, %v2637
  %v2682 = vpack.c.b16 %v2642, %v2638
  %v2683 = vpack.c.b16 %v2643, %v2639
  %v2684 = vpack.c.b16 %v2648, %v2644
  %v2685 = vpack.c.b16 %v2649, %v2645
  %v2686 = vpack.c.b16 %v2650, %v2646
  %v2687 = vpack.c.b16 %v2651, %v2647
  %v2688 = vpack.c.b16 %v2656, %v2652
  %v2689 = vpack.c.b16 %v2657, %v2653
  %v2690 = vpack.c.b16 %v2658, %v2654
  %v2691 = vpack.c.b16 %v2659, %v2655
  %2724 = vmatprep.subr.bf16.mxu0 %v2661
  %2725 = vmatpush1.bf16.msra.mxu0 %v2660
  %2726 = vmatprep.subr.bf16.mxu0 %v2665
  %2727 = vmatpush1.bf16.msra.mxu0 %v2664
  %2728 = vmatprep.subr.bf16.mxu0 %v2669
  %2729 = vmatpush1.bf16.msra.mxu0 %v2668
  %2730 = vmatprep.subr.bf16.mxu0 %v2673
  %2731 = vmatpush1.bf16.msra.mxu0 %v2672
  %2732 = vmatprep.subr.bf16.mxu0 %v2677
  %2733 = vmatpush1.bf16.msra.mxu0 %v2676
  %2734 = vmatprep.subr.bf16.mxu0 %v2681
  %2735 = vmatpush1.bf16.msra.mxu0 %v2680
  %2736 = vmatprep.subr.bf16.mxu0 %v2685
  %2737 = vmatpush1.bf16.msra.mxu0 %v2684
  %2738 = vmatprep.subr.bf16.mxu0 %v2689
  %2739 = vmatpush1.bf16.msra.mxu0 %v2688
  %2740 = vmatprep.subr.bf16.mxu0 0
  %2741 = vmatpush1.bf16.msra.mxu0 0
  %2742 = vmatprep.subr.bf16.mxu0 0
  %2743 = vmatpush1.bf16.msra.mxu0 0
  %2744 = vmatprep.subr.bf16.mxu0 0
  %2745 = vmatpush1.bf16.msra.mxu0 0
  %2746 = vmatprep.subr.bf16.mxu0 0
  %2747 = vmatpush1.bf16.msra.mxu0 0
  %2748 = vmatprep.subr.bf16.mxu0 0
  %2749 = vmatpush1.bf16.msra.mxu0 0
  %2750 = vmatprep.subr.bf16.mxu0 0
  %2751 = vmatpush1.bf16.msra.mxu0 0
  %2752 = vmatprep.subr.bf16.mxu0 0
  %2753 = vmatpush1.bf16.msra.mxu0 0
  %2754 = vmatprep.subr.bf16.mxu0 0
  %2755 = vmatpush1.bf16.msra.mxu0 0
  %2756 = vmatprep.mubr.bf16.mxu0 0
  %2757 = vmatmul.mubr.bf16.gmra.mrb[0].mxu0 %v2531
  %v2758 = vpop.f32.mrb[0].mxu0
  %v2759 = vadd.f32 0.0, %v2758
  %v2760 = vpop.f32.mrb[0].mxu0
  %v2761 = vadd.f32 0.0, %v2760
  %v2762 = vpop.f32.mrb[0].mxu0
  %v2763 = vpop.f32.mrb[0].mxu0
  %2764 = vdwg.mxu0
  %2765 = vmatprep.subr.bf16.mxu0 %v2663
  %2766 = vmatpush1.bf16.msra.mxu0 %v2662
  %2767 = vmatprep.subr.bf16.mxu0 %v2667
  %2768 = vmatpush1.bf16.msra.mxu0 %v2666
  %2769 = vmatprep.subr.bf16.mxu0 %v2671
  %2770 = vmatpush1.bf16.msra.mxu0 %v2670
  %2771 = vmatprep.subr.bf16.mxu0 %v2675
  %2772 = vmatpush1.bf16.msra.mxu0 %v2674
  %2773 = vmatprep.subr.bf16.mxu0 %v2679
  %2774 = vmatpush1.bf16.msra.mxu0 %v2678
  %2775 = vmatprep.subr.bf16.mxu0 %v2683
  %2776 = vmatpush1.bf16.msra.mxu0 %v2682
  %2777 = vmatprep.subr.bf16.mxu0 %v2687
  %2778 = vmatpush1.bf16.msra.mxu0 %v2686
  %2779 = vmatprep.subr.bf16.mxu0 %v2691
  %2780 = vmatpush1.bf16.msra.mxu0 %v2690
  %2781 = vmatprep.subr.bf16.mxu0 0
  %2782 = vmatpush1.bf16.msra.mxu0 0
  %2783 = vmatprep.subr.bf16.mxu0 0
  %2784 = vmatpush1.bf16.msra.mxu0 0
  %2785 = vmatprep.subr.bf16.mxu0 0
  %2786 = vmatpush1.bf16.msra.mxu0 0
  %2787 = vmatprep.subr.bf16.mxu0 0
  %2788 = vmatpush1.bf16.msra.mxu0 0
  %2789 = vmatprep.subr.bf16.mxu0 0
  %2790 = vmatpush1.bf16.msra.mxu0 0
  %2791 = vmatprep.subr.bf16.mxu0 0
  %2792 = vmatpush1.bf16.msra.mxu0 0
  %2793 = vmatprep.subr.bf16.mxu0 0
  %2794 = vmatpush1.bf16.msra.mxu0 0
  %2795 = vmatprep.subr.bf16.mxu0 0
  %2796 = vmatpush1.bf16.msra.mxu0 0
  %2797 = vmatprep.mubr.bf16.mxu0 0
  %2798 = vmatmul.mubr.bf16.gmra.mrb[0].mxu0 %v2531
  %v2799 = vpop.f32.mrb[0].mxu0
  %v2800 = vadd.f32 0.0, %v2799
  %v2801 = vpop.f32.mrb[0].mxu0
  %v2802 = vadd.f32 0.0, %v2801
  %v2803 = vpop.f32.mrb[0].mxu0
  %v2804 = vpop.f32.mrb[0].mxu0
  %2805 = vdwg.mxu0
  %v2806 = vadd.f32 %v2527, %v2759
  %v2807 = vadd.f32 %v2528, %v2761
  %v2808 = vadd.f32 %v2529, %v2800
  %v2809 = vadd.f32 %v2530, %v2802
  %v2810 = vld [vmem:[#allocation2 + $0x1a0] sm:$0xff]
  %v2811 = vld [vmem:[#allocation2 + $0x1a8] sm:$0xff]
  %v2812 = vld [vmem:[#allocation2 + $0x1b0] sm:$0xff]
  %v2813 = vld [vmem:[#allocation2 + $0x1b8] sm:$0xff]
  %v2814 = vpack.c.bf16 %v2524, %v2524
  %v2815 = vld [vmem:[%s4] sm:$0xff]
  %v2816 = vld [vmem:[%s4 + $0x8] sm:$0xff]
  %v2817 = vld [vmem:[%s4 + $0x10] sm:$0xff]
  %v2818 = vld [vmem:[%s4 + $0x18] sm:$0xff]
  %v2819 = vld [vmem:[%s4 + $0x20] sm:$0xff]
  %v2820 = vld [vmem:[%s4 + $0x28] sm:$0xff]
  %v2821 = vld [vmem:[%s4 + $0x30] sm:$0xff]
  %v2822 = vld [vmem:[%s4 + $0x38] sm:$0xff]
  %v2823 = vld [vmem:[%s4 + $0x40] sm:$0xff]
  %v2824 = vld [vmem:[%s4 + $0x48] sm:$0xff]
  %v2825 = vld [vmem:[%s4 + $0x50] sm:$0xff]
  %v2826 = vld [vmem:[%s4 + $0x58] sm:$0xff]
  %v2827 = vld [vmem:[%s4 + $0x60] sm:$0xff]
  %v2828 = vld [vmem:[%s4 + $0x68] sm:$0xff]
  %v2829 = vld [vmem:[%s4 + $0x70] sm:$0xff]
  %v2830 = vld [vmem:[%s4 + $0x78] sm:$0xff]
  %v2831 = vld [vmem:[%s4 + $0x80] sm:$0xff]
  %v2832 = vld [vmem:[%s4 + $0x88] sm:$0xff]
  %v2833 = vld [vmem:[%s4 + $0x90] sm:$0xff]
  %v2834 = vld [vmem:[%s4 + $0x98] sm:$0xff]
  %v2835 = vld [vmem:[%s4 + $0xa0] sm:$0xff]
  %v2836 = vld [vmem:[%s4 + $0xa8] sm:$0xff]
  %v2837 = vld [vmem:[%s4 + $0xb0] sm:$0xff]
  %v2838 = vld [vmem:[%s4 + $0xb8] sm:$0xff]
  %v2839 = vld [vmem:[%s4 + $0xc0] sm:$0xff]
  %v2840 = vld [vmem:[%s4 + $0xc8] sm:$0xff]
  %v2841 = vld [vmem:[%s4 + $0xd0] sm:$0xff]
  %v2842 = vld [vmem:[%s4 + $0xd8] sm:$0xff]
  %v2843 = vld [vmem:[%s4 + $0xe0] sm:$0xff]
  %v2844 = vld [vmem:[%s4 + $0xe8] sm:$0xff]
  %v2845 = vld [vmem:[%s4 + $0xf0] sm:$0xff]
  %v2846 = vld [vmem:[%s4 + $0xf8] sm:$0xff]
  %v2879 = vunpack.c.l.b16 %v2815
  %v2880 = vunpack.c.h.b16 %v2815
  %v2881 = vunpack.c.l.b16 %v2816
  %v2882 = vunpack.c.h.b16 %v2816
  %v2883 = vunpack.c.l.b16 %v2817
  %v2884 = vunpack.c.h.b16 %v2817
  %v2885 = vunpack.c.l.b16 %v2818
  %v2886 = vunpack.c.h.b16 %v2818
  %v2887 = vunpack.c.l.b16 %v2819
  %v2888 = vunpack.c.h.b16 %v2819
  %v2889 = vunpack.c.l.b16 %v2820
  %v2890 = vunpack.c.h.b16 %v2820
  %v2891 = vunpack.c.l.b16 %v2821
  %v2892 = vunpack.c.h.b16 %v2821
  %v2893 = vunpack.c.l.b16 %v2822
  %v2894 = vunpack.c.h.b16 %v2822
  %v2895 = vunpack.c.l.b16 %v2823
  %v2896 = vunpack.c.h.b16 %v2823
  %v2897 = vunpack.c.l.b16 %v2824
  %v2898 = vunpack.c.h.b16 %v2824
  %v2899 = vunpack.c.l.b16 %v2825
  %v2900 = vunpack.c.h.b16 %v2825
  %v2901 = vunpack.c.l.b16 %v2826
  %v2902 = vunpack.c.h.b16 %v2826
  %v2903 = vunpack.c.l.b16 %v2827
  %v2904 = vunpack.c.h.b16 %v2827
  %v2905 = vunpack.c.l.b16 %v2828
  %v2906 = vunpack.c.h.b16 %v2828
  %v2907 = vunpack.c.l.b16 %v2829
  %v2908 = vunpack.c.h.b16 %v2829
  %v2909 = vunpack.c.l.b16 %v2830
  %v2910 = vunpack.c.h.b16 %v2830
  %v2911 = vunpack.c.l.b16 %v2831
  %v2912 = vunpack.c.h.b16 %v2831
  %v2913 = vunpack.c.l.b16 %v2832
  %v2914 = vunpack.c.h.b16 %v2832
  %v2915 = vunpack.c.l.b16 %v2833
  %v2916 = vunpack.c.h.b16 %v2833
  %v2917 = vunpack.c.l.b16 %v2834
  %v2918 = vunpack.c.h.b16 %v2834
  %v2919 = vunpack.c.l.b16 %v2835
  %v2920 = vunpack.c.h.b16 %v2835
  %v2921 = vunpack.c.l.b16 %v2836
  %v2922 = vunpack.c.h.b16 %v2836
  %v2923 = vunpack.c.l.b16 %v2837
  %v2924 = vunpack.c.h.b16 %v2837
  %v2925 = vunpack.c.l.b16 %v2838
  %v2926 = vunpack.c.h.b16 %v2838
  %v2927 = vunpack.c.l.b16 %v2839
  %v2928 = vunpack.c.h.b16 %v2839
  %v2929 = vunpack.c.l.b16 %v2840
  %v2930 = vunpack.c.h.b16 %v2840
  %v2931 = vunpack.c.l.b16 %v2841
  %v2932 = vunpack.c.h.b16 %v2841
  %v2933 = vunpack.c.l.b16 %v2842
  %v2934 = vunpack.c.h.b16 %v2842
  %v2935 = vunpack.c.l.b16 %v2843
  %v2936 = vunpack.c.h.b16 %v2843
  %v2937 = vunpack.c.l.b16 %v2844
  %v2938 = vunpack.c.h.b16 %v2844
  %v2939 = vunpack.c.l.b16 %v2845
  %v2940 = vunpack.c.h.b16 %v2845
  %v2941 = vunpack.c.l.b16 %v2846
  %v2942 = vunpack.c.h.b16 %v2846
  %v2943 = vpack.c.b16 %v2883, %v2879
  %v2944 = vpack.c.b16 %v2884, %v2880
  %v2945 = vpack.c.b16 %v2885, %v2881
  %v2946 = vpack.c.b16 %v2886, %v2882
  %v2947 = vpack.c.b16 %v2891, %v2887
  %v2948 = vpack.c.b16 %v2892, %v2888
  %v2949 = vpack.c.b16 %v2893, %v2889
  %v2950 = vpack.c.b16 %v2894, %v2890
  %v2951 = vpack.c.b16 %v2899, %v2895
  %v2952 = vpack.c.b16 %v2900, %v2896
  %v2953 = vpack.c.b16 %v2901, %v2897
  %v2954 = vpack.c.b16 %v2902, %v2898
  %v2955 = vpack.c.b16 %v2907, %v2903
  %v2956 = vpack.c.b16 %v2908, %v2904
  %v2957 = vpack.c.b16 %v2909, %v2905
  %v2958 = vpack.c.b16 %v2910, %v2906
  %v2959 = vpack.c.b16 %v2915, %v2911
  %v2960 = vpack.c.b16 %v2916, %v2912
  %v2961 = vpack.c.b16 %v2917, %v2913
  %v2962 = vpack.c.b16 %v2918, %v2914
  %v2963 = vpack.c.b16 %v2923, %v2919
  %v2964 = vpack.c.b16 %v2924, %v2920
  %v2965 = vpack.c.b16 %v2925, %v2921
  %v2966 = vpack.c.b16 %v2926, %v2922
  %v2967 = vpack.c.b16 %v2931, %v2927
  %v2968 = vpack.c.b16 %v2932, %v2928
  %v2969 = vpack.c.b16 %v2933, %v2929
  %v2970 = vpack.c.b16 %v2934, %v2930
  %v2971 = vpack.c.b16 %v2939, %v2935
  %v2972 = vpack.c.b16 %v2940, %v2936
  %v2973 = vpack.c.b16 %v2941, %v2937
  %v2974 = vpack.c.b16 %v2942, %v2938
  %3007 = vmatprep.subr.bf16.mxu0 %v2944
  %3008 = vmatpush1.bf16.msra.mxu0 %v2943
  %3009 = vmatprep.subr.bf16.mxu0 %v2948
  %3010 = vmatpush1.bf16.msra.mxu0 %v2947
  %3011 = vmatprep.subr.bf16.mxu0 %v2952
  %3012 = vmatpush1.bf16.msra.mxu0 %v2951
  %3013 = vmatprep.subr.bf16.mxu0 %v2956
  %3014 = vmatpush1.bf16.msra.mxu0 %v2955
  %3015 = vmatprep.subr.bf16.mxu0 %v2960
  %3016 = vmatpush1.bf16.msra.mxu0 %v2959
  %3017 = vmatprep.subr.bf16.mxu0 %v2964
  %3018 = vmatpush1.bf16.msra.mxu0 %v2963
  %3019 = vmatprep.subr.bf16.mxu0 %v2968
  %3020 = vmatpush1.bf16.msra.mxu0 %v2967
  %3021 = vmatprep.subr.bf16.mxu0 %v2972
  %3022 = vmatpush1.bf16.msra.mxu0 %v2971
  %3023 = vmatprep.subr.bf16.mxu0 0
  %3024 = vmatpush1.bf16.msra.mxu0 0
  %3025 = vmatprep.subr.bf16.mxu0 0
  %3026 = vmatpush1.bf16.msra.mxu0 0
  %3027 = vmatprep.subr.bf16.mxu0 0
  %3028 = vmatpush1.bf16.msra.mxu0 0
  %3029 = vmatprep.subr.bf16.mxu0 0
  %3030 = vmatpush1.bf16.msra.mxu0 0
  %3031 = vmatprep.subr.bf16.mxu0 0
  %3032 = vmatpush1.bf16.msra.mxu0 0
  %3033 = vmatprep.subr.bf16.mxu0 0
  %3034 = vmatpush1.bf16.msra.mxu0 0
  %3035 = vmatprep.subr.bf16.mxu0 0
  %3036 = vmatpush1.bf16.msra.mxu0 0
  %3037 = vmatprep.subr.bf16.mxu0 0
  %3038 = vmatpush1.bf16.msra.mxu0 0
  %3039 = vmatprep.mubr.bf16.mxu0 0
  %3040 = vmatmul.mubr.bf16.gmra.mrb[0].mxu0 %v2814
  %v3041 = vpop.f32.mrb[0].mxu0
  %v3042 = vadd.f32 0.0, %v3041
  %v3043 = vpop.f32.mrb[0].mxu0
  %v3044 = vadd.f32 0.0, %v3043
  %v3045 = vpop.f32.mrb[0].mxu0
  %v3046 = vpop.f32.mrb[0].mxu0
  %3047 = vdwg.mxu0
  %3048 = vmatprep.subr.bf16.mxu0 %v2946
  %3049 = vmatpush1.bf16.msra.mxu0 %v2945
  %3050 = vmatprep.subr.bf16.mxu0 %v2950
  %3051 = vmatpush1.bf16.msra.mxu0 %v2949
  %3052 = vmatprep.subr.bf16.mxu0 %v2954
  %3053 = vmatpush1.bf16.msra.mxu0 %v2953
  %3054 = vmatprep.subr.bf16.mxu0 %v2958
  %3055 = vmatpush1.bf16.msra.mxu0 %v2957
  %3056 = vmatprep.subr.bf16.mxu0 %v2962
  %3057 = vmatpush1.bf16.msra.mxu0 %v2961
  %3058 = vmatprep.subr.bf16.mxu0 %v2966
  %3059 = vmatpush1.bf16.msra.mxu0 %v2965
  %3060 = vmatprep.subr.bf16.mxu0 %v2970
  %3061 = vmatpush1.bf16.msra.mxu0 %v2969
  %3062 = vmatprep.subr.bf16.mxu0 %v2974
  %3063 = vmatpush1.bf16.msra.mxu0 %v2973
  %3064 = vmatprep.subr.bf16.mxu0 0
  %3065 = vmatpush1.bf16.msra.mxu0 0
  %3066 = vmatprep.subr.bf16.mxu0 0
  %3067 = vmatpush1.bf16.msra.mxu0 0
  %3068 = vmatprep.subr.bf16.mxu0 0
  %3069 = vmatpush1.bf16.msra.mxu0 0
  %3070 = vmatprep.subr.bf16.mxu0 0
  %3071 = vmatpush1.bf16.msra.mxu0 0
  %3072 = vmatprep.subr.bf16.mxu0 0
  %3073 = vmatpush1.bf16.msra.mxu0 0
  %3074 = vmatprep.subr.bf16.mxu0 0
  %3075 = vmatpush1.bf16.msra.mxu0 0
  %3076 = vmatprep.subr.bf16.mxu0 0
  %3077 = vmatpush1.bf16.msra.mxu0 0
  %3078 = vmatprep.subr.bf16.mxu0 0
  %3079 = vmatpush1.bf16.msra.mxu0 0
  %3080 = vmatprep.mubr.bf16.mxu0 0
  %3081 = vmatmul.mubr.bf16.gmra.mrb[0].mxu0 %v2814
  %v3082 = vpop.f32.mrb[0].mxu0
  %v3083 = vadd.f32 0.0, %v3082
  %v3084 = vpop.f32.mrb[0].mxu0
  %v3085 = vadd.f32 0.0, %v3084
  %v3086 = vpop.f32.mrb[0].mxu0
  %v3087 = vpop.f32.mrb[0].mxu0
  %3088 = vdwg.mxu0
  %v3089 = vadd.f32 %v2810, %v3042
  %v3090 = vadd.f32 %v2811, %v3044
  %v3091 = vadd.f32 %v2812, %v3083
  %v3092 = vadd.f32 %v2813, %v3085
  %v3093 = vxor.u32 %v2806, 2147483648
  %v3094 = vmul.f32 %v3093, 1.442695
  %v3095 = vpow.pop %v3094
  %v3096 = vadd.f32 %v3095, 1.0
  %v3097 = vrcp.pop %v3096
  %v3098 = vmul.f32 1.0, %v3097
  %v3099 = vxor.u32 %v2807, 2147483648
  %v3100 = vmul.f32 %v3099, 1.442695
  %v3101 = vpow.pop %v3100
  %v3102 = vadd.f32 %v3101, 1.0
  %v3103 = vrcp.pop %v3102
  %v3104 = vmul.f32 1.0, %v3103
  %v3105 = vtanh.pop %v2808
  %v3106 = vxor.u32 %v2809, 2147483648
  %v3107 = vmul.f32 %v3106, 1.442695
  %v3108 = vpow.pop %v3107
  %v3109 = vadd.f32 %v3108, 1.0
  %v3110 = vrcp.pop %v3109
  %v3111 = vmul.f32 1.0, %v3110
  %v3112 = vmul.f32 %v3104, %v2498
  %v3113 = vmul.f32 %v3098, %v3105
  %v3114 = vadd.f32 %v3112, %v3113
  %v3115 = vtanh.pop %v3114
  %v3116 = vmul.f32 %v3111, %v3115
  %v3117 = vxor.u32 %v3089, 2147483648
  %v3118 = vmul.f32 %v3117, 1.442695
  %v3119 = vpow.pop %v3118
  %v3120 = vadd.f32 %v3119, 1.0
  %v3121 = vrcp.pop %v3120
  %v3122 = vmul.f32 1.0, %v3121
  %v3123 = vxor.u32 %v3090, 2147483648
  %v3124 = vmul.f32 %v3123, 1.442695
  %v3125 = vpow.pop %v3124
  %v3126 = vadd.f32 %v3125, 1.0
  %v3127 = vrcp.pop %v3126
  %v3128 = vmul.f32 1.0, %v3127
  %v3129 = vtanh.pop %v3091
  %v3130 = vxor.u32 %v3092, 2147483648
  %v3131 = vmul.f32 %v3130, 1.442695
  %v3132 = vpow.pop %v3131
  %v3133 = vadd.f32 %v3132, 1.0
  %v3134 = vrcp.pop %v3133
  %v3135 = vmul.f32 1.0, %v3134
  %v3136 = vmul.f32 %v3128, %v2522
  %v3137 = vmul.f32 %v3122, %v3129
  %v3138 = vadd.f32 %v3136, %v3137
  %v3139 = vtanh.pop %v3138
  %v3140 = vmul.f32 %v3135, %v3139
  %3141 = vst [vmem:[#allocation3 + $0x10] sm:$0xff] %v3116
  %3142 = vst [vmem:[#allocation3 + $0x68] sm:$0xff] %v3140
  %v3143 = vld [vmem:[#allocation2 + $0x80] sm:$0xff]
  %v3144 = vld [vmem:[#allocation2 + $0x88] sm:$0xff]
  %v3145 = vld [vmem:[#allocation2 + $0x90] sm:$0xff]
  %v3146 = vld [vmem:[#allocation2 + $0x98] sm:$0xff]
  %v3147 = vpack.c.bf16 %v3116, %v3116
  %v3148 = vld [vmem:[%s3] sm:$0xff]
  %v3149 = vld [vmem:[%s3 + $0x8] sm:$0xff]
  %v3150 = vld [vmem:[%s3 + $0x10] sm:$0xff]
  %v3151 = vld [vmem:[%s3 + $0x18] sm:$0xff]
  %v3152 = vld [vmem:[%s3 + $0x20] sm:$0xff]
  %v3153 = vld [vmem:[%s3 + $0x28] sm:$0xff]
  %v3154 = vld [vmem:[%s3 + $0x30] sm:$0xff]
  %v3155 = vld [vmem:[%s3 + $0x38] sm:$0xff]
  %v3156 = vld [vmem:[%s3 + $0x40] sm:$0xff]
  %v3157 = vld [vmem:[%s3 + $0x48] sm:$0xff]
  %v3158 = vld [vmem:[%s3 + $0x50] sm:$0xff]
  %v3159 = vld [vmem:[%s3 + $0x58] sm:$0xff]
  %v3160 = vld [vmem:[%s3 + $0x60] sm:$0xff]
  %v3161 = vld [vmem:[%s3 + $0x68] sm:$0xff]
  %v3162 = vld [vmem:[%s3 + $0x70] sm:$0xff]
  %v3163 = vld [vmem:[%s3 + $0x78] sm:$0xff]
  %v3164 = vld [vmem:[%s3 + $0x80] sm:$0xff]
  %v3165 = vld [vmem:[%s3 + $0x88] sm:$0xff]
  %v3166 = vld [vmem:[%s3 + $0x90] sm:$0xff]
  %v3167 = vld [vmem:[%s3 + $0x98] sm:$0xff]
  %v3168 = vld [vmem:[%s3 + $0xa0] sm:$0xff]
  %v3169 = vld [vmem:[%s3 + $0xa8] sm:$0xff]
  %v3170 = vld [vmem:[%s3 + $0xb0] sm:$0xff]
  %v3171 = vld [vmem:[%s3 + $0xb8] sm:$0xff]
  %v3172 = vld [vmem:[%s3 + $0xc0] sm:$0xff]
  %v3173 = vld [vmem:[%s3 + $0xc8] sm:$0xff]
  %v3174 = vld [vmem:[%s3 + $0xd0] sm:$0xff]
  %v3175 = vld [vmem:[%s3 + $0xd8] sm:$0xff]
  %v3176 = vld [vmem:[%s3 + $0xe0] sm:$0xff]
  %v3177 = vld [vmem:[%s3 + $0xe8] sm:$0xff]
  %v3178 = vld [vmem:[%s3 + $0xf0] sm:$0xff]
  %v3179 = vld [vmem:[%s3 + $0xf8] sm:$0xff]
  %v3212 = vunpack.c.l.b16 %v3148
  %v3213 = vunpack.c.h.b16 %v3148
  %v3214 = vunpack.c.l.b16 %v3149
  %v3215 = vunpack.c.h.b16 %v3149
  %v3216 = vunpack.c.l.b16 %v3150
  %v3217 = vunpack.c.h.b16 %v3150
  %v3218 = vunpack.c.l.b16 %v3151
  %v3219 = vunpack.c.h.b16 %v3151
  %v3220 = vunpack.c.l.b16 %v3152
  %v3221 = vunpack.c.h.b16 %v3152
  %v3222 = vunpack.c.l.b16 %v3153
  %v3223 = vunpack.c.h.b16 %v3153
  %v3224 = vunpack.c.l.b16 %v3154
  %v3225 = vunpack.c.h.b16 %v3154
  %v3226 = vunpack.c.l.b16 %v3155
  %v3227 = vunpack.c.h.b16 %v3155
  %v3228 = vunpack.c.l.b16 %v3156
  %v3229 = vunpack.c.h.b16 %v3156
  %v3230 = vunpack.c.l.b16 %v3157
  %v3231 = vunpack.c.h.b16 %v3157
  %v3232 = vunpack.c.l.b16 %v3158
  %v3233 = vunpack.c.h.b16 %v3158
  %v3234 = vunpack.c.l.b16 %v3159
  %v3235 = vunpack.c.h.b16 %v3159
  %v3236 = vunpack.c.l.b16 %v3160
  %v3237 = vunpack.c.h.b16 %v3160
  %v3238 = vunpack.c.l.b16 %v3161
  %v3239 = vunpack.c.h.b16 %v3161
  %v3240 = vunpack.c.l.b16 %v3162
  %v3241 = vunpack.c.h.b16 %v3162
  %v3242 = vunpack.c.l.b16 %v3163
  %v3243 = vunpack.c.h.b16 %v3163
  %v3244 = vunpack.c.l.b16 %v3164
  %v3245 = vunpack.c.h.b16 %v3164
  %v3246 = vunpack.c.l.b16 %v3165
  %v3247 = vunpack.c.h.b16 %v3165
  %v3248 = vunpack.c.l.b16 %v3166
  %v3249 = vunpack.c.h.b16 %v3166
  %v3250 = vunpack.c.l.b16 %v3167
  %v3251 = vunpack.c.h.b16 %v3167
  %v3252 = vunpack.c.l.b16 %v3168
  %v3253 = vunpack.c.h.b16 %v3168
  %v3254 = vunpack.c.l.b16 %v3169
  %v3255 = vunpack.c.h.b16 %v3169
  %v3256 = vunpack.c.l.b16 %v3170
  %v3257 = vunpack.c.h.b16 %v3170
  %v3258 = vunpack.c.l.b16 %v3171
  %v3259 = vunpack.c.h.b16 %v3171
  %v3260 = vunpack.c.l.b16 %v3172
  %v3261 = vunpack.c.h.b16 %v3172
  %v3262 = vunpack.c.l.b16 %v3173
  %v3263 = vunpack.c.h.b16 %v3173
  %v3264 = vunpack.c.l.b16 %v3174
  %v3265 = vunpack.c.h.b16 %v3174
  %v3266 = vunpack.c.l.b16 %v3175
  %v3267 = vunpack.c.h.b16 %v3175
  %v3268 = vunpack.c.l.b16 %v3176
  %v3269 = vunpack.c.h.b16 %v3176
  %v3270 = vunpack.c.l.b16 %v3177
  %v3271 = vunpack.c.h.b16 %v3177
  %v3272 = vunpack.c.l.b16 %v3178
  %v3273 = vunpack.c.h.b16 %v3178
  %v3274 = vunpack.c.l.b16 %v3179
  %v3275 = vunpack.c.h.b16 %v3179
  %v3276 = vpack.c.b16 %v3216, %v3212
  %v3277 = vpack.c.b16 %v3217, %v3213
  %v3278 = vpack.c.b16 %v3218, %v3214
  %v3279 = vpack.c.b16 %v3219, %v3215
  %v3280 = vpack.c.b16 %v3224, %v3220
  %v3281 = vpack.c.b16 %v3225, %v3221
  %v3282 = vpack.c.b16 %v3226, %v3222
  %v3283 = vpack.c.b16 %v3227, %v3223
  %v3284 = vpack.c.b16 %v3232, %v3228
  %v3285 = vpack.c.b16 %v3233, %v3229
  %v3286 = vpack.c.b16 %v3234, %v3230
  %v3287 = vpack.c.b16 %v3235, %v3231
  %v3288 = vpack.c.b16 %v3240, %v3236
  %v3289 = vpack.c.b16 %v3241, %v3237
  %v3290 = vpack.c.b16 %v3242, %v3238
  %v3291 = vpack.c.b16 %v3243, %v3239
  %v3292 = vpack.c.b16 %v3248, %v3244
  %v3293 = vpack.c.b16 %v3249, %v3245
  %v3294 = vpack.c.b16 %v3250, %v3246
  %v3295 = vpack.c.b16 %v3251, %v3247
  %v3296 = vpack.c.b16 %v3256, %v3252
  %v3297 = vpack.c.b16 %v3257, %v3253
  %v3298 = vpack.c.b16 %v3258, %v3254
  %v3299 = vpack.c.b16 %v3259, %v3255
  %v3300 = vpack.c.b16 %v3264, %v3260
  %v3301 = vpack.c.b16 %v3265, %v3261
  %v3302 = vpack.c.b16 %v3266, %v3262
  %v3303 = vpack.c.b16 %v3267, %v3263
  %v3304 = vpack.c.b16 %v3272, %v3268
  %v3305 = vpack.c.b16 %v3273, %v3269
  %v3306 = vpack.c.b16 %v3274, %v3270
  %v3307 = vpack.c.b16 %v3275, %v3271
  %3340 = vmatprep.subr.bf16.mxu0 %v3277
  %3341 = vmatpush1.bf16.msra.mxu0 %v3276
  %3342 = vmatprep.subr.bf16.mxu0 %v3281
  %3343 = vmatpush1.bf16.msra.mxu0 %v3280
  %3344 = vmatprep.subr.bf16.mxu0 %v3285
  %3345 = vmatpush1.bf16.msra.mxu0 %v3284
  %3346 = vmatprep.subr.bf16.mxu0 %v3289
  %3347 = vmatpush1.bf16.msra.mxu0 %v3288
  %3348 = vmatprep.subr.bf16.mxu0 %v3293
  %3349 = vmatpush1.bf16.msra.mxu0 %v3292
  %3350 = vmatprep.subr.bf16.mxu0 %v3297
  %3351 = vmatpush1.bf16.msra.mxu0 %v3296
  %3352 = vmatprep.subr.bf16.mxu0 %v3301
  %3353 = vmatpush1.bf16.msra.mxu0 %v3300
  %3354 = vmatprep.subr.bf16.mxu0 %v3305
  %3355 = vmatpush1.bf16.msra.mxu0 %v3304
  %3356 = vmatprep.subr.bf16.mxu0 0
  %3357 = vmatpush1.bf16.msra.mxu0 0
  %3358 = vmatprep.subr.bf16.mxu0 0
  %3359 = vmatpush1.bf16.msra.mxu0 0
  %3360 = vmatprep.subr.bf16.mxu0 0
  %3361 = vmatpush1.bf16.msra.mxu0 0
  %3362 = vmatprep.subr.bf16.mxu0 0
  %3363 = vmatpush1.bf16.msra.mxu0 0
  %3364 = vmatprep.subr.bf16.mxu0 0
  %3365 = vmatpush1.bf16.msra.mxu0 0
  %3366 = vmatprep.subr.bf16.mxu0 0
  %3367 = vmatpush1.bf16.msra.mxu0 0
  %3368 = vmatprep.subr.bf16.mxu0 0
  %3369 = vmatpush1.bf16.msra.mxu0 0
  %3370 = vmatprep.subr.bf16.mxu0 0
  %3371 = vmatpush1.bf16.msra.mxu0 0
  %3372 = vmatprep.mubr.bf16.mxu0 0
  %3373 = vmatmul.mubr.bf16.gmra.mrb[0].mxu0 %v3147
  %v3374 = vpop.f32.mrb[0].mxu0
  %v3375 = vadd.f32 0.0, %v3374
  %v3376 = vpop.f32.mrb[0].mxu0
  %v3377 = vadd.f32 0.0, %v3376
  %v3378 = vpop.f32.mrb[0].mxu0
  %v3379 = vpop.f32.mrb[0].mxu0
  %3380 = vdwg.mxu0
  %3381 = vmatprep.subr.bf16.mxu0 %v3279
  %3382 = vmatpush1.bf16.msra.mxu0 %v3278
  %3383 = vmatprep.subr.bf16.mxu0 %v3283
  %3384 = vmatpush1.bf16.msra.mxu0 %v3282
  %3385 = vmatprep.subr.bf16.mxu0 %v3287
  %3386 = vmatpush1.bf16.msra.mxu0 %v3286
  %3387 = vmatprep.subr.bf16.mxu0 %v3291
  %3388 = vmatpush1.bf16.msra.mxu0 %v3290
  %3389 = vmatprep.subr.bf16.mxu0 %v3295
  %3390 = vmatpush1.bf16.msra.mxu0 %v3294
  %3391 = vmatprep.subr.bf16.mxu0 %v3299
  %3392 = vmatpush1.bf16.msra.mxu0 %v3298
  %3393 = vmatprep.subr.bf16.mxu0 %v3303
  %3394 = vmatpush1.bf16.msra.mxu0 %v3302
  %3395 = vmatprep.subr.bf16.mxu0 %v3307
  %3396 = vmatpush1.bf16.msra.mxu0 %v3306
  %3397 = vmatprep.subr.bf16.mxu0 0
  %3398 = vmatpush1.bf16.msra.mxu0 0
  %3399 = vmatprep.subr.bf16.mxu0 0
  %3400 = vmatpush1.bf16.msra.mxu0 0
  %3401 = vmatprep.subr.bf16.mxu0 0
  %3402 = vmatpush1.bf16.msra.mxu0 0
  %3403 = vmatprep.subr.bf16.mxu0 0
  %3404 = vmatpush1.bf16.msra.mxu0 0
  %3405 = vmatprep.subr.bf16.mxu0 0
  %3406 = vmatpush1.bf16.msra.mxu0 0
  %3407 = vmatprep.subr.bf16.mxu0 0
  %3408 = vmatpush1.bf16.msra.mxu0 0
  %3409 = vmatprep.subr.bf16.mxu0 0
  %3410 = vmatpush1.bf16.msra.mxu0 0
  %3411 = vmatprep.subr.bf16.mxu0 0
  %3412 = vmatpush1.bf16.msra.mxu0 0
  %3413 = vmatprep.mubr.bf16.mxu0 0
  %3414 = vmatmul.mubr.bf16.gmra.mrb[0].mxu0 %v3147
  %v3415 = vpop.f32.mrb[0].mxu0
  %v3416 = vadd.f32 0.0, %v3415
  %v3417 = vpop.f32.mrb[0].mxu0
  %v3418 = vadd.f32 0.0, %v3417
  %v3419 = vpop.f32.mrb[0].mxu0
  %v3420 = vpop.f32.mrb[0].mxu0
  %3421 = vdwg.mxu0
  %v3422 = vadd.f32 %v3143, %v3375
  %v3423 = vadd.f32 %v3144, %v3377
  %v3424 = vadd.f32 %v3145, %v3416
  %v3425 = vadd.f32 %v3146, %v3418
  %v3426 = vld [vmem:[#allocation2 + $0x160] sm:$0xff]
  %v3427 = vld [vmem:[#allocation2 + $0x168] sm:$0xff]
  %v3428 = vld [vmem:[#allocation2 + $0x170] sm:$0xff]
  %v3429 = vld [vmem:[#allocation2 + $0x178] sm:$0xff]
  %v3430 = vpack.c.bf16 %v3140, %v3140
  %v3431 = vld [vmem:[%s4] sm:$0xff]
  %v3432 = vld [vmem:[%s4 + $0x8] sm:$0xff]
  %v3433 = vld [vmem:[%s4 + $0x10] sm:$0xff]
  %v3434 = vld [vmem:[%s4 + $0x18] sm:$0xff]
  %v3435 = vld [vmem:[%s4 + $0x20] sm:$0xff]
  %v3436 = vld [vmem:[%s4 + $0x28] sm:$0xff]
  %v3437 = vld [vmem:[%s4 + $0x30] sm:$0xff]
  %v3438 = vld [vmem:[%s4 + $0x38] sm:$0xff]
  %v3439 = vld [vmem:[%s4 + $0x40] sm:$0xff]
  %v3440 = vld [vmem:[%s4 + $0x48] sm:$0xff]
  %v3441 = vld [vmem:[%s4 + $0x50] sm:$0xff]
  %v3442 = vld [vmem:[%s4 + $0x58] sm:$0xff]
  %v3443 = vld [vmem:[%s4 + $0x60] sm:$0xff]
  %v3444 = vld [vmem:[%s4 + $0x68] sm:$0xff]
  %v3445 = vld [vmem:[%s4 + $0x70] sm:$0xff]
  %v3446 = vld [vmem:[%s4 + $0x78] sm:$0xff]
  %v3447 = vld [vmem:[%s4 + $0x80] sm:$0xff]
  %v3448 = vld [vmem:[%s4 + $0x88] sm:$0xff]
  %v3449 = vld [vmem:[%s4 + $0x90] sm:$0xff]
  %v3450 = vld [vmem:[%s4 + $0x98] sm:$0xff]
  %v3451 = vld [vmem:[%s4 + $0xa0] sm:$0xff]
  %v3452 = vld [vmem:[%s4 + $0xa8] sm:$0xff]
  %v3453 = vld [vmem:[%s4 + $0xb0] sm:$0xff]
  %v3454 = vld [vmem:[%s4 + $0xb8] sm:$0xff]
  %v3455 = vld [vmem:[%s4 + $0xc0] sm:$0xff]
  %v3456 = vld [vmem:[%s4 + $0xc8] sm:$0xff]
  %v3457 = vld [vmem:[%s4 + $0xd0] sm:$0xff]
  %v3458 = vld [vmem:[%s4 + $0xd8] sm:$0xff]
  %v3459 = vld [vmem:[%s4 + $0xe0] sm:$0xff]
  %v3460 = vld [vmem:[%s4 + $0xe8] sm:$0xff]
  %v3461 = vld [vmem:[%s4 + $0xf0] sm:$0xff]
  %v3462 = vld [vmem:[%s4 + $0xf8] sm:$0xff]
  %v3495 = vunpack.c.l.b16 %v3431
  %v3496 = vunpack.c.h.b16 %v3431
  %v3497 = vunpack.c.l.b16 %v3432
  %v3498 = vunpack.c.h.b16 %v3432
  %v3499 = vunpack.c.l.b16 %v3433
  %v3500 = vunpack.c.h.b16 %v3433
  %v3501 = vunpack.c.l.b16 %v3434
  %v3502 = vunpack.c.h.b16 %v3434
  %v3503 = vunpack.c.l.b16 %v3435
  %v3504 = vunpack.c.h.b16 %v3435
  %v3505 = vunpack.c.l.b16 %v3436
  %v3506 = vunpack.c.h.b16 %v3436
  %v3507 = vunpack.c.l.b16 %v3437
  %v3508 = vunpack.c.h.b16 %v3437
  %v3509 = vunpack.c.l.b16 %v3438
  %v3510 = vunpack.c.h.b16 %v3438
  %v3511 = vunpack.c.l.b16 %v3439
  %v3512 = vunpack.c.h.b16 %v3439
  %v3513 = vunpack.c.l.b16 %v3440
  %v3514 = vunpack.c.h.b16 %v3440
  %v3515 = vunpack.c.l.b16 %v3441
  %v3516 = vunpack.c.h.b16 %v3441
  %v3517 = vunpack.c.l.b16 %v3442
  %v3518 = vunpack.c.h.b16 %v3442
  %v3519 = vunpack.c.l.b16 %v3443
  %v3520 = vunpack.c.h.b16 %v3443
  %v3521 = vunpack.c.l.b16 %v3444
  %v3522 = vunpack.c.h.b16 %v3444
  %v3523 = vunpack.c.l.b16 %v3445
  %v3524 = vunpack.c.h.b16 %v3445
  %v3525 = vunpack.c.l.b16 %v3446
  %v3526 = vunpack.c.h.b16 %v3446
  %v3527 = vunpack.c.l.b16 %v3447
  %v3528 = vunpack.c.h.b16 %v3447
  %v3529 = vunpack.c.l.b16 %v3448
  %v3530 = vunpack.c.h.b16 %v3448
  %v3531 = vunpack.c.l.b16 %v3449
  %v3532 = vunpack.c.h.b16 %v3449
  %v3533 = vunpack.c.l.b16 %v3450
  %v3534 = vunpack.c.h.b16 %v3450
  %v3535 = vunpack.c.l.b16 %v3451
  %v3536 = vunpack.c.h.b16 %v3451
  %v3537 = vunpack.c.l.b16 %v3452
  %v3538 = vunpack.c.h.b16 %v3452
  %v3539 = vunpack.c.l.b16 %v3453
  %v3540 = vunpack.c.h.b16 %v3453
  %v3541 = vunpack.c.l.b16 %v3454
  %v3542 = vunpack.c.h.b16 %v3454
  %v3543 = vunpack.c.l.b16 %v3455
  %v3544 = vunpack.c.h.b16 %v3455
  %v3545 = vunpack.c.l.b16 %v3456
  %v3546 = vunpack.c.h.b16 %v3456
  %v3547 = vunpack.c.l.b16 %v3457
  %v3548 = vunpack.c.h.b16 %v3457
  %v3549 = vunpack.c.l.b16 %v3458
  %v3550 = vunpack.c.h.b16 %v3458
  %v3551 = vunpack.c.l.b16 %v3459
  %v3552 = vunpack.c.h.b16 %v3459
  %v3553 = vunpack.c.l.b16 %v3460
  %v3554 = vunpack.c.h.b16 %v3460
  %v3555 = vunpack.c.l.b16 %v3461
  %v3556 = vunpack.c.h.b16 %v3461
  %v3557 = vunpack.c.l.b16 %v3462
  %v3558 = vunpack.c.h.b16 %v3462
  %v3559 = vpack.c.b16 %v3499, %v3495
  %v3560 = vpack.c.b16 %v3500, %v3496
  %v3561 = vpack.c.b16 %v3501, %v3497
  %v3562 = vpack.c.b16 %v3502, %v3498
  %v3563 = vpack.c.b16 %v3507, %v3503
  %v3564 = vpack.c.b16 %v3508, %v3504
  %v3565 = vpack.c.b16 %v3509, %v3505
  %v3566 = vpack.c.b16 %v3510, %v3506
  %v3567 = vpack.c.b16 %v3515, %v3511
  %v3568 = vpack.c.b16 %v3516, %v3512
  %v3569 = vpack.c.b16 %v3517, %v3513
  %v3570 = vpack.c.b16 %v3518, %v3514
  %v3571 = vpack.c.b16 %v3523, %v3519
  %v3572 = vpack.c.b16 %v3524, %v3520
  %v3573 = vpack.c.b16 %v3525, %v3521
  %v3574 = vpack.c.b16 %v3526, %v3522
  %v3575 = vpack.c.b16 %v3531, %v3527
  %v3576 = vpack.c.b16 %v3532, %v3528
  %v3577 = vpack.c.b16 %v3533, %v3529
  %v3578 = vpack.c.b16 %v3534, %v3530
  %v3579 = vpack.c.b16 %v3539, %v3535
  %v3580 = vpack.c.b16 %v3540, %v3536
  %v3581 = vpack.c.b16 %v3541, %v3537
  %v3582 = vpack.c.b16 %v3542, %v3538
  %v3583 = vpack.c.b16 %v3547, %v3543
  %v3584 = vpack.c.b16 %v3548, %v3544
  %v3585 = vpack.c.b16 %v3549, %v3545
  %v3586 = vpack.c.b16 %v3550, %v3546
  %v3587 = vpack.c.b16 %v3555, %v3551
  %v3588 = vpack.c.b16 %v3556, %v3552
  %v3589 = vpack.c.b16 %v3557, %v3553
  %v3590 = vpack.c.b16 %v3558, %v3554
  %3623 = vmatprep.subr.bf16.mxu0 %v3560
  %3624 = vmatpush1.bf16.msra.mxu0 %v3559
  %3625 = vmatprep.subr.bf16.mxu0 %v3564
  %3626 = vmatpush1.bf16.msra.mxu0 %v3563
  %3627 = vmatprep.subr.bf16.mxu0 %v3568
  %3628 = vmatpush1.bf16.msra.mxu0 %v3567
  %3629 = vmatprep.subr.bf16.mxu0 %v3572
  %3630 = vmatpush1.bf16.msra.mxu0 %v3571
  %3631 = vmatprep.subr.bf16.mxu0 %v3576
  %3632 = vmatpush1.bf16.msra.mxu0 %v3575
  %3633 = vmatprep.subr.bf16.mxu0 %v3580
  %3634 = vmatpush1.bf16.msra.mxu0 %v3579
  %3635 = vmatprep.subr.bf16.mxu0 %v3584
  %3636 = vmatpush1.bf16.msra.mxu0 %v3583
  %3637 = vmatprep.subr.bf16.mxu0 %v3588
  %3638 = vmatpush1.bf16.msra.mxu0 %v3587
  %3639 = vmatprep.subr.bf16.mxu0 0
  %3640 = vmatpush1.bf16.msra.mxu0 0
  %3641 = vmatprep.subr.bf16.mxu0 0
  %3642 = vmatpush1.bf16.msra.mxu0 0
  %3643 = vmatprep.subr.bf16.mxu0 0
  %3644 = vmatpush1.bf16.msra.mxu0 0
  %3645 = vmatprep.subr.bf16.mxu0 0
  %3646 = vmatpush1.bf16.msra.mxu0 0
  %3647 = vmatprep.subr.bf16.mxu0 0
  %3648 = vmatpush1.bf16.msra.mxu0 0
  %3649 = vmatprep.subr.bf16.mxu0 0
  %3650 = vmatpush1.bf16.msra.mxu0 0
  %3651 = vmatprep.subr.bf16.mxu0 0
  %3652 = vmatpush1.bf16.msra.mxu0 0
  %3653 = vmatprep.subr.bf16.mxu0 0
  %3654 = vmatpush1.bf16.msra.mxu0 0
  %3655 = vmatprep.mubr.bf16.mxu0 0
  %3656 = vmatmul.mubr.bf16.gmra.mrb[0].mxu0 %v3430
  %v3657 = vpop.f32.mrb[0].mxu0
  %v3658 = vadd.f32 0.0, %v3657
  %v3659 = vpop.f32.mrb[0].mxu0
  %v3660 = vadd.f32 0.0, %v3659
  %v3661 = vpop.f32.mrb[0].mxu0
  %v3662 = vpop.f32.mrb[0].mxu0
  %3663 = vdwg.mxu0
  %3664 = vmatprep.subr.bf16.mxu0 %v3562
  %3665 = vmatpush1.bf16.msra.mxu0 %v3561
  %3666 = vmatprep.subr.bf16.mxu0 %v3566
  %3667 = vmatpush1.bf16.msra.mxu0 %v3565
  %3668 = vmatprep.subr.bf16.mxu0 %v3570
  %3669 = vmatpush1.bf16.msra.mxu0 %v3569
  %3670 = vmatprep.subr.bf16.mxu0 %v3574
  %3671 = vmatpush1.bf16.msra.mxu0 %v3573
  %3672 = vmatprep.subr.bf16.mxu0 %v3578
  %3673 = vmatpush1.bf16.msra.mxu0 %v3577
  %3674 = vmatprep.subr.bf16.mxu0 %v3582
  %3675 = vmatpush1.bf16.msra.mxu0 %v3581
  %3676 = vmatprep.subr.bf16.mxu0 %v3586
  %3677 = vmatpush1.bf16.msra.mxu0 %v3585
  %3678 = vmatprep.subr.bf16.mxu0 %v3590
  %3679 = vmatpush1.bf16.msra.mxu0 %v3589
  %3680 = vmatprep.subr.bf16.mxu0 0
  %3681 = vmatpush1.bf16.msra.mxu0 0
  %3682 = vmatprep.subr.bf16.mxu0 0
  %3683 = vmatpush1.bf16.msra.mxu0 0
  %3684 = vmatprep.subr.bf16.mxu0 0
  %3685 = vmatpush1.bf16.msra.mxu0 0
  %3686 = vmatprep.subr.bf16.mxu0 0
  %3687 = vmatpush1.bf16.msra.mxu0 0
  %3688 = vmatprep.subr.bf16.mxu0 0
  %3689 = vmatpush1.bf16.msra.mxu0 0
  %3690 = vmatprep.subr.bf16.mxu0 0
  %3691 = vmatpush1.bf16.msra.mxu0 0
  %3692 = vmatprep.subr.bf16.mxu0 0
  %3693 = vmatpush1.bf16.msra.mxu0 0
  %3694 = vmatprep.subr.bf16.mxu0 0
  %3695 = vmatpush1.bf16.msra.mxu0 0
  %3696 = vmatprep.mubr.bf16.mxu0 0
  %3697 = vmatmul.mubr.bf16.gmra.mrb[0].mxu0 %v3430
  %v3698 = vpop.f32.mrb[0].mxu0
  %v3699 = vadd.f32 0.0, %v3698
  %v3700 = vpop.f32.mrb[0].mxu0
  %v3701 = vadd.f32 0.0, %v3700
  %v3702 = vpop.f32.mrb[0].mxu0
  %v3703 = vpop.f32.mrb[0].mxu0
  %3704 = vdwg.mxu0
  %v3705 = vadd.f32 %v3426, %v3658
  %v3706 = vadd.f32 %v3427, %v3660
  %v3707 = vadd.f32 %v3428, %v3699
  %v3708 = vadd.f32 %v3429, %v3701
  %v3709 = vxor.u32 %v3422, 2147483648
  %v3710 = vmul.f32 %v3709, 1.442695
  %v3711 = vpow.pop %v3710
  %v3712 = vadd.f32 %v3711, 1.0
  %v3713 = vrcp.pop %v3712
  %v3714 = vmul.f32 1.0, %v3713
  %v3715 = vxor.u32 %v3423, 2147483648
  %v3716 = vmul.f32 %v3715, 1.442695
  %v3717 = vpow.pop %v3716
  %v3718 = vadd.f32 %v3717, 1.0
  %v3719 = vrcp.pop %v3718
  %v3720 = vmul.f32 1.0, %v3719
  %v3721 = vtanh.pop %v3424
  %v3722 = vxor.u32 %v3425, 2147483648
  %v3723 = vmul.f32 %v3722, 1.442695
  %v3724 = vpow.pop %v3723
  %v3725 = vadd.f32 %v3724, 1.0
  %v3726 = vrcp.pop %v3725
  %v3727 = vmul.f32 1.0, %v3726
  %v3728 = vmul.f32 %v3720, %v3114
  %v3729 = vmul.f32 %v3714, %v3721
  %v3730 = vadd.f32 %v3728, %v3729
  %v3731 = vtanh.pop %v3730
  %v3732 = vmul.f32 %v3727, %v3731
  %v3733 = vxor.u32 %v3705, 2147483648
  %v3734 = vmul.f32 %v3733, 1.442695
  %v3735 = vpow.pop %v3734
  %v3736 = vadd.f32 %v3735, 1.0
  %v3737 = vrcp.pop %v3736
  %v3738 = vmul.f32 1.0, %v3737
  %v3739 = vxor.u32 %v3706, 2147483648
  %v3740 = vmul.f32 %v3739, 1.442695
  %v3741 = vpow.pop %v3740
  %v3742 = vadd.f32 %v3741, 1.0
  %v3743 = vrcp.pop %v3742
  %v3744 = vmul.f32 1.0, %v3743
  %v3745 = vtanh.pop %v3707
  %v3746 = vxor.u32 %v3708, 2147483648
  %v3747 = vmul.f32 %v3746, 1.442695
  %v3748 = vpow.pop %v3747
  %v3749 = vadd.f32 %v3748, 1.0
  %v3750 = vrcp.pop %v3749
  %v3751 = vmul.f32 1.0, %v3750
  %v3752 = vmul.f32 %v3744, %v3138
  %v3753 = vmul.f32 %v3738, %v3745
  %v3754 = vadd.f32 %v3752, %v3753
  %v3755 = vtanh.pop %v3754
  %v3756 = vmul.f32 %v3751, %v3755
  %3757 = vst [vmem:[#allocation3 + $0x20] sm:$0xff] %v3732
  %3758 = vst [vmem:[#allocation3 + $0x58] sm:$0xff] %v3756
  %v3759 = vld [vmem:[#allocation2 + $0xc0] sm:$0xff]
  %v3760 = vld [vmem:[#allocation2 + $0xc8] sm:$0xff]
  %v3761 = vld [vmem:[#allocation2 + $0xd0] sm:$0xff]
  %v3762 = vld [vmem:[#allocation2 + $0xd8] sm:$0xff]
  %v3763 = vpack.c.bf16 %v3732, %v3732
  %v3764 = vld [vmem:[%s3] sm:$0xff]
  %v3765 = vld [vmem:[%s3 + $0x8] sm:$0xff]
  %v3766 = vld [vmem:[%s3 + $0x10] sm:$0xff]
  %v3767 = vld [vmem:[%s3 + $0x18] sm:$0xff]
  %v3768 = vld [vmem:[%s3 + $0x20] sm:$0xff]
  %v3769 = vld [vmem:[%s3 + $0x28] sm:$0xff]
  %v3770 = vld [vmem:[%s3 + $0x30] sm:$0xff]
  %v3771 = vld [vmem:[%s3 + $0x38] sm:$0xff]
  %v3772 = vld [vmem:[%s3 + $0x40] sm:$0xff]
  %v3773 = vld [vmem:[%s3 + $0x48] sm:$0xff]
  %v3774 = vld [vmem:[%s3 + $0x50] sm:$0xff]
  %v3775 = vld [vmem:[%s3 + $0x58] sm:$0xff]
  %v3776 = vld [vmem:[%s3 + $0x60] sm:$0xff]
  %v3777 = vld [vmem:[%s3 + $0x68] sm:$0xff]
  %v3778 = vld [vmem:[%s3 + $0x70] sm:$0xff]
  %v3779 = vld [vmem:[%s3 + $0x78] sm:$0xff]
  %v3780 = vld [vmem:[%s3 + $0x80] sm:$0xff]
  %v3781 = vld [vmem:[%s3 + $0x88] sm:$0xff]
  %v3782 = vld [vmem:[%s3 + $0x90] sm:$0xff]
  %v3783 = vld [vmem:[%s3 + $0x98] sm:$0xff]
  %v3784 = vld [vmem:[%s3 + $0xa0] sm:$0xff]
  %v3785 = vld [vmem:[%s3 + $0xa8] sm:$0xff]
  %v3786 = vld [vmem:[%s3 + $0xb0] sm:$0xff]
  %v3787 = vld [vmem:[%s3 + $0xb8] sm:$0xff]
  %v3788 = vld [vmem:[%s3 + $0xc0] sm:$0xff]
  %v3789 = vld [vmem:[%s3 + $0xc8] sm:$0xff]
  %v3790 = vld [vmem:[%s3 + $0xd0] sm:$0xff]
  %v3791 = vld [vmem:[%s3 + $0xd8] sm:$0xff]
  %v3792 = vld [vmem:[%s3 + $0xe0] sm:$0xff]
  %v3793 = vld [vmem:[%s3 + $0xe8] sm:$0xff]
  %v3794 = vld [vmem:[%s3 + $0xf0] sm:$0xff]
  %v3795 = vld [vmem:[%s3 + $0xf8] sm:$0xff]
  %v3828 = vunpack.c.l.b16 %v3764
  %v3829 = vunpack.c.h.b16 %v3764
  %v3830 = vunpack.c.l.b16 %v3765
  %v3831 = vunpack.c.h.b16 %v3765
  %v3832 = vunpack.c.l.b16 %v3766
  %v3833 = vunpack.c.h.b16 %v3766
  %v3834 = vunpack.c.l.b16 %v3767
  %v3835 = vunpack.c.h.b16 %v3767
  %v3836 = vunpack.c.l.b16 %v3768
  %v3837 = vunpack.c.h.b16 %v3768
  %v3838 = vunpack.c.l.b16 %v3769
  %v3839 = vunpack.c.h.b16 %v3769
  %v3840 = vunpack.c.l.b16 %v3770
  %v3841 = vunpack.c.h.b16 %v3770
  %v3842 = vunpack.c.l.b16 %v3771
  %v3843 = vunpack.c.h.b16 %v3771
  %v3844 = vunpack.c.l.b16 %v3772
  %v3845 = vunpack.c.h.b16 %v3772
  %v3846 = vunpack.c.l.b16 %v3773
  %v3847 = vunpack.c.h.b16 %v3773
  %v3848 = vunpack.c.l.b16 %v3774
  %v3849 = vunpack.c.h.b16 %v3774
  %v3850 = vunpack.c.l.b16 %v3775
  %v3851 = vunpack.c.h.b16 %v3775
  %v3852 = vunpack.c.l.b16 %v3776
  %v3853 = vunpack.c.h.b16 %v3776
  %v3854 = vunpack.c.l.b16 %v3777
  %v3855 = vunpack.c.h.b16 %v3777
  %v3856 = vunpack.c.l.b16 %v3778
  %v3857 = vunpack.c.h.b16 %v3778
  %v3858 = vunpack.c.l.b16 %v3779
  %v3859 = vunpack.c.h.b16 %v3779
  %v3860 = vunpack.c.l.b16 %v3780
  %v3861 = vunpack.c.h.b16 %v3780
  %v3862 = vunpack.c.l.b16 %v3781
  %v3863 = vunpack.c.h.b16 %v3781
  %v3864 = vunpack.c.l.b16 %v3782
  %v3865 = vunpack.c.h.b16 %v3782
  %v3866 = vunpack.c.l.b16 %v3783
  %v3867 = vunpack.c.h.b16 %v3783
  %v3868 = vunpack.c.l.b16 %v3784
  %v3869 = vunpack.c.h.b16 %v3784
  %v3870 = vunpack.c.l.b16 %v3785
  %v3871 = vunpack.c.h.b16 %v3785
  %v3872 = vunpack.c.l.b16 %v3786
  %v3873 = vunpack.c.h.b16 %v3786
  %v3874 = vunpack.c.l.b16 %v3787
  %v3875 = vunpack.c.h.b16 %v3787
  %v3876 = vunpack.c.l.b16 %v3788
  %v3877 = vunpack.c.h.b16 %v3788
  %v3878 = vunpack.c.l.b16 %v3789
  %v3879 = vunpack.c.h.b16 %v3789
  %v3880 = vunpack.c.l.b16 %v3790
  %v3881 = vunpack.c.h.b16 %v3790
  %v3882 = vunpack.c.l.b16 %v3791
  %v3883 = vunpack.c.h.b16 %v3791
  %v3884 = vunpack.c.l.b16 %v3792
  %v3885 = vunpack.c.h.b16 %v3792
  %v3886 = vunpack.c.l.b16 %v3793
  %v3887 = vunpack.c.h.b16 %v3793
  %v3888 = vunpack.c.l.b16 %v3794
  %v3889 = vunpack.c.h.b16 %v3794
  %v3890 = vunpack.c.l.b16 %v3795
  %v3891 = vunpack.c.h.b16 %v3795
  %v3892 = vpack.c.b16 %v3832, %v3828
  %v3893 = vpack.c.b16 %v3833, %v3829
  %v3894 = vpack.c.b16 %v3834, %v3830
  %v3895 = vpack.c.b16 %v3835, %v3831
  %v3896 = vpack.c.b16 %v3840, %v3836
  %v3897 = vpack.c.b16 %v3841, %v3837
  %v3898 = vpack.c.b16 %v3842, %v3838
  %v3899 = vpack.c.b16 %v3843, %v3839
  %v3900 = vpack.c.b16 %v3848, %v3844
  %v3901 = vpack.c.b16 %v3849, %v3845
  %v3902 = vpack.c.b16 %v3850, %v3846
  %v3903 = vpack.c.b16 %v3851, %v3847
  %v3904 = vpack.c.b16 %v3856, %v3852
  %v3905 = vpack.c.b16 %v3857, %v3853
  %v3906 = vpack.c.b16 %v3858, %v3854
  %v3907 = vpack.c.b16 %v3859, %v3855
  %v3908 = vpack.c.b16 %v3864, %v3860
  %v3909 = vpack.c.b16 %v3865, %v3861
  %v3910 = vpack.c.b16 %v3866, %v3862
  %v3911 = vpack.c.b16 %v3867, %v3863
  %v3912 = vpack.c.b16 %v3872, %v3868
  %v3913 = vpack.c.b16 %v3873, %v3869
  %v3914 = vpack.c.b16 %v3874, %v3870
  %v3915 = vpack.c.b16 %v3875, %v3871
  %v3916 = vpack.c.b16 %v3880, %v3876
  %v3917 = vpack.c.b16 %v3881, %v3877
  %v3918 = vpack.c.b16 %v3882, %v3878
  %v3919 = vpack.c.b16 %v3883, %v3879
  %v3920 = vpack.c.b16 %v3888, %v3884
  %v3921 = vpack.c.b16 %v3889, %v3885
  %v3922 = vpack.c.b16 %v3890, %v3886
  %v3923 = vpack.c.b16 %v3891, %v3887
  %3956 = vmatprep.subr.bf16.mxu0 %v3893
  %3957 = vmatpush1.bf16.msra.mxu0 %v3892
  %3958 = vmatprep.subr.bf16.mxu0 %v3897
  %3959 = vmatpush1.bf16.msra.mxu0 %v3896
  %3960 = vmatprep.subr.bf16.mxu0 %v3901
  %3961 = vmatpush1.bf16.msra.mxu0 %v3900
  %3962 = vmatprep.subr.bf16.mxu0 %v3905
  %3963 = vmatpush1.bf16.msra.mxu0 %v3904
  %3964 = vmatprep.subr.bf16.mxu0 %v3909
  %3965 = vmatpush1.bf16.msra.mxu0 %v3908
  %3966 = vmatprep.subr.bf16.mxu0 %v3913
  %3967 = vmatpush1.bf16.msra.mxu0 %v3912
  %3968 = vmatprep.subr.bf16.mxu0 %v3917
  %3969 = vmatpush1.bf16.msra.mxu0 %v3916
  %3970 = vmatprep.subr.bf16.mxu0 %v3921
  %3971 = vmatpush1.bf16.msra.mxu0 %v3920
  %3972 = vmatprep.subr.bf16.mxu0 0
  %3973 = vmatpush1.bf16.msra.mxu0 0
  %3974 = vmatprep.subr.bf16.mxu0 0
  %3975 = vmatpush1.bf16.msra.mxu0 0
  %3976 = vmatprep.subr.bf16.mxu0 0
  %3977 = vmatpush1.bf16.msra.mxu0 0
  %3978 = vmatprep.subr.bf16.mxu0 0
  %3979 = vmatpush1.bf16.msra.mxu0 0
  %3980 = vmatprep.subr.bf16.mxu0 0
  %3981 = vmatpush1.bf16.msra.mxu0 0
  %3982 = vmatprep.subr.bf16.mxu0 0
  %3983 = vmatpush1.bf16.msra.mxu0 0
  %3984 = vmatprep.subr.bf16.mxu0 0
  %3985 = vmatpush1.bf16.msra.mxu0 0
  %3986 = vmatprep.subr.bf16.mxu0 0
  %3987 = vmatpush1.bf16.msra.mxu0 0
  %3988 = vmatprep.mubr.bf16.mxu0 0
  %3989 = vmatmul.mubr.bf16.gmra.mrb[0].mxu0 %v3763
  %v3990 = vpop.f32.mrb[0].mxu0
  %v3991 = vadd.f32 0.0, %v3990
  %v3992 = vpop.f32.mrb[0].mxu0
  %v3993 = vadd.f32 0.0, %v3992
  %v3994 = vpop.f32.mrb[0].mxu0
  %v3995 = vpop.f32.mrb[0].mxu0
  %3996 = vdwg.mxu0
  %3997 = vmatprep.subr.bf16.mxu0 %v3895
  %3998 = vmatpush1.bf16.msra.mxu0 %v3894
  %3999 = vmatprep.subr.bf16.mxu0 %v3899
  %4000 = vmatpush1.bf16.msra.mxu0 %v3898
  %4001 = vmatprep.subr.bf16.mxu0 %v3903
  %4002 = vmatpush1.bf16.msra.mxu0 %v3902
  %4003 = vmatprep.subr.bf16.mxu0 %v3907
  %4004 = vmatpush1.bf16.msra.mxu0 %v3906
  %4005 = vmatprep.subr.bf16.mxu0 %v3911
  %4006 = vmatpush1.bf16.msra.mxu0 %v3910
  %4007 = vmatprep.subr.bf16.mxu0 %v3915
  %4008 = vmatpush1.bf16.msra.mxu0 %v3914
  %4009 = vmatprep.subr.bf16.mxu0 %v3919
  %4010 = vmatpush1.bf16.msra.mxu0 %v3918
  %4011 = vmatprep.subr.bf16.mxu0 %v3923
  %4012 = vmatpush1.bf16.msra.mxu0 %v3922
  %4013 = vmatprep.subr.bf16.mxu0 0
  %4014 = vmatpush1.bf16.msra.mxu0 0
  %4015 = vmatprep.subr.bf16.mxu0 0
  %4016 = vmatpush1.bf16.msra.mxu0 0
  %4017 = vmatprep.subr.bf16.mxu0 0
  %4018 = vmatpush1.bf16.msra.mxu0 0
  %4019 = vmatprep.subr.bf16.mxu0 0
  %4020 = vmatpush1.bf16.msra.mxu0 0
  %4021 = vmatprep.subr.bf16.mxu0 0
  %4022 = vmatpush1.bf16.msra.mxu0 0
  %4023 = vmatprep.subr.bf16.mxu0 0
  %4024 = vmatpush1.bf16.msra.mxu0 0
  %4025 = vmatprep.subr.bf16.mxu0 0
  %4026 = vmatpush1.bf16.msra.mxu0 0
  %4027 = vmatprep.subr.bf16.mxu0 0
  %4028 = vmatpush1.bf16.msra.mxu0 0
  %4029 = vmatprep.mubr.bf16.mxu0 0
  %4030 = vmatmul.mubr.bf16.gmra.mrb[0].mxu0 %v3763
  %v4031 = vpop.f32.mrb[0].mxu0
  %v4032 = vadd.f32 0.0, %v4031
  %v4033 = vpop.f32.mrb[0].mxu0
  %v4034 = vadd.f32 0.0, %v4033
  %v4035 = vpop.f32.mrb[0].mxu0
  %v4036 = vpop.f32.mrb[0].mxu0
  %4037 = vdwg.mxu0
  %v4038 = vadd.f32 %v3759, %v3991
  %v4039 = vadd.f32 %v3760, %v3993
  %v4040 = vadd.f32 %v3761, %v4032
  %v4041 = vadd.f32 %v3762, %v4034
  %v4042 = vld [vmem:[#allocation2 + $0x120] sm:$0xff]
  %v4043 = vld [vmem:[#allocation2 + $0x128] sm:$0xff]
  %v4044 = vld [vmem:[#allocation2 + $0x130] sm:$0xff]
  %v4045 = vld [vmem:[#allocation2 + $0x138] sm:$0xff]
  %v4046 = vpack.c.bf16 %v3756, %v3756
  %v4047 = vld [vmem:[%s4] sm:$0xff]
  %v4048 = vld [vmem:[%s4 + $0x8] sm:$0xff]
  %v4049 = vld [vmem:[%s4 + $0x10] sm:$0xff]
  %v4050 = vld [vmem:[%s4 + $0x18] sm:$0xff]
  %v4051 = vld [vmem:[%s4 + $0x20] sm:$0xff]
  %v4052 = vld [vmem:[%s4 + $0x28] sm:$0xff]
  %v4053 = vld [vmem:[%s4 + $0x30] sm:$0xff]
  %v4054 = vld [vmem:[%s4 + $0x38] sm:$0xff]
  %v4055 = vld [vmem:[%s4 + $0x40] sm:$0xff]
  %v4056 = vld [vmem:[%s4 + $0x48] sm:$0xff]
  %v4057 = vld [vmem:[%s4 + $0x50] sm:$0xff]
  %v4058 = vld [vmem:[%s4 + $0x58] sm:$0xff]
  %v4059 = vld [vmem:[%s4 + $0x60] sm:$0xff]
  %v4060 = vld [vmem:[%s4 + $0x68] sm:$0xff]
  %v4061 = vld [vmem:[%s4 + $0x70] sm:$0xff]
  %v4062 = vld [vmem:[%s4 + $0x78] sm:$0xff]
  %v4063 = vld [vmem:[%s4 + $0x80] sm:$0xff]
  %v4064 = vld [vmem:[%s4 + $0x88] sm:$0xff]
  %v4065 = vld [vmem:[%s4 + $0x90] sm:$0xff]
  %v4066 = vld [vmem:[%s4 + $0x98] sm:$0xff]
  %v4067 = vld [vmem:[%s4 + $0xa0] sm:$0xff]
  %v4068 = vld [vmem:[%s4 + $0xa8] sm:$0xff]
  %v4069 = vld [vmem:[%s4 + $0xb0] sm:$0xff]
  %v4070 = vld [vmem:[%s4 + $0xb8] sm:$0xff]
  %v4071 = vld [vmem:[%s4 + $0xc0] sm:$0xff]
  %v4072 = vld [vmem:[%s4 + $0xc8] sm:$0xff]
  %v4073 = vld [vmem:[%s4 + $0xd0] sm:$0xff]
  %v4074 = vld [vmem:[%s4 + $0xd8] sm:$0xff]
  %v4075 = vld [vmem:[%s4 + $0xe0] sm:$0xff]
  %v4076 = vld [vmem:[%s4 + $0xe8] sm:$0xff]
  %v4077 = vld [vmem:[%s4 + $0xf0] sm:$0xff]
  %v4078 = vld [vmem:[%s4 + $0xf8] sm:$0xff]
  %v4111 = vunpack.c.l.b16 %v4047
  %v4112 = vunpack.c.h.b16 %v4047
  %v4113 = vunpack.c.l.b16 %v4048
  %v4114 = vunpack.c.h.b16 %v4048
  %v4115 = vunpack.c.l.b16 %v4049
  %v4116 = vunpack.c.h.b16 %v4049
  %v4117 = vunpack.c.l.b16 %v4050
  %v4118 = vunpack.c.h.b16 %v4050
  %v4119 = vunpack.c.l.b16 %v4051
  %v4120 = vunpack.c.h.b16 %v4051
  %v4121 = vunpack.c.l.b16 %v4052
  %v4122 = vunpack.c.h.b16 %v4052
  %v4123 = vunpack.c.l.b16 %v4053
  %v4124 = vunpack.c.h.b16 %v4053
  %v4125 = vunpack.c.l.b16 %v4054
  %v4126 = vunpack.c.h.b16 %v4054
  %v4127 = vunpack.c.l.b16 %v4055
  %v4128 = vunpack.c.h.b16 %v4055
  %v4129 = vunpack.c.l.b16 %v4056
  %v4130 = vunpack.c.h.b16 %v4056
  %v4131 = vunpack.c.l.b16 %v4057
  %v4132 = vunpack.c.h.b16 %v4057
  %v4133 = vunpack.c.l.b16 %v4058
  %v4134 = vunpack.c.h.b16 %v4058
  %v4135 = vunpack.c.l.b16 %v4059
  %v4136 = vunpack.c.h.b16 %v4059
  %v4137 = vunpack.c.l.b16 %v4060
  %v4138 = vunpack.c.h.b16 %v4060
  %v4139 = vunpack.c.l.b16 %v4061
  %v4140 = vunpack.c.h.b16 %v4061
  %v4141 = vunpack.c.l.b16 %v4062
  %v4142 = vunpack.c.h.b16 %v4062
  %v4143 = vunpack.c.l.b16 %v4063
  %v4144 = vunpack.c.h.b16 %v4063
  %v4145 = vunpack.c.l.b16 %v4064
  %v4146 = vunpack.c.h.b16 %v4064
  %v4147 = vunpack.c.l.b16 %v4065
  %v4148 = vunpack.c.h.b16 %v4065
  %v4149 = vunpack.c.l.b16 %v4066
  %v4150 = vunpack.c.h.b16 %v4066
  %v4151 = vunpack.c.l.b16 %v4067
  %v4152 = vunpack.c.h.b16 %v4067
  %v4153 = vunpack.c.l.b16 %v4068
  %v4154 = vunpack.c.h.b16 %v4068
  %v4155 = vunpack.c.l.b16 %v4069
  %v4156 = vunpack.c.h.b16 %v4069
  %v4157 = vunpack.c.l.b16 %v4070
  %v4158 = vunpack.c.h.b16 %v4070
  %v4159 = vunpack.c.l.b16 %v4071
  %v4160 = vunpack.c.h.b16 %v4071
  %v4161 = vunpack.c.l.b16 %v4072
  %v4162 = vunpack.c.h.b16 %v4072
  %v4163 = vunpack.c.l.b16 %v4073
  %v4164 = vunpack.c.h.b16 %v4073
  %v4165 = vunpack.c.l.b16 %v4074
  %v4166 = vunpack.c.h.b16 %v4074
  %v4167 = vunpack.c.l.b16 %v4075
  %v4168 = vunpack.c.h.b16 %v4075
  %v4169 = vunpack.c.l.b16 %v4076
  %v4170 = vunpack.c.h.b16 %v4076
  %v4171 = vunpack.c.l.b16 %v4077
  %v4172 = vunpack.c.h.b16 %v4077
  %v4173 = vunpack.c.l.b16 %v4078
  %v4174 = vunpack.c.h.b16 %v4078
  %v4175 = vpack.c.b16 %v4115, %v4111
  %v4176 = vpack.c.b16 %v4116, %v4112
  %v4177 = vpack.c.b16 %v4117, %v4113
  %v4178 = vpack.c.b16 %v4118, %v4114
  %v4179 = vpack.c.b16 %v4123, %v4119
  %v4180 = vpack.c.b16 %v4124, %v4120
  %v4181 = vpack.c.b16 %v4125, %v4121
  %v4182 = vpack.c.b16 %v4126, %v4122
  %v4183 = vpack.c.b16 %v4131, %v4127
  %v4184 = vpack.c.b16 %v4132, %v4128
  %v4185 = vpack.c.b16 %v4133, %v4129
  %v4186 = vpack.c.b16 %v4134, %v4130
  %v4187 = vpack.c.b16 %v4139, %v4135
  %v4188 = vpack.c.b16 %v4140, %v4136
  %v4189 = vpack.c.b16 %v4141, %v4137
  %v4190 = vpack.c.b16 %v4142, %v4138
  %v4191 = vpack.c.b16 %v4147, %v4143
  %v4192 = vpack.c.b16 %v4148, %v4144
  %v4193 = vpack.c.b16 %v4149, %v4145
  %v4194 = vpack.c.b16 %v4150, %v4146
  %v4195 = vpack.c.b16 %v4155, %v4151
  %v4196 = vpack.c.b16 %v4156, %v4152
  %v4197 = vpack.c.b16 %v4157, %v4153
  %v4198 = vpack.c.b16 %v4158, %v4154
  %v4199 = vpack.c.b16 %v4163, %v4159
  %v4200 = vpack.c.b16 %v4164, %v4160
  %v4201 = vpack.c.b16 %v4165, %v4161
  %v4202 = vpack.c.b16 %v4166, %v4162
  %v4203 = vpack.c.b16 %v4171, %v4167
  %v4204 = vpack.c.b16 %v4172, %v4168
  %v4205 = vpack.c.b16 %v4173, %v4169
  %v4206 = vpack.c.b16 %v4174, %v4170
  %4239 = vmatprep.subr.bf16.mxu0 %v4176
  %4240 = vmatpush1.bf16.msra.mxu0 %v4175
  %4241 = vmatprep.subr.bf16.mxu0 %v4180
  %4242 = vmatpush1.bf16.msra.mxu0 %v4179
  %4243 = vmatprep.subr.bf16.mxu0 %v4184
  %4244 = vmatpush1.bf16.msra.mxu0 %v4183
  %4245 = vmatprep.subr.bf16.mxu0 %v4188
  %4246 = vmatpush1.bf16.msra.mxu0 %v4187
  %4247 = vmatprep.subr.bf16.mxu0 %v4192
  %4248 = vmatpush1.bf16.msra.mxu0 %v4191
  %4249 = vmatprep.subr.bf16.mxu0 %v4196
  %4250 = vmatpush1.bf16.msra.mxu0 %v4195
  %4251 = vmatprep.subr.bf16.mxu0 %v4200
  %4252 = vmatpush1.bf16.msra.mxu0 %v4199
  %4253 = vmatprep.subr.bf16.mxu0 %v4204
  %4254 = vmatpush1.bf16.msra.mxu0 %v4203
  %4255 = vmatprep.subr.bf16.mxu0 0
  %4256 = vmatpush1.bf16.msra.mxu0 0
  %4257 = vmatprep.subr.bf16.mxu0 0
  %4258 = vmatpush1.bf16.msra.mxu0 0
  %4259 = vmatprep.subr.bf16.mxu0 0
  %4260 = vmatpush1.bf16.msra.mxu0 0
  %4261 = vmatprep.subr.bf16.mxu0 0
  %4262 = vmatpush1.bf16.msra.mxu0 0
  %4263 = vmatprep.subr.bf16.mxu0 0
  %4264 = vmatpush1.bf16.msra.mxu0 0
  %4265 = vmatprep.subr.bf16.mxu0 0
  %4266 = vmatpush1.bf16.msra.mxu0 0
  %4267 = vmatprep.subr.bf16.mxu0 0
  %4268 = vmatpush1.bf16.msra.mxu0 0
  %4269 = vmatprep.subr.bf16.mxu0 0
  %4270 = vmatpush1.bf16.msra.mxu0 0
  %4271 = vmatprep.mubr.bf16.mxu0 0
  %4272 = vmatmul.mubr.bf16.gmra.mrb[0].mxu0 %v4046
  %v4273 = vpop.f32.mrb[0].mxu0
  %v4274 = vadd.f32 0.0, %v4273
  %v4275 = vpop.f32.mrb[0].mxu0
  %v4276 = vadd.f32 0.0, %v4275
  %v4277 = vpop.f32.mrb[0].mxu0
  %v4278 = vpop.f32.mrb[0].mxu0
  %4279 = vdwg.mxu0
  %4280 = vmatprep.subr.bf16.mxu0 %v4178
  %4281 = vmatpush1.bf16.msra.mxu0 %v4177
  %4282 = vmatprep.subr.bf16.mxu0 %v4182
  %4283 = vmatpush1.bf16.msra.mxu0 %v4181
  %4284 = vmatprep.subr.bf16.mxu0 %v4186
  %4285 = vmatpush1.bf16.msra.mxu0 %v4185
  %4286 = vmatprep.subr.bf16.mxu0 %v4190
  %4287 = vmatpush1.bf16.msra.mxu0 %v4189
  %4288 = vmatprep.subr.bf16.mxu0 %v4194
  %4289 = vmatpush1.bf16.msra.mxu0 %v4193
  %4290 = vmatprep.subr.bf16.mxu0 %v4198
  %4291 = vmatpush1.bf16.msra.mxu0 %v4197
  %4292 = vmatprep.subr.bf16.mxu0 %v4202
  %4293 = vmatpush1.bf16.msra.mxu0 %v4201
  %4294 = vmatprep.subr.bf16.mxu0 %v4206
  %4295 = vmatpush1.bf16.msra.mxu0 %v4205
  %4296 = vmatprep.subr.bf16.mxu0 0
  %4297 = vmatpush1.bf16.msra.mxu0 0
  %4298 = vmatprep.subr.bf16.mxu0 0
  %4299 = vmatpush1.bf16.msra.mxu0 0
  %4300 = vmatprep.subr.bf16.mxu0 0
  %4301 = vmatpush1.bf16.msra.mxu0 0
  %4302 = vmatprep.subr.bf16.mxu0 0
  %4303 = vmatpush1.bf16.msra.mxu0 0
  %4304 = vmatprep.subr.bf16.mxu0 0
  %4305 = vmatpush1.bf16.msra.mxu0 0
  %4306 = vmatprep.subr.bf16.mxu0 0
  %4307 = vmatpush1.bf16.msra.mxu0 0
  %4308 = vmatprep.subr.bf16.mxu0 0
  %4309 = vmatpush1.bf16.msra.mxu0 0
  %4310 = vmatprep.subr.bf16.mxu0 0
  %4311 = vmatpush1.bf16.msra.mxu0 0
  %4312 = vmatprep.mubr.bf16.mxu0 0
  %4313 = vmatmul.mubr.bf16.gmra.mrb[0].mxu0 %v4046
  %v4314 = vpop.f32.mrb[0].mxu0
  %v4315 = vadd.f32 0.0, %v4314
  %v4316 = vpop.f32.mrb[0].mxu0
  %v4317 = vadd.f32 0.0, %v4316
  %v4318 = vpop.f32.mrb[0].mxu0
  %v4319 = vpop.f32.mrb[0].mxu0
  %4320 = vdwg.mxu0
  %v4321 = vadd.f32 %v4042, %v4274
  %v4322 = vadd.f32 %v4043, %v4276
  %v4323 = vadd.f32 %v4044, %v4315
  %v4324 = vadd.f32 %v4045, %v4317
  %v4325 = vxor.u32 %v4038, 2147483648
  %v4326 = vmul.f32 %v4325, 1.442695
  %v4327 = vpow.pop %v4326
  %v4328 = vadd.f32 %v4327, 1.0
  %v4329 = vrcp.pop %v4328
  %v4330 = vmul.f32 1.0, %v4329
  %v4331 = vxor.u32 %v4039, 2147483648
  %v4332 = vmul.f32 %v4331, 1.442695
  %v4333 = vpow.pop %v4332
  %v4334 = vadd.f32 %v4333, 1.0
  %v4335 = vrcp.pop %v4334
  %v4336 = vmul.f32 1.0, %v4335
  %v4337 = vtanh.pop %v4040
  %v4338 = vxor.u32 %v4041, 2147483648
  %v4339 = vmul.f32 %v4338, 1.442695
  %v4340 = vpow.pop %v4339
  %v4341 = vadd.f32 %v4340, 1.0
  %v4342 = vrcp.pop %v4341
  %v4343 = vmul.f32 1.0, %v4342
  %v4344 = vmul.f32 %v4336, %v3730
  %v4345 = vmul.f32 %v4330, %v4337
  %v4346 = vadd.f32 %v4344, %v4345
  %v4347 = vtanh.pop %v4346
  %v4348 = vmul.f32 %v4343, %v4347
  %v4349 = vxor.u32 %v4321, 2147483648
  %v4350 = vmul.f32 %v4349, 1.442695
  %v4351 = vpow.pop %v4350
  %v4352 = vadd.f32 %v4351, 1.0
  %v4353 = vrcp.pop %v4352
  %v4354 = vmul.f32 1.0, %v4353
  %v4355 = vxor.u32 %v4322, 2147483648
  %v4356 = vmul.f32 %v4355, 1.442695
  %v4357 = vpow.pop %v4356
  %v4358 = vadd.f32 %v4357, 1.0
  %v4359 = vrcp.pop %v4358
  %v4360 = vmul.f32 1.0, %v4359
  %v4361 = vtanh.pop %v4323
  %v4362 = vxor.u32 %v4324, 2147483648
  %v4363 = vmul.f32 %v4362, 1.442695
  %v4364 = vpow.pop %v4363
  %v4365 = vadd.f32 %v4364, 1.0
  %v4366 = vrcp.pop %v4365
  %v4367 = vmul.f32 1.0, %v4366
  %v4368 = vmul.f32 %v4360, %v3754
  %v4369 = vmul.f32 %v4354, %v4361
  %v4370 = vadd.f32 %v4368, %v4369
  %v4371 = vtanh.pop %v4370
  %v4372 = vmul.f32 %v4367, %v4371
  %4373 = vst [vmem:[#allocation3 + $0x30] sm:$0xff] %v4348
  %4374 = vst [vmem:[#allocation3 + $0x48] sm:$0xff] %v4372
  %v4375 = vld [vmem:[#allocation2 + $0x100] sm:$0xff]
  %v4376 = vld [vmem:[#allocation2 + $0x108] sm:$0xff]
  %v4377 = vld [vmem:[#allocation2 + $0x110] sm:$0xff]
  %v4378 = vld [vmem:[#allocation2 + $0x118] sm:$0xff]
  %v4379 = vpack.c.bf16 %v4348, %v4348
  %v4380 = vld [vmem:[%s3] sm:$0xff]
  %v4381 = vld [vmem:[%s3 + $0x8] sm:$0xff]
  %v4382 = vld [vmem:[%s3 + $0x10] sm:$0xff]
  %v4383 = vld [vmem:[%s3 + $0x18] sm:$0xff]
  %v4384 = vld [vmem:[%s3 + $0x20] sm:$0xff]
  %v4385 = vld [vmem:[%s3 + $0x28] sm:$0xff]
  %v4386 = vld [vmem:[%s3 + $0x30] sm:$0xff]
  %v4387 = vld [vmem:[%s3 + $0x38] sm:$0xff]
  %v4388 = vld [vmem:[%s3 + $0x40] sm:$0xff]
  %v4389 = vld [vmem:[%s3 + $0x48] sm:$0xff]
  %v4390 = vld [vmem:[%s3 + $0x50] sm:$0xff]
  %v4391 = vld [vmem:[%s3 + $0x58] sm:$0xff]
  %v4392 = vld [vmem:[%s3 + $0x60] sm:$0xff]
  %v4393 = vld [vmem:[%s3 + $0x68] sm:$0xff]
  %v4394 = vld [vmem:[%s3 + $0x70] sm:$0xff]
  %v4395 = vld [vmem:[%s3 + $0x78] sm:$0xff]
  %v4396 = vld [vmem:[%s3 + $0x80] sm:$0xff]
  %v4397 = vld [vmem:[%s3 + $0x88] sm:$0xff]
  %v4398 = vld [vmem:[%s3 + $0x90] sm:$0xff]
  %v4399 = vld [vmem:[%s3 + $0x98] sm:$0xff]
  %v4400 = vld [vmem:[%s3 + $0xa0] sm:$0xff]
  %v4401 = vld [vmem:[%s3 + $0xa8] sm:$0xff]
  %v4402 = vld [vmem:[%s3 + $0xb0] sm:$0xff]
  %v4403 = vld [vmem:[%s3 + $0xb8] sm:$0xff]
  %v4404 = vld [vmem:[%s3 + $0xc0] sm:$0xff]
  %v4405 = vld [vmem:[%s3 + $0xc8] sm:$0xff]
  %v4406 = vld [vmem:[%s3 + $0xd0] sm:$0xff]
  %v4407 = vld [vmem:[%s3 + $0xd8] sm:$0xff]
  %v4408 = vld [vmem:[%s3 + $0xe0] sm:$0xff]
  %v4409 = vld [vmem:[%s3 + $0xe8] sm:$0xff]
  %v4410 = vld [vmem:[%s3 + $0xf0] sm:$0xff]
  %v4411 = vld [vmem:[%s3 + $0xf8] sm:$0xff]
  %v4444 = vunpack.c.l.b16 %v4380
  %v4445 = vunpack.c.h.b16 %v4380
  %v4446 = vunpack.c.l.b16 %v4381
  %v4447 = vunpack.c.h.b16 %v4381
  %v4448 = vunpack.c.l.b16 %v4382
  %v4449 = vunpack.c.h.b16 %v4382
  %v4450 = vunpack.c.l.b16 %v4383
  %v4451 = vunpack.c.h.b16 %v4383
  %v4452 = vunpack.c.l.b16 %v4384
  %v4453 = vunpack.c.h.b16 %v4384
  %v4454 = vunpack.c.l.b16 %v4385
  %v4455 = vunpack.c.h.b16 %v4385
  %v4456 = vunpack.c.l.b16 %v4386
  %v4457 = vunpack.c.h.b16 %v4386
  %v4458 = vunpack.c.l.b16 %v4387
  %v4459 = vunpack.c.h.b16 %v4387
  %v4460 = vunpack.c.l.b16 %v4388
  %v4461 = vunpack.c.h.b16 %v4388
  %v4462 = vunpack.c.l.b16 %v4389
  %v4463 = vunpack.c.h.b16 %v4389
  %v4464 = vunpack.c.l.b16 %v4390
  %v4465 = vunpack.c.h.b16 %v4390
  %v4466 = vunpack.c.l.b16 %v4391
  %v4467 = vunpack.c.h.b16 %v4391
  %v4468 = vunpack.c.l.b16 %v4392
  %v4469 = vunpack.c.h.b16 %v4392
  %v4470 = vunpack.c.l.b16 %v4393
  %v4471 = vunpack.c.h.b16 %v4393
  %v4472 = vunpack.c.l.b16 %v4394
  %v4473 = vunpack.c.h.b16 %v4394
  %v4474 = vunpack.c.l.b16 %v4395
  %v4475 = vunpack.c.h.b16 %v4395
  %v4476 = vunpack.c.l.b16 %v4396
  %v4477 = vunpack.c.h.b16 %v4396
  %v4478 = vunpack.c.l.b16 %v4397
  %v4479 = vunpack.c.h.b16 %v4397
  %v4480 = vunpack.c.l.b16 %v4398
  %v4481 = vunpack.c.h.b16 %v4398
  %v4482 = vunpack.c.l.b16 %v4399
  %v4483 = vunpack.c.h.b16 %v4399
  %v4484 = vunpack.c.l.b16 %v4400
  %v4485 = vunpack.c.h.b16 %v4400
  %v4486 = vunpack.c.l.b16 %v4401
  %v4487 = vunpack.c.h.b16 %v4401
  %v4488 = vunpack.c.l.b16 %v4402
  %v4489 = vunpack.c.h.b16 %v4402
  %v4490 = vunpack.c.l.b16 %v4403
  %v4491 = vunpack.c.h.b16 %v4403
  %v4492 = vunpack.c.l.b16 %v4404
  %v4493 = vunpack.c.h.b16 %v4404
  %v4494 = vunpack.c.l.b16 %v4405
  %v4495 = vunpack.c.h.b16 %v4405
  %v4496 = vunpack.c.l.b16 %v4406
  %v4497 = vunpack.c.h.b16 %v4406
  %v4498 = vunpack.c.l.b16 %v4407
  %v4499 = vunpack.c.h.b16 %v4407
  %v4500 = vunpack.c.l.b16 %v4408
  %v4501 = vunpack.c.h.b16 %v4408
  %v4502 = vunpack.c.l.b16 %v4409
  %v4503 = vunpack.c.h.b16 %v4409
  %v4504 = vunpack.c.l.b16 %v4410
  %v4505 = vunpack.c.h.b16 %v4410
  %v4506 = vunpack.c.l.b16 %v4411
  %v4507 = vunpack.c.h.b16 %v4411
  %v4508 = vpack.c.b16 %v4448, %v4444
  %v4509 = vpack.c.b16 %v4449, %v4445
  %v4510 = vpack.c.b16 %v4450, %v4446
  %v4511 = vpack.c.b16 %v4451, %v4447
  %v4512 = vpack.c.b16 %v4456, %v4452
  %v4513 = vpack.c.b16 %v4457, %v4453
  %v4514 = vpack.c.b16 %v4458, %v4454
  %v4515 = vpack.c.b16 %v4459, %v4455
  %v4516 = vpack.c.b16 %v4464, %v4460
  %v4517 = vpack.c.b16 %v4465, %v4461
  %v4518 = vpack.c.b16 %v4466, %v4462
  %v4519 = vpack.c.b16 %v4467, %v4463
  %v4520 = vpack.c.b16 %v4472, %v4468
  %v4521 = vpack.c.b16 %v4473, %v4469
  %v4522 = vpack.c.b16 %v4474, %v4470
  %v4523 = vpack.c.b16 %v4475, %v4471
  %v4524 = vpack.c.b16 %v4480, %v4476
  %v4525 = vpack.c.b16 %v4481, %v4477
  %v4526 = vpack.c.b16 %v4482, %v4478
  %v4527 = vpack.c.b16 %v4483, %v4479
  %v4528 = vpack.c.b16 %v4488, %v4484
  %v4529 = vpack.c.b16 %v4489, %v4485
  %v4530 = vpack.c.b16 %v4490, %v4486
  %v4531 = vpack.c.b16 %v4491, %v4487
  %v4532 = vpack.c.b16 %v4496, %v4492
  %v4533 = vpack.c.b16 %v4497, %v4493
  %v4534 = vpack.c.b16 %v4498, %v4494
  %v4535 = vpack.c.b16 %v4499, %v4495
  %v4536 = vpack.c.b16 %v4504, %v4500
  %v4537 = vpack.c.b16 %v4505, %v4501
  %v4538 = vpack.c.b16 %v4506, %v4502
  %v4539 = vpack.c.b16 %v4507, %v4503
  %4572 = vmatprep.subr.bf16.mxu0 %v4509
  %4573 = vmatpush1.bf16.msra.mxu0 %v4508
  %4574 = vmatprep.subr.bf16.mxu0 %v4513
  %4575 = vmatpush1.bf16.msra.mxu0 %v4512
  %4576 = vmatprep.subr.bf16.mxu0 %v4517
  %4577 = vmatpush1.bf16.msra.mxu0 %v4516
  %4578 = vmatprep.subr.bf16.mxu0 %v4521
  %4579 = vmatpush1.bf16.msra.mxu0 %v4520
  %4580 = vmatprep.subr.bf16.mxu0 %v4525
  %4581 = vmatpush1.bf16.msra.mxu0 %v4524
  %4582 = vmatprep.subr.bf16.mxu0 %v4529
  %4583 = vmatpush1.bf16.msra.mxu0 %v4528
  %4584 = vmatprep.subr.bf16.mxu0 %v4533
  %4585 = vmatpush1.bf16.msra.mxu0 %v4532
  %4586 = vmatprep.subr.bf16.mxu0 %v4537
  %4587 = vmatpush1.bf16.msra.mxu0 %v4536
  %4588 = vmatprep.subr.bf16.mxu0 0
  %4589 = vmatpush1.bf16.msra.mxu0 0
  %4590 = vmatprep.subr.bf16.mxu0 0
  %4591 = vmatpush1.bf16.msra.mxu0 0
  %4592 = vmatprep.subr.bf16.mxu0 0
  %4593 = vmatpush1.bf16.msra.mxu0 0
  %4594 = vmatprep.subr.bf16.mxu0 0
  %4595 = vmatpush1.bf16.msra.mxu0 0
  %4596 = vmatprep.subr.bf16.mxu0 0
  %4597 = vmatpush1.bf16.msra.mxu0 0
  %4598 = vmatprep.subr.bf16.mxu0 0
  %4599 = vmatpush1.bf16.msra.mxu0 0
  %4600 = vmatprep.subr.bf16.mxu0 0
  %4601 = vmatpush1.bf16.msra.mxu0 0
  %4602 = vmatprep.subr.bf16.mxu0 0
  %4603 = vmatpush1.bf16.msra.mxu0 0
  %4604 = vmatprep.mubr.bf16.mxu0 0
  %4605 = vmatmul.mubr.bf16.gmra.mrb[0].mxu0 %v4379
  %v4606 = vpop.f32.mrb[0].mxu0
  %v4607 = vadd.f32 0.0, %v4606
  %v4608 = vpop.f32.mrb[0].mxu0
  %v4609 = vadd.f32 0.0, %v4608
  %v4610 = vpop.f32.mrb[0].mxu0
  %v4611 = vpop.f32.mrb[0].mxu0
  %4612 = vdwg.mxu0
  %4613 = vmatprep.subr.bf16.mxu0 %v4511
  %4614 = vmatpush1.bf16.msra.mxu0 %v4510
  %4615 = vmatprep.subr.bf16.mxu0 %v4515
  %4616 = vmatpush1.bf16.msra.mxu0 %v4514
  %4617 = vmatprep.subr.bf16.mxu0 %v4519
  %4618 = vmatpush1.bf16.msra.mxu0 %v4518
  %4619 = vmatprep.subr.bf16.mxu0 %v4523
  %4620 = vmatpush1.bf16.msra.mxu0 %v4522
  %4621 = vmatprep.subr.bf16.mxu0 %v4527
  %4622 = vmatpush1.bf16.msra.mxu0 %v4526
  %4623 = vmatprep.subr.bf16.mxu0 %v4531
  %4624 = vmatpush1.bf16.msra.mxu0 %v4530
  %4625 = vmatprep.subr.bf16.mxu0 %v4535
  %4626 = vmatpush1.bf16.msra.mxu0 %v4534
  %4627 = vmatprep.subr.bf16.mxu0 %v4539
  %4628 = vmatpush1.bf16.msra.mxu0 %v4538
  %4629 = vmatprep.subr.bf16.mxu0 0
  %4630 = vmatpush1.bf16.msra.mxu0 0
  %4631 = vmatprep.subr.bf16.mxu0 0
  %4632 = vmatpush1.bf16.msra.mxu0 0
  %4633 = vmatprep.subr.bf16.mxu0 0
  %4634 = vmatpush1.bf16.msra.mxu0 0
  %4635 = vmatprep.subr.bf16.mxu0 0
  %4636 = vmatpush1.bf16.msra.mxu0 0
  %4637 = vmatprep.subr.bf16.mxu0 0
  %4638 = vmatpush1.bf16.msra.mxu0 0
  %4639 = vmatprep.subr.bf16.mxu0 0
  %4640 = vmatpush1.bf16.msra.mxu0 0
  %4641 = vmatprep.subr.bf16.mxu0 0
  %4642 = vmatpush1.bf16.msra.mxu0 0
  %4643 = vmatprep.subr.bf16.mxu0 0
  %4644 = vmatpush1.bf16.msra.mxu0 0
  %4645 = vmatprep.mubr.bf16.mxu0 0
  %4646 = vmatmul.mubr.bf16.gmra.mrb[0].mxu0 %v4379
  %v4647 = vpop.f32.mrb[0].mxu0
  %v4648 = vadd.f32 0.0, %v4647
  %v4649 = vpop.f32.mrb[0].mxu0
  %v4650 = vadd.f32 0.0, %v4649
  %v4651 = vpop.f32.mrb[0].mxu0
  %v4652 = vpop.f32.mrb[0].mxu0
  %4653 = vdwg.mxu0
  %v4654 = vadd.f32 %v4375, %v4607
  %v4655 = vadd.f32 %v4376, %v4609
  %v4656 = vadd.f32 %v4377, %v4648
  %v4657 = vadd.f32 %v4378, %v4650
  %v4658 = vld [vmem:[#allocation2 + $0xe0] sm:$0xff]
  %v4659 = vld [vmem:[#allocation2 + $0xe8] sm:$0xff]
  %v4660 = vld [vmem:[#allocation2 + $0xf0] sm:$0xff]
  %v4661 = vld [vmem:[#allocation2 + $0xf8] sm:$0xff]
  %v4662 = vpack.c.bf16 %v4372, %v4372
  %v4663 = vld [vmem:[%s4] sm:$0xff]
  %v4664 = vld [vmem:[%s4 + $0x8] sm:$0xff]
  %v4665 = vld [vmem:[%s4 + $0x10] sm:$0xff]
  %v4666 = vld [vmem:[%s4 + $0x18] sm:$0xff]
  %v4667 = vld [vmem:[%s4 + $0x20] sm:$0xff]
  %v4668 = vld [vmem:[%s4 + $0x28] sm:$0xff]
  %v4669 = vld [vmem:[%s4 + $0x30] sm:$0xff]
  %v4670 = vld [vmem:[%s4 + $0x38] sm:$0xff]
  %v4671 = vld [vmem:[%s4 + $0x40] sm:$0xff]
  %v4672 = vld [vmem:[%s4 + $0x48] sm:$0xff]
  %v4673 = vld [vmem:[%s4 + $0x50] sm:$0xff]
  %v4674 = vld [vmem:[%s4 + $0x58] sm:$0xff]
  %v4675 = vld [vmem:[%s4 + $0x60] sm:$0xff]
  %v4676 = vld [vmem:[%s4 + $0x68] sm:$0xff]
  %v4677 = vld [vmem:[%s4 + $0x70] sm:$0xff]
  %v4678 = vld [vmem:[%s4 + $0x78] sm:$0xff]
  %v4679 = vld [vmem:[%s4 + $0x80] sm:$0xff]
  %v4680 = vld [vmem:[%s4 + $0x88] sm:$0xff]
  %v4681 = vld [vmem:[%s4 + $0x90] sm:$0xff]
  %v4682 = vld [vmem:[%s4 + $0x98] sm:$0xff]
  %v4683 = vld [vmem:[%s4 + $0xa0] sm:$0xff]
  %v4684 = vld [vmem:[%s4 + $0xa8] sm:$0xff]
  %v4685 = vld [vmem:[%s4 + $0xb0] sm:$0xff]
  %v4686 = vld [vmem:[%s4 + $0xb8] sm:$0xff]
  %v4687 = vld [vmem:[%s4 + $0xc0] sm:$0xff]
  %v4688 = vld [vmem:[%s4 + $0xc8] sm:$0xff]
  %v4689 = vld [vmem:[%s4 + $0xd0] sm:$0xff]
  %v4690 = vld [vmem:[%s4 + $0xd8] sm:$0xff]
  %v4691 = vld [vmem:[%s4 + $0xe0] sm:$0xff]
  %v4692 = vld [vmem:[%s4 + $0xe8] sm:$0xff]
  %v4693 = vld [vmem:[%s4 + $0xf0] sm:$0xff]
  %v4694 = vld [vmem:[%s4 + $0xf8] sm:$0xff]
  %v4727 = vunpack.c.l.b16 %v4663
  %v4728 = vunpack.c.h.b16 %v4663
  %v4729 = vunpack.c.l.b16 %v4664
  %v4730 = vunpack.c.h.b16 %v4664
  %v4731 = vunpack.c.l.b16 %v4665
  %v4732 = vunpack.c.h.b16 %v4665
  %v4733 = vunpack.c.l.b16 %v4666
  %v4734 = vunpack.c.h.b16 %v4666
  %v4735 = vunpack.c.l.b16 %v4667
  %v4736 = vunpack.c.h.b16 %v4667
  %v4737 = vunpack.c.l.b16 %v4668
  %v4738 = vunpack.c.h.b16 %v4668
  %v4739 = vunpack.c.l.b16 %v4669
  %v4740 = vunpack.c.h.b16 %v4669
  %v4741 = vunpack.c.l.b16 %v4670
  %v4742 = vunpack.c.h.b16 %v4670
  %v4743 = vunpack.c.l.b16 %v4671
  %v4744 = vunpack.c.h.b16 %v4671
  %v4745 = vunpack.c.l.b16 %v4672
  %v4746 = vunpack.c.h.b16 %v4672
  %v4747 = vunpack.c.l.b16 %v4673
  %v4748 = vunpack.c.h.b16 %v4673
  %v4749 = vunpack.c.l.b16 %v4674
  %v4750 = vunpack.c.h.b16 %v4674
  %v4751 = vunpack.c.l.b16 %v4675
  %v4752 = vunpack.c.h.b16 %v4675
  %v4753 = vunpack.c.l.b16 %v4676
  %v4754 = vunpack.c.h.b16 %v4676
  %v4755 = vunpack.c.l.b16 %v4677
  %v4756 = vunpack.c.h.b16 %v4677
  %v4757 = vunpack.c.l.b16 %v4678
  %v4758 = vunpack.c.h.b16 %v4678
  %v4759 = vunpack.c.l.b16 %v4679
  %v4760 = vunpack.c.h.b16 %v4679
  %v4761 = vunpack.c.l.b16 %v4680
  %v4762 = vunpack.c.h.b16 %v4680
  %v4763 = vunpack.c.l.b16 %v4681
  %v4764 = vunpack.c.h.b16 %v4681
  %v4765 = vunpack.c.l.b16 %v4682
  %v4766 = vunpack.c.h.b16 %v4682
  %v4767 = vunpack.c.l.b16 %v4683
  %v4768 = vunpack.c.h.b16 %v4683
  %v4769 = vunpack.c.l.b16 %v4684
  %v4770 = vunpack.c.h.b16 %v4684
  %v4771 = vunpack.c.l.b16 %v4685
  %v4772 = vunpack.c.h.b16 %v4685
  %v4773 = vunpack.c.l.b16 %v4686
  %v4774 = vunpack.c.h.b16 %v4686
  %v4775 = vunpack.c.l.b16 %v4687
  %v4776 = vunpack.c.h.b16 %v4687
  %v4777 = vunpack.c.l.b16 %v4688
  %v4778 = vunpack.c.h.b16 %v4688
  %v4779 = vunpack.c.l.b16 %v4689
  %v4780 = vunpack.c.h.b16 %v4689
  %v4781 = vunpack.c.l.b16 %v4690
  %v4782 = vunpack.c.h.b16 %v4690
  %v4783 = vunpack.c.l.b16 %v4691
  %v4784 = vunpack.c.h.b16 %v4691
  %v4785 = vunpack.c.l.b16 %v4692
  %v4786 = vunpack.c.h.b16 %v4692
  %v4787 = vunpack.c.l.b16 %v4693
  %v4788 = vunpack.c.h.b16 %v4693
  %v4789 = vunpack.c.l.b16 %v4694
  %v4790 = vunpack.c.h.b16 %v4694
  %v4791 = vpack.c.b16 %v4731, %v4727
  %v4792 = vpack.c.b16 %v4732, %v4728
  %v4793 = vpack.c.b16 %v4733, %v4729
  %v4794 = vpack.c.b16 %v4734, %v4730
  %v4795 = vpack.c.b16 %v4739, %v4735
  %v4796 = vpack.c.b16 %v4740, %v4736
  %v4797 = vpack.c.b16 %v4741, %v4737
  %v4798 = vpack.c.b16 %v4742, %v4738
  %v4799 = vpack.c.b16 %v4747, %v4743
  %v4800 = vpack.c.b16 %v4748, %v4744
  %v4801 = vpack.c.b16 %v4749, %v4745
  %v4802 = vpack.c.b16 %v4750, %v4746
  %v4803 = vpack.c.b16 %v4755, %v4751
  %v4804 = vpack.c.b16 %v4756, %v4752
  %v4805 = vpack.c.b16 %v4757, %v4753
  %v4806 = vpack.c.b16 %v4758, %v4754
  %v4807 = vpack.c.b16 %v4763, %v4759
  %v4808 = vpack.c.b16 %v4764, %v4760
  %v4809 = vpack.c.b16 %v4765, %v4761
  %v4810 = vpack.c.b16 %v4766, %v4762
  %v4811 = vpack.c.b16 %v4771, %v4767
  %v4812 = vpack.c.b16 %v4772, %v4768
  %v4813 = vpack.c.b16 %v4773, %v4769
  %v4814 = vpack.c.b16 %v4774, %v4770
  %v4815 = vpack.c.b16 %v4779, %v4775
  %v4816 = vpack.c.b16 %v4780, %v4776
  %v4817 = vpack.c.b16 %v4781, %v4777
  %v4818 = vpack.c.b16 %v4782, %v4778
  %v4819 = vpack.c.b16 %v4787, %v4783
  %v4820 = vpack.c.b16 %v4788, %v4784
  %v4821 = vpack.c.b16 %v4789, %v4785
  %v4822 = vpack.c.b16 %v4790, %v4786
  %4855 = vmatprep.subr.bf16.mxu0 %v4792
  %4856 = vmatpush1.bf16.msra.mxu0 %v4791
  %4857 = vmatprep.subr.bf16.mxu0 %v4796
  %4858 = vmatpush1.bf16.msra.mxu0 %v4795
  %4859 = vmatprep.subr.bf16.mxu0 %v4800
  %4860 = vmatpush1.bf16.msra.mxu0 %v4799
  %4861 = vmatprep.subr.bf16.mxu0 %v4804
  %4862 = vmatpush1.bf16.msra.mxu0 %v4803
  %4863 = vmatprep.subr.bf16.mxu0 %v4808
  %4864 = vmatpush1.bf16.msra.mxu0 %v4807
  %4865 = vmatprep.subr.bf16.mxu0 %v4812
  %4866 = vmatpush1.bf16.msra.mxu0 %v4811
  %4867 = vmatprep.subr.bf16.mxu0 %v4816
  %4868 = vmatpush1.bf16.msra.mxu0 %v4815
  %4869 = vmatprep.subr.bf16.mxu0 %v4820
  %4870 = vmatpush1.bf16.msra.mxu0 %v4819
  %4871 = vmatprep.subr.bf16.mxu0 0
  %4872 = vmatpush1.bf16.msra.mxu0 0
  %4873 = vmatprep.subr.bf16.mxu0 0
  %4874 = vmatpush1.bf16.msra.mxu0 0
  %4875 = vmatprep.subr.bf16.mxu0 0
  %4876 = vmatpush1.bf16.msra.mxu0 0
  %4877 = vmatprep.subr.bf16.mxu0 0
  %4878 = vmatpush1.bf16.msra.mxu0 0
  %4879 = vmatprep.subr.bf16.mxu0 0
  %4880 = vmatpush1.bf16.msra.mxu0 0
  %4881 = vmatprep.subr.bf16.mxu0 0
  %4882 = vmatpush1.bf16.msra.mxu0 0
  %4883 = vmatprep.subr.bf16.mxu0 0
  %4884 = vmatpush1.bf16.msra.mxu0 0
  %4885 = vmatprep.subr.bf16.mxu0 0
  %4886 = vmatpush1.bf16.msra.mxu0 0
  %4887 = vmatprep.mubr.bf16.mxu0 0
  %4888 = vmatmul.mubr.bf16.gmra.mrb[0].mxu0 %v4662
  %v4889 = vpop.f32.mrb[0].mxu0
  %v4890 = vadd.f32 0.0, %v4889
  %v4891 = vpop.f32.mrb[0].mxu0
  %v4892 = vadd.f32 0.0, %v4891
  %v4893 = vpop.f32.mrb[0].mxu0
  %v4894 = vpop.f32.mrb[0].mxu0
  %4895 = vdwg.mxu0
  %4896 = vmatprep.subr.bf16.mxu0 %v4794
  %4897 = vmatpush1.bf16.msra.mxu0 %v4793
  %4898 = vmatprep.subr.bf16.mxu0 %v4798
  %4899 = vmatpush1.bf16.msra.mxu0 %v4797
  %4900 = vmatprep.subr.bf16.mxu0 %v4802
  %4901 = vmatpush1.bf16.msra.mxu0 %v4801
  %4902 = vmatprep.subr.bf16.mxu0 %v4806
  %4903 = vmatpush1.bf16.msra.mxu0 %v4805
  %4904 = vmatprep.subr.bf16.mxu0 %v4810
  %4905 = vmatpush1.bf16.msra.mxu0 %v4809
  %4906 = vmatprep.subr.bf16.mxu0 %v4814
  %4907 = vmatpush1.bf16.msra.mxu0 %v4813
  %4908 = vmatprep.subr.bf16.mxu0 %v4818
  %4909 = vmatpush1.bf16.msra.mxu0 %v4817
  %4910 = vmatprep.subr.bf16.mxu0 %v4822
  %4911 = vmatpush1.bf16.msra.mxu0 %v4821
  %4912 = vmatprep.subr.bf16.mxu0 0
  %4913 = vmatpush1.bf16.msra.mxu0 0
  %4914 = vmatprep.subr.bf16.mxu0 0
  %4915 = vmatpush1.bf16.msra.mxu0 0
  %4916 = vmatprep.subr.bf16.mxu0 0
  %4917 = vmatpush1.bf16.msra.mxu0 0
  %4918 = vmatprep.subr.bf16.mxu0 0
  %4919 = vmatpush1.bf16.msra.mxu0 0
  %4920 = vmatprep.subr.bf16.mxu0 0
  %4921 = vmatpush1.bf16.msra.mxu0 0
  %4922 = vmatprep.subr.bf16.mxu0 0
  %4923 = vmatpush1.bf16.msra.mxu0 0
  %4924 = vmatprep.subr.bf16.mxu0 0
  %4925 = vmatpush1.bf16.msra.mxu0 0
  %4926 = vmatprep.subr.bf16.mxu0 0
  %4927 = vmatpush1.bf16.msra.mxu0 0
  %4928 = vmatprep.mubr.bf16.mxu0 0
  %4929 = vmatmul.mubr.bf16.gmra.mrb[0].mxu0 %v4662
  %v4930 = vpop.f32.mrb[0].mxu0
  %v4931 = vadd.f32 0.0, %v4930
  %v4932 = vpop.f32.mrb[0].mxu0
  %v4933 = vadd.f32 0.0, %v4932
  %v4934 = vpop.f32.mrb[0].mxu0
  %v4935 = vpop.f32.mrb[0].mxu0
  %4936 = vdwg.mxu0
  %v4937 = vadd.f32 %v4658, %v4890
  %v4938 = vadd.f32 %v4659, %v4892
  %v4939 = vadd.f32 %v4660, %v4931
  %v4940 = vadd.f32 %v4661, %v4933
  %v4941 = vxor.u32 %v4654, 2147483648
  %v4942 = vmul.f32 %v4941, 1.442695
  %v4943 = vpow.pop %v4942
  %v4944 = vadd.f32 %v4943, 1.0
  %v4945 = vrcp.pop %v4944
  %v4946 = vmul.f32 1.0, %v4945
  %v4947 = vxor.u32 %v4655, 2147483648
  %v4948 = vmul.f32 %v4947, 1.442695
  %v4949 = vpow.pop %v4948
  %v4950 = vadd.f32 %v4949, 1.0
  %v4951 = vrcp.pop %v4950
  %v4952 = vmul.f32 1.0, %v4951
  %v4953 = vtanh.pop %v4656
  %v4954 = vxor.u32 %v4657, 2147483648
  %v4955 = vmul.f32 %v4954, 1.442695
  %v4956 = vpow.pop %v4955
  %v4957 = vadd.f32 %v4956, 1.0
  %v4958 = vrcp.pop %v4957
  %v4959 = vmul.f32 1.0, %v4958
  %v4960 = vmul.f32 %v4952, %v4346
  %v4961 = vmul.f32 %v4946, %v4953
  %v4962 = vadd.f32 %v4960, %v4961
  %v4963 = vtanh.pop %v4962
  %v4964 = vmul.f32 %v4959, %v4963
  %v4965 = vxor.u32 %v4937, 2147483648
  %v4966 = vmul.f32 %v4965, 1.442695
  %v4967 = vpow.pop %v4966
  %v4968 = vadd.f32 %v4967, 1.0
  %v4969 = vrcp.pop %v4968
  %v4970 = vmul.f32 1.0, %v4969
  %v4971 = vxor.u32 %v4938, 2147483648
  %v4972 = vmul.f32 %v4971, 1.442695
  %v4973 = vpow.pop %v4972
  %v4974 = vadd.f32 %v4973, 1.0
  %v4975 = vrcp.pop %v4974
  %v4976 = vmul.f32 1.0, %v4975
  %v4977 = vtanh.pop %v4939
  %v4978 = vxor.u32 %v4940, 2147483648
  %v4979 = vmul.f32 %v4978, 1.442695
  %v4980 = vpow.pop %v4979
  %v4981 = vadd.f32 %v4980, 1.0
  %v4982 = vrcp.pop %v4981
  %v4983 = vmul.f32 1.0, %v4982
  %v4984 = vmul.f32 %v4976, %v4370
  %v4985 = vmul.f32 %v4970, %v4977
  %v4986 = vadd.f32 %v4984, %v4985
  %v4987 = vtanh.pop %v4986
  %v4988 = vmul.f32 %v4983, %v4987
  %4989 = vst [vmem:[#allocation3 + $0x40] sm:$0xff] %v4964
  %4990 = vst [vmem:[#allocation3 + $0x38] sm:$0xff] %v4988
  %v4991 = vld [vmem:[#allocation2 + $0x140] sm:$0xff]
  %v4992 = vld [vmem:[#allocation2 + $0x148] sm:$0xff]
  %v4993 = vld [vmem:[#allocation2 + $0x150] sm:$0xff]
  %v4994 = vld [vmem:[#allocation2 + $0x158] sm:$0xff]
  %v4995 = vpack.c.bf16 %v4964, %v4964
  %v4996 = vld [vmem:[%s3] sm:$0xff]
  %v4997 = vld [vmem:[%s3 + $0x8] sm:$0xff]
  %v4998 = vld [vmem:[%s3 + $0x10] sm:$0xff]
  %v4999 = vld [vmem:[%s3 + $0x18] sm:$0xff]
  %v5000 = vld [vmem:[%s3 + $0x20] sm:$0xff]
  %v5001 = vld [vmem:[%s3 + $0x28] sm:$0xff]
  %v5002 = vld [vmem:[%s3 + $0x30] sm:$0xff]
  %v5003 = vld [vmem:[%s3 + $0x38] sm:$0xff]
  %v5004 = vld [vmem:[%s3 + $0x40] sm:$0xff]
  %v5005 = vld [vmem:[%s3 + $0x48] sm:$0xff]
  %v5006 = vld [vmem:[%s3 + $0x50] sm:$0xff]
  %v5007 = vld [vmem:[%s3 + $0x58] sm:$0xff]
  %v5008 = vld [vmem:[%s3 + $0x60] sm:$0xff]
  %v5009 = vld [vmem:[%s3 + $0x68] sm:$0xff]
  %v5010 = vld [vmem:[%s3 + $0x70] sm:$0xff]
  %v5011 = vld [vmem:[%s3 + $0x78] sm:$0xff]
  %v5012 = vld [vmem:[%s3 + $0x80] sm:$0xff]
  %v5013 = vld [vmem:[%s3 + $0x88] sm:$0xff]
  %v5014 = vld [vmem:[%s3 + $0x90] sm:$0xff]
  %v5015 = vld [vmem:[%s3 + $0x98] sm:$0xff]
  %v5016 = vld [vmem:[%s3 + $0xa0] sm:$0xff]
  %v5017 = vld [vmem:[%s3 + $0xa8] sm:$0xff]
  %v5018 = vld [vmem:[%s3 + $0xb0] sm:$0xff]
  %v5019 = vld [vmem:[%s3 + $0xb8] sm:$0xff]
  %v5020 = vld [vmem:[%s3 + $0xc0] sm:$0xff]
  %v5021 = vld [vmem:[%s3 + $0xc8] sm:$0xff]
  %v5022 = vld [vmem:[%s3 + $0xd0] sm:$0xff]
  %v5023 = vld [vmem:[%s3 + $0xd8] sm:$0xff]
  %v5024 = vld [vmem:[%s3 + $0xe0] sm:$0xff]
  %v5025 = vld [vmem:[%s3 + $0xe8] sm:$0xff]
  %v5026 = vld [vmem:[%s3 + $0xf0] sm:$0xff]
  %v5027 = vld [vmem:[%s3 + $0xf8] sm:$0xff]
  %v5060 = vunpack.c.l.b16 %v4996
  %v5061 = vunpack.c.h.b16 %v4996
  %v5062 = vunpack.c.l.b16 %v4997
  %v5063 = vunpack.c.h.b16 %v4997
  %v5064 = vunpack.c.l.b16 %v4998
  %v5065 = vunpack.c.h.b16 %v4998
  %v5066 = vunpack.c.l.b16 %v4999
  %v5067 = vunpack.c.h.b16 %v4999
  %v5068 = vunpack.c.l.b16 %v5000
  %v5069 = vunpack.c.h.b16 %v5000
  %v5070 = vunpack.c.l.b16 %v5001
  %v5071 = vunpack.c.h.b16 %v5001
  %v5072 = vunpack.c.l.b16 %v5002
  %v5073 = vunpack.c.h.b16 %v5002
  %v5074 = vunpack.c.l.b16 %v5003
  %v5075 = vunpack.c.h.b16 %v5003
  %v5076 = vunpack.c.l.b16 %v5004
  %v5077 = vunpack.c.h.b16 %v5004
  %v5078 = vunpack.c.l.b16 %v5005
  %v5079 = vunpack.c.h.b16 %v5005
  %v5080 = vunpack.c.l.b16 %v5006
  %v5081 = vunpack.c.h.b16 %v5006
  %v5082 = vunpack.c.l.b16 %v5007
  %v5083 = vunpack.c.h.b16 %v5007
  %v5084 = vunpack.c.l.b16 %v5008
  %v5085 = vunpack.c.h.b16 %v5008
  %v5086 = vunpack.c.l.b16 %v5009
  %v5087 = vunpack.c.h.b16 %v5009
  %v5088 = vunpack.c.l.b16 %v5010
  %v5089 = vunpack.c.h.b16 %v5010
  %v5090 = vunpack.c.l.b16 %v5011
  %v5091 = vunpack.c.h.b16 %v5011
  %v5092 = vunpack.c.l.b16 %v5012
  %v5093 = vunpack.c.h.b16 %v5012
  %v5094 = vunpack.c.l.b16 %v5013
  %v5095 = vunpack.c.h.b16 %v5013
  %v5096 = vunpack.c.l.b16 %v5014
  %v5097 = vunpack.c.h.b16 %v5014
  %v5098 = vunpack.c.l.b16 %v5015
  %v5099 = vunpack.c.h.b16 %v5015
  %v5100 = vunpack.c.l.b16 %v5016
  %v5101 = vunpack.c.h.b16 %v5016
  %v5102 = vunpack.c.l.b16 %v5017
  %v5103 = vunpack.c.h.b16 %v5017
  %v5104 = vunpack.c.l.b16 %v5018
  %v5105 = vunpack.c.h.b16 %v5018
  %v5106 = vunpack.c.l.b16 %v5019
  %v5107 = vunpack.c.h.b16 %v5019
  %v5108 = vunpack.c.l.b16 %v5020
  %v5109 = vunpack.c.h.b16 %v5020
  %v5110 = vunpack.c.l.b16 %v5021
  %v5111 = vunpack.c.h.b16 %v5021
  %v5112 = vunpack.c.l.b16 %v5022
  %v5113 = vunpack.c.h.b16 %v5022
  %v5114 = vunpack.c.l.b16 %v5023
  %v5115 = vunpack.c.h.b16 %v5023
  %v5116 = vunpack.c.l.b16 %v5024
  %v5117 = vunpack.c.h.b16 %v5024
  %v5118 = vunpack.c.l.b16 %v5025
  %v5119 = vunpack.c.h.b16 %v5025
  %v5120 = vunpack.c.l.b16 %v5026
  %v5121 = vunpack.c.h.b16 %v5026
  %v5122 = vunpack.c.l.b16 %v5027
  %v5123 = vunpack.c.h.b16 %v5027
  %v5124 = vpack.c.b16 %v5064, %v5060
  %v5125 = vpack.c.b16 %v5065, %v5061
  %v5126 = vpack.c.b16 %v5066, %v5062
  %v5127 = vpack.c.b16 %v5067, %v5063
  %v5128 = vpack.c.b16 %v5072, %v5068
  %v5129 = vpack.c.b16 %v5073, %v5069
  %v5130 = vpack.c.b16 %v5074, %v5070
  %v5131 = vpack.c.b16 %v5075, %v5071
  %v5132 = vpack.c.b16 %v5080, %v5076
  %v5133 = vpack.c.b16 %v5081, %v5077
  %v5134 = vpack.c.b16 %v5082, %v5078
  %v5135 = vpack.c.b16 %v5083, %v5079
  %v5136 = vpack.c.b16 %v5088, %v5084
  %v5137 = vpack.c.b16 %v5089, %v5085
  %v5138 = vpack.c.b16 %v5090, %v5086
  %v5139 = vpack.c.b16 %v5091, %v5087
  %v5140 = vpack.c.b16 %v5096, %v5092
  %v5141 = vpack.c.b16 %v5097, %v5093
  %v5142 = vpack.c.b16 %v5098, %v5094
  %v5143 = vpack.c.b16 %v5099, %v5095
  %v5144 = vpack.c.b16 %v5104, %v5100
  %v5145 = vpack.c.b16 %v5105, %v5101
  %v5146 = vpack.c.b16 %v5106, %v5102
  %v5147 = vpack.c.b16 %v5107, %v5103
  %v5148 = vpack.c.b16 %v5112, %v5108
  %v5149 = vpack.c.b16 %v5113, %v5109
  %v5150 = vpack.c.b16 %v5114, %v5110
  %v5151 = vpack.c.b16 %v5115, %v5111
  %v5152 = vpack.c.b16 %v5120, %v5116
  %v5153 = vpack.c.b16 %v5121, %v5117
  %v5154 = vpack.c.b16 %v5122, %v5118
  %v5155 = vpack.c.b16 %v5123, %v5119
  %5188 = vmatprep.subr.bf16.mxu0 %v5125
  %5189 = vmatpush1.bf16.msra.mxu0 %v5124
  %5190 = vmatprep.subr.bf16.mxu0 %v5129
  %5191 = vmatpush1.bf16.msra.mxu0 %v5128
  %5192 = vmatprep.subr.bf16.mxu0 %v5133
  %5193 = vmatpush1.bf16.msra.mxu0 %v5132
  %5194 = vmatprep.subr.bf16.mxu0 %v5137
  %5195 = vmatpush1.bf16.msra.mxu0 %v5136
  %5196 = vmatprep.subr.bf16.mxu0 %v5141
  %5197 = vmatpush1.bf16.msra.mxu0 %v5140
  %5198 = vmatprep.subr.bf16.mxu0 %v5145
  %5199 = vmatpush1.bf16.msra.mxu0 %v5144
  %5200 = vmatprep.subr.bf16.mxu0 %v5149
  %5201 = vmatpush1.bf16.msra.mxu0 %v5148
  %5202 = vmatprep.subr.bf16.mxu0 %v5153
  %5203 = vmatpush1.bf16.msra.mxu0 %v5152
  %5204 = vmatprep.subr.bf16.mxu0 0
  %5205 = vmatpush1.bf16.msra.mxu0 0
  %5206 = vmatprep.subr.bf16.mxu0 0
  %5207 = vmatpush1.bf16.msra.mxu0 0
  %5208 = vmatprep.subr.bf16.mxu0 0
  %5209 = vmatpush1.bf16.msra.mxu0 0
  %5210 = vmatprep.subr.bf16.mxu0 0
  %5211 = vmatpush1.bf16.msra.mxu0 0
  %5212 = vmatprep.subr.bf16.mxu0 0
  %5213 = vmatpush1.bf16.msra.mxu0 0
  %5214 = vmatprep.subr.bf16.mxu0 0
  %5215 = vmatpush1.bf16.msra.mxu0 0
  %5216 = vmatprep.subr.bf16.mxu0 0
  %5217 = vmatpush1.bf16.msra.mxu0 0
  %5218 = vmatprep.subr.bf16.mxu0 0
  %5219 = vmatpush1.bf16.msra.mxu0 0
  %5220 = vmatprep.mubr.bf16.mxu0 0
  %5221 = vmatmul.mubr.bf16.gmra.mrb[0].mxu0 %v4995
  %v5222 = vpop.f32.mrb[0].mxu0
  %v5223 = vadd.f32 0.0, %v5222
  %v5224 = vpop.f32.mrb[0].mxu0
  %v5225 = vadd.f32 0.0, %v5224
  %v5226 = vpop.f32.mrb[0].mxu0
  %v5227 = vpop.f32.mrb[0].mxu0
  %5228 = vdwg.mxu0
  %5229 = vmatprep.subr.bf16.mxu0 %v5127
  %5230 = vmatpush1.bf16.msra.mxu0 %v5126
  %5231 = vmatprep.subr.bf16.mxu0 %v5131
  %5232 = vmatpush1.bf16.msra.mxu0 %v5130
  %5233 = vmatprep.subr.bf16.mxu0 %v5135
  %5234 = vmatpush1.bf16.msra.mxu0 %v5134
  %5235 = vmatprep.subr.bf16.mxu0 %v5139
  %5236 = vmatpush1.bf16.msra.mxu0 %v5138
  %5237 = vmatprep.subr.bf16.mxu0 %v5143
  %5238 = vmatpush1.bf16.msra.mxu0 %v5142
  %5239 = vmatprep.subr.bf16.mxu0 %v5147
  %5240 = vmatpush1.bf16.msra.mxu0 %v5146
  %5241 = vmatprep.subr.bf16.mxu0 %v5151
  %5242 = vmatpush1.bf16.msra.mxu0 %v5150
  %5243 = vmatprep.subr.bf16.mxu0 %v5155
  %5244 = vmatpush1.bf16.msra.mxu0 %v5154
  %5245 = vmatprep.subr.bf16.mxu0 0
  %5246 = vmatpush1.bf16.msra.mxu0 0
  %5247 = vmatprep.subr.bf16.mxu0 0
  %5248 = vmatpush1.bf16.msra.mxu0 0
  %5249 = vmatprep.subr.bf16.mxu0 0
  %5250 = vmatpush1.bf16.msra.mxu0 0
  %5251 = vmatprep.subr.bf16.mxu0 0
  %5252 = vmatpush1.bf16.msra.mxu0 0
  %5253 = vmatprep.subr.bf16.mxu0 0
  %5254 = vmatpush1.bf16.msra.mxu0 0
  %5255 = vmatprep.subr.bf16.mxu0 0
  %5256 = vmatpush1.bf16.msra.mxu0 0
  %5257 = vmatprep.subr.bf16.mxu0 0
  %5258 = vmatpush1.bf16.msra.mxu0 0
  %5259 = vmatprep.subr.bf16.mxu0 0
  %5260 = vmatpush1.bf16.msra.mxu0 0
  %5261 = vmatprep.mubr.bf16.mxu0 0
  %5262 = vmatmul.mubr.bf16.gmra.mrb[0].mxu0 %v4995
  %v5263 = vpop.f32.mrb[0].mxu0
  %v5264 = vadd.f32 0.0, %v5263
  %v5265 = vpop.f32.mrb[0].mxu0
  %v5266 = vadd.f32 0.0, %v5265
  %v5267 = vpop.f32.mrb[0].mxu0
  %v5268 = vpop.f32.mrb[0].mxu0
  %5269 = vdwg.mxu0
  %v5270 = vadd.f32 %v4991, %v5223
  %v5271 = vadd.f32 %v4992, %v5225
  %v5272 = vadd.f32 %v4993, %v5264
  %v5273 = vadd.f32 %v4994, %v5266
  %v5274 = vld [vmem:[#allocation2 + $0xa0] sm:$0xff]
  %v5275 = vld [vmem:[#allocation2 + $0xa8] sm:$0xff]
  %v5276 = vld [vmem:[#allocation2 + $0xb0] sm:$0xff]
  %v5277 = vld [vmem:[#allocation2 + $0xb8] sm:$0xff]
  %v5278 = vpack.c.bf16 %v4988, %v4988
  %v5279 = vld [vmem:[%s4] sm:$0xff]
  %v5280 = vld [vmem:[%s4 + $0x8] sm:$0xff]
  %v5281 = vld [vmem:[%s4 + $0x10] sm:$0xff]
  %v5282 = vld [vmem:[%s4 + $0x18] sm:$0xff]
  %v5283 = vld [vmem:[%s4 + $0x20] sm:$0xff]
  %v5284 = vld [vmem:[%s4 + $0x28] sm:$0xff]
  %v5285 = vld [vmem:[%s4 + $0x30] sm:$0xff]
  %v5286 = vld [vmem:[%s4 + $0x38] sm:$0xff]
  %v5287 = vld [vmem:[%s4 + $0x40] sm:$0xff]
  %v5288 = vld [vmem:[%s4 + $0x48] sm:$0xff]
  %v5289 = vld [vmem:[%s4 + $0x50] sm:$0xff]
  %v5290 = vld [vmem:[%s4 + $0x58] sm:$0xff]
  %v5291 = vld [vmem:[%s4 + $0x60] sm:$0xff]
  %v5292 = vld [vmem:[%s4 + $0x68] sm:$0xff]
  %v5293 = vld [vmem:[%s4 + $0x70] sm:$0xff]
  %v5294 = vld [vmem:[%s4 + $0x78] sm:$0xff]
  %v5295 = vld [vmem:[%s4 + $0x80] sm:$0xff]
  %v5296 = vld [vmem:[%s4 + $0x88] sm:$0xff]
  %v5297 = vld [vmem:[%s4 + $0x90] sm:$0xff]
  %v5298 = vld [vmem:[%s4 + $0x98] sm:$0xff]
  %v5299 = vld [vmem:[%s4 + $0xa0] sm:$0xff]
  %v5300 = vld [vmem:[%s4 + $0xa8] sm:$0xff]
  %v5301 = vld [vmem:[%s4 + $0xb0] sm:$0xff]
  %v5302 = vld [vmem:[%s4 + $0xb8] sm:$0xff]
  %v5303 = vld [vmem:[%s4 + $0xc0] sm:$0xff]
  %v5304 = vld [vmem:[%s4 + $0xc8] sm:$0xff]
  %v5305 = vld [vmem:[%s4 + $0xd0] sm:$0xff]
  %v5306 = vld [vmem:[%s4 + $0xd8] sm:$0xff]
  %v5307 = vld [vmem:[%s4 + $0xe0] sm:$0xff]
  %v5308 = vld [vmem:[%s4 + $0xe8] sm:$0xff]
  %v5309 = vld [vmem:[%s4 + $0xf0] sm:$0xff]
  %v5310 = vld [vmem:[%s4 + $0xf8] sm:$0xff]
  %v5343 = vunpack.c.l.b16 %v5279
  %v5344 = vunpack.c.h.b16 %v5279
  %v5345 = vunpack.c.l.b16 %v5280
  %v5346 = vunpack.c.h.b16 %v5280
  %v5347 = vunpack.c.l.b16 %v5281
  %v5348 = vunpack.c.h.b16 %v5281
  %v5349 = vunpack.c.l.b16 %v5282
  %v5350 = vunpack.c.h.b16 %v5282
  %v5351 = vunpack.c.l.b16 %v5283
  %v5352 = vunpack.c.h.b16 %v5283
  %v5353 = vunpack.c.l.b16 %v5284
  %v5354 = vunpack.c.h.b16 %v5284
  %v5355 = vunpack.c.l.b16 %v5285
  %v5356 = vunpack.c.h.b16 %v5285
  %v5357 = vunpack.c.l.b16 %v5286
  %v5358 = vunpack.c.h.b16 %v5286
  %v5359 = vunpack.c.l.b16 %v5287
  %v5360 = vunpack.c.h.b16 %v5287
  %v5361 = vunpack.c.l.b16 %v5288
  %v5362 = vunpack.c.h.b16 %v5288
  %v5363 = vunpack.c.l.b16 %v5289
  %v5364 = vunpack.c.h.b16 %v5289
  %v5365 = vunpack.c.l.b16 %v5290
  %v5366 = vunpack.c.h.b16 %v5290
  %v5367 = vunpack.c.l.b16 %v5291
  %v5368 = vunpack.c.h.b16 %v5291
  %v5369 = vunpack.c.l.b16 %v5292
  %v5370 = vunpack.c.h.b16 %v5292
  %v5371 = vunpack.c.l.b16 %v5293
  %v5372 = vunpack.c.h.b16 %v5293
  %v5373 = vunpack.c.l.b16 %v5294
  %v5374 = vunpack.c.h.b16 %v5294
  %v5375 = vunpack.c.l.b16 %v5295
  %v5376 = vunpack.c.h.b16 %v5295
  %v5377 = vunpack.c.l.b16 %v5296
  %v5378 = vunpack.c.h.b16 %v5296
  %v5379 = vunpack.c.l.b16 %v5297
  %v5380 = vunpack.c.h.b16 %v5297
  %v5381 = vunpack.c.l.b16 %v5298
  %v5382 = vunpack.c.h.b16 %v5298
  %v5383 = vunpack.c.l.b16 %v5299
  %v5384 = vunpack.c.h.b16 %v5299
  %v5385 = vunpack.c.l.b16 %v5300
  %v5386 = vunpack.c.h.b16 %v5300
  %v5387 = vunpack.c.l.b16 %v5301
  %v5388 = vunpack.c.h.b16 %v5301
  %v5389 = vunpack.c.l.b16 %v5302
  %v5390 = vunpack.c.h.b16 %v5302
  %v5391 = vunpack.c.l.b16 %v5303
  %v5392 = vunpack.c.h.b16 %v5303
  %v5393 = vunpack.c.l.b16 %v5304
  %v5394 = vunpack.c.h.b16 %v5304
  %v5395 = vunpack.c.l.b16 %v5305
  %v5396 = vunpack.c.h.b16 %v5305
  %v5397 = vunpack.c.l.b16 %v5306
  %v5398 = vunpack.c.h.b16 %v5306
  %v5399 = vunpack.c.l.b16 %v5307
  %v5400 = vunpack.c.h.b16 %v5307
  %v5401 = vunpack.c.l.b16 %v5308
  %v5402 = vunpack.c.h.b16 %v5308
  %v5403 = vunpack.c.l.b16 %v5309
  %v5404 = vunpack.c.h.b16 %v5309
  %v5405 = vunpack.c.l.b16 %v5310
  %v5406 = vunpack.c.h.b16 %v5310
  %v5407 = vpack.c.b16 %v5347, %v5343
  %v5408 = vpack.c.b16 %v5348, %v5344
  %v5409 = vpack.c.b16 %v5349, %v5345
  %v5410 = vpack.c.b16 %v5350, %v5346
  %v5411 = vpack.c.b16 %v5355, %v5351
  %v5412 = vpack.c.b16 %v5356, %v5352
  %v5413 = vpack.c.b16 %v5357, %v5353
  %v5414 = vpack.c.b16 %v5358, %v5354
  %v5415 = vpack.c.b16 %v5363, %v5359
  %v5416 = vpack.c.b16 %v5364, %v5360
  %v5417 = vpack.c.b16 %v5365, %v5361
  %v5418 = vpack.c.b16 %v5366, %v5362
  %v5419 = vpack.c.b16 %v5371, %v5367
  %v5420 = vpack.c.b16 %v5372, %v5368
  %v5421 = vpack.c.b16 %v5373, %v5369
  %v5422 = vpack.c.b16 %v5374, %v5370
  %v5423 = vpack.c.b16 %v5379, %v5375
  %v5424 = vpack.c.b16 %v5380, %v5376
  %v5425 = vpack.c.b16 %v5381, %v5377
  %v5426 = vpack.c.b16 %v5382, %v5378
  %v5427 = vpack.c.b16 %v5387, %v5383
  %v5428 = vpack.c.b16 %v5388, %v5384
  %v5429 = vpack.c.b16 %v5389, %v5385
  %v5430 = vpack.c.b16 %v5390, %v5386
  %v5431 = vpack.c.b16 %v5395, %v5391
  %v5432 = vpack.c.b16 %v5396, %v5392
  %v5433 = vpack.c.b16 %v5397, %v5393
  %v5434 = vpack.c.b16 %v5398, %v5394
  %v5435 = vpack.c.b16 %v5403, %v5399
  %v5436 = vpack.c.b16 %v5404, %v5400
  %v5437 = vpack.c.b16 %v5405, %v5401
  %v5438 = vpack.c.b16 %v5406, %v5402
  %5471 = vmatprep.subr.bf16.mxu0 %v5408
  %5472 = vmatpush1.bf16.msra.mxu0 %v5407
  %5473 = vmatprep.subr.bf16.mxu0 %v5412
  %5474 = vmatpush1.bf16.msra.mxu0 %v5411
  %5475 = vmatprep.subr.bf16.mxu0 %v5416
  %5476 = vmatpush1.bf16.msra.mxu0 %v5415
  %5477 = vmatprep.subr.bf16.mxu0 %v5420
  %5478 = vmatpush1.bf16.msra.mxu0 %v5419
  %5479 = vmatprep.subr.bf16.mxu0 %v5424
  %5480 = vmatpush1.bf16.msra.mxu0 %v5423
  %5481 = vmatprep.subr.bf16.mxu0 %v5428
  %5482 = vmatpush1.bf16.msra.mxu0 %v5427
  %5483 = vmatprep.subr.bf16.mxu0 %v5432
  %5484 = vmatpush1.bf16.msra.mxu0 %v5431
  %5485 = vmatprep.subr.bf16.mxu0 %v5436
  %5486 = vmatpush1.bf16.msra.mxu0 %v5435
  %5487 = vmatprep.subr.bf16.mxu0 0
  %5488 = vmatpush1.bf16.msra.mxu0 0
  %5489 = vmatprep.subr.bf16.mxu0 0
  %5490 = vmatpush1.bf16.msra.mxu0 0
  %5491 = vmatprep.subr.bf16.mxu0 0
  %5492 = vmatpush1.bf16.msra.mxu0 0
  %5493 = vmatprep.subr.bf16.mxu0 0
  %5494 = vmatpush1.bf16.msra.mxu0 0
  %5495 = vmatprep.subr.bf16.mxu0 0
  %5496 = vmatpush1.bf16.msra.mxu0 0
  %5497 = vmatprep.subr.bf16.mxu0 0
  %5498 = vmatpush1.bf16.msra.mxu0 0
  %5499 = vmatprep.subr.bf16.mxu0 0
  %5500 = vmatpush1.bf16.msra.mxu0 0
  %5501 = vmatprep.subr.bf16.mxu0 0
  %5502 = vmatpush1.bf16.msra.mxu0 0
  %5503 = vmatprep.mubr.bf16.mxu0 0
  %5504 = vmatmul.mubr.bf16.gmra.mrb[0].mxu0 %v5278
  %v5505 = vpop.f32.mrb[0].mxu0
  %v5506 = vadd.f32 0.0, %v5505
  %v5507 = vpop.f32.mrb[0].mxu0
  %v5508 = vadd.f32 0.0, %v5507
  %v5509 = vpop.f32.mrb[0].mxu0
  %v5510 = vpop.f32.mrb[0].mxu0
  %5511 = vdwg.mxu0
  %5512 = vmatprep.subr.bf16.mxu0 %v5410
  %5513 = vmatpush1.bf16.msra.mxu0 %v5409
  %5514 = vmatprep.subr.bf16.mxu0 %v5414
  %5515 = vmatpush1.bf16.msra.mxu0 %v5413
  %5516 = vmatprep.subr.bf16.mxu0 %v5418
  %5517 = vmatpush1.bf16.msra.mxu0 %v5417
  %5518 = vmatprep.subr.bf16.mxu0 %v5422
  %5519 = vmatpush1.bf16.msra.mxu0 %v5421
  %5520 = vmatprep.subr.bf16.mxu0 %v5426
  %5521 = vmatpush1.bf16.msra.mxu0 %v5425
  %5522 = vmatprep.subr.bf16.mxu0 %v5430
  %5523 = vmatpush1.bf16.msra.mxu0 %v5429
  %5524 = vmatprep.subr.bf16.mxu0 %v5434
  %5525 = vmatpush1.bf16.msra.mxu0 %v5433
  %5526 = vmatprep.subr.bf16.mxu0 %v5438
  %5527 = vmatpush1.bf16.msra.mxu0 %v5437
  %5528 = vmatprep.subr.bf16.mxu0 0
  %5529 = vmatpush1.bf16.msra.mxu0 0
  %5530 = vmatprep.subr.bf16.mxu0 0
  %5531 = vmatpush1.bf16.msra.mxu0 0
  %5532 = vmatprep.subr.bf16.mxu0 0
  %5533 = vmatpush1.bf16.msra.mxu0 0
  %5534 = vmatprep.subr.bf16.mxu0 0
  %5535 = vmatpush1.bf16.msra.mxu0 0
  %5536 = vmatprep.subr.bf16.mxu0 0
  %5537 = vmatpush1.bf16.msra.mxu0 0
  %5538 = vmatprep.subr.bf16.mxu0 0
  %5539 = vmatpush1.bf16.msra.mxu0 0
  %5540 = vmatprep.subr.bf16.mxu0 0
  %5541 = vmatpush1.bf16.msra.mxu0 0
  %5542 = vmatprep.subr.bf16.mxu0 0
  %5543 = vmatpush1.bf16.msra.mxu0 0
  %5544 = vmatprep.mubr.bf16.mxu0 0
  %5545 = vmatmul.mubr.bf16.gmra.mrb[0].mxu0 %v5278
  %v5546 = vpop.f32.mrb[0].mxu0
  %v5547 = vadd.f32 0.0, %v5546
  %v5548 = vpop.f32.mrb[0].mxu0
  %v5549 = vadd.f32 0.0, %v5548
  %v5550 = vpop.f32.mrb[0].mxu0
  %v5551 = vpop.f32.mrb[0].mxu0
  %5552 = vdwg.mxu0
  %v5553 = vadd.f32 %v5274, %v5506
  %v5554 = vadd.f32 %v5275, %v5508
  %v5555 = vadd.f32 %v5276, %v5547
  %v5556 = vadd.f32 %v5277, %v5549
  %v5557 = vxor.u32 %v5270, 2147483648
  %v5558 = vmul.f32 %v5557, 1.442695
  %v5559 = vpow.pop %v5558
  %v5560 = vadd.f32 %v5559, 1.0
  %v5561 = vrcp.pop %v5560
  %v5562 = vmul.f32 1.0, %v5561
  %v5563 = vxor.u32 %v5271, 2147483648
  %v5564 = vmul.f32 %v5563, 1.442695
  %v5565 = vpow.pop %v5564
  %v5566 = vadd.f32 %v5565, 1.0
  %v5567 = vrcp.pop %v5566
  %v5568 = vmul.f32 1.0, %v5567
  %v5569 = vtanh.pop %v5272
  %v5570 = vxor.u32 %v5273, 2147483648
  %v5571 = vmul.f32 %v5570, 1.442695
  %v5572 = vpow.pop %v5571
  %v5573 = vadd.f32 %v5572, 1.0
  %v5574 = vrcp.pop %v5573
  %v5575 = vmul.f32 1.0, %v5574
  %v5576 = vmul.f32 %v5568, %v4962
  %v5577 = vmul.f32 %v5562, %v5569
  %v5578 = vadd.f32 %v5576, %v5577
  %v5579 = vtanh.pop %v5578
  %v5580 = vmul.f32 %v5575, %v5579
  %v5581 = vxor.u32 %v5553, 2147483648
  %v5582 = vmul.f32 %v5581, 1.442695
  %v5583 = vpow.pop %v5582
  %v5584 = vadd.f32 %v5583, 1.0
  %v5585 = vrcp.pop %v5584
  %v5586 = vmul.f32 1.0, %v5585
  %v5587 = vxor.u32 %v5554, 2147483648
  %v5588 = vmul.f32 %v5587, 1.442695
  %v5589 = vpow.pop %v5588
  %v5590 = vadd.f32 %v5589, 1.0
  %v5591 = vrcp.pop %v5590
  %v5592 = vmul.f32 1.0, %v5591
  %v5593 = vtanh.pop %v5555
  %v5594 = vxor.u32 %v5556, 2147483648
  %v5595 = vmul.f32 %v5594, 1.442695
  %v5596 = vpow.pop %v5595
  %v5597 = vadd.f32 %v5596, 1.0
  %v5598 = vrcp.pop %v5597
  %v5599 = vmul.f32 1.0, %v5598
  %v5600 = vmul.f32 %v5592, %v4986
  %v5601 = vmul.f32 %v5586, %v5593
  %v5602 = vadd.f32 %v5600, %v5601
  %v5603 = vtanh.pop %v5602
  %v5604 = vmul.f32 %v5599, %v5603
  %5605 = vst [vmem:[#allocation3 + $0x50] sm:$0xff] %v5580
  %5606 = vst [vmem:[#allocation3 + $0x28] sm:$0xff] %v5604
  %v5607 = vld [vmem:[#allocation2 + $0x180] sm:$0xff]
  %v5608 = vld [vmem:[#allocation2 + $0x188] sm:$0xff]
  %v5609 = vld [vmem:[#allocation2 + $0x190] sm:$0xff]
  %v5610 = vld [vmem:[#allocation2 + $0x198] sm:$0xff]
  %v5611 = vpack.c.bf16 %v5580, %v5580
  %v5612 = vld [vmem:[%s3] sm:$0xff]
  %v5613 = vld [vmem:[%s3 + $0x8] sm:$0xff]
  %v5614 = vld [vmem:[%s3 + $0x10] sm:$0xff]
  %v5615 = vld [vmem:[%s3 + $0x18] sm:$0xff]
  %v5616 = vld [vmem:[%s3 + $0x20] sm:$0xff]
  %v5617 = vld [vmem:[%s3 + $0x28] sm:$0xff]
  %v5618 = vld [vmem:[%s3 + $0x30] sm:$0xff]
  %v5619 = vld [vmem:[%s3 + $0x38] sm:$0xff]
  %v5620 = vld [vmem:[%s3 + $0x40] sm:$0xff]
  %v5621 = vld [vmem:[%s3 + $0x48] sm:$0xff]
  %v5622 = vld [vmem:[%s3 + $0x50] sm:$0xff]
  %v5623 = vld [vmem:[%s3 + $0x58] sm:$0xff]
  %v5624 = vld [vmem:[%s3 + $0x60] sm:$0xff]
  %v5625 = vld [vmem:[%s3 + $0x68] sm:$0xff]
  %v5626 = vld [vmem:[%s3 + $0x70] sm:$0xff]
  %v5627 = vld [vmem:[%s3 + $0x78] sm:$0xff]
  %v5628 = vld [vmem:[%s3 + $0x80] sm:$0xff]
  %v5629 = vld [vmem:[%s3 + $0x88] sm:$0xff]
  %v5630 = vld [vmem:[%s3 + $0x90] sm:$0xff]
  %v5631 = vld [vmem:[%s3 + $0x98] sm:$0xff]
  %v5632 = vld [vmem:[%s3 + $0xa0] sm:$0xff]
  %v5633 = vld [vmem:[%s3 + $0xa8] sm:$0xff]
  %v5634 = vld [vmem:[%s3 + $0xb0] sm:$0xff]
  %v5635 = vld [vmem:[%s3 + $0xb8] sm:$0xff]
  %v5636 = vld [vmem:[%s3 + $0xc0] sm:$0xff]
  %v5637 = vld [vmem:[%s3 + $0xc8] sm:$0xff]
  %v5638 = vld [vmem:[%s3 + $0xd0] sm:$0xff]
  %v5639 = vld [vmem:[%s3 + $0xd8] sm:$0xff]
  %v5640 = vld [vmem:[%s3 + $0xe0] sm:$0xff]
  %v5641 = vld [vmem:[%s3 + $0xe8] sm:$0xff]
  %v5642 = vld [vmem:[%s3 + $0xf0] sm:$0xff]
  %v5643 = vld [vmem:[%s3 + $0xf8] sm:$0xff]
  %v5676 = vunpack.c.l.b16 %v5612
  %v5677 = vunpack.c.h.b16 %v5612
  %v5678 = vunpack.c.l.b16 %v5613
  %v5679 = vunpack.c.h.b16 %v5613
  %v5680 = vunpack.c.l.b16 %v5614
  %v5681 = vunpack.c.h.b16 %v5614
  %v5682 = vunpack.c.l.b16 %v5615
  %v5683 = vunpack.c.h.b16 %v5615
  %v5684 = vunpack.c.l.b16 %v5616
  %v5685 = vunpack.c.h.b16 %v5616
  %v5686 = vunpack.c.l.b16 %v5617
  %v5687 = vunpack.c.h.b16 %v5617
  %v5688 = vunpack.c.l.b16 %v5618
  %v5689 = vunpack.c.h.b16 %v5618
  %v5690 = vunpack.c.l.b16 %v5619
  %v5691 = vunpack.c.h.b16 %v5619
  %v5692 = vunpack.c.l.b16 %v5620
  %v5693 = vunpack.c.h.b16 %v5620
  %v5694 = vunpack.c.l.b16 %v5621
  %v5695 = vunpack.c.h.b16 %v5621
  %v5696 = vunpack.c.l.b16 %v5622
  %v5697 = vunpack.c.h.b16 %v5622
  %v5698 = vunpack.c.l.b16 %v5623
  %v5699 = vunpack.c.h.b16 %v5623
  %v5700 = vunpack.c.l.b16 %v5624
  %v5701 = vunpack.c.h.b16 %v5624
  %v5702 = vunpack.c.l.b16 %v5625
  %v5703 = vunpack.c.h.b16 %v5625
  %v5704 = vunpack.c.l.b16 %v5626
  %v5705 = vunpack.c.h.b16 %v5626
  %v5706 = vunpack.c.l.b16 %v5627
  %v5707 = vunpack.c.h.b16 %v5627
  %v5708 = vunpack.c.l.b16 %v5628
  %v5709 = vunpack.c.h.b16 %v5628
  %v5710 = vunpack.c.l.b16 %v5629
  %v5711 = vunpack.c.h.b16 %v5629
  %v5712 = vunpack.c.l.b16 %v5630
  %v5713 = vunpack.c.h.b16 %v5630
  %v5714 = vunpack.c.l.b16 %v5631
  %v5715 = vunpack.c.h.b16 %v5631
  %v5716 = vunpack.c.l.b16 %v5632
  %v5717 = vunpack.c.h.b16 %v5632
  %v5718 = vunpack.c.l.b16 %v5633
  %v5719 = vunpack.c.h.b16 %v5633
  %v5720 = vunpack.c.l.b16 %v5634
  %v5721 = vunpack.c.h.b16 %v5634
  %v5722 = vunpack.c.l.b16 %v5635
  %v5723 = vunpack.c.h.b16 %v5635
  %v5724 = vunpack.c.l.b16 %v5636
  %v5725 = vunpack.c.h.b16 %v5636
  %v5726 = vunpack.c.l.b16 %v5637
  %v5727 = vunpack.c.h.b16 %v5637
  %v5728 = vunpack.c.l.b16 %v5638
  %v5729 = vunpack.c.h.b16 %v5638
  %v5730 = vunpack.c.l.b16 %v5639
  %v5731 = vunpack.c.h.b16 %v5639
  %v5732 = vunpack.c.l.b16 %v5640
  %v5733 = vunpack.c.h.b16 %v5640
  %v5734 = vunpack.c.l.b16 %v5641
  %v5735 = vunpack.c.h.b16 %v5641
  %v5736 = vunpack.c.l.b16 %v5642
  %v5737 = vunpack.c.h.b16 %v5642
  %v5738 = vunpack.c.l.b16 %v5643
  %v5739 = vunpack.c.h.b16 %v5643
  %v5740 = vpack.c.b16 %v5680, %v5676
  %v5741 = vpack.c.b16 %v5681, %v5677
  %v5742 = vpack.c.b16 %v5682, %v5678
  %v5743 = vpack.c.b16 %v5683, %v5679
  %v5744 = vpack.c.b16 %v5688, %v5684
  %v5745 = vpack.c.b16 %v5689, %v5685
  %v5746 = vpack.c.b16 %v5690, %v5686
  %v5747 = vpack.c.b16 %v5691, %v5687
  %v5748 = vpack.c.b16 %v5696, %v5692
  %v5749 = vpack.c.b16 %v5697, %v5693
  %v5750 = vpack.c.b16 %v5698, %v5694
  %v5751 = vpack.c.b16 %v5699, %v5695
  %v5752 = vpack.c.b16 %v5704, %v5700
  %v5753 = vpack.c.b16 %v5705, %v5701
  %v5754 = vpack.c.b16 %v5706, %v5702
  %v5755 = vpack.c.b16 %v5707, %v5703
  %v5756 = vpack.c.b16 %v5712, %v5708
  %v5757 = vpack.c.b16 %v5713, %v5709
  %v5758 = vpack.c.b16 %v5714, %v5710
  %v5759 = vpack.c.b16 %v5715, %v5711
  %v5760 = vpack.c.b16 %v5720, %v5716
  %v5761 = vpack.c.b16 %v5721, %v5717
  %v5762 = vpack.c.b16 %v5722, %v5718
  %v5763 = vpack.c.b16 %v5723, %v5719
  %v5764 = vpack.c.b16 %v5728, %v5724
  %v5765 = vpack.c.b16 %v5729, %v5725
  %v5766 = vpack.c.b16 %v5730, %v5726
  %v5767 = vpack.c.b16 %v5731, %v5727
  %v5768 = vpack.c.b16 %v5736, %v5732
  %v5769 = vpack.c.b16 %v5737, %v5733
  %v5770 = vpack.c.b16 %v5738, %v5734
  %v5771 = vpack.c.b16 %v5739, %v5735
  %5804 = vmatprep.subr.bf16.mxu0 %v5741
  %5805 = vmatpush1.bf16.msra.mxu0 %v5740
  %5806 = vmatprep.subr.bf16.mxu0 %v5745
  %5807 = vmatpush1.bf16.msra.mxu0 %v5744
  %5808 = vmatprep.subr.bf16.mxu0 %v5749
  %5809 = vmatpush1.bf16.msra.mxu0 %v5748
  %5810 = vmatprep.subr.bf16.mxu0 %v5753
  %5811 = vmatpush1.bf16.msra.mxu0 %v5752
  %5812 = vmatprep.subr.bf16.mxu0 %v5757
  %5813 = vmatpush1.bf16.msra.mxu0 %v5756
  %5814 = vmatprep.subr.bf16.mxu0 %v5761
  %5815 = vmatpush1.bf16.msra.mxu0 %v5760
  %5816 = vmatprep.subr.bf16.mxu0 %v5765
  %5817 = vmatpush1.bf16.msra.mxu0 %v5764
  %5818 = vmatprep.subr.bf16.mxu0 %v5769
  %5819 = vmatpush1.bf16.msra.mxu0 %v5768
  %5820 = vmatprep.subr.bf16.mxu0 0
  %5821 = vmatpush1.bf16.msra.mxu0 0
  %5822 = vmatprep.subr.bf16.mxu0 0
  %5823 = vmatpush1.bf16.msra.mxu0 0
  %5824 = vmatprep.subr.bf16.mxu0 0
  %5825 = vmatpush1.bf16.msra.mxu0 0
  %5826 = vmatprep.subr.bf16.mxu0 0
  %5827 = vmatpush1.bf16.msra.mxu0 0
  %5828 = vmatprep.subr.bf16.mxu0 0
  %5829 = vmatpush1.bf16.msra.mxu0 0
  %5830 = vmatprep.subr.bf16.mxu0 0
  %5831 = vmatpush1.bf16.msra.mxu0 0
  %5832 = vmatprep.subr.bf16.mxu0 0
  %5833 = vmatpush1.bf16.msra.mxu0 0
  %5834 = vmatprep.subr.bf16.mxu0 0
  %5835 = vmatpush1.bf16.msra.mxu0 0
  %5836 = vmatprep.mubr.bf16.mxu0 0
  %5837 = vmatmul.mubr.bf16.gmra.mrb[0].mxu0 %v5611
  %v5838 = vpop.f32.mrb[0].mxu0
  %v5839 = vadd.f32 0.0, %v5838
  %v5840 = vpop.f32.mrb[0].mxu0
  %v5841 = vadd.f32 0.0, %v5840
  %v5842 = vpop.f32.mrb[0].mxu0
  %v5843 = vpop.f32.mrb[0].mxu0
  %5844 = vdwg.mxu0
  %5845 = vmatprep.subr.bf16.mxu0 %v5743
  %5846 = vmatpush1.bf16.msra.mxu0 %v5742
  %5847 = vmatprep.subr.bf16.mxu0 %v5747
  %5848 = vmatpush1.bf16.msra.mxu0 %v5746
  %5849 = vmatprep.subr.bf16.mxu0 %v5751
  %5850 = vmatpush1.bf16.msra.mxu0 %v5750
  %5851 = vmatprep.subr.bf16.mxu0 %v5755
  %5852 = vmatpush1.bf16.msra.mxu0 %v5754
  %5853 = vmatprep.subr.bf16.mxu0 %v5759
  %5854 = vmatpush1.bf16.msra.mxu0 %v5758
  %5855 = vmatprep.subr.bf16.mxu0 %v5763
  %5856 = vmatpush1.bf16.msra.mxu0 %v5762
  %5857 = vmatprep.subr.bf16.mxu0 %v5767
  %5858 = vmatpush1.bf16.msra.mxu0 %v5766
  %5859 = vmatprep.subr.bf16.mxu0 %v5771
  %5860 = vmatpush1.bf16.msra.mxu0 %v5770
  %5861 = vmatprep.subr.bf16.mxu0 0
  %5862 = vmatpush1.bf16.msra.mxu0 0
  %5863 = vmatprep.subr.bf16.mxu0 0
  %5864 = vmatpush1.bf16.msra.mxu0 0
  %5865 = vmatprep.subr.bf16.mxu0 0
  %5866 = vmatpush1.bf16.msra.mxu0 0
  %5867 = vmatprep.subr.bf16.mxu0 0
  %5868 = vmatpush1.bf16.msra.mxu0 0
  %5869 = vmatprep.subr.bf16.mxu0 0
  %5870 = vmatpush1.bf16.msra.mxu0 0
  %5871 = vmatprep.subr.bf16.mxu0 0
  %5872 = vmatpush1.bf16.msra.mxu0 0
  %5873 = vmatprep.subr.bf16.mxu0 0
  %5874 = vmatpush1.bf16.msra.mxu0 0
  %5875 = vmatprep.subr.bf16.mxu0 0
  %5876 = vmatpush1.bf16.msra.mxu0 0
  %5877 = vmatprep.mubr.bf16.mxu0 0
  %5878 = vmatmul.mubr.bf16.gmra.mrb[0].mxu0 %v5611
  %v5879 = vpop.f32.mrb[0].mxu0
  %v5880 = vadd.f32 0.0, %v5879
  %v5881 = vpop.f32.mrb[0].mxu0
  %v5882 = vadd.f32 0.0, %v5881
  %v5883 = vpop.f32.mrb[0].mxu0
  %v5884 = vpop.f32.mrb[0].mxu0
  %5885 = vdwg.mxu0
  %v5886 = vadd.f32 %v5607, %v5839
  %v5887 = vadd.f32 %v5608, %v5841
  %v5888 = vadd.f32 %v5609, %v5880
  %v5889 = vadd.f32 %v5610, %v5882
  %v5890 = vld [vmem:[#allocation2 + $0x60] sm:$0xff]
  %v5891 = vld [vmem:[#allocation2 + $0x68] sm:$0xff]
  %v5892 = vld [vmem:[#allocation2 + $0x70] sm:$0xff]
  %v5893 = vld [vmem:[#allocation2 + $0x78] sm:$0xff]
  %v5894 = vpack.c.bf16 %v5604, %v5604
  %v5895 = vld [vmem:[%s4] sm:$0xff]
  %v5896 = vld [vmem:[%s4 + $0x8] sm:$0xff]
  %v5897 = vld [vmem:[%s4 + $0x10] sm:$0xff]
  %v5898 = vld [vmem:[%s4 + $0x18] sm:$0xff]
  %v5899 = vld [vmem:[%s4 + $0x20] sm:$0xff]
  %v5900 = vld [vmem:[%s4 + $0x28] sm:$0xff]
  %v5901 = vld [vmem:[%s4 + $0x30] sm:$0xff]
  %v5902 = vld [vmem:[%s4 + $0x38] sm:$0xff]
  %v5903 = vld [vmem:[%s4 + $0x40] sm:$0xff]
  %v5904 = vld [vmem:[%s4 + $0x48] sm:$0xff]
  %v5905 = vld [vmem:[%s4 + $0x50] sm:$0xff]
  %v5906 = vld [vmem:[%s4 + $0x58] sm:$0xff]
  %v5907 = vld [vmem:[%s4 + $0x60] sm:$0xff]
  %v5908 = vld [vmem:[%s4 + $0x68] sm:$0xff]
  %v5909 = vld [vmem:[%s4 + $0x70] sm:$0xff]
  %v5910 = vld [vmem:[%s4 + $0x78] sm:$0xff]
  %v5911 = vld [vmem:[%s4 + $0x80] sm:$0xff]
  %v5912 = vld [vmem:[%s4 + $0x88] sm:$0xff]
  %v5913 = vld [vmem:[%s4 + $0x90] sm:$0xff]
  %v5914 = vld [vmem:[%s4 + $0x98] sm:$0xff]
  %v5915 = vld [vmem:[%s4 + $0xa0] sm:$0xff]
  %v5916 = vld [vmem:[%s4 + $0xa8] sm:$0xff]
  %v5917 = vld [vmem:[%s4 + $0xb0] sm:$0xff]
  %v5918 = vld [vmem:[%s4 + $0xb8] sm:$0xff]
  %v5919 = vld [vmem:[%s4 + $0xc0] sm:$0xff]
  %v5920 = vld [vmem:[%s4 + $0xc8] sm:$0xff]
  %v5921 = vld [vmem:[%s4 + $0xd0] sm:$0xff]
  %v5922 = vld [vmem:[%s4 + $0xd8] sm:$0xff]
  %v5923 = vld [vmem:[%s4 + $0xe0] sm:$0xff]
  %v5924 = vld [vmem:[%s4 + $0xe8] sm:$0xff]
  %v5925 = vld [vmem:[%s4 + $0xf0] sm:$0xff]
  %v5926 = vld [vmem:[%s4 + $0xf8] sm:$0xff]
  %v5959 = vunpack.c.l.b16 %v5895
  %v5960 = vunpack.c.h.b16 %v5895
  %v5961 = vunpack.c.l.b16 %v5896
  %v5962 = vunpack.c.h.b16 %v5896
  %v5963 = vunpack.c.l.b16 %v5897
  %v5964 = vunpack.c.h.b16 %v5897
  %v5965 = vunpack.c.l.b16 %v5898
  %v5966 = vunpack.c.h.b16 %v5898
  %v5967 = vunpack.c.l.b16 %v5899
  %v5968 = vunpack.c.h.b16 %v5899
  %v5969 = vunpack.c.l.b16 %v5900
  %v5970 = vunpack.c.h.b16 %v5900
  %v5971 = vunpack.c.l.b16 %v5901
  %v5972 = vunpack.c.h.b16 %v5901
  %v5973 = vunpack.c.l.b16 %v5902
  %v5974 = vunpack.c.h.b16 %v5902
  %v5975 = vunpack.c.l.b16 %v5903
  %v5976 = vunpack.c.h.b16 %v5903
  %v5977 = vunpack.c.l.b16 %v5904
  %v5978 = vunpack.c.h.b16 %v5904
  %v5979 = vunpack.c.l.b16 %v5905
  %v5980 = vunpack.c.h.b16 %v5905
  %v5981 = vunpack.c.l.b16 %v5906
  %v5982 = vunpack.c.h.b16 %v5906
  %v5983 = vunpack.c.l.b16 %v5907
  %v5984 = vunpack.c.h.b16 %v5907
  %v5985 = vunpack.c.l.b16 %v5908
  %v5986 = vunpack.c.h.b16 %v5908
  %v5987 = vunpack.c.l.b16 %v5909
  %v5988 = vunpack.c.h.b16 %v5909
  %v5989 = vunpack.c.l.b16 %v5910
  %v5990 = vunpack.c.h.b16 %v5910
  %v5991 = vunpack.c.l.b16 %v5911
  %v5992 = vunpack.c.h.b16 %v5911
  %v5993 = vunpack.c.l.b16 %v5912
  %v5994 = vunpack.c.h.b16 %v5912
  %v5995 = vunpack.c.l.b16 %v5913
  %v5996 = vunpack.c.h.b16 %v5913
  %v5997 = vunpack.c.l.b16 %v5914
  %v5998 = vunpack.c.h.b16 %v5914
  %v5999 = vunpack.c.l.b16 %v5915
  %v6000 = vunpack.c.h.b16 %v5915
  %v6001 = vunpack.c.l.b16 %v5916
  %v6002 = vunpack.c.h.b16 %v5916
  %v6003 = vunpack.c.l.b16 %v5917
  %v6004 = vunpack.c.h.b16 %v5917
  %v6005 = vunpack.c.l.b16 %v5918
  %v6006 = vunpack.c.h.b16 %v5918
  %v6007 = vunpack.c.l.b16 %v5919
  %v6008 = vunpack.c.h.b16 %v5919
  %v6009 = vunpack.c.l.b16 %v5920
  %v6010 = vunpack.c.h.b16 %v5920
  %v6011 = vunpack.c.l.b16 %v5921
  %v6012 = vunpack.c.h.b16 %v5921
  %v6013 = vunpack.c.l.b16 %v5922
  %v6014 = vunpack.c.h.b16 %v5922
  %v6015 = vunpack.c.l.b16 %v5923
  %v6016 = vunpack.c.h.b16 %v5923
  %v6017 = vunpack.c.l.b16 %v5924
  %v6018 = vunpack.c.h.b16 %v5924
  %v6019 = vunpack.c.l.b16 %v5925
  %v6020 = vunpack.c.h.b16 %v5925
  %v6021 = vunpack.c.l.b16 %v5926
  %v6022 = vunpack.c.h.b16 %v5926
  %v6023 = vpack.c.b16 %v5963, %v5959
  %v6024 = vpack.c.b16 %v5964, %v5960
  %v6025 = vpack.c.b16 %v5965, %v5961
  %v6026 = vpack.c.b16 %v5966, %v5962
  %v6027 = vpack.c.b16 %v5971, %v5967
  %v6028 = vpack.c.b16 %v5972, %v5968
  %v6029 = vpack.c.b16 %v5973, %v5969
  %v6030 = vpack.c.b16 %v5974, %v5970
  %v6031 = vpack.c.b16 %v5979, %v5975
  %v6032 = vpack.c.b16 %v5980, %v5976
  %v6033 = vpack.c.b16 %v5981, %v5977
  %v6034 = vpack.c.b16 %v5982, %v5978
  %v6035 = vpack.c.b16 %v5987, %v5983
  %v6036 = vpack.c.b16 %v5988, %v5984
  %v6037 = vpack.c.b16 %v5989, %v5985
  %v6038 = vpack.c.b16 %v5990, %v5986
  %v6039 = vpack.c.b16 %v5995, %v5991
  %v6040 = vpack.c.b16 %v5996, %v5992
  %v6041 = vpack.c.b16 %v5997, %v5993
  %v6042 = vpack.c.b16 %v5998, %v5994
  %v6043 = vpack.c.b16 %v6003, %v5999
  %v6044 = vpack.c.b16 %v6004, %v6000
  %v6045 = vpack.c.b16 %v6005, %v6001
  %v6046 = vpack.c.b16 %v6006, %v6002
  %v6047 = vpack.c.b16 %v6011, %v6007
  %v6048 = vpack.c.b16 %v6012, %v6008
  %v6049 = vpack.c.b16 %v6013, %v6009
  %v6050 = vpack.c.b16 %v6014, %v6010
  %v6051 = vpack.c.b16 %v6019, %v6015
  %v6052 = vpack.c.b16 %v6020, %v6016
  %v6053 = vpack.c.b16 %v6021, %v6017
  %v6054 = vpack.c.b16 %v6022, %v6018
  %6087 = vmatprep.subr.bf16.mxu0 %v6024
  %6088 = vmatpush1.bf16.msra.mxu0 %v6023
  %6089 = vmatprep.subr.bf16.mxu0 %v6028
  %6090 = vmatpush1.bf16.msra.mxu0 %v6027
  %6091 = vmatprep.subr.bf16.mxu0 %v6032
  %6092 = vmatpush1.bf16.msra.mxu0 %v6031
  %6093 = vmatprep.subr.bf16.mxu0 %v6036
  %6094 = vmatpush1.bf16.msra.mxu0 %v6035
  %6095 = vmatprep.subr.bf16.mxu0 %v6040
  %6096 = vmatpush1.bf16.msra.mxu0 %v6039
  %6097 = vmatprep.subr.bf16.mxu0 %v6044
  %6098 = vmatpush1.bf16.msra.mxu0 %v6043
  %6099 = vmatprep.subr.bf16.mxu0 %v6048
  %6100 = vmatpush1.bf16.msra.mxu0 %v6047
  %6101 = vmatprep.subr.bf16.mxu0 %v6052
  %6102 = vmatpush1.bf16.msra.mxu0 %v6051
  %6103 = vmatprep.subr.bf16.mxu0 0
  %6104 = vmatpush1.bf16.msra.mxu0 0
  %6105 = vmatprep.subr.bf16.mxu0 0
  %6106 = vmatpush1.bf16.msra.mxu0 0
  %6107 = vmatprep.subr.bf16.mxu0 0
  %6108 = vmatpush1.bf16.msra.mxu0 0
  %6109 = vmatprep.subr.bf16.mxu0 0
  %6110 = vmatpush1.bf16.msra.mxu0 0
  %6111 = vmatprep.subr.bf16.mxu0 0
  %6112 = vmatpush1.bf16.msra.mxu0 0
  %6113 = vmatprep.subr.bf16.mxu0 0
  %6114 = vmatpush1.bf16.msra.mxu0 0
  %6115 = vmatprep.subr.bf16.mxu0 0
  %6116 = vmatpush1.bf16.msra.mxu0 0
  %6117 = vmatprep.subr.bf16.mxu0 0
  %6118 = vmatpush1.bf16.msra.mxu0 0
  %6119 = vmatprep.mubr.bf16.mxu0 0
  %6120 = vmatmul.mubr.bf16.gmra.mrb[0].mxu0 %v5894
  %v6121 = vpop.f32.mrb[0].mxu0
  %v6122 = vadd.f32 0.0, %v6121
  %v6123 = vpop.f32.mrb[0].mxu0
  %v6124 = vadd.f32 0.0, %v6123
  %v6125 = vpop.f32.mrb[0].mxu0
  %v6126 = vpop.f32.mrb[0].mxu0
  %6127 = vdwg.mxu0
  %6128 = vmatprep.subr.bf16.mxu0 %v6026
  %6129 = vmatpush1.bf16.msra.mxu0 %v6025
  %6130 = vmatprep.subr.bf16.mxu0 %v6030
  %6131 = vmatpush1.bf16.msra.mxu0 %v6029
  %6132 = vmatprep.subr.bf16.mxu0 %v6034
  %6133 = vmatpush1.bf16.msra.mxu0 %v6033
  %6134 = vmatprep.subr.bf16.mxu0 %v6038
  %6135 = vmatpush1.bf16.msra.mxu0 %v6037
  %6136 = vmatprep.subr.bf16.mxu0 %v6042
  %6137 = vmatpush1.bf16.msra.mxu0 %v6041
  %6138 = vmatprep.subr.bf16.mxu0 %v6046
  %6139 = vmatpush1.bf16.msra.mxu0 %v6045
  %6140 = vmatprep.subr.bf16.mxu0 %v6050
  %6141 = vmatpush1.bf16.msra.mxu0 %v6049
  %6142 = vmatprep.subr.bf16.mxu0 %v6054
  %6143 = vmatpush1.bf16.msra.mxu0 %v6053
  %6144 = vmatprep.subr.bf16.mxu0 0
  %6145 = vmatpush1.bf16.msra.mxu0 0
  %6146 = vmatprep.subr.bf16.mxu0 0
  %6147 = vmatpush1.bf16.msra.mxu0 0
  %6148 = vmatprep.subr.bf16.mxu0 0
  %6149 = vmatpush1.bf16.msra.mxu0 0
  %6150 = vmatprep.subr.bf16.mxu0 0
  %6151 = vmatpush1.bf16.msra.mxu0 0
  %6152 = vmatprep.subr.bf16.mxu0 0
  %6153 = vmatpush1.bf16.msra.mxu0 0
  %6154 = vmatprep.subr.bf16.mxu0 0
  %6155 = vmatpush1.bf16.msra.mxu0 0
  %6156 = vmatprep.subr.bf16.mxu0 0
  %6157 = vmatpush1.bf16.msra.mxu0 0
  %6158 = vmatprep.subr.bf16.mxu0 0
  %6159 = vmatpush1.bf16.msra.mxu0 0
  %6160 = vmatprep.mubr.bf16.mxu0 0
  %6161 = vmatmul.mubr.bf16.gmra.mrb[0].mxu0 %v5894
  %v6162 = vpop.f32.mrb[0].mxu0
  %v6163 = vadd.f32 0.0, %v6162
  %v6164 = vpop.f32.mrb[0].mxu0
  %v6165 = vadd.f32 0.0, %v6164
  %v6166 = vpop.f32.mrb[0].mxu0
  %v6167 = vpop.f32.mrb[0].mxu0
  %6168 = vdwg.mxu0
  %v6169 = vadd.f32 %v5890, %v6122
  %v6170 = vadd.f32 %v5891, %v6124
  %v6171 = vadd.f32 %v5892, %v6163
  %v6172 = vadd.f32 %v5893, %v6165
  %v6173 = vxor.u32 %v5886, 2147483648
  %v6174 = vmul.f32 %v6173, 1.442695
  %v6175 = vpow.pop %v6174
  %v6176 = vadd.f32 %v6175, 1.0
  %v6177 = vrcp.pop %v6176
  %v6178 = vmul.f32 1.0, %v6177
  %v6179 = vxor.u32 %v5887, 2147483648
  %v6180 = vmul.f32 %v6179, 1.442695
  %v6181 = vpow.pop %v6180
  %v6182 = vadd.f32 %v6181, 1.0
  %v6183 = vrcp.pop %v6182
  %v6184 = vmul.f32 1.0, %v6183
  %v6185 = vtanh.pop %v5888
  %v6186 = vxor.u32 %v5889, 2147483648
  %v6187 = vmul.f32 %v6186, 1.442695
  %v6188 = vpow.pop %v6187
  %v6189 = vadd.f32 %v6188, 1.0
  %v6190 = vrcp.pop %v6189
  %v6191 = vmul.f32 1.0, %v6190
  %v6192 = vmul.f32 %v6184, %v5578
  %v6193 = vmul.f32 %v6178, %v6185
  %v6194 = vadd.f32 %v6192, %v6193
  %v6195 = vtanh.pop %v6194
  %v6196 = vmul.f32 %v6191, %v6195
  %v6197 = vxor.u32 %v6169, 2147483648
  %v6198 = vmul.f32 %v6197, 1.442695
  %v6199 = vpow.pop %v6198
  %v6200 = vadd.f32 %v6199, 1.0
  %v6201 = vrcp.pop %v6200
  %v6202 = vmul.f32 1.0, %v6201
  %v6203 = vxor.u32 %v6170, 2147483648
  %v6204 = vmul.f32 %v6203, 1.442695
  %v6205 = vpow.pop %v6204
  %v6206 = vadd.f32 %v6205, 1.0
  %v6207 = vrcp.pop %v6206
  %v6208 = vmul.f32 1.0, %v6207
  %v6209 = vtanh.pop %v6171
  %v6210 = vxor.u32 %v6172, 2147483648
  %v6211 = vmul.f32 %v6210, 1.442695
  %v6212 = vpow.pop %v6211
  %v6213 = vadd.f32 %v6212, 1.0
  %v6214 = vrcp.pop %v6213
  %v6215 = vmul.f32 1.0, %v6214
  %v6216 = vmul.f32 %v6208, %v5602
  %v6217 = vmul.f32 %v6202, %v6209
  %v6218 = vadd.f32 %v6216, %v6217
  %v6219 = vtanh.pop %v6218
  %v6220 = vmul.f32 %v6215, %v6219
  %6221 = vst [vmem:[#allocation3 + $0x60] sm:$0xff] %v6196
  %6222 = vst [vmem:[#allocation3 + $0x18] sm:$0xff] %v6220
  %v6223 = vld [vmem:[#allocation2 + $0x1c0] sm:$0xff]
  %v6224 = vld [vmem:[#allocation2 + $0x1c8] sm:$0xff]
  %v6225 = vld [vmem:[#allocation2 + $0x1d0] sm:$0xff]
  %v6226 = vld [vmem:[#allocation2 + $0x1d8] sm:$0xff]
  %v6227 = vpack.c.bf16 %v6196, %v6196
  %v6228 = vld [vmem:[%s3] sm:$0xff]
  %v6229 = vld [vmem:[%s3 + $0x8] sm:$0xff]
  %v6230 = vld [vmem:[%s3 + $0x10] sm:$0xff]
  %v6231 = vld [vmem:[%s3 + $0x18] sm:$0xff]
  %v6232 = vld [vmem:[%s3 + $0x20] sm:$0xff]
  %v6233 = vld [vmem:[%s3 + $0x28] sm:$0xff]
  %v6234 = vld [vmem:[%s3 + $0x30] sm:$0xff]
  %v6235 = vld [vmem:[%s3 + $0x38] sm:$0xff]
  %v6236 = vld [vmem:[%s3 + $0x40] sm:$0xff]
  %v6237 = vld [vmem:[%s3 + $0x48] sm:$0xff]
  %v6238 = vld [vmem:[%s3 + $0x50] sm:$0xff]
  %v6239 = vld [vmem:[%s3 + $0x58] sm:$0xff]
  %v6240 = vld [vmem:[%s3 + $0x60] sm:$0xff]
  %v6241 = vld [vmem:[%s3 + $0x68] sm:$0xff]
  %v6242 = vld [vmem:[%s3 + $0x70] sm:$0xff]
  %v6243 = vld [vmem:[%s3 + $0x78] sm:$0xff]
  %v6244 = vld [vmem:[%s3 + $0x80] sm:$0xff]
  %v6245 = vld [vmem:[%s3 + $0x88] sm:$0xff]
  %v6246 = vld [vmem:[%s3 + $0x90] sm:$0xff]
  %v6247 = vld [vmem:[%s3 + $0x98] sm:$0xff]
  %v6248 = vld [vmem:[%s3 + $0xa0] sm:$0xff]
  %v6249 = vld [vmem:[%s3 + $0xa8] sm:$0xff]
  %v6250 = vld [vmem:[%s3 + $0xb0] sm:$0xff]
  %v6251 = vld [vmem:[%s3 + $0xb8] sm:$0xff]
  %v6252 = vld [vmem:[%s3 + $0xc0] sm:$0xff]
  %v6253 = vld [vmem:[%s3 + $0xc8] sm:$0xff]
  %v6254 = vld [vmem:[%s3 + $0xd0] sm:$0xff]
  %v6255 = vld [vmem:[%s3 + $0xd8] sm:$0xff]
  %v6256 = vld [vmem:[%s3 + $0xe0] sm:$0xff]
  %v6257 = vld [vmem:[%s3 + $0xe8] sm:$0xff]
  %v6258 = vld [vmem:[%s3 + $0xf0] sm:$0xff]
  %v6259 = vld [vmem:[%s3 + $0xf8] sm:$0xff]
  %v6292 = vunpack.c.l.b16 %v6228
  %v6293 = vunpack.c.h.b16 %v6228
  %v6294 = vunpack.c.l.b16 %v6229
  %v6295 = vunpack.c.h.b16 %v6229
  %v6296 = vunpack.c.l.b16 %v6230
  %v6297 = vunpack.c.h.b16 %v6230
  %v6298 = vunpack.c.l.b16 %v6231
  %v6299 = vunpack.c.h.b16 %v6231
  %v6300 = vunpack.c.l.b16 %v6232
  %v6301 = vunpack.c.h.b16 %v6232
  %v6302 = vunpack.c.l.b16 %v6233
  %v6303 = vunpack.c.h.b16 %v6233
  %v6304 = vunpack.c.l.b16 %v6234
  %v6305 = vunpack.c.h.b16 %v6234
  %v6306 = vunpack.c.l.b16 %v6235
  %v6307 = vunpack.c.h.b16 %v6235
  %v6308 = vunpack.c.l.b16 %v6236
  %v6309 = vunpack.c.h.b16 %v6236
  %v6310 = vunpack.c.l.b16 %v6237
  %v6311 = vunpack.c.h.b16 %v6237
  %v6312 = vunpack.c.l.b16 %v6238
  %v6313 = vunpack.c.h.b16 %v6238
  %v6314 = vunpack.c.l.b16 %v6239
  %v6315 = vunpack.c.h.b16 %v6239
  %v6316 = vunpack.c.l.b16 %v6240
  %v6317 = vunpack.c.h.b16 %v6240
  %v6318 = vunpack.c.l.b16 %v6241
  %v6319 = vunpack.c.h.b16 %v6241
  %v6320 = vunpack.c.l.b16 %v6242
  %v6321 = vunpack.c.h.b16 %v6242
  %v6322 = vunpack.c.l.b16 %v6243
  %v6323 = vunpack.c.h.b16 %v6243
  %v6324 = vunpack.c.l.b16 %v6244
  %v6325 = vunpack.c.h.b16 %v6244
  %v6326 = vunpack.c.l.b16 %v6245
  %v6327 = vunpack.c.h.b16 %v6245
  %v6328 = vunpack.c.l.b16 %v6246
  %v6329 = vunpack.c.h.b16 %v6246
  %v6330 = vunpack.c.l.b16 %v6247
  %v6331 = vunpack.c.h.b16 %v6247
  %v6332 = vunpack.c.l.b16 %v6248
  %v6333 = vunpack.c.h.b16 %v6248
  %v6334 = vunpack.c.l.b16 %v6249
  %v6335 = vunpack.c.h.b16 %v6249
  %v6336 = vunpack.c.l.b16 %v6250
  %v6337 = vunpack.c.h.b16 %v6250
  %v6338 = vunpack.c.l.b16 %v6251
  %v6339 = vunpack.c.h.b16 %v6251
  %v6340 = vunpack.c.l.b16 %v6252
  %v6341 = vunpack.c.h.b16 %v6252
  %v6342 = vunpack.c.l.b16 %v6253
  %v6343 = vunpack.c.h.b16 %v6253
  %v6344 = vunpack.c.l.b16 %v6254
  %v6345 = vunpack.c.h.b16 %v6254
  %v6346 = vunpack.c.l.b16 %v6255
  %v6347 = vunpack.c.h.b16 %v6255
  %v6348 = vunpack.c.l.b16 %v6256
  %v6349 = vunpack.c.h.b16 %v6256
  %v6350 = vunpack.c.l.b16 %v6257
  %v6351 = vunpack.c.h.b16 %v6257
  %v6352 = vunpack.c.l.b16 %v6258
  %v6353 = vunpack.c.h.b16 %v6258
  %v6354 = vunpack.c.l.b16 %v6259
  %v6355 = vunpack.c.h.b16 %v6259
  %v6356 = vpack.c.b16 %v6296, %v6292
  %v6357 = vpack.c.b16 %v6297, %v6293
  %v6358 = vpack.c.b16 %v6298, %v6294
  %v6359 = vpack.c.b16 %v6299, %v6295
  %v6360 = vpack.c.b16 %v6304, %v6300
  %v6361 = vpack.c.b16 %v6305, %v6301
  %v6362 = vpack.c.b16 %v6306, %v6302
  %v6363 = vpack.c.b16 %v6307, %v6303
  %v6364 = vpack.c.b16 %v6312, %v6308
  %v6365 = vpack.c.b16 %v6313, %v6309
  %v6366 = vpack.c.b16 %v6314, %v6310
  %v6367 = vpack.c.b16 %v6315, %v6311
  %v6368 = vpack.c.b16 %v6320, %v6316
  %v6369 = vpack.c.b16 %v6321, %v6317
  %v6370 = vpack.c.b16 %v6322, %v6318
  %v6371 = vpack.c.b16 %v6323, %v6319
  %v6372 = vpack.c.b16 %v6328, %v6324
  %v6373 = vpack.c.b16 %v6329, %v6325
  %v6374 = vpack.c.b16 %v6330, %v6326
  %v6375 = vpack.c.b16 %v6331, %v6327
  %v6376 = vpack.c.b16 %v6336, %v6332
  %v6377 = vpack.c.b16 %v6337, %v6333
  %v6378 = vpack.c.b16 %v6338, %v6334
  %v6379 = vpack.c.b16 %v6339, %v6335
  %v6380 = vpack.c.b16 %v6344, %v6340
  %v6381 = vpack.c.b16 %v6345, %v6341
  %v6382 = vpack.c.b16 %v6346, %v6342
  %v6383 = vpack.c.b16 %v6347, %v6343
  %v6384 = vpack.c.b16 %v6352, %v6348
  %v6385 = vpack.c.b16 %v6353, %v6349
  %v6386 = vpack.c.b16 %v6354, %v6350
  %v6387 = vpack.c.b16 %v6355, %v6351
  %6420 = vmatprep.subr.bf16.mxu0 %v6357
  %6421 = vmatpush1.bf16.msra.mxu0 %v6356
  %6422 = vmatprep.subr.bf16.mxu0 %v6361
  %6423 = vmatpush1.bf16.msra.mxu0 %v6360
  %6424 = vmatprep.subr.bf16.mxu0 %v6365
  %6425 = vmatpush1.bf16.msra.mxu0 %v6364
  %6426 = vmatprep.subr.bf16.mxu0 %v6369
  %6427 = vmatpush1.bf16.msra.mxu0 %v6368
  %6428 = vmatprep.subr.bf16.mxu0 %v6373
  %6429 = vmatpush1.bf16.msra.mxu0 %v6372
  %6430 = vmatprep.subr.bf16.mxu0 %v6377
  %6431 = vmatpush1.bf16.msra.mxu0 %v6376
  %6432 = vmatprep.subr.bf16.mxu0 %v6381
  %6433 = vmatpush1.bf16.msra.mxu0 %v6380
  %6434 = vmatprep.subr.bf16.mxu0 %v6385
  %6435 = vmatpush1.bf16.msra.mxu0 %v6384
  %6436 = vmatprep.subr.bf16.mxu0 0
  %6437 = vmatpush1.bf16.msra.mxu0 0
  %6438 = vmatprep.subr.bf16.mxu0 0
  %6439 = vmatpush1.bf16.msra.mxu0 0
  %6440 = vmatprep.subr.bf16.mxu0 0
  %6441 = vmatpush1.bf16.msra.mxu0 0
  %6442 = vmatprep.subr.bf16.mxu0 0
  %6443 = vmatpush1.bf16.msra.mxu0 0
  %6444 = vmatprep.subr.bf16.mxu0 0
  %6445 = vmatpush1.bf16.msra.mxu0 0
  %6446 = vmatprep.subr.bf16.mxu0 0
  %6447 = vmatpush1.bf16.msra.mxu0 0
  %6448 = vmatprep.subr.bf16.mxu0 0
  %6449 = vmatpush1.bf16.msra.mxu0 0
  %6450 = vmatprep.subr.bf16.mxu0 0
  %6451 = vmatpush1.bf16.msra.mxu0 0
  %6452 = vmatprep.mubr.bf16.mxu0 0
  %6453 = vmatmul.mubr.bf16.gmra.mrb[0].mxu0 %v6227
  %v6454 = vpop.f32.mrb[0].mxu0
  %v6455 = vadd.f32 0.0, %v6454
  %v6456 = vpop.f32.mrb[0].mxu0
  %v6457 = vadd.f32 0.0, %v6456
  %v6458 = vpop.f32.mrb[0].mxu0
  %v6459 = vpop.f32.mrb[0].mxu0
  %6460 = vdwg.mxu0
  %6461 = vmatprep.subr.bf16.mxu0 %v6359
  %6462 = vmatpush1.bf16.msra.mxu0 %v6358
  %6463 = vmatprep.subr.bf16.mxu0 %v6363
  %6464 = vmatpush1.bf16.msra.mxu0 %v6362
  %6465 = vmatprep.subr.bf16.mxu0 %v6367
  %6466 = vmatpush1.bf16.msra.mxu0 %v6366
  %6467 = vmatprep.subr.bf16.mxu0 %v6371
  %6468 = vmatpush1.bf16.msra.mxu0 %v6370
  %6469 = vmatprep.subr.bf16.mxu0 %v6375
  %6470 = vmatpush1.bf16.msra.mxu0 %v6374
  %6471 = vmatprep.subr.bf16.mxu0 %v6379
  %6472 = vmatpush1.bf16.msra.mxu0 %v6378
  %6473 = vmatprep.subr.bf16.mxu0 %v6383
  %6474 = vmatpush1.bf16.msra.mxu0 %v6382
  %6475 = vmatprep.subr.bf16.mxu0 %v6387
  %6476 = vmatpush1.bf16.msra.mxu0 %v6386
  %6477 = vmatprep.subr.bf16.mxu0 0
  %6478 = vmatpush1.bf16.msra.mxu0 0
  %6479 = vmatprep.subr.bf16.mxu0 0
  %6480 = vmatpush1.bf16.msra.mxu0 0
  %6481 = vmatprep.subr.bf16.mxu0 0
  %6482 = vmatpush1.bf16.msra.mxu0 0
  %6483 = vmatprep.subr.bf16.mxu0 0
  %6484 = vmatpush1.bf16.msra.mxu0 0
  %6485 = vmatprep.subr.bf16.mxu0 0
  %6486 = vmatpush1.bf16.msra.mxu0 0
  %6487 = vmatprep.subr.bf16.mxu0 0
  %6488 = vmatpush1.bf16.msra.mxu0 0
  %6489 = vmatprep.subr.bf16.mxu0 0
  %6490 = vmatpush1.bf16.msra.mxu0 0
  %6491 = vmatprep.subr.bf16.mxu0 0
  %6492 = vmatpush1.bf16.msra.mxu0 0
  %6493 = vmatprep.mubr.bf16.mxu0 0
  %6494 = vmatmul.mubr.bf16.gmra.mrb[0].mxu0 %v6227
  %v6495 = vpop.f32.mrb[0].mxu0
  %v6496 = vadd.f32 0.0, %v6495
  %v6497 = vpop.f32.mrb[0].mxu0
  %v6498 = vadd.f32 0.0, %v6497
  %v6499 = vpop.f32.mrb[0].mxu0
  %v6500 = vpop.f32.mrb[0].mxu0
  %6501 = vdwg.mxu0
  %v6502 = vadd.f32 %v6223, %v6455
  %v6503 = vadd.f32 %v6224, %v6457
  %v6504 = vadd.f32 %v6225, %v6496
  %v6505 = vadd.f32 %v6226, %v6498
  %v6506 = vld [vmem:[#allocation2 + $0x20] sm:$0xff]
  %v6507 = vld [vmem:[#allocation2 + $0x28] sm:$0xff]
  %v6508 = vld [vmem:[#allocation2 + $0x30] sm:$0xff]
  %v6509 = vld [vmem:[#allocation2 + $0x38] sm:$0xff]
  %v6510 = vpack.c.bf16 %v6220, %v6220
  %v6511 = vld [vmem:[%s4] sm:$0xff]
  %v6512 = vld [vmem:[%s4 + $0x8] sm:$0xff]
  %v6513 = vld [vmem:[%s4 + $0x10] sm:$0xff]
  %v6514 = vld [vmem:[%s4 + $0x18] sm:$0xff]
  %v6515 = vld [vmem:[%s4 + $0x20] sm:$0xff]
  %v6516 = vld [vmem:[%s4 + $0x28] sm:$0xff]
  %v6517 = vld [vmem:[%s4 + $0x30] sm:$0xff]
  %v6518 = vld [vmem:[%s4 + $0x38] sm:$0xff]
  %v6519 = vld [vmem:[%s4 + $0x40] sm:$0xff]
  %v6520 = vld [vmem:[%s4 + $0x48] sm:$0xff]
  %v6521 = vld [vmem:[%s4 + $0x50] sm:$0xff]
  %v6522 = vld [vmem:[%s4 + $0x58] sm:$0xff]
  %v6523 = vld [vmem:[%s4 + $0x60] sm:$0xff]
  %v6524 = vld [vmem:[%s4 + $0x68] sm:$0xff]
  %v6525 = vld [vmem:[%s4 + $0x70] sm:$0xff]
  %v6526 = vld [vmem:[%s4 + $0x78] sm:$0xff]
  %v6527 = vld [vmem:[%s4 + $0x80] sm:$0xff]
  %v6528 = vld [vmem:[%s4 + $0x88] sm:$0xff]
  %v6529 = vld [vmem:[%s4 + $0x90] sm:$0xff]
  %v6530 = vld [vmem:[%s4 + $0x98] sm:$0xff]
  %v6531 = vld [vmem:[%s4 + $0xa0] sm:$0xff]
  %v6532 = vld [vmem:[%s4 + $0xa8] sm:$0xff]
  %v6533 = vld [vmem:[%s4 + $0xb0] sm:$0xff]
  %v6534 = vld [vmem:[%s4 + $0xb8] sm:$0xff]
  %v6535 = vld [vmem:[%s4 + $0xc0] sm:$0xff]
  %v6536 = vld [vmem:[%s4 + $0xc8] sm:$0xff]
  %v6537 = vld [vmem:[%s4 + $0xd0] sm:$0xff]
  %v6538 = vld [vmem:[%s4 + $0xd8] sm:$0xff]
  %v6539 = vld [vmem:[%s4 + $0xe0] sm:$0xff]
  %v6540 = vld [vmem:[%s4 + $0xe8] sm:$0xff]
  %v6541 = vld [vmem:[%s4 + $0xf0] sm:$0xff]
  %v6542 = vld [vmem:[%s4 + $0xf8] sm:$0xff]
  %v6575 = vunpack.c.l.b16 %v6511
  %v6576 = vunpack.c.h.b16 %v6511
  %v6577 = vunpack.c.l.b16 %v6512
  %v6578 = vunpack.c.h.b16 %v6512
  %v6579 = vunpack.c.l.b16 %v6513
  %v6580 = vunpack.c.h.b16 %v6513
  %v6581 = vunpack.c.l.b16 %v6514
  %v6582 = vunpack.c.h.b16 %v6514
  %v6583 = vunpack.c.l.b16 %v6515
  %v6584 = vunpack.c.h.b16 %v6515
  %v6585 = vunpack.c.l.b16 %v6516
  %v6586 = vunpack.c.h.b16 %v6516
  %v6587 = vunpack.c.l.b16 %v6517
  %v6588 = vunpack.c.h.b16 %v6517
  %v6589 = vunpack.c.l.b16 %v6518
  %v6590 = vunpack.c.h.b16 %v6518
  %v6591 = vunpack.c.l.b16 %v6519
  %v6592 = vunpack.c.h.b16 %v6519
  %v6593 = vunpack.c.l.b16 %v6520
  %v6594 = vunpack.c.h.b16 %v6520
  %v6595 = vunpack.c.l.b16 %v6521
  %v6596 = vunpack.c.h.b16 %v6521
  %v6597 = vunpack.c.l.b16 %v6522
  %v6598 = vunpack.c.h.b16 %v6522
  %v6599 = vunpack.c.l.b16 %v6523
  %v6600 = vunpack.c.h.b16 %v6523
  %v6601 = vunpack.c.l.b16 %v6524
  %v6602 = vunpack.c.h.b16 %v6524
  %v6603 = vunpack.c.l.b16 %v6525
  %v6604 = vunpack.c.h.b16 %v6525
  %v6605 = vunpack.c.l.b16 %v6526
  %v6606 = vunpack.c.h.b16 %v6526
  %v6607 = vunpack.c.l.b16 %v6527
  %v6608 = vunpack.c.h.b16 %v6527
  %v6609 = vunpack.c.l.b16 %v6528
  %v6610 = vunpack.c.h.b16 %v6528
  %v6611 = vunpack.c.l.b16 %v6529
  %v6612 = vunpack.c.h.b16 %v6529
  %v6613 = vunpack.c.l.b16 %v6530
  %v6614 = vunpack.c.h.b16 %v6530
  %v6615 = vunpack.c.l.b16 %v6531
  %v6616 = vunpack.c.h.b16 %v6531
  %v6617 = vunpack.c.l.b16 %v6532
  %v6618 = vunpack.c.h.b16 %v6532
  %v6619 = vunpack.c.l.b16 %v6533
  %v6620 = vunpack.c.h.b16 %v6533
  %v6621 = vunpack.c.l.b16 %v6534
  %v6622 = vunpack.c.h.b16 %v6534
  %v6623 = vunpack.c.l.b16 %v6535
  %v6624 = vunpack.c.h.b16 %v6535
  %v6625 = vunpack.c.l.b16 %v6536
  %v6626 = vunpack.c.h.b16 %v6536
  %v6627 = vunpack.c.l.b16 %v6537
  %v6628 = vunpack.c.h.b16 %v6537
  %v6629 = vunpack.c.l.b16 %v6538
  %v6630 = vunpack.c.h.b16 %v6538
  %v6631 = vunpack.c.l.b16 %v6539
  %v6632 = vunpack.c.h.b16 %v6539
  %v6633 = vunpack.c.l.b16 %v6540
  %v6634 = vunpack.c.h.b16 %v6540
  %v6635 = vunpack.c.l.b16 %v6541
  %v6636 = vunpack.c.h.b16 %v6541
  %v6637 = vunpack.c.l.b16 %v6542
  %v6638 = vunpack.c.h.b16 %v6542
  %v6639 = vpack.c.b16 %v6579, %v6575
  %v6640 = vpack.c.b16 %v6580, %v6576
  %v6641 = vpack.c.b16 %v6581, %v6577
  %v6642 = vpack.c.b16 %v6582, %v6578
  %v6643 = vpack.c.b16 %v6587, %v6583
  %v6644 = vpack.c.b16 %v6588, %v6584
  %v6645 = vpack.c.b16 %v6589, %v6585
  %v6646 = vpack.c.b16 %v6590, %v6586
  %v6647 = vpack.c.b16 %v6595, %v6591
  %v6648 = vpack.c.b16 %v6596, %v6592
  %v6649 = vpack.c.b16 %v6597, %v6593
  %v6650 = vpack.c.b16 %v6598, %v6594
  %v6651 = vpack.c.b16 %v6603, %v6599
  %v6652 = vpack.c.b16 %v6604, %v6600
  %v6653 = vpack.c.b16 %v6605, %v6601
  %v6654 = vpack.c.b16 %v6606, %v6602
  %v6655 = vpack.c.b16 %v6611, %v6607
  %v6656 = vpack.c.b16 %v6612, %v6608
  %v6657 = vpack.c.b16 %v6613, %v6609
  %v6658 = vpack.c.b16 %v6614, %v6610
  %v6659 = vpack.c.b16 %v6619, %v6615
  %v6660 = vpack.c.b16 %v6620, %v6616
  %v6661 = vpack.c.b16 %v6621, %v6617
  %v6662 = vpack.c.b16 %v6622, %v6618
  %v6663 = vpack.c.b16 %v6627, %v6623
  %v6664 = vpack.c.b16 %v6628, %v6624
  %v6665 = vpack.c.b16 %v6629, %v6625
  %v6666 = vpack.c.b16 %v6630, %v6626
  %v6667 = vpack.c.b16 %v6635, %v6631
  %v6668 = vpack.c.b16 %v6636, %v6632
  %v6669 = vpack.c.b16 %v6637, %v6633
  %v6670 = vpack.c.b16 %v6638, %v6634
  %6703 = vmatprep.subr.bf16.mxu0 %v6640
  %6704 = vmatpush1.bf16.msra.mxu0 %v6639
  %6705 = vmatprep.subr.bf16.mxu0 %v6644
  %6706 = vmatpush1.bf16.msra.mxu0 %v6643
  %6707 = vmatprep.subr.bf16.mxu0 %v6648
  %6708 = vmatpush1.bf16.msra.mxu0 %v6647
  %6709 = vmatprep.subr.bf16.mxu0 %v6652
  %6710 = vmatpush1.bf16.msra.mxu0 %v6651
  %6711 = vmatprep.subr.bf16.mxu0 %v6656
  %6712 = vmatpush1.bf16.msra.mxu0 %v6655
  %6713 = vmatprep.subr.bf16.mxu0 %v6660
  %6714 = vmatpush1.bf16.msra.mxu0 %v6659
  %6715 = vmatprep.subr.bf16.mxu0 %v6664
  %6716 = vmatpush1.bf16.msra.mxu0 %v6663
  %6717 = vmatprep.subr.bf16.mxu0 %v6668
  %6718 = vmatpush1.bf16.msra.mxu0 %v6667
  %6719 = vmatprep.subr.bf16.mxu0 0
  %6720 = vmatpush1.bf16.msra.mxu0 0
  %6721 = vmatprep.subr.bf16.mxu0 0
  %6722 = vmatpush1.bf16.msra.mxu0 0
  %6723 = vmatprep.subr.bf16.mxu0 0
  %6724 = vmatpush1.bf16.msra.mxu0 0
  %6725 = vmatprep.subr.bf16.mxu0 0
  %6726 = vmatpush1.bf16.msra.mxu0 0
  %6727 = vmatprep.subr.bf16.mxu0 0
  %6728 = vmatpush1.bf16.msra.mxu0 0
  %6729 = vmatprep.subr.bf16.mxu0 0
  %6730 = vmatpush1.bf16.msra.mxu0 0
  %6731 = vmatprep.subr.bf16.mxu0 0
  %6732 = vmatpush1.bf16.msra.mxu0 0
  %6733 = vmatprep.subr.bf16.mxu0 0
  %6734 = vmatpush1.bf16.msra.mxu0 0
  %6735 = vmatprep.mubr.bf16.mxu0 0
  %6736 = vmatmul.mubr.bf16.gmra.mrb[0].mxu0 %v6510
  %v6737 = vpop.f32.mrb[0].mxu0
  %v6738 = vadd.f32 0.0, %v6737
  %v6739 = vpop.f32.mrb[0].mxu0
  %v6740 = vadd.f32 0.0, %v6739
  %v6741 = vpop.f32.mrb[0].mxu0
  %v6742 = vpop.f32.mrb[0].mxu0
  %6743 = vdwg.mxu0
  %6744 = vmatprep.subr.bf16.mxu0 %v6642
  %6745 = vmatpush1.bf16.msra.mxu0 %v6641
  %6746 = vmatprep.subr.bf16.mxu0 %v6646
  %6747 = vmatpush1.bf16.msra.mxu0 %v6645
  %6748 = vmatprep.subr.bf16.mxu0 %v6650
  %6749 = vmatpush1.bf16.msra.mxu0 %v6649
  %6750 = vmatprep.subr.bf16.mxu0 %v6654
  %6751 = vmatpush1.bf16.msra.mxu0 %v6653
  %6752 = vmatprep.subr.bf16.mxu0 %v6658
  %6753 = vmatpush1.bf16.msra.mxu0 %v6657
  %6754 = vmatprep.subr.bf16.mxu0 %v6662
  %6755 = vmatpush1.bf16.msra.mxu0 %v6661
  %6756 = vmatprep.subr.bf16.mxu0 %v6666
  %6757 = vmatpush1.bf16.msra.mxu0 %v6665
  %6758 = vmatprep.subr.bf16.mxu0 %v6670
  %6759 = vmatpush1.bf16.msra.mxu0 %v6669
  %6760 = vmatprep.subr.bf16.mxu0 0
  %6761 = vmatpush1.bf16.msra.mxu0 0
  %6762 = vmatprep.subr.bf16.mxu0 0
  %6763 = vmatpush1.bf16.msra.mxu0 0
  %6764 = vmatprep.subr.bf16.mxu0 0
  %6765 = vmatpush1.bf16.msra.mxu0 0
  %6766 = vmatprep.subr.bf16.mxu0 0
  %6767 = vmatpush1.bf16.msra.mxu0 0
  %6768 = vmatprep.subr.bf16.mxu0 0
  %6769 = vmatpush1.bf16.msra.mxu0 0
  %6770 = vmatprep.subr.bf16.mxu0 0
  %6771 = vmatpush1.bf16.msra.mxu0 0
  %6772 = vmatprep.subr.bf16.mxu0 0
  %6773 = vmatpush1.bf16.msra.mxu0 0
  %6774 = vmatprep.subr.bf16.mxu0 0
  %6775 = vmatpush1.bf16.msra.mxu0 0
  %6776 = vmatprep.mubr.bf16.mxu0 0
  %6777 = vmatmul.mubr.bf16.gmra.mrb[0].mxu0 %v6510
  %v6778 = vpop.f32.mrb[0].mxu0
  %v6779 = vadd.f32 0.0, %v6778
  %v6780 = vpop.f32.mrb[0].mxu0
  %v6781 = vadd.f32 0.0, %v6780
  %v6782 = vpop.f32.mrb[0].mxu0
  %v6783 = vpop.f32.mrb[0].mxu0
  %6784 = vdwg.mxu0
  %v6785 = vadd.f32 %v6506, %v6738
  %v6786 = vadd.f32 %v6507, %v6740
  %v6787 = vadd.f32 %v6508, %v6779
  %v6788 = vadd.f32 %v6509, %v6781
  %v6789 = vxor.u32 %v6502, 2147483648
  %v6790 = vmul.f32 %v6789, 1.442695
  %v6791 = vpow.pop %v6790
  %v6792 = vadd.f32 %v6791, 1.0
  %v6793 = vrcp.pop %v6792
  %v6794 = vmul.f32 1.0, %v6793
  %v6795 = vxor.u32 %v6503, 2147483648
  %v6796 = vmul.f32 %v6795, 1.442695
  %v6797 = vpow.pop %v6796
  %v6798 = vadd.f32 %v6797, 1.0
  %v6799 = vrcp.pop %v6798
  %v6800 = vmul.f32 1.0, %v6799
  %v6801 = vtanh.pop %v6504
  %v6802 = vxor.u32 %v6505, 2147483648
  %v6803 = vmul.f32 %v6802, 1.442695
  %v6804 = vpow.pop %v6803
  %v6805 = vadd.f32 %v6804, 1.0
  %v6806 = vrcp.pop %v6805
  %v6807 = vmul.f32 1.0, %v6806
  %v6808 = vmul.f32 %v6800, %v6194
  %v6809 = vmul.f32 %v6794, %v6801
  %v6810 = vadd.f32 %v6808, %v6809
  %v6811 = vtanh.pop %v6810
  %v6812 = vmul.f32 %v6807, %v6811
  %v6813 = vxor.u32 %v6785, 2147483648
  %v6814 = vmul.f32 %v6813, 1.442695
  %v6815 = vpow.pop %v6814
  %v6816 = vadd.f32 %v6815, 1.0
  %v6817 = vrcp.pop %v6816
  %v6818 = vmul.f32 1.0, %v6817
  %v6819 = vxor.u32 %v6786, 2147483648
  %v6820 = vmul.f32 %v6819, 1.442695
  %v6821 = vpow.pop %v6820
  %v6822 = vadd.f32 %v6821, 1.0
  %v6823 = vrcp.pop %v6822
  %v6824 = vmul.f32 1.0, %v6823
  %v6825 = vtanh.pop %v6787
  %v6826 = vxor.u32 %v6788, 2147483648
  %v6827 = vmul.f32 %v6826, 1.442695
  %v6828 = vpow.pop %v6827
  %v6829 = vadd.f32 %v6828, 1.0
  %v6830 = vrcp.pop %v6829
  %v6831 = vmul.f32 1.0, %v6830
  %v6832 = vmul.f32 %v6824, %v6218
  %v6833 = vmul.f32 %v6818, %v6825
  %v6834 = vadd.f32 %v6832, %v6833
  %v6835 = vtanh.pop %v6834
  %v6836 = vmul.f32 %v6831, %v6835
  %6837 = vst [vmem:[#allocation3 + $0x70] sm:$0xff] %v6812
  %6838 = vst [vmem:[#allocation3 + $0x8] sm:$0xff] %v6836
  %s6839 = smul.u32 4, 32
  %s6840 = smul.u32 %s6839, 8
  %s6841 = sshll.u32 %s6840, 4
  %6842 = dma.done [#allocation7], %s6841
  %s6843 = smul.u32 4, 16
  %s6844 = smul.u32 %s6843, 4
  %s6845 = sshll.u32 %s6844, 4
  %6846 = dma.done %s1104, %s6845
  %v6847 = vld [vmem:[#allocation3] sm:$0xff]
  %v6848 = vld [vmem:[#allocation3 + $0x8] sm:$0xff]
  %v6849 = vld [vmem:[#allocation3 + $0x10] sm:$0xff]
  %v6850 = vld [vmem:[#allocation3 + $0x18] sm:$0xff]
  %v6851 = vld [vmem:[#allocation3 + $0x20] sm:$0xff]
  %v6852 = vld [vmem:[#allocation3 + $0x28] sm:$0xff]
  %v6853 = vld [vmem:[#allocation3 + $0x30] sm:$0xff]
  %v6854 = vld [vmem:[#allocation3 + $0x38] sm:$0xff]
  %v6855 = vld [vmem:[#allocation3 + $0x40] sm:$0xff]
  %v6856 = vld [vmem:[#allocation3 + $0x48] sm:$0xff]
  %v6857 = vld [vmem:[#allocation3 + $0x50] sm:$0xff]
  %v6858 = vld [vmem:[#allocation3 + $0x58] sm:$0xff]
  %v6859 = vld [vmem:[#allocation3 + $0x60] sm:$0xff]
  %v6860 = vld [vmem:[#allocation3 + $0x68] sm:$0xff]
  %v6861 = vld [vmem:[#allocation3 + $0x70] sm:$0xff]
  %v6862 = vld [vmem:[#allocation3 + $0x78] sm:$0xff]
  %v6863 = vpack.c.bf16 %v6849, %v6847
  %v6864 = vpack.c.bf16 %v6850, %v6848
  %v6865 = vpack.c.bf16 %v6853, %v6851
  %v6866 = vpack.c.bf16 %v6854, %v6852
  %v6867 = vpack.c.bf16 %v6857, %v6855
  %v6868 = vpack.c.bf16 %v6858, %v6856
  %v6869 = vpack.c.bf16 %v6861, %v6859
  %v6870 = vpack.c.bf16 %v6862, %v6860
  %v6871 = vld [vmem:[#allocation5] sm:$0xff]
  %v6872 = vld [vmem:[#allocation5 + $0x8] sm:$0xff]
  %v6873 = vld [vmem:[#allocation5 + $0x10] sm:$0xff]
  %v6874 = vld [vmem:[#allocation5 + $0x18] sm:$0xff]
  %v6875 = vld [vmem:[#allocation5 + $0x20] sm:$0xff]
  %v6876 = vld [vmem:[#allocation5 + $0x28] sm:$0xff]
  %v6877 = vld [vmem:[#allocation5 + $0x30] sm:$0xff]
  %v6878 = vld [vmem:[#allocation5 + $0x38] sm:$0xff]
  %v6879 = vld [vmem:[#allocation5 + $0x40] sm:$0xff]
  %v6880 = vld [vmem:[#allocation5 + $0x48] sm:$0xff]
  %v6881 = vld [vmem:[#allocation5 + $0x50] sm:$0xff]
  %v6882 = vld [vmem:[#allocation5 + $0x58] sm:$0xff]
  %v6883 = vld [vmem:[#allocation5 + $0x60] sm:$0xff]
  %v6884 = vld [vmem:[#allocation5 + $0x68] sm:$0xff]
  %v6885 = vld [vmem:[#allocation5 + $0x70] sm:$0xff]
  %v6886 = vld [vmem:[#allocation5 + $0x78] sm:$0xff]
  %v6887 = vld [vmem:[#allocation5 + $0x80] sm:$0xff]
  %v6888 = vld [vmem:[#allocation5 + $0x88] sm:$0xff]
  %v6889 = vld [vmem:[#allocation5 + $0x90] sm:$0xff]
  %v6890 = vld [vmem:[#allocation5 + $0x98] sm:$0xff]
  %v6891 = vld [vmem:[#allocation5 + $0xa0] sm:$0xff]
  %v6892 = vld [vmem:[#allocation5 + $0xa8] sm:$0xff]
  %v6893 = vld [vmem:[#allocation5 + $0xb0] sm:$0xff]
  %v6894 = vld [vmem:[#allocation5 + $0xb8] sm:$0xff]
  %v6895 = vld [vmem:[#allocation5 + $0xc0] sm:$0xff]
  %v6896 = vld [vmem:[#allocation5 + $0xc8] sm:$0xff]
  %v6897 = vld [vmem:[#allocation5 + $0xd0] sm:$0xff]
  %v6898 = vld [vmem:[#allocation5 + $0xd8] sm:$0xff]
  %v6899 = vld [vmem:[#allocation5 + $0xe0] sm:$0xff]
  %v6900 = vld [vmem:[#allocation5 + $0xe8] sm:$0xff]
  %v6901 = vld [vmem:[#allocation5 + $0xf0] sm:$0xff]
  %v6902 = vld [vmem:[#allocation5 + $0xf8] sm:$0xff]
  %v6903 = vld [vmem:[#allocation5 + $0x100] sm:$0xff]
  %v6904 = vld [vmem:[#allocation5 + $0x108] sm:$0xff]
  %v6905 = vld [vmem:[#allocation5 + $0x110] sm:$0xff]
  %v6906 = vld [vmem:[#allocation5 + $0x118] sm:$0xff]
  %v6907 = vld [vmem:[#allocation5 + $0x120] sm:$0xff]
  %v6908 = vld [vmem:[#allocation5 + $0x128] sm:$0xff]
  %v6909 = vld [vmem:[#allocation5 + $0x130] sm:$0xff]
  %v6910 = vld [vmem:[#allocation5 + $0x138] sm:$0xff]
  %v6911 = vld [vmem:[#allocation5 + $0x140] sm:$0xff]
  %v6912 = vld [vmem:[#allocation5 + $0x148] sm:$0xff]
  %v6913 = vld [vmem:[#allocation5 + $0x150] sm:$0xff]
  %v6914 = vld [vmem:[#allocation5 + $0x158] sm:$0xff]
  %v6915 = vld [vmem:[#allocation5 + $0x160] sm:$0xff]
  %v6916 = vld [vmem:[#allocation5 + $0x168] sm:$0xff]
  %v6917 = vld [vmem:[#allocation5 + $0x170] sm:$0xff]
  %v6918 = vld [vmem:[#allocation5 + $0x178] sm:$0xff]
  %v6919 = vld [vmem:[#allocation5 + $0x180] sm:$0xff]
  %v6920 = vld [vmem:[#allocation5 + $0x188] sm:$0xff]
  %v6921 = vld [vmem:[#allocation5 + $0x190] sm:$0xff]
  %v6922 = vld [vmem:[#allocation5 + $0x198] sm:$0xff]
  %v6923 = vld [vmem:[#allocation5 + $0x1a0] sm:$0xff]
  %v6924 = vld [vmem:[#allocation5 + $0x1a8] sm:$0xff]
  %v6925 = vld [vmem:[#allocation5 + $0x1b0] sm:$0xff]
  %v6926 = vld [vmem:[#allocation5 + $0x1b8] sm:$0xff]
  %v6927 = vld [vmem:[#allocation5 + $0x1c0] sm:$0xff]
  %v6928 = vld [vmem:[#allocation5 + $0x1c8] sm:$0xff]
  %v6929 = vld [vmem:[#allocation5 + $0x1d0] sm:$0xff]
  %v6930 = vld [vmem:[#allocation5 + $0x1d8] sm:$0xff]
  %v6931 = vld [vmem:[#allocation5 + $0x1e0] sm:$0xff]
  %v6932 = vld [vmem:[#allocation5 + $0x1e8] sm:$0xff]
  %v6933 = vld [vmem:[#allocation5 + $0x1f0] sm:$0xff]
  %v6934 = vld [vmem:[#allocation5 + $0x1f8] sm:$0xff]
  %v6935 = vld [vmem:[#allocation5 + $0x200] sm:$0xff]
  %v6936 = vld [vmem:[#allocation5 + $0x208] sm:$0xff]
  %v6937 = vld [vmem:[#allocation5 + $0x210] sm:$0xff]
  %v6938 = vld [vmem:[#allocation5 + $0x218] sm:$0xff]
  %v6939 = vld [vmem:[#allocation5 + $0x220] sm:$0xff]
  %v6940 = vld [vmem:[#allocation5 + $0x228] sm:$0xff]
  %v6941 = vld [vmem:[#allocation5 + $0x230] sm:$0xff]
  %v6942 = vld [vmem:[#allocation5 + $0x238] sm:$0xff]
  %v6943 = vld [vmem:[#allocation5 + $0x240] sm:$0xff]
  %v6944 = vld [vmem:[#allocation5 + $0x248] sm:$0xff]
  %v6945 = vld [vmem:[#allocation5 + $0x250] sm:$0xff]
  %v6946 = vld [vmem:[#allocation5 + $0x258] sm:$0xff]
  %v6947 = vld [vmem:[#allocation5 + $0x260] sm:$0xff]
  %v6948 = vld [vmem:[#allocation5 + $0x268] sm:$0xff]
  %v6949 = vld [vmem:[#allocation5 + $0x270] sm:$0xff]
  %v6950 = vld [vmem:[#allocation5 + $0x278] sm:$0xff]
  %v6951 = vld [vmem:[#allocation5 + $0x280] sm:$0xff]
  %v6952 = vld [vmem:[#allocation5 + $0x288] sm:$0xff]
  %v6953 = vld [vmem:[#allocation5 + $0x290] sm:$0xff]
  %v6954 = vld [vmem:[#allocation5 + $0x298] sm:$0xff]
  %v6955 = vld [vmem:[#allocation5 + $0x2a0] sm:$0xff]
  %v6956 = vld [vmem:[#allocation5 + $0x2a8] sm:$0xff]
  %v6957 = vld [vmem:[#allocation5 + $0x2b0] sm:$0xff]
  %v6958 = vld [vmem:[#allocation5 + $0x2b8] sm:$0xff]
  %v6959 = vld [vmem:[#allocation5 + $0x2c0] sm:$0xff]
  %v6960 = vld [vmem:[#allocation5 + $0x2c8] sm:$0xff]
  %v6961 = vld [vmem:[#allocation5 + $0x2d0] sm:$0xff]
  %v6962 = vld [vmem:[#allocation5 + $0x2d8] sm:$0xff]
  %v6963 = vld [vmem:[#allocation5 + $0x2e0] sm:$0xff]
  %v6964 = vld [vmem:[#allocation5 + $0x2e8] sm:$0xff]
  %v6965 = vld [vmem:[#allocation5 + $0x2f0] sm:$0xff]
  %v6966 = vld [vmem:[#allocation5 + $0x2f8] sm:$0xff]
  %v6967 = vld [vmem:[#allocation5 + $0x300] sm:$0xff]
  %v6968 = vld [vmem:[#allocation5 + $0x308] sm:$0xff]
  %v6969 = vld [vmem:[#allocation5 + $0x310] sm:$0xff]
  %v6970 = vld [vmem:[#allocation5 + $0x318] sm:$0xff]
  %v6971 = vld [vmem:[#allocation5 + $0x320] sm:$0xff]
  %v6972 = vld [vmem:[#allocation5 + $0x328] sm:$0xff]
  %v6973 = vld [vmem:[#allocation5 + $0x330] sm:$0xff]
  %v6974 = vld [vmem:[#allocation5 + $0x338] sm:$0xff]
  %v6975 = vld [vmem:[#allocation5 + $0x340] sm:$0xff]
  %v6976 = vld [vmem:[#allocation5 + $0x348] sm:$0xff]
  %v6977 = vld [vmem:[#allocation5 + $0x350] sm:$0xff]
  %v6978 = vld [vmem:[#allocation5 + $0x358] sm:$0xff]
  %v6979 = vld [vmem:[#allocation5 + $0x360] sm:$0xff]
  %v6980 = vld [vmem:[#allocation5 + $0x368] sm:$0xff]
  %v6981 = vld [vmem:[#allocation5 + $0x370] sm:$0xff]
  %v6982 = vld [vmem:[#allocation5 + $0x378] sm:$0xff]
  %v6983 = vld [vmem:[#allocation5 + $0x380] sm:$0xff]
  %v6984 = vld [vmem:[#allocation5 + $0x388] sm:$0xff]
  %v6985 = vld [vmem:[#allocation5 + $0x390] sm:$0xff]
  %v6986 = vld [vmem:[#allocation5 + $0x398] sm:$0xff]
  %v6987 = vld [vmem:[#allocation5 + $0x3a0] sm:$0xff]
  %v6988 = vld [vmem:[#allocation5 + $0x3a8] sm:$0xff]
  %v6989 = vld [vmem:[#allocation5 + $0x3b0] sm:$0xff]
  %v6990 = vld [vmem:[#allocation5 + $0x3b8] sm:$0xff]
  %v6991 = vld [vmem:[#allocation5 + $0x3c0] sm:$0xff]
  %v6992 = vld [vmem:[#allocation5 + $0x3c8] sm:$0xff]
  %v6993 = vld [vmem:[#allocation5 + $0x3d0] sm:$0xff]
  %v6994 = vld [vmem:[#allocation5 + $0x3d8] sm:$0xff]
  %v6995 = vld [vmem:[#allocation5 + $0x3e0] sm:$0xff]
  %v6996 = vld [vmem:[#allocation5 + $0x3e8] sm:$0xff]
  %v6997 = vld [vmem:[#allocation5 + $0x3f0] sm:$0xff]
  %v6998 = vld [vmem:[#allocation5 + $0x3f8] sm:$0xff]
  %v6999 = vld [vmem:[%s7] sm:$0xff]
  %v7001 = vlaneseq
  %v7002 = vshrl.u32 %v7001, 7
  %v7003 = vsub.s32 0, %v7002
  %v7004 = vrot.slane %v6999, %v7003
  %v7005 = vlaneseq
  %v7006 = vshrl.u32 %v7005, 7
  %v7007 = vsub.s32 1, %v7006
  %v7008 = vrot.slane %v6999, %v7007
  %v7009 = vlaneseq
  %v7010 = vshrl.u32 %v7009, 7
  %v7011 = vsub.s32 2, %v7010
  %v7012 = vrot.slane %v6999, %v7011
  %v7013 = vlaneseq
  %v7014 = vshrl.u32 %v7013, 7
  %v7015 = vsub.s32 3, %v7014
  %v7016 = vrot.slane %v6999, %v7015
  %v7017 = vlaneseq
  %v7018 = vshrl.u32 %v7017, 7
  %v7019 = vsub.s32 4, %v7018
  %v7020 = vrot.slane %v6999, %v7019
  %v7021 = vlaneseq
  %v7022 = vshrl.u32 %v7021, 7
  %v7023 = vsub.s32 5, %v7022
  %v7024 = vrot.slane %v6999, %v7023
  %v7025 = vlaneseq
  %v7026 = vshrl.u32 %v7025, 7
  %v7027 = vsub.s32 6, %v7026
  %v7028 = vrot.slane %v6999, %v7027
  %v7029 = vlaneseq
  %v7030 = vshrl.u32 %v7029, 7
  %v7031 = vsub.s32 7, %v7030
  %v7032 = vrot.slane %v6999, %v7031
  %7041 = vmatprep.subr.bf16.mxu0 %v6872
  %7042 = vmatpush1.bf16.msra.mxu0 %v6871
  %7043 = vmatprep.subr.bf16.mxu0 %v6880
  %7044 = vmatpush1.bf16.msra.mxu0 %v6879
  %7045 = vmatprep.subr.bf16.mxu0 %v6888
  %7046 = vmatpush1.bf16.msra.mxu0 %v6887
  %7047 = vmatprep.subr.bf16.mxu0 %v6896
  %7048 = vmatpush1.bf16.msra.mxu0 %v6895
  %7049 = vmatprep.subr.bf16.mxu0 %v6904
  %7050 = vmatpush1.bf16.msra.mxu0 %v6903
  %7051 = vmatprep.subr.bf16.mxu0 %v6912
  %7052 = vmatpush1.bf16.msra.mxu0 %v6911
  %7053 = vmatprep.subr.bf16.mxu0 %v6920
  %7054 = vmatpush1.bf16.msra.mxu0 %v6919
  %7055 = vmatprep.subr.bf16.mxu0 %v6928
  %7056 = vmatpush1.bf16.msra.mxu0 %v6927
  %7057 = vmatprep.subr.bf16.mxu0 %v6936
  %7058 = vmatpush1.bf16.msra.mxu0 %v6935
  %7059 = vmatprep.subr.bf16.mxu0 %v6944
  %7060 = vmatpush1.bf16.msra.mxu0 %v6943
  %7061 = vmatprep.subr.bf16.mxu0 %v6952
  %7062 = vmatpush1.bf16.msra.mxu0 %v6951
  %7063 = vmatprep.subr.bf16.mxu0 %v6960
  %7064 = vmatpush1.bf16.msra.mxu0 %v6959
  %7065 = vmatprep.subr.bf16.mxu0 %v6968
  %7066 = vmatpush1.bf16.msra.mxu0 %v6967
  %7067 = vmatprep.subr.bf16.mxu0 %v6976
  %7068 = vmatpush1.bf16.msra.mxu0 %v6975
  %7069 = vmatprep.subr.bf16.mxu0 %v6984
  %7070 = vmatpush1.bf16.msra.mxu0 %v6983
  %7071 = vmatprep.subr.bf16.mxu0 %v6992
  %7072 = vmatpush1.bf16.msra.mxu0 %v6991
  %7073 = vmatprep.mubr.bf16.mxu0 %v6864
  %7074 = vmatmul.mubr.bf16.gmra.mrb[0].mxu0 %v6863
  %v7075 = vpop.f32.mrb[0].mxu0
  %v7076 = vadd.f32 %v7004, %v7075
  %v7077 = vpop.f32.mrb[0].mxu0
  %v7078 = vadd.f32 %v7008, %v7077
  %v7079 = vpop.f32.mrb[0].mxu0
  %v7080 = vadd.f32 %v7004, %v7079
  %v7081 = vpop.f32.mrb[0].mxu0
  %v7082 = vadd.f32 %v7008, %v7081
  %7083 = vmatprep.mubr.bf16.mxu0 %v6866
  %7084 = vmatmul.mubr.bf16.gmra.mrb[0].mxu0 %v6865
  %v7085 = vpop.f32.mrb[0].mxu0
  %v7086 = vadd.f32 %v7004, %v7085
  %v7087 = vpop.f32.mrb[0].mxu0
  %v7088 = vadd.f32 %v7008, %v7087
  %v7089 = vpop.f32.mrb[0].mxu0
  %v7090 = vadd.f32 %v7004, %v7089
  %v7091 = vpop.f32.mrb[0].mxu0
  %v7092 = vadd.f32 %v7008, %v7091
  %7093 = vmatprep.mubr.bf16.mxu0 %v6868
  %7094 = vmatmul.mubr.bf16.gmra.mrb[0].mxu0 %v6867
  %v7095 = vpop.f32.mrb[0].mxu0
  %v7096 = vadd.f32 %v7004, %v7095
  %v7097 = vpop.f32.mrb[0].mxu0
  %v7098 = vadd.f32 %v7008, %v7097
  %v7099 = vpop.f32.mrb[0].mxu0
  %v7100 = vadd.f32 %v7004, %v7099
  %v7101 = vpop.f32.mrb[0].mxu0
  %v7102 = vadd.f32 %v7008, %v7101
  %7103 = vmatprep.mubr.bf16.mxu0 %v6870
  %7104 = vmatmul.mubr.bf16.gmra.mrb[0].mxu0 %v6869
  %v7105 = vpop.f32.mrb[0].mxu0
  %v7106 = vadd.f32 %v7004, %v7105
  %v7107 = vpop.f32.mrb[0].mxu0
  %v7108 = vadd.f32 %v7008, %v7107
  %v7109 = vpop.f32.mrb[0].mxu0
  %v7110 = vadd.f32 %v7004, %v7109
  %v7111 = vpop.f32.mrb[0].mxu0
  %v7112 = vadd.f32 %v7008, %v7111
  %7113 = vdwg.mxu0
  %7114 = vmatprep.subr.bf16.mxu0 %v6874
  %7115 = vmatpush1.bf16.msra.mxu0 %v6873
  %7116 = vmatprep.subr.bf16.mxu0 %v6882
  %7117 = vmatpush1.bf16.msra.mxu0 %v6881
  %7118 = vmatprep.subr.bf16.mxu0 %v6890
  %7119 = vmatpush1.bf16.msra.mxu0 %v6889
  %7120 = vmatprep.subr.bf16.mxu0 %v6898
  %7121 = vmatpush1.bf16.msra.mxu0 %v6897
  %7122 = vmatprep.subr.bf16.mxu0 %v6906
  %7123 = vmatpush1.bf16.msra.mxu0 %v6905
  %7124 = vmatprep.subr.bf16.mxu0 %v6914
  %7125 = vmatpush1.bf16.msra.mxu0 %v6913
  %7126 = vmatprep.subr.bf16.mxu0 %v6922
  %7127 = vmatpush1.bf16.msra.mxu0 %v6921
  %7128 = vmatprep.subr.bf16.mxu0 %v6930
  %7129 = vmatpush1.bf16.msra.mxu0 %v6929
  %7130 = vmatprep.subr.bf16.mxu0 %v6938
  %7131 = vmatpush1.bf16.msra.mxu0 %v6937
  %7132 = vmatprep.subr.bf16.mxu0 %v6946
  %7133 = vmatpush1.bf16.msra.mxu0 %v6945
  %7134 = vmatprep.subr.bf16.mxu0 %v6954
  %7135 = vmatpush1.bf16.msra.mxu0 %v6953
  %7136 = vmatprep.subr.bf16.mxu0 %v6962
  %7137 = vmatpush1.bf16.msra.mxu0 %v6961
  %7138 = vmatprep.subr.bf16.mxu0 %v6970
  %7139 = vmatpush1.bf16.msra.mxu0 %v6969
  %7140 = vmatprep.subr.bf16.mxu0 %v6978
  %7141 = vmatpush1.bf16.msra.mxu0 %v6977
  %7142 = vmatprep.subr.bf16.mxu0 %v6986
  %7143 = vmatpush1.bf16.msra.mxu0 %v6985
  %7144 = vmatprep.subr.bf16.mxu0 %v6994
  %7145 = vmatpush1.bf16.msra.mxu0 %v6993
  %7146 = vmatprep.mubr.bf16.mxu0 %v6864
  %7147 = vmatmul.mubr.bf16.gmra.mrb[0].mxu0 %v6863
  %v7148 = vpop.f32.mrb[0].mxu0
  %v7149 = vadd.f32 %v7012, %v7148
  %v7150 = vpop.f32.mrb[0].mxu0
  %v7151 = vadd.f32 %v7016, %v7150
  %v7152 = vpop.f32.mrb[0].mxu0
  %v7153 = vadd.f32 %v7012, %v7152
  %v7154 = vpop.f32.mrb[0].mxu0
  %v7155 = vadd.f32 %v7016, %v7154
  %7156 = vmatprep.mubr.bf16.mxu0 %v6866
  %7157 = vmatmul.mubr.bf16.gmra.mrb[0].mxu0 %v6865
  %v7158 = vpop.f32.mrb[0].mxu0
  %v7159 = vadd.f32 %v7012, %v7158
  %v7160 = vpop.f32.mrb[0].mxu0
  %v7161 = vadd.f32 %v7016, %v7160
  %v7162 = vpop.f32.mrb[0].mxu0
  %v7163 = vadd.f32 %v7012, %v7162
  %v7164 = vpop.f32.mrb[0].mxu0
  %v7165 = vadd.f32 %v7016, %v7164
  %7166 = vmatprep.mubr.bf16.mxu0 %v6868
  %7167 = vmatmul.mubr.bf16.gmra.mrb[0].mxu0 %v6867
  %v7168 = vpop.f32.mrb[0].mxu0
  %v7169 = vadd.f32 %v7012, %v7168
  %v7170 = vpop.f32.mrb[0].mxu0
  %v7171 = vadd.f32 %v7016, %v7170
  %v7172 = vpop.f32.mrb[0].mxu0
  %v7173 = vadd.f32 %v7012, %v7172
  %v7174 = vpop.f32.mrb[0].mxu0
  %v7175 = vadd.f32 %v7016, %v7174
  %7176 = vmatprep.mubr.bf16.mxu0 %v6870
  %7177 = vmatmul.mubr.bf16.gmra.mrb[0].mxu0 %v6869
  %v7178 = vpop.f32.mrb[0].mxu0
  %v7179 = vadd.f32 %v7012, %v7178
  %v7180 = vpop.f32.mrb[0].mxu0
  %v7181 = vadd.f32 %v7016, %v7180
  %v7182 = vpop.f32.mrb[0].mxu0
  %v7183 = vadd.f32 %v7012, %v7182
  %v7184 = vpop.f32.mrb[0].mxu0
  %v7185 = vadd.f32 %v7016, %v7184
  %7186 = vdwg.mxu0
  %7187 = vmatprep.subr.bf16.mxu0 %v6876
  %7188 = vmatpush1.bf16.msra.mxu0 %v6875
  %7189 = vmatprep.subr.bf16.mxu0 %v6884
  %7190 = vmatpush1.bf16.msra.mxu0 %v6883
  %7191 = vmatprep.subr.bf16.mxu0 %v6892
  %7192 = vmatpush1.bf16.msra.mxu0 %v6891
  %7193 = vmatprep.subr.bf16.mxu0 %v6900
  %7194 = vmatpush1.bf16.msra.mxu0 %v6899
  %7195 = vmatprep.subr.bf16.mxu0 %v6908
  %7196 = vmatpush1.bf16.msra.mxu0 %v6907
  %7197 = vmatprep.subr.bf16.mxu0 %v6916
  %7198 = vmatpush1.bf16.msra.mxu0 %v6915
  %7199 = vmatprep.subr.bf16.mxu0 %v6924
  %7200 = vmatpush1.bf16.msra.mxu0 %v6923
  %7201 = vmatprep.subr.bf16.mxu0 %v6932
  %7202 = vmatpush1.bf16.msra.mxu0 %v6931
  %7203 = vmatprep.subr.bf16.mxu0 %v6940
  %7204 = vmatpush1.bf16.msra.mxu0 %v6939
  %7205 = vmatprep.subr.bf16.mxu0 %v6948
  %7206 = vmatpush1.bf16.msra.mxu0 %v6947
  %7207 = vmatprep.subr.bf16.mxu0 %v6956
  %7208 = vmatpush1.bf16.msra.mxu0 %v6955
  %7209 = vmatprep.subr.bf16.mxu0 %v6964
  %7210 = vmatpush1.bf16.msra.mxu0 %v6963
  %7211 = vmatprep.subr.bf16.mxu0 %v6972
  %7212 = vmatpush1.bf16.msra.mxu0 %v6971
  %7213 = vmatprep.subr.bf16.mxu0 %v6980
  %7214 = vmatpush1.bf16.msra.mxu0 %v6979
  %7215 = vmatprep.subr.bf16.mxu0 %v6988
  %7216 = vmatpush1.bf16.msra.mxu0 %v6987
  %7217 = vmatprep.subr.bf16.mxu0 %v6996
  %7218 = vmatpush1.bf16.msra.mxu0 %v6995
  %7219 = vmatprep.mubr.bf16.mxu0 %v6864
  %7220 = vmatmul.mubr.bf16.gmra.mrb[0].mxu0 %v6863
  %v7221 = vpop.f32.mrb[0].mxu0
  %v7222 = vadd.f32 %v7020, %v7221
  %v7223 = vpop.f32.mrb[0].mxu0
  %v7224 = vadd.f32 %v7024, %v7223
  %v7225 = vpop.f32.mrb[0].mxu0
  %v7226 = vadd.f32 %v7020, %v7225
  %v7227 = vpop.f32.mrb[0].mxu0
  %v7228 = vadd.f32 %v7024, %v7227
  %7229 = vmatprep.mubr.bf16.mxu0 %v6866
  %7230 = vmatmul.mubr.bf16.gmra.mrb[0].mxu0 %v6865
  %v7231 = vpop.f32.mrb[0].mxu0
  %v7232 = vadd.f32 %v7020, %v7231
  %v7233 = vpop.f32.mrb[0].mxu0
  %v7234 = vadd.f32 %v7024, %v7233
  %v7235 = vpop.f32.mrb[0].mxu0
  %v7236 = vadd.f32 %v7020, %v7235
  %v7237 = vpop.f32.mrb[0].mxu0
  %v7238 = vadd.f32 %v7024, %v7237
  %7239 = vmatprep.mubr.bf16.mxu0 %v6868
  %7240 = vmatmul.mubr.bf16.gmra.mrb[0].mxu0 %v6867
  %v7241 = vpop.f32.mrb[0].mxu0
  %v7242 = vadd.f32 %v7020, %v7241
  %v7243 = vpop.f32.mrb[0].mxu0
  %v7244 = vadd.f32 %v7024, %v7243
  %v7245 = vpop.f32.mrb[0].mxu0
  %v7246 = vadd.f32 %v7020, %v7245
  %v7247 = vpop.f32.mrb[0].mxu0
  %v7248 = vadd.f32 %v7024, %v7247
  %7249 = vmatprep.mubr.bf16.mxu0 %v6870
  %7250 = vmatmul.mubr.bf16.gmra.mrb[0].mxu0 %v6869
  %v7251 = vpop.f32.mrb[0].mxu0
  %v7252 = vadd.f32 %v7020, %v7251
  %v7253 = vpop.f32.mrb[0].mxu0
  %v7254 = vadd.f32 %v7024, %v7253
  %v7255 = vpop.f32.mrb[0].mxu0
  %v7256 = vadd.f32 %v7020, %v7255
  %v7257 = vpop.f32.mrb[0].mxu0
  %v7258 = vadd.f32 %v7024, %v7257
  %7259 = vdwg.mxu0
  %7260 = vmatprep.subr.bf16.mxu0 %v6878
  %7261 = vmatpush1.bf16.msra.mxu0 %v6877
  %7262 = vmatprep.subr.bf16.mxu0 %v6886
  %7263 = vmatpush1.bf16.msra.mxu0 %v6885
  %7264 = vmatprep.subr.bf16.mxu0 %v6894
  %7265 = vmatpush1.bf16.msra.mxu0 %v6893
  %7266 = vmatprep.subr.bf16.mxu0 %v6902
  %7267 = vmatpush1.bf16.msra.mxu0 %v6901
  %7268 = vmatprep.subr.bf16.mxu0 %v6910
  %7269 = vmatpush1.bf16.msra.mxu0 %v6909
  %7270 = vmatprep.subr.bf16.mxu0 %v6918
  %7271 = vmatpush1.bf16.msra.mxu0 %v6917
  %7272 = vmatprep.subr.bf16.mxu0 %v6926
  %7273 = vmatpush1.bf16.msra.mxu0 %v6925
  %7274 = vmatprep.subr.bf16.mxu0 %v6934
  %7275 = vmatpush1.bf16.msra.mxu0 %v6933
  %7276 = vmatprep.subr.bf16.mxu0 %v6942
  %7277 = vmatpush1.bf16.msra.mxu0 %v6941
  %7278 = vmatprep.subr.bf16.mxu0 %v6950
  %7279 = vmatpush1.bf16.msra.mxu0 %v6949
  %7280 = vmatprep.subr.bf16.mxu0 %v6958
  %7281 = vmatpush1.bf16.msra.mxu0 %v6957
  %7282 = vmatprep.subr.bf16.mxu0 %v6966
  %7283 = vmatpush1.bf16.msra.mxu0 %v6965
  %7284 = vmatprep.subr.bf16.mxu0 %v6974
  %7285 = vmatpush1.bf16.msra.mxu0 %v6973
  %7286 = vmatprep.subr.bf16.mxu0 %v6982
  %7287 = vmatpush1.bf16.msra.mxu0 %v6981
  %7288 = vmatprep.subr.bf16.mxu0 %v6990
  %7289 = vmatpush1.bf16.msra.mxu0 %v6989
  %7290 = vmatprep.subr.bf16.mxu0 %v6998
  %7291 = vmatpush1.bf16.msra.mxu0 %v6997
  %7292 = vmatprep.mubr.bf16.mxu0 %v6864
  %7293 = vmatmul.mubr.bf16.gmra.mrb[0].mxu0 %v6863
  %v7294 = vpop.f32.mrb[0].mxu0
  %v7295 = vadd.f32 %v7028, %v7294
  %v7296 = vpop.f32.mrb[0].mxu0
  %v7297 = vadd.f32 %v7032, %v7296
  %v7298 = vpop.f32.mrb[0].mxu0
  %v7299 = vadd.f32 %v7028, %v7298
  %v7300 = vpop.f32.mrb[0].mxu0
  %v7301 = vadd.f32 %v7032, %v7300
  %7302 = vmatprep.mubr.bf16.mxu0 %v6866
  %7303 = vmatmul.mubr.bf16.gmra.mrb[0].mxu0 %v6865
  %v7304 = vpop.f32.mrb[0].mxu0
  %v7305 = vadd.f32 %v7028, %v7304
  %v7306 = vpop.f32.mrb[0].mxu0
  %v7307 = vadd.f32 %v7032, %v7306
  %v7308 = vpop.f32.mrb[0].mxu0
  %v7309 = vadd.f32 %v7028, %v7308
  %v7310 = vpop.f32.mrb[0].mxu0
  %v7311 = vadd.f32 %v7032, %v7310
  %7312 = vmatprep.mubr.bf16.mxu0 %v6868
  %7313 = vmatmul.mubr.bf16.gmra.mrb[0].mxu0 %v6867
  %v7314 = vpop.f32.mrb[0].mxu0
  %v7315 = vadd.f32 %v7028, %v7314
  %v7316 = vpop.f32.mrb[0].mxu0
  %v7317 = vadd.f32 %v7032, %v7316
  %v7318 = vpop.f32.mrb[0].mxu0
  %v7319 = vadd.f32 %v7028, %v7318
  %v7320 = vpop.f32.mrb[0].mxu0
  %v7321 = vadd.f32 %v7032, %v7320
  %7322 = vmatprep.mubr.bf16.mxu0 %v6870
  %7323 = vmatmul.mubr.bf16.gmra.mrb[0].mxu0 %v6869
  %v7324 = vpop.f32.mrb[0].mxu0
  %v7325 = vadd.f32 %v7028, %v7324
  %v7326 = vpop.f32.mrb[0].mxu0
  %v7327 = vadd.f32 %v7032, %v7326
  %v7328 = vpop.f32.mrb[0].mxu0
  %v7329 = vadd.f32 %v7028, %v7328
  %v7330 = vpop.f32.mrb[0].mxu0
  %v7331 = vadd.f32 %v7032, %v7330
  %7332 = vdwg.mxu0
  %7333 = vst [vmem:[#allocation4] sm:$0xff] %v7076
  %7334 = vst [vmem:[#allocation4 + $0x8] sm:$0xff] %v7078
  %7335 = vst [vmem:[#allocation4 + $0x10] sm:$0xff] %v7149
  %7336 = vst [vmem:[#allocation4 + $0x18] sm:$0xff] %v7151
  %7337 = vst [vmem:[#allocation4 + $0x20] sm:$0xff] %v7222
  %7338 = vst [vmem:[#allocation4 + $0x28] sm:$0xff] %v7224
  %7339 = vst [vmem:[#allocation4 + $0x30] sm:$0xff] %v7295
  %7340 = vst [vmem:[#allocation4 + $0x38] sm:$0xff] %v7297
  %7341 = vst [vmem:[#allocation4 + $0x40] sm:$0xff] %v7080
  %7342 = vst [vmem:[#allocation4 + $0x48] sm:$0xff] %v7082
  %7343 = vst [vmem:[#allocation4 + $0x50] sm:$0xff] %v7153
  %7344 = vst [vmem:[#allocation4 + $0x58] sm:$0xff] %v7155
  %7345 = vst [vmem:[#allocation4 + $0x60] sm:$0xff] %v7226
  %7346 = vst [vmem:[#allocation4 + $0x68] sm:$0xff] %v7228
  %7347 = vst [vmem:[#allocation4 + $0x70] sm:$0xff] %v7299
  %7348 = vst [vmem:[#allocation4 + $0x78] sm:$0xff] %v7301
  %7349 = vst [vmem:[#allocation4 + $0x80] sm:$0xff] %v7086
  %7350 = vst [vmem:[#allocation4 + $0x88] sm:$0xff] %v7088
  %7351 = vst [vmem:[#allocation4 + $0x90] sm:$0xff] %v7159
  %7352 = vst [vmem:[#allocation4 + $0x98] sm:$0xff] %v7161
  %7353 = vst [vmem:[#allocation4 + $0xa0] sm:$0xff] %v7232
  %7354 = vst [vmem:[#allocation4 + $0xa8] sm:$0xff] %v7234
  %7355 = vst [vmem:[#allocation4 + $0xb0] sm:$0xff] %v7305
  %7356 = vst [vmem:[#allocation4 + $0xb8] sm:$0xff] %v7307
  %7357 = vst [vmem:[#allocation4 + $0xc0] sm:$0xff] %v7090
  %7358 = vst [vmem:[#allocation4 + $0xc8] sm:$0xff] %v7092
  %7359 = vst [vmem:[#allocation4 + $0xd0] sm:$0xff] %v7163
  %7360 = vst [vmem:[#allocation4 + $0xd8] sm:$0xff] %v7165
  %7361 = vst [vmem:[#allocation4 + $0xe0] sm:$0xff] %v7236
  %7362 = vst [vmem:[#allocation4 + $0xe8] sm:$0xff] %v7238
  %7363 = vst [vmem:[#allocation4 + $0xf0] sm:$0xff] %v7309
  %7364 = vst [vmem:[#allocation4 + $0xf8] sm:$0xff] %v7311
  %7365 = vst [vmem:[#allocation4 + $0x100] sm:$0xff] %v7096
  %7366 = vst [vmem:[#allocation4 + $0x108] sm:$0xff] %v7098
  %7367 = vst [vmem:[#allocation4 + $0x110] sm:$0xff] %v7169
  %7368 = vst [vmem:[#allocation4 + $0x118] sm:$0xff] %v7171
  %7369 = vst [vmem:[#allocation4 + $0x120] sm:$0xff] %v7242
  %7370 = vst [vmem:[#allocation4 + $0x128] sm:$0xff] %v7244
  %7371 = vst [vmem:[#allocation4 + $0x130] sm:$0xff] %v7315
  %7372 = vst [vmem:[#allocation4 + $0x138] sm:$0xff] %v7317
  %7373 = vst [vmem:[#allocation4 + $0x140] sm:$0xff] %v7100
  %7374 = vst [vmem:[#allocation4 + $0x148] sm:$0xff] %v7102
  %7375 = vst [vmem:[#allocation4 + $0x150] sm:$0xff] %v7173
  %7376 = vst [vmem:[#allocation4 + $0x158] sm:$0xff] %v7175
  %7377 = vst [vmem:[#allocation4 + $0x160] sm:$0xff] %v7246
  %7378 = vst [vmem:[#allocation4 + $0x168] sm:$0xff] %v7248
  %7379 = vst [vmem:[#allocation4 + $0x170] sm:$0xff] %v7319
  %7380 = vst [vmem:[#allocation4 + $0x178] sm:$0xff] %v7321
  %7381 = vst [vmem:[#allocation4 + $0x180] sm:$0xff] %v7106
  %7382 = vst [vmem:[#allocation4 + $0x188] sm:$0xff] %v7108
  %7383 = vst [vmem:[#allocation4 + $0x190] sm:$0xff] %v7179
  %7384 = vst [vmem:[#allocation4 + $0x198] sm:$0xff] %v7181
  %7385 = vst [vmem:[#allocation4 + $0x1a0] sm:$0xff] %v7252
  %7386 = vst [vmem:[#allocation4 + $0x1a8] sm:$0xff] %v7254
  %7387 = vst [vmem:[#allocation4 + $0x1b0] sm:$0xff] %v7325
  %7388 = vst [vmem:[#allocation4 + $0x1b8] sm:$0xff] %v7327
  %7389 = vst [vmem:[#allocation4 + $0x1c0] sm:$0xff] %v7110
  %7390 = vst [vmem:[#allocation4 + $0x1c8] sm:$0xff] %v7112
  %7391 = vst [vmem:[#allocation4 + $0x1d0] sm:$0xff] %v7183
  %7392 = vst [vmem:[#allocation4 + $0x1d8] sm:$0xff] %v7185
  %7393 = vst [vmem:[#allocation4 + $0x1e0] sm:$0xff] %v7256
  %7394 = vst [vmem:[#allocation4 + $0x1e8] sm:$0xff] %v7258
  %7395 = vst [vmem:[#allocation4 + $0x1f0] sm:$0xff] %v7329
  %7396 = vst [vmem:[#allocation4 + $0x1f8] sm:$0xff] %v7331
  %v7397 = vld [vmem:[#allocation4] sm:$0xff]
  %v7398 = vld [vmem:[#allocation4 + $0x8] sm:$0xff]
  %v7399 = vld [vmem:[#allocation4 + $0x10] sm:$0xff]
  %v7400 = vld [vmem:[#allocation4 + $0x18] sm:$0xff]
  %v7401 = vld [vmem:[#allocation6] sm:$0xff]
  %v7402 = vld [vmem:[#allocation6 + $0x8] sm:$0xff]
  %v7403 = vld [vmem:[#allocation6 + $0x10] sm:$0xff]
  %v7404 = vld [vmem:[#allocation6 + $0x18] sm:$0xff]
  %v7405 = vld [vmem:[#allocation6 + $0x20] sm:$0xff]
  %v7406 = vld [vmem:[#allocation6 + $0x28] sm:$0xff]
  %v7407 = vld [vmem:[#allocation6 + $0x30] sm:$0xff]
  %v7408 = vld [vmem:[#allocation6 + $0x38] sm:$0xff]
  %v7409 = vld [vmem:[#allocation6 + $0x40] sm:$0xff]
  %v7410 = vld [vmem:[#allocation6 + $0x48] sm:$0xff]
  %v7411 = vld [vmem:[#allocation6 + $0x50] sm:$0xff]
  %v7412 = vld [vmem:[#allocation6 + $0x58] sm:$0xff]
  %v7413 = vld [vmem:[#allocation6 + $0x60] sm:$0xff]
  %v7414 = vld [vmem:[#allocation6 + $0x68] sm:$0xff]
  %v7415 = vld [vmem:[#allocation6 + $0x70] sm:$0xff]
  %v7416 = vld [vmem:[#allocation6 + $0x78] sm:$0xff]
  %v7417 = vld [vmem:[#allocation6 + $0x80] sm:$0xff]
  %v7418 = vld [vmem:[#allocation6 + $0x88] sm:$0xff]
  %v7419 = vld [vmem:[#allocation6 + $0x90] sm:$0xff]
  %v7420 = vld [vmem:[#allocation6 + $0x98] sm:$0xff]
  %v7421 = vld [vmem:[#allocation6 + $0xa0] sm:$0xff]
  %v7422 = vld [vmem:[#allocation6 + $0xa8] sm:$0xff]
  %v7423 = vld [vmem:[#allocation6 + $0xb0] sm:$0xff]
  %v7424 = vld [vmem:[#allocation6 + $0xb8] sm:$0xff]
  %v7425 = vld [vmem:[#allocation6 + $0xc0] sm:$0xff]
  %v7426 = vld [vmem:[#allocation6 + $0xc8] sm:$0xff]
  %v7427 = vld [vmem:[#allocation6 + $0xd0] sm:$0xff]
  %v7428 = vld [vmem:[#allocation6 + $0xd8] sm:$0xff]
  %v7429 = vld [vmem:[#allocation6 + $0xe0] sm:$0xff]
  %v7430 = vld [vmem:[#allocation6 + $0xe8] sm:$0xff]
  %v7431 = vld [vmem:[#allocation6 + $0xf0] sm:$0xff]
  %v7432 = vld [vmem:[#allocation6 + $0xf8] sm:$0xff]
  %7433 = vmatprep.subr.bf16.mxu0 %v7402
  %7434 = vmatpush1.bf16.msra.mxu0 %v7401
  %7435 = vmatprep.subr.bf16.mxu0 %v7406
  %7436 = vmatpush1.bf16.msra.mxu0 %v7405
  %7437 = vmatprep.subr.bf16.mxu0 %v7410
  %7438 = vmatpush1.bf16.msra.mxu0 %v7409
  %7439 = vmatprep.subr.bf16.mxu0 %v7414
  %7440 = vmatpush1.bf16.msra.mxu0 %v7413
  %7441 = vmatprep.subr.bf16.mxu0 %v7418
  %7442 = vmatpush1.bf16.msra.mxu0 %v7417
  %7443 = vmatprep.subr.bf16.mxu0 %v7422
  %7444 = vmatpush1.bf16.msra.mxu0 %v7421
  %7445 = vmatprep.subr.bf16.mxu0 %v7426
  %7446 = vmatpush1.bf16.msra.mxu0 %v7425
  %7447 = vmatprep.subr.bf16.mxu0 %v7430
  %7448 = vmatpush1.bf16.msra.mxu0 %v7429
  %7449 = vmatprep.subr.bf16.mxu0 0
  %7450 = vmatpush1.bf16.msra.mxu0 0
  %7451 = vmatprep.subr.bf16.mxu0 0
  %7452 = vmatpush1.bf16.msra.mxu0 0
  %7453 = vmatprep.subr.bf16.mxu0 0
  %7454 = vmatpush1.bf16.msra.mxu0 0
  %7455 = vmatprep.subr.bf16.mxu0 0
  %7456 = vmatpush1.bf16.msra.mxu0 0
  %7457 = vmatprep.subr.bf16.mxu0 0
  %7458 = vmatpush1.bf16.msra.mxu0 0
  %7459 = vmatprep.subr.bf16.mxu0 0
  %7460 = vmatpush1.bf16.msra.mxu0 0
  %7461 = vmatprep.subr.bf16.mxu0 0
  %7462 = vmatpush1.bf16.msra.mxu0 0
  %7463 = vmatprep.subr.bf16.mxu0 0
  %7464 = vmatpush1.bf16.msra.mxu0 0
  %7465 = vmatprep.mubr.bf16.mxu0 0
  %7466 = vmatmul.mubr.bf16.gmra.mrb[0].mxu0 0
  %v7467 = vpop.f32.mrb[0].mxu0
  %v7468 = vadd.f32 0.0, %v7467
  %v7469 = vpop.f32.mrb[0].mxu0
  %v7470 = vadd.f32 0.0, %v7469
  %v7471 = vpop.f32.mrb[0].mxu0
  %v7472 = vpop.f32.mrb[0].mxu0
  %7473 = vdwg.mxu0
  %7474 = vmatprep.subr.bf16.mxu0 %v7404
  %7475 = vmatpush1.bf16.msra.mxu0 %v7403
  %7476 = vmatprep.subr.bf16.mxu0 %v7408
  %7477 = vmatpush1.bf16.msra.mxu0 %v7407
  %7478 = vmatprep.subr.bf16.mxu0 %v7412
  %7479 = vmatpush1.bf16.msra.mxu0 %v7411
  %7480 = vmatprep.subr.bf16.mxu0 %v7416
  %7481 = vmatpush1.bf16.msra.mxu0 %v7415
  %7482 = vmatprep.subr.bf16.mxu0 %v7420
  %7483 = vmatpush1.bf16.msra.mxu0 %v7419
  %7484 = vmatprep.subr.bf16.mxu0 %v7424
  %7485 = vmatpush1.bf16.msra.mxu0 %v7423
  %7486 = vmatprep.subr.bf16.mxu0 %v7428
  %7487 = vmatpush1.bf16.msra.mxu0 %v7427
  %7488 = vmatprep.subr.bf16.mxu0 %v7432
  %7489 = vmatpush1.bf16.msra.mxu0 %v7431
  %7490 = vmatprep.subr.bf16.mxu0 0
  %7491 = vmatpush1.bf16.msra.mxu0 0
  %7492 = vmatprep.subr.bf16.mxu0 0
  %7493 = vmatpush1.bf16.msra.mxu0 0
  %7494 = vmatprep.subr.bf16.mxu0 0
  %7495 = vmatpush1.bf16.msra.mxu0 0
  %7496 = vmatprep.subr.bf16.mxu0 0
  %7497 = vmatpush1.bf16.msra.mxu0 0
  %7498 = vmatprep.subr.bf16.mxu0 0
  %7499 = vmatpush1.bf16.msra.mxu0 0
  %7500 = vmatprep.subr.bf16.mxu0 0
  %7501 = vmatpush1.bf16.msra.mxu0 0
  %7502 = vmatprep.subr.bf16.mxu0 0
  %7503 = vmatpush1.bf16.msra.mxu0 0
  %7504 = vmatprep.subr.bf16.mxu0 0
  %7505 = vmatpush1.bf16.msra.mxu0 0
  %7506 = vmatprep.mubr.bf16.mxu0 0
  %7507 = vmatmul.mubr.bf16.gmra.mrb[0].mxu0 0
  %v7508 = vpop.f32.mrb[0].mxu0
  %v7509 = vadd.f32 0.0, %v7508
  %v7510 = vpop.f32.mrb[0].mxu0
  %v7511 = vadd.f32 0.0, %v7510
  %v7512 = vpop.f32.mrb[0].mxu0
  %v7513 = vpop.f32.mrb[0].mxu0
  %7514 = vdwg.mxu0
  %v7515 = vadd.f32 %v7397, %v7468
  %v7516 = vadd.f32 %v7398, %v7470
  %v7517 = vadd.f32 %v7399, %v7509
  %v7518 = vadd.f32 %v7400, %v7511
  %v7519 = vxor.u32 %v7515, 2147483648
  %v7520 = vmul.f32 %v7519, 1.442695
  %v7521 = vpow.pop %v7520
  %v7522 = vadd.f32 %v7521, 1.0
  %v7523 = vrcp.pop %v7522
  %v7524 = vmul.f32 1.0, %v7523
  %v7525 = vxor.u32 %v7516, 2147483648
  %v7526 = vmul.f32 %v7525, 1.442695
  %v7527 = vpow.pop %v7526
  %v7528 = vadd.f32 %v7527, 1.0
  %v7529 = vrcp.pop %v7528
  %v7530 = vmul.f32 1.0, %v7529
  %v7531 = vtanh.pop %v7517
  %v7532 = vxor.u32 %v7518, 2147483648
  %v7533 = vmul.f32 %v7532, 1.442695
  %v7534 = vpow.pop %v7533
  %v7535 = vadd.f32 %v7534, 1.0
  %v7536 = vrcp.pop %v7535
  %v7537 = vmul.f32 1.0, %v7536
  %v7538 = vmul.f32 %v7530, 0.0
  %v7539 = vmul.f32 %v7524, %v7531
  %v7540 = vadd.f32 %v7538, %v7539
  %v7541 = vtanh.pop %v7540
  %v7542 = vmul.f32 %v7537, %v7541
  %v7543 = vld [vmem:[#allocation4 + $0x40] sm:$0xff]
  %v7544 = vld [vmem:[#allocation4 + $0x48] sm:$0xff]
  %v7545 = vld [vmem:[#allocation4 + $0x50] sm:$0xff]
  %v7546 = vld [vmem:[#allocation4 + $0x58] sm:$0xff]
  %v7547 = vpack.c.bf16 %v7542, %v7542
  %7548 = vmatprep.subr.bf16.mxu0 %v7402
  %7549 = vmatpush1.bf16.msra.mxu0 %v7401
  %7550 = vmatprep.subr.bf16.mxu0 %v7406
  %7551 = vmatpush1.bf16.msra.mxu0 %v7405
  %7552 = vmatprep.subr.bf16.mxu0 %v7410
  %7553 = vmatpush1.bf16.msra.mxu0 %v7409
  %7554 = vmatprep.subr.bf16.mxu0 %v7414
  %7555 = vmatpush1.bf16.msra.mxu0 %v7413
  %7556 = vmatprep.subr.bf16.mxu0 %v7418
  %7557 = vmatpush1.bf16.msra.mxu0 %v7417
  %7558 = vmatprep.subr.bf16.mxu0 %v7422
  %7559 = vmatpush1.bf16.msra.mxu0 %v7421
  %7560 = vmatprep.subr.bf16.mxu0 %v7426
  %7561 = vmatpush1.bf16.msra.mxu0 %v7425
  %7562 = vmatprep.subr.bf16.mxu0 %v7430
  %7563 = vmatpush1.bf16.msra.mxu0 %v7429
  %7564 = vmatprep.subr.bf16.mxu0 0
  %7565 = vmatpush1.bf16.msra.mxu0 0
  %7566 = vmatprep.subr.bf16.mxu0 0
  %7567 = vmatpush1.bf16.msra.mxu0 0
  %7568 = vmatprep.subr.bf16.mxu0 0
  %7569 = vmatpush1.bf16.msra.mxu0 0
  %7570 = vmatprep.subr.bf16.mxu0 0
  %7571 = vmatpush1.bf16.msra.mxu0 0
  %7572 = vmatprep.subr.bf16.mxu0 0
  %7573 = vmatpush1.bf16.msra.mxu0 0
  %7574 = vmatprep.subr.bf16.mxu0 0
  %7575 = vmatpush1.bf16.msra.mxu0 0
  %7576 = vmatprep.subr.bf16.mxu0 0
  %7577 = vmatpush1.bf16.msra.mxu0 0
  %7578 = vmatprep.subr.bf16.mxu0 0
  %7579 = vmatpush1.bf16.msra.mxu0 0
  %7580 = vmatprep.mubr.bf16.mxu0 0
  %7581 = vmatmul.mubr.bf16.gmra.mrb[0].mxu0 %v7547
  %v7582 = vpop.f32.mrb[0].mxu0
  %v7583 = vadd.f32 0.0, %v7582
  %v7584 = vpop.f32.mrb[0].mxu0
  %v7585 = vadd.f32 0.0, %v7584
  %v7586 = vpop.f32.mrb[0].mxu0
  %v7587 = vpop.f32.mrb[0].mxu0
  %7588 = vdwg.mxu0
  %7589 = vmatprep.subr.bf16.mxu0 %v7404
  %7590 = vmatpush1.bf16.msra.mxu0 %v7403
  %7591 = vmatprep.subr.bf16.mxu0 %v7408
  %7592 = vmatpush1.bf16.msra.mxu0 %v7407
  %7593 = vmatprep.subr.bf16.mxu0 %v7412
  %7594 = vmatpush1.bf16.msra.mxu0 %v7411
  %7595 = vmatprep.subr.bf16.mxu0 %v7416
  %7596 = vmatpush1.bf16.msra.mxu0 %v7415
  %7597 = vmatprep.subr.bf16.mxu0 %v7420
  %7598 = vmatpush1.bf16.msra.mxu0 %v7419
  %7599 = vmatprep.subr.bf16.mxu0 %v7424
  %7600 = vmatpush1.bf16.msra.mxu0 %v7423
  %7601 = vmatprep.subr.bf16.mxu0 %v7428
  %7602 = vmatpush1.bf16.msra.mxu0 %v7427
  %7603 = vmatprep.subr.bf16.mxu0 %v7432
  %7604 = vmatpush1.bf16.msra.mxu0 %v7431
  %7605 = vmatprep.subr.bf16.mxu0 0
  %7606 = vmatpush1.bf16.msra.mxu0 0
  %7607 = vmatprep.subr.bf16.mxu0 0
  %7608 = vmatpush1.bf16.msra.mxu0 0
  %7609 = vmatprep.subr.bf16.mxu0 0
  %7610 = vmatpush1.bf16.msra.mxu0 0
  %7611 = vmatprep.subr.bf16.mxu0 0
  %7612 = vmatpush1.bf16.msra.mxu0 0
  %7613 = vmatprep.subr.bf16.mxu0 0
  %7614 = vmatpush1.bf16.msra.mxu0 0
  %7615 = vmatprep.subr.bf16.mxu0 0
  %7616 = vmatpush1.bf16.msra.mxu0 0
  %7617 = vmatprep.subr.bf16.mxu0 0
  %7618 = vmatpush1.bf16.msra.mxu0 0
  %7619 = vmatprep.subr.bf16.mxu0 0
  %7620 = vmatpush1.bf16.msra.mxu0 0
  %7621 = vmatprep.mubr.bf16.mxu0 0
  %7622 = vmatmul.mubr.bf16.gmra.mrb[0].mxu0 %v7547
  %v7623 = vpop.f32.mrb[0].mxu0
  %v7624 = vadd.f32 0.0, %v7623
  %v7625 = vpop.f32.mrb[0].mxu0
  %v7626 = vadd.f32 0.0, %v7625
  %v7627 = vpop.f32.mrb[0].mxu0
  %v7628 = vpop.f32.mrb[0].mxu0
  %7629 = vdwg.mxu0
  %v7630 = vadd.f32 %v7543, %v7583
  %v7631 = vadd.f32 %v7544, %v7585
  %v7632 = vadd.f32 %v7545, %v7624
  %v7633 = vadd.f32 %v7546, %v7626
  %v7634 = vxor.u32 %v7630, 2147483648
  %v7635 = vmul.f32 %v7634, 1.442695
  %v7636 = vpow.pop %v7635
  %v7637 = vadd.f32 %v7636, 1.0
  %v7638 = vrcp.pop %v7637
  %v7639 = vmul.f32 1.0, %v7638
  %v7640 = vxor.u32 %v7631, 2147483648
  %v7641 = vmul.f32 %v7640, 1.442695
  %v7642 = vpow.pop %v7641
  %v7643 = vadd.f32 %v7642, 1.0
  %v7644 = vrcp.pop %v7643
  %v7645 = vmul.f32 1.0, %v7644
  %v7646 = vtanh.pop %v7632
  %v7647 = vxor.u32 %v7633, 2147483648
  %v7648 = vmul.f32 %v7647, 1.442695
  %v7649 = vpow.pop %v7648
  %v7650 = vadd.f32 %v7649, 1.0
  %v7651 = vrcp.pop %v7650
  %v7652 = vmul.f32 1.0, %v7651
  %v7653 = vmul.f32 %v7645, %v7540
  %v7654 = vmul.f32 %v7639, %v7646
  %v7655 = vadd.f32 %v7653, %v7654
  %v7656 = vtanh.pop %v7655
  %v7657 = vmul.f32 %v7652, %v7656
  %v7658 = vld [vmem:[#allocation4 + $0x80] sm:$0xff]
  %v7659 = vld [vmem:[#allocation4 + $0x88] sm:$0xff]
  %v7660 = vld [vmem:[#allocation4 + $0x90] sm:$0xff]
  %v7661 = vld [vmem:[#allocation4 + $0x98] sm:$0xff]
  %v7662 = vpack.c.bf16 %v7657, %v7657
  %7663 = vmatprep.subr.bf16.mxu0 %v7402
  %7664 = vmatpush1.bf16.msra.mxu0 %v7401
  %7665 = vmatprep.subr.bf16.mxu0 %v7406
  %7666 = vmatpush1.bf16.msra.mxu0 %v7405
  %7667 = vmatprep.subr.bf16.mxu0 %v7410
  %7668 = vmatpush1.bf16.msra.mxu0 %v7409
  %7669 = vmatprep.subr.bf16.mxu0 %v7414
  %7670 = vmatpush1.bf16.msra.mxu0 %v7413
  %7671 = vmatprep.subr.bf16.mxu0 %v7418
  %7672 = vmatpush1.bf16.msra.mxu0 %v7417
  %7673 = vmatprep.subr.bf16.mxu0 %v7422
  %7674 = vmatpush1.bf16.msra.mxu0 %v7421
  %7675 = vmatprep.subr.bf16.mxu0 %v7426
  %7676 = vmatpush1.bf16.msra.mxu0 %v7425
  %7677 = vmatprep.subr.bf16.mxu0 %v7430
  %7678 = vmatpush1.bf16.msra.mxu0 %v7429
  %7679 = vmatprep.subr.bf16.mxu0 0
  %7680 = vmatpush1.bf16.msra.mxu0 0
  %7681 = vmatprep.subr.bf16.mxu0 0
  %7682 = vmatpush1.bf16.msra.mxu0 0
  %7683 = vmatprep.subr.bf16.mxu0 0
  %7684 = vmatpush1.bf16.msra.mxu0 0
  %7685 = vmatprep.subr.bf16.mxu0 0
  %7686 = vmatpush1.bf16.msra.mxu0 0
  %7687 = vmatprep.subr.bf16.mxu0 0
  %7688 = vmatpush1.bf16.msra.mxu0 0
  %7689 = vmatprep.subr.bf16.mxu0 0
  %7690 = vmatpush1.bf16.msra.mxu0 0
  %7691 = vmatprep.subr.bf16.mxu0 0
  %7692 = vmatpush1.bf16.msra.mxu0 0
  %7693 = vmatprep.subr.bf16.mxu0 0
  %7694 = vmatpush1.bf16.msra.mxu0 0
  %7695 = vmatprep.mubr.bf16.mxu0 0
  %7696 = vmatmul.mubr.bf16.gmra.mrb[0].mxu0 %v7662
  %v7697 = vpop.f32.mrb[0].mxu0
  %v7698 = vadd.f32 0.0, %v7697
  %v7699 = vpop.f32.mrb[0].mxu0
  %v7700 = vadd.f32 0.0, %v7699
  %v7701 = vpop.f32.mrb[0].mxu0
  %v7702 = vpop.f32.mrb[0].mxu0
  %7703 = vdwg.mxu0
  %7704 = vmatprep.subr.bf16.mxu0 %v7404
  %7705 = vmatpush1.bf16.msra.mxu0 %v7403
  %7706 = vmatprep.subr.bf16.mxu0 %v7408
  %7707 = vmatpush1.bf16.msra.mxu0 %v7407
  %7708 = vmatprep.subr.bf16.mxu0 %v7412
  %7709 = vmatpush1.bf16.msra.mxu0 %v7411
  %7710 = vmatprep.subr.bf16.mxu0 %v7416
  %7711 = vmatpush1.bf16.msra.mxu0 %v7415
  %7712 = vmatprep.subr.bf16.mxu0 %v7420
  %7713 = vmatpush1.bf16.msra.mxu0 %v7419
  %7714 = vmatprep.subr.bf16.mxu0 %v7424
  %7715 = vmatpush1.bf16.msra.mxu0 %v7423
  %7716 = vmatprep.subr.bf16.mxu0 %v7428
  %7717 = vmatpush1.bf16.msra.mxu0 %v7427
  %7718 = vmatprep.subr.bf16.mxu0 %v7432
  %7719 = vmatpush1.bf16.msra.mxu0 %v7431
  %7720 = vmatprep.subr.bf16.mxu0 0
  %7721 = vmatpush1.bf16.msra.mxu0 0
  %7722 = vmatprep.subr.bf16.mxu0 0
  %7723 = vmatpush1.bf16.msra.mxu0 0
  %7724 = vmatprep.subr.bf16.mxu0 0
  %7725 = vmatpush1.bf16.msra.mxu0 0
  %7726 = vmatprep.subr.bf16.mxu0 0
  %7727 = vmatpush1.bf16.msra.mxu0 0
  %7728 = vmatprep.subr.bf16.mxu0 0
  %7729 = vmatpush1.bf16.msra.mxu0 0
  %7730 = vmatprep.subr.bf16.mxu0 0
  %7731 = vmatpush1.bf16.msra.mxu0 0
  %7732 = vmatprep.subr.bf16.mxu0 0
  %7733 = vmatpush1.bf16.msra.mxu0 0
  %7734 = vmatprep.subr.bf16.mxu0 0
  %7735 = vmatpush1.bf16.msra.mxu0 0
  %7736 = vmatprep.mubr.bf16.mxu0 0
  %7737 = vmatmul.mubr.bf16.gmra.mrb[0].mxu0 %v7662
  %v7738 = vpop.f32.mrb[0].mxu0
  %v7739 = vadd.f32 0.0, %v7738
  %v7740 = vpop.f32.mrb[0].mxu0
  %v7741 = vadd.f32 0.0, %v7740
  %v7742 = vpop.f32.mrb[0].mxu0
  %v7743 = vpop.f32.mrb[0].mxu0
  %7744 = vdwg.mxu0
  %v7745 = vadd.f32 %v7658, %v7698
  %v7746 = vadd.f32 %v7659, %v7700
  %v7747 = vadd.f32 %v7660, %v7739
  %v7748 = vadd.f32 %v7661, %v7741
  %v7749 = vxor.u32 %v7745, 2147483648
  %v7750 = vmul.f32 %v7749, 1.442695
  %v7751 = vpow.pop %v7750
  %v7752 = vadd.f32 %v7751, 1.0
  %v7753 = vrcp.pop %v7752
  %v7754 = vmul.f32 1.0, %v7753
  %v7755 = vxor.u32 %v7746, 2147483648
  %v7756 = vmul.f32 %v7755, 1.442695
  %v7757 = vpow.pop %v7756
  %v7758 = vadd.f32 %v7757, 1.0
  %v7759 = vrcp.pop %v7758
  %v7760 = vmul.f32 1.0, %v7759
  %v7761 = vtanh.pop %v7747
  %v7762 = vxor.u32 %v7748, 2147483648
  %v7763 = vmul.f32 %v7762, 1.442695
  %v7764 = vpow.pop %v7763
  %v7765 = vadd.f32 %v7764, 1.0
  %v7766 = vrcp.pop %v7765
  %v7767 = vmul.f32 1.0, %v7766
  %v7768 = vmul.f32 %v7760, %v7655
  %v7769 = vmul.f32 %v7754, %v7761
  %v7770 = vadd.f32 %v7768, %v7769
  %v7771 = vtanh.pop %v7770
  %v7772 = vmul.f32 %v7767, %v7771
  %v7773 = vld [vmem:[#allocation4 + $0xc0] sm:$0xff]
  %v7774 = vld [vmem:[#allocation4 + $0xc8] sm:$0xff]
  %v7775 = vld [vmem:[#allocation4 + $0xd0] sm:$0xff]
  %v7776 = vld [vmem:[#allocation4 + $0xd8] sm:$0xff]
  %v7777 = vpack.c.bf16 %v7772, %v7772
  %7778 = vmatprep.subr.bf16.mxu0 %v7402
  %7779 = vmatpush1.bf16.msra.mxu0 %v7401
  %7780 = vmatprep.subr.bf16.mxu0 %v7406
  %7781 = vmatpush1.bf16.msra.mxu0 %v7405
  %7782 = vmatprep.subr.bf16.mxu0 %v7410
  %7783 = vmatpush1.bf16.msra.mxu0 %v7409
  %7784 = vmatprep.subr.bf16.mxu0 %v7414
  %7785 = vmatpush1.bf16.msra.mxu0 %v7413
  %7786 = vmatprep.subr.bf16.mxu0 %v7418
  %7787 = vmatpush1.bf16.msra.mxu0 %v7417
  %7788 = vmatprep.subr.bf16.mxu0 %v7422
  %7789 = vmatpush1.bf16.msra.mxu0 %v7421
  %7790 = vmatprep.subr.bf16.mxu0 %v7426
  %7791 = vmatpush1.bf16.msra.mxu0 %v7425
  %7792 = vmatprep.subr.bf16.mxu0 %v7430
  %7793 = vmatpush1.bf16.msra.mxu0 %v7429
  %7794 = vmatprep.subr.bf16.mxu0 0
  %7795 = vmatpush1.bf16.msra.mxu0 0
  %7796 = vmatprep.subr.bf16.mxu0 0
  %7797 = vmatpush1.bf16.msra.mxu0 0
  %7798 = vmatprep.subr.bf16.mxu0 0
  %7799 = vmatpush1.bf16.msra.mxu0 0
  %7800 = vmatprep.subr.bf16.mxu0 0
  %7801 = vmatpush1.bf16.msra.mxu0 0
  %7802 = vmatprep.subr.bf16.mxu0 0
  %7803 = vmatpush1.bf16.msra.mxu0 0
  %7804 = vmatprep.subr.bf16.mxu0 0
  %7805 = vmatpush1.bf16.msra.mxu0 0
  %7806 = vmatprep.subr.bf16.mxu0 0
  %7807 = vmatpush1.bf16.msra.mxu0 0
  %7808 = vmatprep.subr.bf16.mxu0 0
  %7809 = vmatpush1.bf16.msra.mxu0 0
  %7810 = vmatprep.mubr.bf16.mxu0 0
  %7811 = vmatmul.mubr.bf16.gmra.mrb[0].mxu0 %v7777
  %v7812 = vpop.f32.mrb[0].mxu0
  %v7813 = vadd.f32 0.0, %v7812
  %v7814 = vpop.f32.mrb[0].mxu0
  %v7815 = vadd.f32 0.0, %v7814
  %v7816 = vpop.f32.mrb[0].mxu0
  %v7817 = vpop.f32.mrb[0].mxu0
  %7818 = vdwg.mxu0
  %7819 = vmatprep.subr.bf16.mxu0 %v7404
  %7820 = vmatpush1.bf16.msra.mxu0 %v7403
  %7821 = vmatprep.subr.bf16.mxu0 %v7408
  %7822 = vmatpush1.bf16.msra.mxu0 %v7407
  %7823 = vmatprep.subr.bf16.mxu0 %v7412
  %7824 = vmatpush1.bf16.msra.mxu0 %v7411
  %7825 = vmatprep.subr.bf16.mxu0 %v7416
  %7826 = vmatpush1.bf16.msra.mxu0 %v7415
  %7827 = vmatprep.subr.bf16.mxu0 %v7420
  %7828 = vmatpush1.bf16.msra.mxu0 %v7419
  %7829 = vmatprep.subr.bf16.mxu0 %v7424
  %7830 = vmatpush1.bf16.msra.mxu0 %v7423
  %7831 = vmatprep.subr.bf16.mxu0 %v7428
  %7832 = vmatpush1.bf16.msra.mxu0 %v7427
  %7833 = vmatprep.subr.bf16.mxu0 %v7432
  %7834 = vmatpush1.bf16.msra.mxu0 %v7431
  %7835 = vmatprep.subr.bf16.mxu0 0
  %7836 = vmatpush1.bf16.msra.mxu0 0
  %7837 = vmatprep.subr.bf16.mxu0 0
  %7838 = vmatpush1.bf16.msra.mxu0 0
  %7839 = vmatprep.subr.bf16.mxu0 0
  %7840 = vmatpush1.bf16.msra.mxu0 0
  %7841 = vmatprep.subr.bf16.mxu0 0
  %7842 = vmatpush1.bf16.msra.mxu0 0
  %7843 = vmatprep.subr.bf16.mxu0 0
  %7844 = vmatpush1.bf16.msra.mxu0 0
  %7845 = vmatprep.subr.bf16.mxu0 0
  %7846 = vmatpush1.bf16.msra.mxu0 0
  %7847 = vmatprep.subr.bf16.mxu0 0
  %7848 = vmatpush1.bf16.msra.mxu0 0
  %7849 = vmatprep.subr.bf16.mxu0 0
  %7850 = vmatpush1.bf16.msra.mxu0 0
  %7851 = vmatprep.mubr.bf16.mxu0 0
  %7852 = vmatmul.mubr.bf16.gmra.mrb[0].mxu0 %v7777
  %v7853 = vpop.f32.mrb[0].mxu0
  %v7854 = vadd.f32 0.0, %v7853
  %v7855 = vpop.f32.mrb[0].mxu0
  %v7856 = vadd.f32 0.0, %v7855
  %v7857 = vpop.f32.mrb[0].mxu0
  %v7858 = vpop.f32.mrb[0].mxu0
  %7859 = vdwg.mxu0
  %v7860 = vadd.f32 %v7773, %v7813
  %v7861 = vadd.f32 %v7774, %v7815
  %v7862 = vadd.f32 %v7775, %v7854
  %v7863 = vadd.f32 %v7776, %v7856
  %v7864 = vxor.u32 %v7860, 2147483648
  %v7865 = vmul.f32 %v7864, 1.442695
  %v7866 = vpow.pop %v7865
  %v7867 = vadd.f32 %v7866, 1.0
  %v7868 = vrcp.pop %v7867
  %v7869 = vmul.f32 1.0, %v7868
  %v7870 = vxor.u32 %v7861, 2147483648
  %v7871 = vmul.f32 %v7870, 1.442695
  %v7872 = vpow.pop %v7871
  %v7873 = vadd.f32 %v7872, 1.0
  %v7874 = vrcp.pop %v7873
  %v7875 = vmul.f32 1.0, %v7874
  %v7876 = vtanh.pop %v7862
  %v7877 = vxor.u32 %v7863, 2147483648
  %v7878 = vmul.f32 %v7877, 1.442695
  %v7879 = vpow.pop %v7878
  %v7880 = vadd.f32 %v7879, 1.0
  %v7881 = vrcp.pop %v7880
  %v7882 = vmul.f32 1.0, %v7881
  %v7883 = vmul.f32 %v7875, %v7770
  %v7884 = vmul.f32 %v7869, %v7876
  %v7885 = vadd.f32 %v7883, %v7884
  %v7886 = vtanh.pop %v7885
  %v7887 = vmul.f32 %v7882, %v7886
  %v7888 = vld [vmem:[#allocation4 + $0x100] sm:$0xff]
  %v7889 = vld [vmem:[#allocation4 + $0x108] sm:$0xff]
  %v7890 = vld [vmem:[#allocation4 + $0x110] sm:$0xff]
  %v7891 = vld [vmem:[#allocation4 + $0x118] sm:$0xff]
  %v7892 = vpack.c.bf16 %v7887, %v7887
  %7893 = vmatprep.subr.bf16.mxu0 %v7402
  %7894 = vmatpush1.bf16.msra.mxu0 %v7401
  %7895 = vmatprep.subr.bf16.mxu0 %v7406
  %7896 = vmatpush1.bf16.msra.mxu0 %v7405
  %7897 = vmatprep.subr.bf16.mxu0 %v7410
  %7898 = vmatpush1.bf16.msra.mxu0 %v7409
  %7899 = vmatprep.subr.bf16.mxu0 %v7414
  %7900 = vmatpush1.bf16.msra.mxu0 %v7413
  %7901 = vmatprep.subr.bf16.mxu0 %v7418
  %7902 = vmatpush1.bf16.msra.mxu0 %v7417
  %7903 = vmatprep.subr.bf16.mxu0 %v7422
  %7904 = vmatpush1.bf16.msra.mxu0 %v7421
  %7905 = vmatprep.subr.bf16.mxu0 %v7426
  %7906 = vmatpush1.bf16.msra.mxu0 %v7425
  %7907 = vmatprep.subr.bf16.mxu0 %v7430
  %7908 = vmatpush1.bf16.msra.mxu0 %v7429
  %7909 = vmatprep.subr.bf16.mxu0 0
  %7910 = vmatpush1.bf16.msra.mxu0 0
  %7911 = vmatprep.subr.bf16.mxu0 0
  %7912 = vmatpush1.bf16.msra.mxu0 0
  %7913 = vmatprep.subr.bf16.mxu0 0
  %7914 = vmatpush1.bf16.msra.mxu0 0
  %7915 = vmatprep.subr.bf16.mxu0 0
  %7916 = vmatpush1.bf16.msra.mxu0 0
  %7917 = vmatprep.subr.bf16.mxu0 0
  %7918 = vmatpush1.bf16.msra.mxu0 0
  %7919 = vmatprep.subr.bf16.mxu0 0
  %7920 = vmatpush1.bf16.msra.mxu0 0
  %7921 = vmatprep.subr.bf16.mxu0 0
  %7922 = vmatpush1.bf16.msra.mxu0 0
  %7923 = vmatprep.subr.bf16.mxu0 0
  %7924 = vmatpush1.bf16.msra.mxu0 0
  %7925 = vmatprep.mubr.bf16.mxu0 0
  %7926 = vmatmul.mubr.bf16.gmra.mrb[0].mxu0 %v7892
  %v7927 = vpop.f32.mrb[0].mxu0
  %v7928 = vadd.f32 0.0, %v7927
  %v7929 = vpop.f32.mrb[0].mxu0
  %v7930 = vadd.f32 0.0, %v7929
  %v7931 = vpop.f32.mrb[0].mxu0
  %v7932 = vpop.f32.mrb[0].mxu0
  %7933 = vdwg.mxu0
  %7934 = vmatprep.subr.bf16.mxu0 %v7404
  %7935 = vmatpush1.bf16.msra.mxu0 %v7403
  %7936 = vmatprep.subr.bf16.mxu0 %v7408
  %7937 = vmatpush1.bf16.msra.mxu0 %v7407
  %7938 = vmatprep.subr.bf16.mxu0 %v7412
  %7939 = vmatpush1.bf16.msra.mxu0 %v7411
  %7940 = vmatprep.subr.bf16.mxu0 %v7416
  %7941 = vmatpush1.bf16.msra.mxu0 %v7415
  %7942 = vmatprep.subr.bf16.mxu0 %v7420
  %7943 = vmatpush1.bf16.msra.mxu0 %v7419
  %7944 = vmatprep.subr.bf16.mxu0 %v7424
  %7945 = vmatpush1.bf16.msra.mxu0 %v7423
  %7946 = vmatprep.subr.bf16.mxu0 %v7428
  %7947 = vmatpush1.bf16.msra.mxu0 %v7427
  %7948 = vmatprep.subr.bf16.mxu0 %v7432
  %7949 = vmatpush1.bf16.msra.mxu0 %v7431
  %7950 = vmatprep.subr.bf16.mxu0 0
  %7951 = vmatpush1.bf16.msra.mxu0 0
  %7952 = vmatprep.subr.bf16.mxu0 0
  %7953 = vmatpush1.bf16.msra.mxu0 0
  %7954 = vmatprep.subr.bf16.mxu0 0
  %7955 = vmatpush1.bf16.msra.mxu0 0
  %7956 = vmatprep.subr.bf16.mxu0 0
  %7957 = vmatpush1.bf16.msra.mxu0 0
  %7958 = vmatprep.subr.bf16.mxu0 0
  %7959 = vmatpush1.bf16.msra.mxu0 0
  %7960 = vmatprep.subr.bf16.mxu0 0
  %7961 = vmatpush1.bf16.msra.mxu0 0
  %7962 = vmatprep.subr.bf16.mxu0 0
  %7963 = vmatpush1.bf16.msra.mxu0 0
  %7964 = vmatprep.subr.bf16.mxu0 0
  %7965 = vmatpush1.bf16.msra.mxu0 0
  %7966 = vmatprep.mubr.bf16.mxu0 0
  %7967 = vmatmul.mubr.bf16.gmra.mrb[0].mxu0 %v7892
  %v7968 = vpop.f32.mrb[0].mxu0
  %v7969 = vadd.f32 0.0, %v7968
  %v7970 = vpop.f32.mrb[0].mxu0
  %v7971 = vadd.f32 0.0, %v7970
  %v7972 = vpop.f32.mrb[0].mxu0
  %v7973 = vpop.f32.mrb[0].mxu0
  %7974 = vdwg.mxu0
  %v7975 = vadd.f32 %v7888, %v7928
  %v7976 = vadd.f32 %v7889, %v7930
  %v7977 = vadd.f32 %v7890, %v7969
  %v7978 = vadd.f32 %v7891, %v7971
  %v7979 = vxor.u32 %v7975, 2147483648
  %v7980 = vmul.f32 %v7979, 1.442695
  %v7981 = vpow.pop %v7980
  %v7982 = vadd.f32 %v7981, 1.0
  %v7983 = vrcp.pop %v7982
  %v7984 = vmul.f32 1.0, %v7983
  %v7985 = vxor.u32 %v7976, 2147483648
  %v7986 = vmul.f32 %v7985, 1.442695
  %v7987 = vpow.pop %v7986
  %v7988 = vadd.f32 %v7987, 1.0
  %v7989 = vrcp.pop %v7988
  %v7990 = vmul.f32 1.0, %v7989
  %v7991 = vtanh.pop %v7977
  %v7992 = vxor.u32 %v7978, 2147483648
  %v7993 = vmul.f32 %v7992, 1.442695
  %v7994 = vpow.pop %v7993
  %v7995 = vadd.f32 %v7994, 1.0
  %v7996 = vrcp.pop %v7995
  %v7997 = vmul.f32 1.0, %v7996
  %v7998 = vmul.f32 %v7990, %v7885
  %v7999 = vmul.f32 %v7984, %v7991
  %v8000 = vadd.f32 %v7998, %v7999
  %v8001 = vtanh.pop %v8000
  %v8002 = vmul.f32 %v7997, %v8001
  %v8003 = vld [vmem:[#allocation4 + $0x140] sm:$0xff]
  %v8004 = vld [vmem:[#allocation4 + $0x148] sm:$0xff]
  %v8005 = vld [vmem:[#allocation4 + $0x150] sm:$0xff]
  %v8006 = vld [vmem:[#allocation4 + $0x158] sm:$0xff]
  %v8007 = vpack.c.bf16 %v8002, %v8002
  %8008 = vmatprep.subr.bf16.mxu0 %v7402
  %8009 = vmatpush1.bf16.msra.mxu0 %v7401
  %8010 = vmatprep.subr.bf16.mxu0 %v7406
  %8011 = vmatpush1.bf16.msra.mxu0 %v7405
  %8012 = vmatprep.subr.bf16.mxu0 %v7410
  %8013 = vmatpush1.bf16.msra.mxu0 %v7409
  %8014 = vmatprep.subr.bf16.mxu0 %v7414
  %8015 = vmatpush1.bf16.msra.mxu0 %v7413
  %8016 = vmatprep.subr.bf16.mxu0 %v7418
  %8017 = vmatpush1.bf16.msra.mxu0 %v7417
  %8018 = vmatprep.subr.bf16.mxu0 %v7422
  %8019 = vmatpush1.bf16.msra.mxu0 %v7421
  %8020 = vmatprep.subr.bf16.mxu0 %v7426
  %8021 = vmatpush1.bf16.msra.mxu0 %v7425
  %8022 = vmatprep.subr.bf16.mxu0 %v7430
  %8023 = vmatpush1.bf16.msra.mxu0 %v7429
  %8024 = vmatprep.subr.bf16.mxu0 0
  %8025 = vmatpush1.bf16.msra.mxu0 0
  %8026 = vmatprep.subr.bf16.mxu0 0
  %8027 = vmatpush1.bf16.msra.mxu0 0
  %8028 = vmatprep.subr.bf16.mxu0 0
  %8029 = vmatpush1.bf16.msra.mxu0 0
  %8030 = vmatprep.subr.bf16.mxu0 0
  %8031 = vmatpush1.bf16.msra.mxu0 0
  %8032 = vmatprep.subr.bf16.mxu0 0
  %8033 = vmatpush1.bf16.msra.mxu0 0
  %8034 = vmatprep.subr.bf16.mxu0 0
  %8035 = vmatpush1.bf16.msra.mxu0 0
  %8036 = vmatprep.subr.bf16.mxu0 0
  %8037 = vmatpush1.bf16.msra.mxu0 0
  %8038 = vmatprep.subr.bf16.mxu0 0
  %8039 = vmatpush1.bf16.msra.mxu0 0
  %8040 = vmatprep.mubr.bf16.mxu0 0
  %8041 = vmatmul.mubr.bf16.gmra.mrb[0].mxu0 %v8007
  %v8042 = vpop.f32.mrb[0].mxu0
  %v8043 = vadd.f32 0.0, %v8042
  %v8044 = vpop.f32.mrb[0].mxu0
  %v8045 = vadd.f32 0.0, %v8044
  %v8046 = vpop.f32.mrb[0].mxu0
  %v8047 = vpop.f32.mrb[0].mxu0
  %8048 = vdwg.mxu0
  %8049 = vmatprep.subr.bf16.mxu0 %v7404
  %8050 = vmatpush1.bf16.msra.mxu0 %v7403
  %8051 = vmatprep.subr.bf16.mxu0 %v7408
  %8052 = vmatpush1.bf16.msra.mxu0 %v7407
  %8053 = vmatprep.subr.bf16.mxu0 %v7412
  %8054 = vmatpush1.bf16.msra.mxu0 %v7411
  %8055 = vmatprep.subr.bf16.mxu0 %v7416
  %8056 = vmatpush1.bf16.msra.mxu0 %v7415
  %8057 = vmatprep.subr.bf16.mxu0 %v7420
  %8058 = vmatpush1.bf16.msra.mxu0 %v7419
  %8059 = vmatprep.subr.bf16.mxu0 %v7424
  %8060 = vmatpush1.bf16.msra.mxu0 %v7423
  %8061 = vmatprep.subr.bf16.mxu0 %v7428
  %8062 = vmatpush1.bf16.msra.mxu0 %v7427
  %8063 = vmatprep.subr.bf16.mxu0 %v7432
  %8064 = vmatpush1.bf16.msra.mxu0 %v7431
  %8065 = vmatprep.subr.bf16.mxu0 0
  %8066 = vmatpush1.bf16.msra.mxu0 0
  %8067 = vmatprep.subr.bf16.mxu0 0
  %8068 = vmatpush1.bf16.msra.mxu0 0
  %8069 = vmatprep.subr.bf16.mxu0 0
  %8070 = vmatpush1.bf16.msra.mxu0 0
  %8071 = vmatprep.subr.bf16.mxu0 0
  %8072 = vmatpush1.bf16.msra.mxu0 0
  %8073 = vmatprep.subr.bf16.mxu0 0
  %8074 = vmatpush1.bf16.msra.mxu0 0
  %8075 = vmatprep.subr.bf16.mxu0 0
  %8076 = vmatpush1.bf16.msra.mxu0 0
  %8077 = vmatprep.subr.bf16.mxu0 0
  %8078 = vmatpush1.bf16.msra.mxu0 0
  %8079 = vmatprep.subr.bf16.mxu0 0
  %8080 = vmatpush1.bf16.msra.mxu0 0
  %8081 = vmatprep.mubr.bf16.mxu0 0
  %8082 = vmatmul.mubr.bf16.gmra.mrb[0].mxu0 %v8007
  %v8083 = vpop.f32.mrb[0].mxu0
  %v8084 = vadd.f32 0.0, %v8083
  %v8085 = vpop.f32.mrb[0].mxu0
  %v8086 = vadd.f32 0.0, %v8085
  %v8087 = vpop.f32.mrb[0].mxu0
  %v8088 = vpop.f32.mrb[0].mxu0
  %8089 = vdwg.mxu0
  %v8090 = vadd.f32 %v8003, %v8043
  %v8091 = vadd.f32 %v8004, %v8045
  %v8092 = vadd.f32 %v8005, %v8084
  %v8093 = vadd.f32 %v8006, %v8086
  %v8094 = vxor.u32 %v8090, 2147483648
  %v8095 = vmul.f32 %v8094, 1.442695
  %v8096 = vpow.pop %v8095
  %v8097 = vadd.f32 %v8096, 1.0
  %v8098 = vrcp.pop %v8097
  %v8099 = vmul.f32 1.0, %v8098
  %v8100 = vxor.u32 %v8091, 2147483648
  %v8101 = vmul.f32 %v8100, 1.442695
  %v8102 = vpow.pop %v8101
  %v8103 = vadd.f32 %v8102, 1.0
  %v8104 = vrcp.pop %v8103
  %v8105 = vmul.f32 1.0, %v8104
  %v8106 = vtanh.pop %v8092
  %v8107 = vxor.u32 %v8093, 2147483648
  %v8108 = vmul.f32 %v8107, 1.442695
  %v8109 = vpow.pop %v8108
  %v8110 = vadd.f32 %v8109, 1.0
  %v8111 = vrcp.pop %v8110
  %v8112 = vmul.f32 1.0, %v8111
  %v8113 = vmul.f32 %v8105, %v8000
  %v8114 = vmul.f32 %v8099, %v8106
  %v8115 = vadd.f32 %v8113, %v8114
  %v8116 = vtanh.pop %v8115
  %v8117 = vmul.f32 %v8112, %v8116
  %v8118 = vld [vmem:[#allocation4 + $0x180] sm:$0xff]
  %v8119 = vld [vmem:[#allocation4 + $0x188] sm:$0xff]
  %v8120 = vld [vmem:[#allocation4 + $0x190] sm:$0xff]
  %v8121 = vld [vmem:[#allocation4 + $0x198] sm:$0xff]
  %v8122 = vpack.c.bf16 %v8117, %v8117
  %8123 = vmatprep.subr.bf16.mxu0 %v7402
  %8124 = vmatpush1.bf16.msra.mxu0 %v7401
  %8125 = vmatprep.subr.bf16.mxu0 %v7406
  %8126 = vmatpush1.bf16.msra.mxu0 %v7405
  %8127 = vmatprep.subr.bf16.mxu0 %v7410
  %8128 = vmatpush1.bf16.msra.mxu0 %v7409
  %8129 = vmatprep.subr.bf16.mxu0 %v7414
  %8130 = vmatpush1.bf16.msra.mxu0 %v7413
  %8131 = vmatprep.subr.bf16.mxu0 %v7418
  %8132 = vmatpush1.bf16.msra.mxu0 %v7417
  %8133 = vmatprep.subr.bf16.mxu0 %v7422
  %8134 = vmatpush1.bf16.msra.mxu0 %v7421
  %8135 = vmatprep.subr.bf16.mxu0 %v7426
  %8136 = vmatpush1.bf16.msra.mxu0 %v7425
  %8137 = vmatprep.subr.bf16.mxu0 %v7430
  %8138 = vmatpush1.bf16.msra.mxu0 %v7429
  %8139 = vmatprep.subr.bf16.mxu0 0
  %8140 = vmatpush1.bf16.msra.mxu0 0
  %8141 = vmatprep.subr.bf16.mxu0 0
  %8142 = vmatpush1.bf16.msra.mxu0 0
  %8143 = vmatprep.subr.bf16.mxu0 0
  %8144 = vmatpush1.bf16.msra.mxu0 0
  %8145 = vmatprep.subr.bf16.mxu0 0
  %8146 = vmatpush1.bf16.msra.mxu0 0
  %8147 = vmatprep.subr.bf16.mxu0 0
  %8148 = vmatpush1.bf16.msra.mxu0 0
  %8149 = vmatprep.subr.bf16.mxu0 0
  %8150 = vmatpush1.bf16.msra.mxu0 0
  %8151 = vmatprep.subr.bf16.mxu0 0
  %8152 = vmatpush1.bf16.msra.mxu0 0
  %8153 = vmatprep.subr.bf16.mxu0 0
  %8154 = vmatpush1.bf16.msra.mxu0 0
  %8155 = vmatprep.mubr.bf16.mxu0 0
  %8156 = vmatmul.mubr.bf16.gmra.mrb[0].mxu0 %v8122
  %v8157 = vpop.f32.mrb[0].mxu0
  %v8158 = vadd.f32 0.0, %v8157
  %v8159 = vpop.f32.mrb[0].mxu0
  %v8160 = vadd.f32 0.0, %v8159
  %v8161 = vpop.f32.mrb[0].mxu0
  %v8162 = vpop.f32.mrb[0].mxu0
  %8163 = vdwg.mxu0
  %8164 = vmatprep.subr.bf16.mxu0 %v7404
  %8165 = vmatpush1.bf16.msra.mxu0 %v7403
  %8166 = vmatprep.subr.bf16.mxu0 %v7408
  %8167 = vmatpush1.bf16.msra.mxu0 %v7407
  %8168 = vmatprep.subr.bf16.mxu0 %v7412
  %8169 = vmatpush1.bf16.msra.mxu0 %v7411
  %8170 = vmatprep.subr.bf16.mxu0 %v7416
  %8171 = vmatpush1.bf16.msra.mxu0 %v7415
  %8172 = vmatprep.subr.bf16.mxu0 %v7420
  %8173 = vmatpush1.bf16.msra.mxu0 %v7419
  %8174 = vmatprep.subr.bf16.mxu0 %v7424
  %8175 = vmatpush1.bf16.msra.mxu0 %v7423
  %8176 = vmatprep.subr.bf16.mxu0 %v7428
  %8177 = vmatpush1.bf16.msra.mxu0 %v7427
  %8178 = vmatprep.subr.bf16.mxu0 %v7432
  %8179 = vmatpush1.bf16.msra.mxu0 %v7431
  %8180 = vmatprep.subr.bf16.mxu0 0
  %8181 = vmatpush1.bf16.msra.mxu0 0
  %8182 = vmatprep.subr.bf16.mxu0 0
  %8183 = vmatpush1.bf16.msra.mxu0 0
  %8184 = vmatprep.subr.bf16.mxu0 0
  %8185 = vmatpush1.bf16.msra.mxu0 0
  %8186 = vmatprep.subr.bf16.mxu0 0
  %8187 = vmatpush1.bf16.msra.mxu0 0
  %8188 = vmatprep.subr.bf16.mxu0 0
  %8189 = vmatpush1.bf16.msra.mxu0 0
  %8190 = vmatprep.subr.bf16.mxu0 0
  %8191 = vmatpush1.bf16.msra.mxu0 0
  %8192 = vmatprep.subr.bf16.mxu0 0
  %8193 = vmatpush1.bf16.msra.mxu0 0
  %8194 = vmatprep.subr.bf16.mxu0 0
  %8195 = vmatpush1.bf16.msra.mxu0 0
  %8196 = vmatprep.mubr.bf16.mxu0 0
  %8197 = vmatmul.mubr.bf16.gmra.mrb[0].mxu0 %v8122
  %v8198 = vpop.f32.mrb[0].mxu0
  %v8199 = vadd.f32 0.0, %v8198
  %v8200 = vpop.f32.mrb[0].mxu0
  %v8201 = vadd.f32 0.0, %v8200
  %v8202 = vpop.f32.mrb[0].mxu0
  %v8203 = vpop.f32.mrb[0].mxu0
  %8204 = vdwg.mxu0
  %v8205 = vadd.f32 %v8118, %v8158
  %v8206 = vadd.f32 %v8119, %v8160
  %v8207 = vadd.f32 %v8120, %v8199
  %v8208 = vadd.f32 %v8121, %v8201
  %v8209 = vxor.u32 %v8205, 2147483648
  %v8210 = vmul.f32 %v8209, 1.442695
  %v8211 = vpow.pop %v8210
  %v8212 = vadd.f32 %v8211, 1.0
  %v8213 = vrcp.pop %v8212
  %v8214 = vmul.f32 1.0, %v8213
  %v8215 = vxor.u32 %v8206, 2147483648
  %v8216 = vmul.f32 %v8215, 1.442695
  %v8217 = vpow.pop %v8216
  %v8218 = vadd.f32 %v8217, 1.0
  %v8219 = vrcp.pop %v8218
  %v8220 = vmul.f32 1.0, %v8219
  %v8221 = vtanh.pop %v8207
  %v8222 = vxor.u32 %v8208, 2147483648
  %v8223 = vmul.f32 %v8222, 1.442695
  %v8224 = vpow.pop %v8223
  %v8225 = vadd.f32 %v8224, 1.0
  %v8226 = vrcp.pop %v8225
  %v8227 = vmul.f32 1.0, %v8226
  %v8228 = vmul.f32 %v8220, %v8115
  %v8229 = vmul.f32 %v8214, %v8221
  %v8230 = vadd.f32 %v8228, %v8229
  %v8231 = vtanh.pop %v8230
  %v8232 = vmul.f32 %v8227, %v8231
  %v8233 = vld [vmem:[#allocation4 + $0x1c0] sm:$0xff]
  %v8234 = vld [vmem:[#allocation4 + $0x1c8] sm:$0xff]
  %v8235 = vld [vmem:[#allocation4 + $0x1d0] sm:$0xff]
  %v8236 = vld [vmem:[#allocation4 + $0x1d8] sm:$0xff]
  %v8237 = vpack.c.bf16 %v8232, %v8232
  %8238 = vmatprep.subr.bf16.mxu0 %v7402
  %8239 = vmatpush1.bf16.msra.mxu0 %v7401
  %8240 = vmatprep.subr.bf16.mxu0 %v7406
  %8241 = vmatpush1.bf16.msra.mxu0 %v7405
  %8242 = vmatprep.subr.bf16.mxu0 %v7410
  %8243 = vmatpush1.bf16.msra.mxu0 %v7409
  %8244 = vmatprep.subr.bf16.mxu0 %v7414
  %8245 = vmatpush1.bf16.msra.mxu0 %v7413
  %8246 = vmatprep.subr.bf16.mxu0 %v7418
  %8247 = vmatpush1.bf16.msra.mxu0 %v7417
  %8248 = vmatprep.subr.bf16.mxu0 %v7422
  %8249 = vmatpush1.bf16.msra.mxu0 %v7421
  %8250 = vmatprep.subr.bf16.mxu0 %v7426
  %8251 = vmatpush1.bf16.msra.mxu0 %v7425
  %8252 = vmatprep.subr.bf16.mxu0 %v7430
  %8253 = vmatpush1.bf16.msra.mxu0 %v7429
  %8254 = vmatprep.subr.bf16.mxu0 0
  %8255 = vmatpush1.bf16.msra.mxu0 0
  %8256 = vmatprep.subr.bf16.mxu0 0
  %8257 = vmatpush1.bf16.msra.mxu0 0
  %8258 = vmatprep.subr.bf16.mxu0 0
  %8259 = vmatpush1.bf16.msra.mxu0 0
  %8260 = vmatprep.subr.bf16.mxu0 0
  %8261 = vmatpush1.bf16.msra.mxu0 0
  %8262 = vmatprep.subr.bf16.mxu0 0
  %8263 = vmatpush1.bf16.msra.mxu0 0
  %8264 = vmatprep.subr.bf16.mxu0 0
  %8265 = vmatpush1.bf16.msra.mxu0 0
  %8266 = vmatprep.subr.bf16.mxu0 0
  %8267 = vmatpush1.bf16.msra.mxu0 0
  %8268 = vmatprep.subr.bf16.mxu0 0
  %8269 = vmatpush1.bf16.msra.mxu0 0
  %8270 = vmatprep.mubr.bf16.mxu0 0
  %8271 = vmatmul.mubr.bf16.gmra.mrb[0].mxu0 %v8237
  %v8272 = vpop.f32.mrb[0].mxu0
  %v8273 = vadd.f32 0.0, %v8272
  %v8274 = vpop.f32.mrb[0].mxu0
  %v8275 = vadd.f32 0.0, %v8274
  %v8276 = vpop.f32.mrb[0].mxu0
  %v8277 = vpop.f32.mrb[0].mxu0
  %8278 = vdwg.mxu0
  %8279 = vmatprep.subr.bf16.mxu0 %v7404
  %8280 = vmatpush1.bf16.msra.mxu0 %v7403
  %8281 = vmatprep.subr.bf16.mxu0 %v7408
  %8282 = vmatpush1.bf16.msra.mxu0 %v7407
  %8283 = vmatprep.subr.bf16.mxu0 %v7412
  %8284 = vmatpush1.bf16.msra.mxu0 %v7411
  %8285 = vmatprep.subr.bf16.mxu0 %v7416
  %8286 = vmatpush1.bf16.msra.mxu0 %v7415
  %8287 = vmatprep.subr.bf16.mxu0 %v7420
  %8288 = vmatpush1.bf16.msra.mxu0 %v7419
  %8289 = vmatprep.subr.bf16.mxu0 %v7424
  %8290 = vmatpush1.bf16.msra.mxu0 %v7423
  %8291 = vmatprep.subr.bf16.mxu0 %v7428
  %8292 = vmatpush1.bf16.msra.mxu0 %v7427
  %8293 = vmatprep.subr.bf16.mxu0 %v7432
  %8294 = vmatpush1.bf16.msra.mxu0 %v7431
  %8295 = vmatprep.subr.bf16.mxu0 0
  %8296 = vmatpush1.bf16.msra.mxu0 0
  %8297 = vmatprep.subr.bf16.mxu0 0
  %8298 = vmatpush1.bf16.msra.mxu0 0
  %8299 = vmatprep.subr.bf16.mxu0 0
  %8300 = vmatpush1.bf16.msra.mxu0 0
  %8301 = vmatprep.subr.bf16.mxu0 0
  %8302 = vmatpush1.bf16.msra.mxu0 0
  %8303 = vmatprep.subr.bf16.mxu0 0
  %8304 = vmatpush1.bf16.msra.mxu0 0
  %8305 = vmatprep.subr.bf16.mxu0 0
  %8306 = vmatpush1.bf16.msra.mxu0 0
  %8307 = vmatprep.subr.bf16.mxu0 0
  %8308 = vmatpush1.bf16.msra.mxu0 0
  %8309 = vmatprep.subr.bf16.mxu0 0
  %8310 = vmatpush1.bf16.msra.mxu0 0
  %8311 = vmatprep.mubr.bf16.mxu0 0
  %8312 = vmatmul.mubr.bf16.gmra.mrb[0].mxu0 %v8237
  %v8313 = vpop.f32.mrb[0].mxu0
  %v8314 = vadd.f32 0.0, %v8313
  %v8315 = vpop.f32.mrb[0].mxu0
  %v8316 = vadd.f32 0.0, %v8315
  %v8317 = vpop.f32.mrb[0].mxu0
  %v8318 = vpop.f32.mrb[0].mxu0
  %8319 = vdwg.mxu0
  %v8320 = vadd.f32 %v8233, %v8273
  %v8321 = vadd.f32 %v8234, %v8275
  %v8322 = vadd.f32 %v8235, %v8314
  %v8323 = vadd.f32 %v8236, %v8316
  %v8324 = vxor.u32 %v8320, 2147483648
  %v8325 = vmul.f32 %v8324, 1.442695
  %v8326 = vpow.pop %v8325
  %v8327 = vadd.f32 %v8326, 1.0
  %v8328 = vrcp.pop %v8327
  %v8329 = vmul.f32 1.0, %v8328
  %v8330 = vxor.u32 %v8321, 2147483648
  %v8331 = vmul.f32 %v8330, 1.442695
  %v8332 = vpow.pop %v8331
  %v8333 = vadd.f32 %v8332, 1.0
  %v8334 = vrcp.pop %v8333
  %v8335 = vmul.f32 1.0, %v8334
  %v8336 = vtanh.pop %v8322
  %v8337 = vxor.u32 %v8323, 2147483648
  %v8338 = vmul.f32 %v8337, 1.442695
  %v8339 = vpow.pop %v8338
  %v8340 = vadd.f32 %v8339, 1.0
  %v8341 = vrcp.pop %v8340
  %v8342 = vmul.f32 1.0, %v8341
  %v8343 = vmul.f32 %v8335, %v8230
  %v8344 = vmul.f32 %v8329, %v8336
  %v8345 = vadd.f32 %v8343, %v8344
  %v8346 = vtanh.pop %v8345
  %v8347 = vmul.f32 %v8342, %v8346
  %v8348 = vld [vmem:[#allocation4 + $0x1e0] sm:$0xff]
  %v8349 = vld [vmem:[#allocation4 + $0x1e8] sm:$0xff]
  %v8350 = vld [vmem:[#allocation4 + $0x1f0] sm:$0xff]
  %v8351 = vld [vmem:[#allocation4 + $0x1f8] sm:$0xff]
  %v8352 = vxor.u32 %v8348, 2147483648
  %v8353 = vmul.f32 %v8352, 1.442695
  %v8354 = vpow.pop %v8353
  %v8355 = vadd.f32 %v8354, 1.0
  %v8356 = vrcp.pop %v8355
  %v8357 = vmul.f32 1.0, %v8356
  %v8358 = vxor.u32 %v8349, 2147483648
  %v8359 = vmul.f32 %v8358, 1.442695
  %v8360 = vpow.pop %v8359
  %v8361 = vadd.f32 %v8360, 1.0
  %v8362 = vrcp.pop %v8361
  %v8363 = vmul.f32 1.0, %v8362
  %v8364 = vtanh.pop %v8350
  %v8365 = vxor.u32 %v8351, 2147483648
  %v8366 = vmul.f32 %v8365, 1.442695
  %v8367 = vpow.pop %v8366
  %v8368 = vadd.f32 %v8367, 1.0
  %v8369 = vrcp.pop %v8368
  %v8370 = vmul.f32 1.0, %v8369
  %v8371 = vmul.f32 %v8363, 0.0
  %v8372 = vmul.f32 %v8357, %v8364
  %v8373 = vadd.f32 %v8371, %v8372
  %v8374 = vtanh.pop %v8373
  %v8375 = vmul.f32 %v8370, %v8374
  %v8376 = vpack.c.bf16 %v8347, %v8347
  %v8377 = vld [vmem:[%s8] sm:$0xf]
  %v8378 = vld [vmem:[%s8 + $0x4] sm:$0xf]
  %v8379 = vld [vmem:[%s8 + $0x8] sm:$0xf]
  %v8380 = vld [vmem:[%s8 + $0xc] sm:$0xf]
  %v8381 = vld [vmem:[%s8 + $0x10] sm:$0xf]
  %v8382 = vld [vmem:[%s8 + $0x14] sm:$0xf]
  %v8383 = vld [vmem:[%s8 + $0x18] sm:$0xf]
  %v8384 = vld [vmem:[%s8 + $0x1c] sm:$0xf]
  %v8385 = vld [vmem:[%s8 + $0x20] sm:$0xf]
  %v8386 = vld [vmem:[%s8 + $0x24] sm:$0xf]
  %v8387 = vld [vmem:[%s8 + $0x28] sm:$0xf]
  %v8388 = vld [vmem:[%s8 + $0x2c] sm:$0xf]
  %v8389 = vld [vmem:[%s8 + $0x30] sm:$0xf]
  %v8390 = vld [vmem:[%s8 + $0x34] sm:$0xf]
  %v8391 = vld [vmem:[%s8 + $0x38] sm:$0xf]
  %v8392 = vld [vmem:[%s8 + $0x3c] sm:$0xf]
  %v8393 = vpack.c.bf16 %v8375, %v8375
  %v8394 = vld [vmem:[%s8 + $0x40] sm:$0xf]
  %v8395 = vld [vmem:[%s8 + $0x44] sm:$0xf]
  %v8396 = vld [vmem:[%s8 + $0x48] sm:$0xf]
  %v8397 = vld [vmem:[%s8 + $0x4c] sm:$0xf]
  %v8398 = vld [vmem:[%s8 + $0x50] sm:$0xf]
  %v8399 = vld [vmem:[%s8 + $0x54] sm:$0xf]
  %v8400 = vld [vmem:[%s8 + $0x58] sm:$0xf]
  %v8401 = vld [vmem:[%s8 + $0x5c] sm:$0xf]
  %v8402 = vld [vmem:[%s8 + $0x60] sm:$0xf]
  %v8403 = vld [vmem:[%s8 + $0x64] sm:$0xf]
  %v8404 = vld [vmem:[%s8 + $0x68] sm:$0xf]
  %v8405 = vld [vmem:[%s8 + $0x6c] sm:$0xf]
  %v8406 = vld [vmem:[%s8 + $0x70] sm:$0xf]
  %v8407 = vld [vmem:[%s8 + $0x74] sm:$0xf]
  %v8408 = vld [vmem:[%s8 + $0x78] sm:$0xf]
  %v8409 = vld [vmem:[%s8 + $0x7c] sm:$0xf]
  %v8426 = vunpack.c.l.b16 %v8394
  %v8427 = vunpack.c.l.b16 %v8395
  %v8428 = vunpack.c.l.b16 %v8396
  %v8429 = vunpack.c.l.b16 %v8397
  %v8430 = vunpack.c.l.b16 %v8398
  %v8431 = vunpack.c.l.b16 %v8399
  %v8432 = vunpack.c.l.b16 %v8400
  %v8433 = vunpack.c.l.b16 %v8401
  %v8434 = vunpack.c.l.b16 %v8402
  %v8435 = vunpack.c.l.b16 %v8403
  %v8436 = vunpack.c.l.b16 %v8404
  %v8437 = vunpack.c.l.b16 %v8405
  %v8438 = vunpack.c.l.b16 %v8406
  %v8439 = vunpack.c.l.b16 %v8407
  %v8440 = vunpack.c.l.b16 %v8408
  %v8441 = vunpack.c.l.b16 %v8409
  %v8442 = vpack.c.b16 %v8427, %v8426
  %v8443 = vpack.c.b16 %v8429, %v8428
  %v8444 = vpack.c.b16 %v8431, %v8430
  %v8445 = vpack.c.b16 %v8433, %v8432
  %v8446 = vpack.c.b16 %v8435, %v8434
  %v8447 = vpack.c.b16 %v8437, %v8436
  %v8448 = vpack.c.b16 %v8439, %v8438
  %v8449 = vpack.c.b16 %v8441, %v8440
  %8458 = vmatprep.subr.bf16.mxu0 0
  %8459 = vmatpush1.bf16.msra.mxu0 %v8442
  %8460 = vmatprep.subr.bf16.mxu0 0
  %8461 = vmatpush1.bf16.msra.mxu0 %v8443
  %8462 = vmatprep.subr.bf16.mxu0 0
  %8463 = vmatpush1.bf16.msra.mxu0 %v8444
  %8464 = vmatprep.subr.bf16.mxu0 0
  %8465 = vmatpush1.bf16.msra.mxu0 %v8445
  %8466 = vmatprep.subr.bf16.mxu0 0
  %8467 = vmatpush1.bf16.msra.mxu0 %v8446
  %8468 = vmatprep.subr.bf16.mxu0 0
  %8469 = vmatpush1.bf16.msra.mxu0 %v8447
  %8470 = vmatprep.subr.bf16.mxu0 0
  %8471 = vmatpush1.bf16.msra.mxu0 %v8448
  %8472 = vmatprep.subr.bf16.mxu0 0
  %8473 = vmatpush1.bf16.msra.mxu0 %v8449
  %8474 = vmatprep.subr.bf16.mxu0 0
  %8475 = vmatpush1.bf16.msra.mxu0 0
  %8476 = vmatprep.subr.bf16.mxu0 0
  %8477 = vmatpush1.bf16.msra.mxu0 0
  %8478 = vmatprep.subr.bf16.mxu0 0
  %8479 = vmatpush1.bf16.msra.mxu0 0
  %8480 = vmatprep.subr.bf16.mxu0 0
  %8481 = vmatpush1.bf16.msra.mxu0 0
  %8482 = vmatprep.subr.bf16.mxu0 0
  %8483 = vmatpush1.bf16.msra.mxu0 0
  %8484 = vmatprep.subr.bf16.mxu0 0
  %8485 = vmatpush1.bf16.msra.mxu0 0
  %8486 = vmatprep.subr.bf16.mxu0 0
  %8487 = vmatpush1.bf16.msra.mxu0 0
  %8488 = vmatprep.subr.bf16.mxu0 0
  %8489 = vmatpush1.bf16.msra.mxu0 0
  %8490 = vmatprep.mubr.bf16.mxu0 0
  %8491 = vmatmul.mubr.bf16.gmra.mrb[0].mxu0 %v8393
  %v8492 = vpop.f32.mrb[0].mxu0
  %v8493 = vadd.f32 0.0, %v8492
  %v8494 = vpop.f32.mrb[0].mxu0
  %v8495 = vpop.f32.mrb[0].mxu0
  %v8496 = vpop.f32.mrb[0].mxu0
  %8497 = vdwg.mxu0
  %v8514 = vunpack.c.l.b16 %v8377
  %v8515 = vunpack.c.l.b16 %v8378
  %v8516 = vunpack.c.l.b16 %v8379
  %v8517 = vunpack.c.l.b16 %v8380
  %v8518 = vunpack.c.l.b16 %v8381
  %v8519 = vunpack.c.l.b16 %v8382
  %v8520 = vunpack.c.l.b16 %v8383
  %v8521 = vunpack.c.l.b16 %v8384
  %v8522 = vunpack.c.l.b16 %v8385
  %v8523 = vunpack.c.l.b16 %v8386
  %v8524 = vunpack.c.l.b16 %v8387
  %v8525 = vunpack.c.l.b16 %v8388
  %v8526 = vunpack.c.l.b16 %v8389
  %v8527 = vunpack.c.l.b16 %v8390
  %v8528 = vunpack.c.l.b16 %v8391
  %v8529 = vunpack.c.l.b16 %v8392
  %v8530 = vpack.c.b16 %v8515, %v8514
  %v8531 = vpack.c.b16 %v8517, %v8516
  %v8532 = vpack.c.b16 %v8519, %v8518
  %v8533 = vpack.c.b16 %v8521, %v8520
  %v8534 = vpack.c.b16 %v8523, %v8522
  %v8535 = vpack.c.b16 %v8525, %v8524
  %v8536 = vpack.c.b16 %v8527, %v8526
  %v8537 = vpack.c.b16 %v8529, %v8528
  %8546 = vmatprep.subr.bf16.mxu0 0
  %8547 = vmatpush1.bf16.msra.mxu0 %v8530
  %8548 = vmatprep.subr.bf16.mxu0 0
  %8549 = vmatpush1.bf16.msra.mxu0 %v8531
  %8550 = vmatprep.subr.bf16.mxu0 0
  %8551 = vmatpush1.bf16.msra.mxu0 %v8532
  %8552 = vmatprep.subr.bf16.mxu0 0
  %8553 = vmatpush1.bf16.msra.mxu0 %v8533
  %8554 = vmatprep.subr.bf16.mxu0 0
  %8555 = vmatpush1.bf16.msra.mxu0 %v8534
  %8556 = vmatprep.subr.bf16.mxu0 0
  %8557 = vmatpush1.bf16.msra.mxu0 %v8535
  %8558 = vmatprep.subr.bf16.mxu0 0
  %8559 = vmatpush1.bf16.msra.mxu0 %v8536
  %8560 = vmatprep.subr.bf16.mxu0 0
  %8561 = vmatpush1.bf16.msra.mxu0 %v8537
  %8562 = vmatprep.subr.bf16.mxu0 0
  %8563 = vmatpush1.bf16.msra.mxu0 0
  %8564 = vmatprep.subr.bf16.mxu0 0
  %8565 = vmatpush1.bf16.msra.mxu0 0
  %8566 = vmatprep.subr.bf16.mxu0 0
  %8567 = vmatpush1.bf16.msra.mxu0 0
  %8568 = vmatprep.subr.bf16.mxu0 0
  %8569 = vmatpush1.bf16.msra.mxu0 0
  %8570 = vmatprep.subr.bf16.mxu0 0
  %8571 = vmatpush1.bf16.msra.mxu0 0
  %8572 = vmatprep.subr.bf16.mxu0 0
  %8573 = vmatpush1.bf16.msra.mxu0 0
  %8574 = vmatprep.subr.bf16.mxu0 0
  %8575 = vmatpush1.bf16.msra.mxu0 0
  %8576 = vmatprep.subr.bf16.mxu0 0
  %8577 = vmatpush1.bf16.msra.mxu0 0
  %8578 = vmatprep.mubr.bf16.mxu0 0
  %8579 = vmatmul.mubr.bf16.gmra.mrb[0].mxu0 %v8376
  %v8580 = vpop.f32.mrb[0].mxu0
  %v8581 = vadd.f32 %v8493, %v8580
  %v8582 = vpop.f32.mrb[0].mxu0
  %v8583 = vpop.f32.mrb[0].mxu0
  %v8584 = vpop.f32.mrb[0].mxu0
  %8585 = vdwg.mxu0
  %v8586 = vld [vmem:[%s9] sm:$0x1]
  %v8588 = vlaneseq
  %v8589 = vshrl.u32 %v8588, 7
  %v8590 = vsub.s32 0, %v8589
  %v8591 = vrot.slane %v8586, %v8590
  %v8593 = vadd.f32 %v8581, %v8591
  %vm8594 = vcmask 31744
  %8595 = vst.msk [vmem:[%s10] sm:$0xff] %vm8594, %v8593
  // Predicated region
  $region108: #{lstm_model_forward.1} parent=0 // pred_check
    _
  $region109: #{lstm_model_forward.1} parent=0 // pred_check_branch
    %8597 = sbr.rel (0) target = $region111
  $region110: #{lstm_model_forward.1} parent=0 // pred_region
    _
  $region111: #{lstm_model_forward.1} parent=0 // pred_fallthru
    _
  // Predicated region
  $region112: #{lstm_model_forward.1} parent=0 // pred_check
    _
  $region113: #{lstm_model_forward.1} parent=0 // pred_check_branch
    %8599 = sbr.rel (0) target = $region115
  $region114: #{lstm_model_forward.1} parent=0 // pred_region
    _
  $region115: #{lstm_model_forward.1} parent=0 // pred_fallthru
    _
  %8600 = vsyncmov [#allocation7]
  %s8601 = vpop.sfrf %8600
  %p8602 = scmp.eq.s32.totalorder %s8601, 0
  %p8603 = pneg %p8602
  %8605 = shalt.err (%p8603)
  %s8606 = scalar_lea.sflag [#allocation7], 1
  %8607 = vsyncmov %s8606
  %s8608 = vpop.sfrf %8607
  %p8609 = scmp.eq.s32.totalorder %s8608, 0
  %p8610 = pneg %p8609
  %8612 = shalt.err (%p8610)

</llo_original>
